<compile_context>
chip_gen: v5e
topology: v5e:2x2
jax: 0.10.0
libtpu: 0.0.40
codegen_flags: <defaults>
</compile_context>

<pallas_src>
import functools

import numpy as np
import jax
import jax.numpy as jnp
from jax.experimental import pallas as pl
from jax.experimental.pallas import tpu as pltpu


# ----------------------------------------------------------------------------
# Compiler params helper (explicit scoped-VMEM limit, review item)
# ----------------------------------------------------------------------------
def _cparams(semantics, vmem_bytes):
    return pltpu.CompilerParams(
        dimension_semantics=semantics,
        vmem_limit_bytes=int(min(64 * 2**20, max(32 * 2**20, vmem_bytes))),
    )


# ----------------------------------------------------------------------------
# Resampling matrices: reflect-pad + [1,4,6,4,1] Gaussian, decimate / polyphase
# upsample, expressed as small dense matrices (run on the MXU inside kernels).
# Entries are derived directly from the PyTorch reference semantics
# (pad(reflect,2) -> conv -> [::2]   and   zero-stuff*4 -> pad(reflect,2) -> conv).
# ----------------------------------------------------------------------------
_G1 = (1.0, 4.0, 6.0, 4.0, 1.0)


def _reflect(i, n):
    if i < 0:
        return -i
    if i >= n:
        return 2 * (n - 1) - i
    return i


@functools.lru_cache(maxsize=None)
def _down_matrix(n):
    """(n//2, n): per-axis reflect-pad(2) + g1/16 blur + stride-2 decimation."""
    m = n // 2
    A = np.zeros((m, n), dtype=np.float64)
    for a in range(m):
        for i, g in enumerate(_G1):
            A[a, _reflect(2 * a + i - 2, n)] += g / 16.0
    return A.astype(np.float32)


@functools.lru_cache(maxsize=None)
def _up_matrix(n):
    """(n, n//2): per-axis polyphase upsample of the reference transposed conv.

    Matches zero-stuff(*4) -> reflect-pad(2) -> g1 blur exactly (reflection of
    the stuffed grid => reflect at the top edge, replicate at the bottom edge);
    the global *4/256 is split as (2/16) per axis.
    """
    m = n // 2
    A = np.zeros((n, m), dtype=np.float64)
    for y in range(n):
        for i, g in enumerate(_G1):
            s = _reflect(y + i - 2, n)
            if s % 2 == 0:                       # odd stuffed positions are zero
                A[y, s // 2] += g * 2.0 / 16.0
    return A.astype(np.float32)


def _resample_matrices(Hc, Wc):
    adn = jnp.asarray(_down_matrix(Hc))          # (h,  Hc)  left  (rows)
    bdnT = jnp.asarray(_down_matrix(Wc).T)       # (Wc, w)   right (cols)
    aup = jnp.asarray(_up_matrix(Hc))            # (Hc, h)   left  (rows)
    bupT = jnp.asarray(_up_matrix(Wc).T)         # (w,  Wc)  right (cols)
    return adn, bdnT, aup, bupT


# ----------------------------------------------------------------------------
# Kernel 1: fused pixel losses (gradient penalty + unknown/known masked L1)
# ----------------------------------------------------------------------------
def _pixel_losses_kernel(p_ref, t_ref, sm_ref, out_ref, pp_scr, tp_scr):
    """Per-image partial sums.  Blocks are (1, H, W); out block is (1, 5, 128).

    out lanes [*, k, 0]:
      0: sum (|dpx-dgx| + |dpy-dgy| + 0.01|dpx| + 0.01|dpy|) * sm
      1: sum sm
      2: sum |p - t| * sm
      3: sum |p - t| * (sm == 0)
      4: sum (sm == 0)
    """
    _, H, W = p_ref.shape

    # In-kernel zero padding (conv2d padding=1) — no host jnp.pad HBM round trip.
    pp_scr[...] = jnp.zeros_like(pp_scr)
    tp_scr[...] = jnp.zeros_like(tp_scr)
    pp_scr[:, 1:H + 1, 1:W + 1] = p_ref[...].astype(jnp.float32)
    tp_scr[:, 1:H + 1, 1:W + 1] = t_ref[...].astype(jnp.float32)
    pp = pp_scr[...]
    tp = tp_scr[...]
    sm = sm_ref[...].astype(jnp.float32)

    # Separable Sobel:  Sx = [1,2,1]^T x [-1,0,1],   Sy = [-1,0,1]^T x [1,2,1]
    vs_p = pp[:, 0:H, :] + 2.0 * pp[:, 1:H + 1, :] + pp[:, 2:H + 2, :]
    vd_p = pp[:, 2:H + 2, :] - pp[:, 0:H, :]
    vs_t = tp[:, 0:H, :] + 2.0 * tp[:, 1:H + 1, :] + tp[:, 2:H + 2, :]
    vd_t = tp[:, 2:H + 2, :] - tp[:, 0:H, :]

    dpx = vs_p[:, :, 2:W + 2] - vs_p[:, :, 0:W]
    dgx = vs_t[:, :, 2:W + 2] - vs_t[:, :, 0:W]
    dpy = vd_p[:, :, 0:W] + 2.0 * vd_p[:, :, 1:W + 1] + vd_p[:, :, 2:W + 2]
    dgy = vd_t[:, :, 0:W] + 2.0 * vd_t[:, :, 1:W + 1] + vd_t[:, :, 2:W + 2]

    # Single weighted reduction for the whole gradient penalty (review item).
    grad_w = (jnp.abs(dpx - dgx) + jnp.abs(dpy - dgy)
              + 0.01 * jnp.abs(dpx) + 0.01 * jnp.abs(dpy)) * sm

    p = p_ref[...].astype(jnp.float32)
    t = t_ref[...].astype(jnp.float32)
    d = jnp.abs(p - t)
    known = (sm == 0.0).astype(jnp.float32)   # matches torch: new_map[sm == 0] = 1

    s0 = jnp.sum(grad_w)
    s1 = jnp.sum(sm)
    s2 = jnp.sum(d * sm)
    s3 = jnp.sum(d * known)
    s4 = jnp.sum(known)
    out_ref[...] = jnp.concatenate(
        [jnp.broadcast_to(s, (1, 1, 128)) for s in (s0, s1, s2, s3, s4)], axis=1)


def _pixel_loss_sums(sample_map, pred, true):
    """One launch shared by loss_gradient_penalty / unknown_l1 / known_l1."""
    B, C, H, W = pred.shape
    N = B * C
    p = pred.reshape(N, H, W)
    t = true.reshape(N, H, W)
    sm = sample_map.reshape(N, H, W)

    img_spec = pl.BlockSpec((1, H, W), lambda n: (n, 0, 0))
    out_spec = pl.BlockSpec((1, 5, 128), lambda n: (n, 0, 0))
    vmem = 4 * (3 * H * W * 2 + 2 * (H + 2) * (W + 2) + 12 * H * W)
    parts = pl.pallas_call(
        _pixel_losses_kernel,
        grid=(N,),
        in_specs=[img_spec, img_spec, img_spec],
        out_specs=out_spec,
        out_shape=jax.ShapeDtypeStruct((N, 5, 128), jnp.float32),
        scratch_shapes=[pltpu.VMEM((1, H + 2, W + 2), jnp.float32),
                        pltpu.VMEM((1, H + 2, W + 2), jnp.float32)],
        compiler_params=_cparams(("parallel",), vmem),
    )(p, t, sm)
    # Per-image partials summed in f32 outside the kernel (accuracy + megacore).
    return jnp.sum(parts[:, :, 0], axis=0)


# ----------------------------------------------------------------------------
# Kernel 2: one fused Laplacian-pyramid level
#   reads  cur_p, cur_t (N, Hc, Wc)
#   writes down_p, down_t (N, h, w)  and a per-block L1 partial sum
# ----------------------------------------------------------------------------
def _pyr_level_kernel(cp_ref, ct_ref, adn_ref, bdnT_ref, aup_ref, bupT_ref,
                      dp_ref, dt_ref, sum_ref):
    nb = cp_ref.shape[0]
    adn = adn_ref[...]
    bdnT = bdnT_ref[...]
    aup = aup_ref[...]
    bupT = bupT_ref[...]

    total = jnp.float32(0.0)
    for n in range(nb):                               # static unroll over the block
        cp = cp_ref[n].astype(jnp.float32)            # (Hc, Wc)
        ct = ct_ref[n].astype(jnp.float32)
        # downsample: blur + decimate as two small matmuls (MXU, no strided ops)
        dp = jnp.dot(adn, jnp.dot(cp, bdnT, preferred_element_type=jnp.float32),
                     preferred_element_type=jnp.float32)
        dt = jnp.dot(adn, jnp.dot(ct, bdnT, preferred_element_type=jnp.float32),
                     preferred_element_type=jnp.float32)
        dp_ref[n] = dp.astype(dp_ref.dtype)
        dt_ref[n] = dt.astype(dt_ref.dtype)
        # polyphase upsample (stays in VMEM — never written to HBM)
        up_p = jnp.dot(aup, jnp.dot(dp, bupT, preferred_element_type=jnp.float32),
                       preferred_element_type=jnp.float32)
        up_t = jnp.dot(aup, jnp.dot(dt, bupT, preferred_element_type=jnp.float32),
                       preferred_element_type=jnp.float32)
        res = (cp - up_p) - (ct - up_t)
        total = total + jnp.sum(jnp.abs(res))
    sum_ref[0] = jnp.broadcast_to(total, (1, 128))


def _pyr_level_pallas(cur_p, cur_t, mats):
    adn, bdnT, aup, bupT = mats
    N, Hc, Wc = cur_p.shape
    h, w = adn.shape[0], bdnT.shape[1]
    # Small levels (< 128 lanes) fold the whole batch into one block so the
    # per-grid-step overhead is amortized (review: tiny-level handling).
    nb = N if Wc < 128 else 1
    G = N // nb

    img_spec = pl.BlockSpec((nb, Hc, Wc), lambda g: (g, 0, 0))
    dn_spec = pl.BlockSpec((nb, h, w), lambda g: (g, 0, 0))
    mat_specs = [pl.BlockSpec(m.shape, lambda g: (0, 0)) for m in mats]
    sum_spec = pl.BlockSpec((1, 1, 128), lambda g: (g, 0, 0))

    vmem = 4 * nb * (2 * Hc * Wc * 2 + 2 * h * w * 2 + 8 * Hc * Wc) + 16 * Hc * Wc
    down_p, down_t, part = pl.pallas_call(
        _pyr_level_kernel,
        grid=(G,),
        in_specs=[img_spec, img_spec] + mat_specs,
        out_specs=(dn_spec, dn_spec, sum_spec),
        out_shape=(jax.ShapeDtypeStruct((N, h, w), cur_p.dtype),
                   jax.ShapeDtypeStruct((N, h, w), cur_t.dtype),
                   jax.ShapeDtypeStruct((G, 1, 128), jnp.float32)),
        compiler_params=_cparams(("parallel",), vmem),
    )(cur_p, cur_t, adn, bdnT, aup, bupT)
    return down_p, down_t, jnp.sum(part[:, 0, 0])


def _pyr_level_xla(cur_p, cur_t, mats):
    """Plain-XLA level for the tiny tail levels (identical math, negligible work)."""
    adn, bdnT, aup, bupT = mats

    def down(x):
        return jnp.einsum('ah,nhb->nab', adn, jnp.einsum('nhw,wb->nhb', x, bdnT))

    def up(x):
        return jnp.einsum('yh,nhx->nyx', aup, jnp.einsum('nhw,wx->nhx', x, bupT))

    dp, dt = down(cur_p), down(cur_t)
    res = (cur_p - up(dp)) - (cur_t - up(dt))
    return dp, dt, jnp.sum(jnp.abs(res))


def laplacian_loss(pred, true, max_levels=5):
    B, C, H, W = pred.shape
    cur_p = pred.reshape(B * C, H, W)
    cur_t = true.reshape(B * C, H, W)
    loss = jnp.float32(0.0)
    for level in range(max_levels):
        Hc = cur_p.shape[1] - cur_p.shape[1] % 2
        Wc = cur_p.shape[2] - cur_p.shape[2] % 2
        cur_p = cur_p[:, :Hc, :Wc]
        cur_t = cur_t[:, :Hc, :Wc]
        mats = _resample_matrices(Hc, Wc)
        if min(Hc, Wc) >= 16:
            down_p, down_t, lvl_sum = _pyr_level_pallas(cur_p, cur_t, mats)
        else:
            # TODO(synk): sub-16px levels stay in XLA (per review); <12% lane use
            # in a Pallas block and the work is negligible at these sizes.
            down_p, down_t, lvl_sum = _pyr_level_xla(cur_p, cur_t, mats)
        loss = loss + (2.0 ** level) * (lvl_sum / float(cur_p.size))
        cur_p, cur_t = down_p, down_t
    return loss / float(max_levels)


# ----------------------------------------------------------------------------
# Criterion
# ----------------------------------------------------------------------------
class MattingCriterion:

    def __init__(self, *, losses):
        self.losses = list(losses)

    # Optional precomputed `sums` lets all three pixel losses share ONE launch.
    def loss_gradient_penalty(self, sample_map, preds, targets, sums=None):
        p, t = preds["phas"], targets["phas"]
        if sums is None:
            sums = _pixel_loss_sums(sample_map, p, t)
        n = float(p.size)
        # Matches the reference exactly: no guard on sum(sample_map) == 0
        # (the PyTorch code divides unguarded here as well).
        scale = sample_map.shape[0] * 262144.0 / sums[1]
        return dict(loss_gradient_penalty=(sums[0] / n) * scale)

    def loss_pha_laplacian(self, preds, targets):
        assert "phas" in preds and "phas" in targets
        return dict(loss_pha_laplacian=laplacian_loss(preds["phas"], targets["phas"]))

    def unknown_l1_loss(self, sample_map, preds, targets, sums=None):
        if sums is None:
            sums = _pixel_loss_sums(sample_map, preds["phas"], targets["phas"])
        n = float(preds["phas"].size)
        scale = sample_map.shape[0] * 262144.0 / sums[1]
        return dict(unknown_l1_loss=(sums[2] / n) * scale)

    def known_l1_loss(self, sample_map, preds, targets, sums=None):
        if sums is None:
            sums = _pixel_loss_sums(sample_map, preds["phas"], targets["phas"])
        n = float(preds["phas"].size)
        # Matches the reference: new_sample_map[sample_map == 0] = 1 and the
        # explicit scale = 0 guard (assumes a binary mask, as the reference does).
        denom = jnp.where(sums[4] == 0, jnp.float32(1.0), sums[4])
        scale = jnp.where(sums[4] == 0, jnp.float32(0.0),
                          sample_map.shape[0] * 262144.0 / denom)
        return dict(known_l1_loss=(sums[3] / n) * scale)

    # Fused evaluation: one pixel-sum kernel shared by three losses + pyramid.
    def get_losses(self, sample_map, preds, targets):
        sums = _pixel_loss_sums(sample_map, preds["phas"], targets["phas"])
        out = {}
        for name in self.losses:
            if name == "loss_gradient_penalty":
                out.update(self.loss_gradient_penalty(sample_map, preds, targets, sums=sums))
            elif name == "loss_pha_laplacian":
                out.update(self.loss_pha_laplacian(preds, targets))
            elif name == "unknown_l1_loss":
                out.update(self.unknown_l1_loss(sample_map, preds, targets, sums=sums))
            elif name == "known_l1_loss":
                out.update(self.known_l1_loss(sample_map, preds, targets, sums=sums))
        return out

    def forward(self, sample_map, preds, targets):
        # NOTE: the reference forward body is a stub returning an empty dict.
        return dict()

    __call__ = forward


# ----------------------------------------------------------------------------
if __name__ == "__main__":
    key = jax.random.PRNGKey(0)
    k1, k2, k3 = jax.random.split(key, 3)
    # 128 spatial keeps the 5-level pyramid meaningful (128->64->32->16->8) while
    # staying small; level 0 exercises the lane-dense path, levels 1-3 the
    # batch-folded path, level 4 the XLA tail path.
    B, C, H, W = 2, 1, 128, 128

    pred = jax.random.uniform(k1, (B, C, H, W), dtype=jnp.float32)
    true = jax.random.uniform(k2, (B, C, H, W), dtype=jnp.float32)
    sample_map = (jax.random.uniform(k3, (B, C, H, W)) > 0.5).astype(jnp.float32)

    crit = MattingCriterion(losses=["loss_gradient_penalty", "loss_pha_laplacian",
                                    "unknown_l1_loss", "known_l1_loss"])

    results = dict(crit.forward(sample_map, {"phas": pred}, {"phas": true}))  # == {}

    # Single jit over the whole criterion: every pallas_call is scheduled in one
    # executable, eliminating per-method dispatch overhead.
    fused_eval = jax.jit(lambda sm, p, t: crit.get_losses(sm, {"phas": p}, {"phas": t}))
    results.update(fused_eval(sample_map, pred, true))

    jax.block_until_ready(results)
    print("KERNEL_OK")
</pallas_src>

<mosaic_0001>
module attributes {stable_mosaic.version = 11 : i64} {
  func.func @_pyr_level_kernel(%arg0: i32, %arg1: memref<2x16x16xf32, #tpu.memory_space<vmem>>, %arg2: memref<2x16x16xf32, #tpu.memory_space<vmem>>, %arg3: memref<8x16xf32, #tpu.memory_space<vmem>>, %arg4: memref<16x8xf32, #tpu.memory_space<vmem>>, %arg5: memref<16x8xf32, #tpu.memory_space<vmem>>, %arg6: memref<8x16xf32, #tpu.memory_space<vmem>>, %arg7: memref<2x8x8xf32, #tpu.memory_space<vmem>>, %arg8: memref<2x8x8xf32, #tpu.memory_space<vmem>>, %arg9: memref<1x1x128xf32, #tpu.memory_space<vmem>>) attributes {dimension_semantics = [#tpu.dimension_semantics<parallel>], iteration_bounds = array<i64: 1>, scalar_prefetch = 0 : i64, scratch_operands = 0 : i64, tpu.core_type = #tpu.core_type<tc>, window_params = [{transform_indices = @transform_0, window_bounds = array<i64: 2, 16, 16>}, {transform_indices = @transform_1, window_bounds = array<i64: 2, 16, 16>}, {pipeline_mode = #tpu.pipeline_mode<synchronous>, transform_indices = @transform_2, window_bounds = array<i64: 8, 16>}, {pipeline_mode = #tpu.pipeline_mode<synchronous>, transform_indices = @transform_3, window_bounds = array<i64: 16, 8>}, {pipeline_mode = #tpu.pipeline_mode<synchronous>, transform_indices = @transform_4, window_bounds = array<i64: 16, 8>}, {pipeline_mode = #tpu.pipeline_mode<synchronous>, transform_indices = @transform_5, window_bounds = array<i64: 8, 16>}, {transform_indices = @transform_6, window_bounds = array<i64: 2, 8, 8>}, {transform_indices = @transform_7, window_bounds = array<i64: 2, 8, 8>}, {transform_indices = @transform_8, window_bounds = array<i64: 1, 1, 128>}]} {
    %c0 = arith.constant 0 : index
    %c0_0 = arith.constant 0 : index
    %0 = vector.load %arg3[%c0, %c0_0] : memref<8x16xf32, #tpu.memory_space<vmem>>, vector<8x16xf32>
    %c0_1 = arith.constant 0 : index
    %c0_2 = arith.constant 0 : index
    %1 = vector.load %arg4[%c0_1, %c0_2] : memref<16x8xf32, #tpu.memory_space<vmem>>, vector<16x8xf32>
    %c0_3 = arith.constant 0 : index
    %c0_4 = arith.constant 0 : index
    %2 = vector.load %arg5[%c0_3, %c0_4] : memref<16x8xf32, #tpu.memory_space<vmem>>, vector<16x8xf32>
    %c0_5 = arith.constant 0 : index
    %c0_6 = arith.constant 0 : index
    %3 = vector.load %arg6[%c0_5, %c0_6] : memref<8x16xf32, #tpu.memory_space<vmem>>, vector<8x16xf32>
    %c0_7 = arith.constant 0 : index
    %c0_8 = arith.constant 0 : index
    %c0_9 = arith.constant 0 : index
    %4 = vector.load %arg1[%c0_7, %c0_8, %c0_9] : memref<2x16x16xf32, #tpu.memory_space<vmem>>, vector<1x16x16xf32>
    %5 = vector.shape_cast %4 : vector<1x16x16xf32> to vector<16x16xf32>
    %c0_10 = arith.constant 0 : index
    %c0_11 = arith.constant 0 : index
    %c0_12 = arith.constant 0 : index
    %6 = vector.load %arg2[%c0_10, %c0_11, %c0_12] : memref<2x16x16xf32, #tpu.memory_space<vmem>>, vector<1x16x16xf32>
    %7 = vector.shape_cast %6 : vector<1x16x16xf32> to vector<16x16xf32>
    %cst = arith.constant dense<0.000000e+00> : vector<16x8xf32>
    %8 = tpu.matmul %5, %1, %cst {dimension_numbers = #tpu.dot_dimension_numbers<[1], [0], [0], [1], [0, 0, 1, 1], [], []>} : vector<16x16xf32>, vector<16x8xf32>, vector<16x8xf32> -> vector<16x8xf32>
    %cst_13 = arith.constant dense<0.000000e+00> : vector<8x8xf32>
    %9 = tpu.matmul %0, %8, %cst_13 {dimension_numbers = #tpu.dot_dimension_numbers<[1], [0], [0], [1], [0, 0, 1, 1], [], []>} : vector<8x16xf32>, vector<16x8xf32>, vector<8x8xf32> -> vector<8x8xf32>
    %cst_14 = arith.constant dense<0.000000e+00> : vector<16x8xf32>
    %10 = tpu.matmul %7, %1, %cst_14 {dimension_numbers = #tpu.dot_dimension_numbers<[1], [0], [0], [1], [0, 0, 1, 1], [], []>} : vector<16x16xf32>, vector<16x8xf32>, vector<16x8xf32> -> vector<16x8xf32>
    %cst_15 = arith.constant dense<0.000000e+00> : vector<8x8xf32>
    %11 = tpu.matmul %0, %10, %cst_15 {dimension_numbers = #tpu.dot_dimension_numbers<[1], [0], [0], [1], [0, 0, 1, 1], [], []>} : vector<8x16xf32>, vector<16x8xf32>, vector<8x8xf32> -> vector<8x8xf32>
    %c0_16 = arith.constant 0 : index
    %c0_17 = arith.constant 0 : index
    %c0_18 = arith.constant 0 : index
    %12 = vector.load %arg7[%c0_16, %c0_17, %c0_18] : memref<2x8x8xf32, #tpu.memory_space<vmem>>, vector<1x8x8xf32>
    %13 = vector.shape_cast %12 : vector<1x8x8xf32> to vector<8x8xf32>
    %14 = vector.shape_cast %9 : vector<8x8xf32> to vector<1x8x8xf32>
    tpu.vector_store %arg7[%c0_16, %c0_17, %c0_18], %14 {strides = array<i32>} : memref<2x8x8xf32, #tpu.memory_space<vmem>>, vector<1x8x8xf32>,
    %c0_19 = arith.constant 0 : index
    %c0_20 = arith.constant 0 : index
    %c0_21 = arith.constant 0 : index
    %15 = vector.load %arg8[%c0_19, %c0_20, %c0_21] : memref<2x8x8xf32, #tpu.memory_space<vmem>>, vector<1x8x8xf32>
    %16 = vector.shape_cast %15 : vector<1x8x8xf32> to vector<8x8xf32>
    %17 = vector.shape_cast %11 : vector<8x8xf32> to vector<1x8x8xf32>
    tpu.vector_store %arg8[%c0_19, %c0_20, %c0_21], %17 {strides = array<i32>} : memref<2x8x8xf32, #tpu.memory_space<vmem>>, vector<1x8x8xf32>,
    %cst_22 = arith.constant dense<0.000000e+00> : vector<8x16xf32>
    %18 = tpu.matmul %9, %3, %cst_22 {dimension_numbers = #tpu.dot_dimension_numbers<[1], [0], [0], [1], [0, 0, 1, 1], [], []>} : vector<8x8xf32>, vector<8x16xf32>, vector<8x16xf32> -> vector<8x16xf32>
    %cst_23 = arith.constant dense<0.000000e+00> : vector<16x16xf32>
    %19 = tpu.matmul %2, %18, %cst_23 {dimension_numbers = #tpu.dot_dimension_numbers<[1], [0], [0], [1], [0, 0, 1, 1], [], []>} : vector<16x8xf32>, vector<8x16xf32>, vector<16x16xf32> -> vector<16x16xf32>
    %cst_24 = arith.constant dense<0.000000e+00> : vector<8x16xf32>
    %20 = tpu.matmul %11, %3, %cst_24 {dimension_numbers = #tpu.dot_dimension_numbers<[1], [0], [0], [1], [0, 0, 1, 1], [], []>} : vector<8x8xf32>, vector<8x16xf32>, vector<8x16xf32> -> vector<8x16xf32>
    %cst_25 = arith.constant dense<0.000000e+00> : vector<16x16xf32>
    %21 = tpu.matmul %2, %20, %cst_25 {dimension_numbers = #tpu.dot_dimension_numbers<[1], [0], [0], [1], [0, 0, 1, 1], [], []>} : vector<16x8xf32>, vector<8x16xf32>, vector<16x16xf32> -> vector<16x16xf32>
    %22 = arith.subf %5, %19 : vector<16x16xf32>
    %23 = arith.subf %7, %21 : vector<16x16xf32>
    %24 = arith.subf %22, %23 : vector<16x16xf32>
    %25 = math.absf %24 : vector<16x16xf32>
    %26 = vector.shape_cast %25 : vector<16x16xf32> to vector<1x16x16xf32>
    %cst_26 = arith.constant dense<0.000000e+00> : vector<1xf32>
    %27 = vector.multi_reduction <add>, %26, %cst_26 [1, 2] : vector<1x16x16xf32> to vector<1xf32>
    %28 = vector.shape_cast %27 : vector<1xf32> to vector<1x1x1xf32>
    %29 = vector.extract %28[0, 0, 0] : f32 from vector<1x1x1xf32>
    %cst_27 = arith.constant 0.000000e+00 : f32
    %30 = arith.addf %cst_27, %29 : f32
    %c1 = arith.constant 1 : index
    %c0_28 = arith.constant 0 : index
    %c0_29 = arith.constant 0 : index
    %31 = vector.load %arg1[%c1, %c0_28, %c0_29] : memref<2x16x16xf32, #tpu.memory_space<vmem>>, vector<1x16x16xf32>
    %32 = vector.shape_cast %31 : vector<1x16x16xf32> to vector<16x16xf32>
    %c1_30 = arith.constant 1 : index
    %c0_31 = arith.constant 0 : index
    %c0_32 = arith.constant 0 : index
    %33 = vector.load %arg2[%c1_30, %c0_31, %c0_32] : memref<2x16x16xf32, #tpu.memory_space<vmem>>, vector<1x16x16xf32>
    %34 = vector.shape_cast %33 : vector<1x16x16xf32> to vector<16x16xf32>
    %cst_33 = arith.constant dense<0.000000e+00> : vector<16x8xf32>
    %35 = tpu.matmul %32, %1, %cst_33 {dimension_numbers = #tpu.dot_dimension_numbers<[1], [0], [0], [1], [0, 0, 1, 1], [], []>} : vector<16x16xf32>, vector<16x8xf32>, vector<16x8xf32> -> vector<16x8xf32>
    %cst_34 = arith.constant dense<0.000000e+00> : vector<8x8xf32>
    %36 = tpu.matmul %0, %35, %cst_34 {dimension_numbers = #tpu.dot_dimension_numbers<[1], [0], [0], [1], [0, 0, 1, 1], [], []>} : vector<8x16xf32>, vector<16x8xf32>, vector<8x8xf32> -> vector<8x8xf32>
    %cst_35 = arith.constant dense<0.000000e+00> : vector<16x8xf32>
    %37 = tpu.matmul %34, %1, %cst_35 {dimension_numbers = #tpu.dot_dimension_numbers<[1], [0], [0], [1], [0, 0, 1, 1], [], []>} : vector<16x16xf32>, vector<16x8xf32>, vector<16x8xf32> -> vector<16x8xf32>
    %cst_36 = arith.constant dense<0.000000e+00> : vector<8x8xf32>
    %38 = tpu.matmul %0, %37, %cst_36 {dimension_numbers = #tpu.dot_dimension_numbers<[1], [0], [0], [1], [0, 0, 1, 1], [], []>} : vector<8x16xf32>, vector<16x8xf32>, vector<8x8xf32> -> vector<8x8xf32>
    %c1_37 = arith.constant 1 : index
    %c0_38 = arith.constant 0 : index
    %c0_39 = arith.constant 0 : index
    %39 = vector.load %arg7[%c1_37, %c0_38, %c0_39] : memref<2x8x8xf32, #tpu.memory_space<vmem>>, vector<1x8x8xf32>
    %40 = vector.shape_cast %39 : vector<1x8x8xf32> to vector<8x8xf32>
    %41 = vector.shape_cast %36 : vector<8x8xf32> to vector<1x8x8xf32>
    tpu.vector_store %arg7[%c1_37, %c0_38, %c0_39], %41 {strides = array<i32>} : memref<2x8x8xf32, #tpu.memory_space<vmem>>, vector<1x8x8xf32>,
    %c1_40 = arith.constant 1 : index
    %c0_41 = arith.constant 0 : index
    %c0_42 = arith.constant 0 : index
    %42 = vector.load %arg8[%c1_40, %c0_41, %c0_42] : memref<2x8x8xf32, #tpu.memory_space<vmem>>, vector<1x8x8xf32>
    %43 = vector.shape_cast %42 : vector<1x8x8xf32> to vector<8x8xf32>
    %44 = vector.shape_cast %38 : vector<8x8xf32> to vector<1x8x8xf32>
    tpu.vector_store %arg8[%c1_40, %c0_41, %c0_42], %44 {strides = array<i32>} : memref<2x8x8xf32, #tpu.memory_space<vmem>>, vector<1x8x8xf32>,
    %cst_43 = arith.constant dense<0.000000e+00> : vector<8x16xf32>
    %45 = tpu.matmul %36, %3, %cst_43 {dimension_numbers = #tpu.dot_dimension_numbers<[1], [0], [0], [1], [0, 0, 1, 1], [], []>} : vector<8x8xf32>, vector<8x16xf32>, vector<8x16xf32> -> vector<8x16xf32>
    %cst_44 = arith.constant dense<0.000000e+00> : vector<16x16xf32>
    %46 = tpu.matmul %2, %45, %cst_44 {dimension_numbers = #tpu.dot_dimension_numbers<[1], [0], [0], [1], [0, 0, 1, 1], [], []>} : vector<16x8xf32>, vector<8x16xf32>, vector<16x16xf32> -> vector<16x16xf32>
    %cst_45 = arith.constant dense<0.000000e+00> : vector<8x16xf32>
    %47 = tpu.matmul %38, %3, %cst_45 {dimension_numbers = #tpu.dot_dimension_numbers<[1], [0], [0], [1], [0, 0, 1, 1], [], []>} : vector<8x8xf32>, vector<8x16xf32>, vector<8x16xf32> -> vector<8x16xf32>
    %cst_46 = arith.constant dense<0.000000e+00> : vector<16x16xf32>
    %48 = tpu.matmul %2, %47, %cst_46 {dimension_numbers = #tpu.dot_dimension_numbers<[1], [0], [0], [1], [0, 0, 1, 1], [], []>} : vector<16x8xf32>, vector<8x16xf32>, vector<16x16xf32> -> vector<16x16xf32>
    %49 = arith.subf %32, %46 : vector<16x16xf32>
    %50 = arith.subf %34, %48 : vector<16x16xf32>
    %51 = arith.subf %49, %50 : vector<16x16xf32>
    %52 = math.absf %51 : vector<16x16xf32>
    %53 = vector.shape_cast %52 : vector<16x16xf32> to vector<1x16x16xf32>
    %cst_47 = arith.constant dense<0.000000e+00> : vector<1xf32>
    %54 = vector.multi_reduction <add>, %53, %cst_47 [1, 2] : vector<1x16x16xf32> to vector<1xf32>
    %55 = vector.shape_cast %54 : vector<1xf32> to vector<1x1x1xf32>
    %56 = vector.extract %55[0, 0, 0] : f32 from vector<1x1x1xf32>
    %57 = arith.addf %30, %56 : f32
    %58 = vector.broadcast %57 : f32 to vector<1x128xf32>
    %c0_48 = arith.constant 0 : index
    %c0_49 = arith.constant 0 : index
    %c0_50 = arith.constant 0 : index
    %59 = vector.load %arg9[%c0_48, %c0_49, %c0_50] : memref<1x1x128xf32, #tpu.memory_space<vmem>>, vector<1x1x128xf32>
    %60 = vector.shape_cast %59 : vector<1x1x128xf32> to vector<1x128xf32>
    %61 = vector.shape_cast %58 : vector<1x128xf32> to vector<1x1x128xf32>
    tpu.vector_store %arg9[%c0_48, %c0_49, %c0_50], %61 {strides = array<i32>} : memref<1x1x128xf32, #tpu.memory_space<vmem>>, vector<1x1x128xf32>,
    return
  }
  func.func @transform_0(%arg0: i32) -> (i32, i32, i32) {
    %c0_i32 = arith.constant 0 : i32
    %c0_i32_0 = arith.constant 0 : i32
    %c0_i32_1 = arith.constant 0 : i32
    return %arg0, %c0_i32, %c0_i32_0 : i32, i32, i32
  }
  func.func @transform_1(%arg0: i32) -> (i32, i32, i32) {
    %c0_i32 = arith.constant 0 : i32
    %c0_i32_0 = arith.constant 0 : i32
    %c0_i32_1 = arith.constant 0 : i32
    return %arg0, %c0_i32, %c0_i32_0 : i32, i32, i32
  }
  func.func @transform_2(%arg0: i32) -> (i32, i32) {
    %c0_i32 = arith.constant 0 : i32
    %c0_i32_0 = arith.constant 0 : i32
    %c0_i32_1 = arith.constant 0 : i32
    return %c0_i32, %c0_i32_0 : i32, i32
  }
  func.func @transform_3(%arg0: i32) -> (i32, i32) {
    %c0_i32 = arith.constant 0 : i32
    %c0_i32_0 = arith.constant 0 : i32
    %c0_i32_1 = arith.constant 0 : i32
    return %c0_i32, %c0_i32_0 : i32, i32
  }
  func.func @transform_4(%arg0: i32) -> (i32, i32) {
    %c0_i32 = arith.constant 0 : i32
    %c0_i32_0 = arith.constant 0 : i32
    %c0_i32_1 = arith.constant 0 : i32
    return %c0_i32, %c0_i32_0 : i32, i32
  }
  func.func @transform_5(%arg0: i32) -> (i32, i32) {
    %c0_i32 = arith.constant 0 : i32
    %c0_i32_0 = arith.constant 0 : i32
    %c0_i32_1 = arith.constant 0 : i32
    return %c0_i32, %c0_i32_0 : i32, i32
  }
  func.func @transform_6(%arg0: i32) -> (i32, i32, i32) {
    %c0_i32 = arith.constant 0 : i32
    %c0_i32_0 = arith.constant 0 : i32
    %c0_i32_1 = arith.constant 0 : i32
    return %arg0, %c0_i32, %c0_i32_0 : i32, i32, i32
  }
  func.func @transform_7(%arg0: i32) -> (i32, i32, i32) {
    %c0_i32 = arith.constant 0 : i32
    %c0_i32_0 = arith.constant 0 : i32
    %c0_i32_1 = arith.constant 0 : i32
    return %arg0, %c0_i32, %c0_i32_0 : i32, i32, i32
  }
  func.func @transform_8(%arg0: i32) -> (i32, i32, i32) {
    %c0_i32 = arith.constant 0 : i32
    %c0_i32_0 = arith.constant 0 : i32
    %c0_i32_1 = arith.constant 0 : i32
    return %arg0, %c0_i32, %c0_i32_0 : i32, i32, i32
  }
}

module attributes {stable_mosaic.version = 11 : i64} {
  func.func @_pyr_level_kernel(%arg0: i32, %arg1: memref<2x32x32xf32, #tpu.memory_space<vmem>>, %arg2: memref<2x32x32xf32, #tpu.memory_space<vmem>>, %arg3: memref<16x32xf32, #tpu.memory_space<vmem>>, %arg4: memref<32x16xf32, #tpu.memory_space<vmem>>, %arg5: memref<32x16xf32, #tpu.memory_space<vmem>>, %arg6: memref<16x32xf32, #tpu.memory_space<vmem>>, %arg7: memref<2x16x16xf32, #tpu.memory_space<vmem>>, %arg8: memref<2x16x16xf32, #tpu.memory_space<vmem>>, %arg9: memref<1x1x128xf32, #tpu.memory_space<vmem>>) attributes {dimension_semantics = [#tpu.dimension_semantics<parallel>], iteration_bounds = array<i64: 1>, scalar_prefetch = 0 : i64, scratch_operands = 0 : i64, tpu.core_type = #tpu.core_type<tc>, window_params = [{transform_indices = @transform_0, window_bounds = array<i64: 2, 32, 32>}, {transform_indices = @transform_1, window_bounds = array<i64: 2, 32, 32>}, {pipeline_mode = #tpu.pipeline_mode<synchronous>, transform_indices = @transform_2, window_bounds = array<i64: 16, 32>}, {pipeline_mode = #tpu.pipeline_mode<synchronous>, transform_indices = @transform_3, window_bounds = array<i64: 32, 16>}, {pipeline_mode = #tpu.pipeline_mode<synchronous>, transform_indices = @transform_4, window_bounds = array<i64: 32, 16>}, {pipeline_mode = #tpu.pipeline_mode<synchronous>, transform_indices = @transform_5, window_bounds = array<i64: 16, 32>}, {transform_indices = @transform_6, window_bounds = array<i64: 2, 16, 16>}, {transform_indices = @transform_7, window_bounds = array<i64: 2, 16, 16>}, {transform_indices = @transform_8, window_bounds = array<i64: 1, 1, 128>}]} {
    %c0 = arith.constant 0 : index
    %c0_0 = arith.constant 0 : index
    %0 = vector.load %arg3[%c0, %c0_0] : memref<16x32xf32, #tpu.memory_space<vmem>>, vector<16x32xf32>
    %c0_1 = arith.constant 0 : index
    %c0_2 = arith.constant 0 : index
    %1 = vector.load %arg4[%c0_1, %c0_2] : memref<32x16xf32, #tpu.memory_space<vmem>>, vector<32x16xf32>
    %c0_3 = arith.constant 0 : index
    %c0_4 = arith.constant 0 : index
    %2 = vector.load %arg5[%c0_3, %c0_4] : memref<32x16xf32, #tpu.memory_space<vmem>>, vector<32x16xf32>
    %c0_5 = arith.constant 0 : index
    %c0_6 = arith.constant 0 : index
    %3 = vector.load %arg6[%c0_5, %c0_6] : memref<16x32xf32, #tpu.memory_space<vmem>>, vector<16x32xf32>
    %c0_7 = arith.constant 0 : index
    %c0_8 = arith.constant 0 : index
    %c0_9 = arith.constant 0 : index
    %4 = vector.load %arg1[%c0_7, %c0_8, %c0_9] : memref<2x32x32xf32, #tpu.memory_space<vmem>>, vector<1x32x32xf32>
    %5 = vector.shape_cast %4 : vector<1x32x32xf32> to vector<32x32xf32>
    %c0_10 = arith.constant 0 : index
    %c0_11 = arith.constant 0 : index
    %c0_12 = arith.constant 0 : index
    %6 = vector.load %arg2[%c0_10, %c0_11, %c0_12] : memref<2x32x32xf32, #tpu.memory_space<vmem>>, vector<1x32x32xf32>
    %7 = vector.shape_cast %6 : vector<1x32x32xf32> to vector<32x32xf32>
    %cst = arith.constant dense<0.000000e+00> : vector<32x16xf32>
    %8 = tpu.matmul %5, %1, %cst {dimension_numbers = #tpu.dot_dimension_numbers<[1], [0], [0], [1], [0, 0, 1, 1], [], []>} : vector<32x32xf32>, vector<32x16xf32>, vector<32x16xf32> -> vector<32x16xf32>
    %cst_13 = arith.constant dense<0.000000e+00> : vector<16x16xf32>
    %9 = tpu.matmul %0, %8, %cst_13 {dimension_numbers = #tpu.dot_dimension_numbers<[1], [0], [0], [1], [0, 0, 1, 1], [], []>} : vector<16x32xf32>, vector<32x16xf32>, vector<16x16xf32> -> vector<16x16xf32>
    %cst_14 = arith.constant dense<0.000000e+00> : vector<32x16xf32>
    %10 = tpu.matmul %7, %1, %cst_14 {dimension_numbers = #tpu.dot_dimension_numbers<[1], [0], [0], [1], [0, 0, 1, 1], [], []>} : vector<32x32xf32>, vector<32x16xf32>, vector<32x16xf32> -> vector<32x16xf32>
    %cst_15 = arith.constant dense<0.000000e+00> : vector<16x16xf32>
    %11 = tpu.matmul %0, %10, %cst_15 {dimension_numbers = #tpu.dot_dimension_numbers<[1], [0], [0], [1], [0, 0, 1, 1], [], []>} : vector<16x32xf32>, vector<32x16xf32>, vector<16x16xf32> -> vector<16x16xf32>
    %c0_16 = arith.constant 0 : index
    %c0_17 = arith.constant 0 : index
    %c0_18 = arith.constant 0 : index
    %12 = vector.load %arg7[%c0_16, %c0_17, %c0_18] : memref<2x16x16xf32, #tpu.memory_space<vmem>>, vector<1x16x16xf32>
    %13 = vector.shape_cast %12 : vector<1x16x16xf32> to vector<16x16xf32>
    %14 = vector.shape_cast %9 : vector<16x16xf32> to vector<1x16x16xf32>
    tpu.vector_store %arg7[%c0_16, %c0_17, %c0_18], %14 {strides = array<i32>} : memref<2x16x16xf32, #tpu.memory_space<vmem>>, vector<1x16x16xf32>,
    %c0_19 = arith.constant 0 : index
    %c0_20 = arith.constant 0 : index
    %c0_21 = arith.constant 0 : index
    %15 = vector.load %arg8[%c0_19, %c0_20, %c0_21] : memref<2x16x16xf32, #tpu.memory_space<vmem>>, vector<1x16x16xf32>
    %16 = vector.shape_cast %15 : vector<1x16x16xf32> to vector<16x16xf32>
    %17 = vector.shape_cast %11 : vector<16x16xf32> to vector<1x16x16xf32>
    tpu.vector_store %arg8[%c0_19, %c0_20, %c0_21], %17 {strides = array<i32>} : memref<2x16x16xf32, #tpu.memory_space<vmem>>, vector<1x16x16xf32>,
    %cst_22 = arith.constant dense<0.000000e+00> : vector<16x32xf32>
    %18 = tpu.matmul %9, %3, %cst_22 {dimension_numbers = #tpu.dot_dimension_numbers<[1], [0], [0], [1], [0, 0, 1, 1], [], []>} : vector<16x16xf32>, vector<16x32xf32>, vector<16x32xf32> -> vector<16x32xf32>
    %cst_23 = arith.constant dense<0.000000e+00> : vector<32x32xf32>
    %19 = tpu.matmul %2, %18, %cst_23 {dimension_numbers = #tpu.dot_dimension_numbers<[1], [0], [0], [1], [0, 0, 1, 1], [], []>} : vector<32x16xf32>, vector<16x32xf32>, vector<32x32xf32> -> vector<32x32xf32>
    %cst_24 = arith.constant dense<0.000000e+00> : vector<16x32xf32>
    %20 = tpu.matmul %11, %3, %cst_24 {dimension_numbers = #tpu.dot_dimension_numbers<[1], [0], [0], [1], [0, 0, 1, 1], [], []>} : vector<16x16xf32>, vector<16x32xf32>, vector<16x32xf32> -> vector<16x32xf32>
    %cst_25 = arith.constant dense<0.000000e+00> : vector<32x32xf32>
    %21 = tpu.matmul %2, %20, %cst_25 {dimension_numbers = #tpu.dot_dimension_numbers<[1], [0], [0], [1], [0, 0, 1, 1], [], []>} : vector<32x16xf32>, vector<16x32xf32>, vector<32x32xf32> -> vector<32x32xf32>
    %22 = arith.subf %5, %19 : vector<32x32xf32>
    %23 = arith.subf %7, %21 : vector<32x32xf32>
    %24 = arith.subf %22, %23 : vector<32x32xf32>
    %25 = math.absf %24 : vector<32x32xf32>
    %26 = vector.shape_cast %25 : vector<32x32xf32> to vector<1x32x32xf32>
    %cst_26 = arith.constant dense<0.000000e+00> : vector<1xf32>
    %27 = vector.multi_reduction <add>, %26, %cst_26 [1, 2] : vector<1x32x32xf32> to vector<1xf32>
    %28 = vector.shape_cast %27 : vector<1xf32> to vector<1x1x1xf32>
    %29 = vector.extract %28[0, 0, 0] : f32 from vector<1x1x1xf32>
    %cst_27 = arith.constant 0.000000e+00 : f32
    %30 = arith.addf %cst_27, %29 : f32
    %c1 = arith.constant 1 : index
    %c0_28 = arith.constant 0 : index
    %c0_29 = arith.constant 0 : index
    %31 = vector.load %arg1[%c1, %c0_28, %c0_29] : memref<2x32x32xf32, #tpu.memory_space<vmem>>, vector<1x32x32xf32>
    %32 = vector.shape_cast %31 : vector<1x32x32xf32> to vector<32x32xf32>
    %c1_30 = arith.constant 1 : index
    %c0_31 = arith.constant 0 : index
    %c0_32 = arith.constant 0 : index
    %33 = vector.load %arg2[%c1_30, %c0_31, %c0_32] : memref<2x32x32xf32, #tpu.memory_space<vmem>>, vector<1x32x32xf32>
    %34 = vector.shape_cast %33 : vector<1x32x32xf32> to vector<32x32xf32>
    %cst_33 = arith.constant dense<0.000000e+00> : vector<32x16xf32>
    %35 = tpu.matmul %32, %1, %cst_33 {dimension_numbers = #tpu.dot_dimension_numbers<[1], [0], [0], [1], [0, 0, 1, 1], [], []>} : vector<32x32xf32>, vector<32x16xf32>, vector<32x16xf32> -> vector<32x16xf32>
    %cst_34 = arith.constant dense<0.000000e+00> : vector<16x16xf32>
    %36 = tpu.matmul %0, %35, %cst_34 {dimension_numbers = #tpu.dot_dimension_numbers<[1], [0], [0], [1], [0, 0, 1, 1], [], []>} : vector<16x32xf32>, vector<32x16xf32>, vector<16x16xf32> -> vector<16x16xf32>
    %cst_35 = arith.constant dense<0.000000e+00> : vector<32x16xf32>
    %37 = tpu.matmul %34, %1, %cst_35 {dimension_numbers = #tpu.dot_dimension_numbers<[1], [0], [0], [1], [0, 0, 1, 1], [], []>} : vector<32x32xf32>, vector<32x16xf32>, vector<32x16xf32> -> vector<32x16xf32>
    %cst_36 = arith.constant dense<0.000000e+00> : vector<16x16xf32>
    %38 = tpu.matmul %0, %37, %cst_36 {dimension_numbers = #tpu.dot_dimension_numbers<[1], [0], [0], [1], [0, 0, 1, 1], [], []>} : vector<16x32xf32>, vector<32x16xf32>, vector<16x16xf32> -> vector<16x16xf32>
    %c1_37 = arith.constant 1 : index
    %c0_38 = arith.constant 0 : index
    %c0_39 = arith.constant 0 : index
    %39 = vector.load %arg7[%c1_37, %c0_38, %c0_39] : memref<2x16x16xf32, #tpu.memory_space<vmem>>, vector<1x16x16xf32>
    %40 = vector.shape_cast %39 : vector<1x16x16xf32> to vector<16x16xf32>
    %41 = vector.shape_cast %36 : vector<16x16xf32> to vector<1x16x16xf32>
    tpu.vector_store %arg7[%c1_37, %c0_38, %c0_39], %41 {strides = array<i32>} : memref<2x16x16xf32, #tpu.memory_space<vmem>>, vector<1x16x16xf32>,
    %c1_40 = arith.constant 1 : index
    %c0_41 = arith.constant 0 : index
    %c0_42 = arith.constant 0 : index
    %42 = vector.load %arg8[%c1_40, %c0_41, %c0_42] : memref<2x16x16xf32, #tpu.memory_space<vmem>>, vector<1x16x16xf32>
    %43 = vector.shape_cast %42 : vector<1x16x16xf32> to vector<16x16xf32>
    %44 = vector.shape_cast %38 : vector<16x16xf32> to vector<1x16x16xf32>
    tpu.vector_store %arg8[%c1_40, %c0_41, %c0_42], %44 {strides = array<i32>} : memref<2x16x16xf32, #tpu.memory_space<vmem>>, vector<1x16x16xf32>,
    %cst_43 = arith.constant dense<0.000000e+00> : vector<16x32xf32>
    %45 = tpu.matmul %36, %3, %cst_43 {dimension_numbers = #tpu.dot_dimension_numbers<[1], [0], [0], [1], [0, 0, 1, 1], [], []>} : vector<16x16xf32>, vector<16x32xf32>, vector<16x32xf32> -> vector<16x32xf32>
    %cst_44 = arith.constant dense<0.000000e+00> : vector<32x32xf32>
    %46 = tpu.matmul %2, %45, %cst_44 {dimension_numbers = #tpu.dot_dimension_numbers<[1], [0], [0], [1], [0, 0, 1, 1], [], []>} : vector<32x16xf32>, vector<16x32xf32>, vector<32x32xf32> -> vector<32x32xf32>
    %cst_45 = arith.constant dense<0.000000e+00> : vector<16x32xf32>
    %47 = tpu.matmul %38, %3, %cst_45 {dimension_numbers = #tpu.dot_dimension_numbers<[1], [0], [0], [1], [0, 0, 1, 1], [], []>} : vector<16x16xf32>, vector<16x32xf32>, vector<16x32xf32> -> vector<16x32xf32>
    %cst_46 = arith.constant dense<0.000000e+00> : vector<32x32xf32>
    %48 = tpu.matmul %2, %47, %cst_46 {dimension_numbers = #tpu.dot_dimension_numbers<[1], [0], [0], [1], [0, 0, 1, 1], [], []>} : vector<32x16xf32>, vector<16x32xf32>, vector<32x32xf32> -> vector<32x32xf32>
    %49 = arith.subf %32, %46 : vector<32x32xf32>
    %50 = arith.subf %34, %48 : vector<32x32xf32>
    %51 = arith.subf %49, %50 : vector<32x32xf32>
    %52 = math.absf %51 : vector<32x32xf32>
    %53 = vector.shape_cast %52 : vector<32x32xf32> to vector<1x32x32xf32>
    %cst_47 = arith.constant dense<0.000000e+00> : vector<1xf32>
    %54 = vector.multi_reduction <add>, %53, %cst_47 [1, 2] : vector<1x32x32xf32> to vector<1xf32>
    %55 = vector.shape_cast %54 : vector<1xf32> to vector<1x1x1xf32>
    %56 = vector.extract %55[0, 0, 0] : f32 from vector<1x1x1xf32>
    %57 = arith.addf %30, %56 : f32
    %58 = vector.broadcast %57 : f32 to vector<1x128xf32>
    %c0_48 = arith.constant 0 : index
    %c0_49 = arith.constant 0 : index
    %c0_50 = arith.constant 0 : index
    %59 = vector.load %arg9[%c0_48, %c0_49, %c0_50] : memref<1x1x128xf32, #tpu.memory_space<vmem>>, vector<1x1x128xf32>
    %60 = vector.shape_cast %59 : vector<1x1x128xf32> to vector<1x128xf32>
    %61 = vector.shape_cast %58 : vector<1x128xf32> to vector<1x1x128xf32>
    tpu.vector_store %arg9[%c0_48, %c0_49, %c0_50], %61 {strides = array<i32>} : memref<1x1x128xf32, #tpu.memory_space<vmem>>, vector<1x1x128xf32>,
    return
  }
  func.func @transform_0(%arg0: i32) -> (i32, i32, i32) {
    %c0_i32 = arith.constant 0 : i32
    %c0_i32_0 = arith.constant 0 : i32
    %c0_i32_1 = arith.constant 0 : i32
    return %arg0, %c0_i32, %c0_i32_0 : i32, i32, i32
  }
  func.func @transform_1(%arg0: i32) -> (i32, i32, i32) {
    %c0_i32 = arith.constant 0 : i32
    %c0_i32_0 = arith.constant 0 : i32
    %c0_i32_1 = arith.constant 0 : i32
    return %arg0, %c0_i32, %c0_i32_0 : i32, i32, i32
  }
  func.func @transform_2(%arg0: i32) -> (i32, i32) {
    %c0_i32 = arith.constant 0 : i32
    %c0_i32_0 = arith.constant 0 : i32
    %c0_i32_1 = arith.constant 0 : i32
    return %c0_i32, %c0_i32_0 : i32, i32
  }
  func.func @transform_3(%arg0: i32) -> (i32, i32) {
    %c0_i32 = arith.constant 0 : i32
    %c0_i32_0 = arith.constant 0 : i32
    %c0_i32_1 = arith.constant 0 : i32
    return %c0_i32, %c0_i32_0 : i32, i32
  }
  func.func @transform_4(%arg0: i32) -> (i32, i32) {
    %c0_i32 = arith.constant 0 : i32
    %c0_i32_0 = arith.constant 0 : i32
    %c0_i32_1 = arith.constant 0 : i32
    return %c0_i32, %c0_i32_0 : i32, i32
  }
  func.func @transform_5(%arg0: i32) -> (i32, i32) {
    %c0_i32 = arith.constant 0 : i32
    %c0_i32_0 = arith.constant 0 : i32
    %c0_i32_1 = arith.constant 0 : i32
    return %c0_i32, %c0_i32_0 : i32, i32
  }
  func.func @transform_6(%arg0: i32) -> (i32, i32, i32) {
    %c0_i32 = arith.constant 0 : i32
    %c0_i32_0 = arith.constant 0 : i32
    %c0_i32_1 = arith.constant 0 : i32
    return %arg0, %c0_i32, %c0_i32_0 : i32, i32, i32
  }
  func.func @transform_7(%arg0: i32) -> (i32, i32, i32) {
    %c0_i32 = arith.constant 0 : i32
    %c0_i32_0 = arith.constant 0 : i32
    %c0_i32_1 = arith.constant 0 : i32
    return %arg0, %c0_i32, %c0_i32_0 : i32, i32, i32
  }
  func.func @transform_8(%arg0: i32) -> (i32, i32, i32) {
    %c0_i32 = arith.constant 0 : i32
    %c0_i32_0 = arith.constant 0 : i32
    %c0_i32_1 = arith.constant 0 : i32
    return %arg0, %c0_i32, %c0_i32_0 : i32, i32, i32
  }
}

module attributes {stable_mosaic.version = 11 : i64} {
  func.func @_pyr_level_kernel(%arg0: i32, %arg1: memref<1x128x128xf32, #tpu.memory_space<vmem>>, %arg2: memref<1x128x128xf32, #tpu.memory_space<vmem>>, %arg3: memref<64x128xf32, #tpu.memory_space<vmem>>, %arg4: memref<128x64xf32, #tpu.memory_space<vmem>>, %arg5: memref<128x64xf32, #tpu.memory_space<vmem>>, %arg6: memref<64x128xf32, #tpu.memory_space<vmem>>, %arg7: memref<1x64x64xf32, #tpu.memory_space<vmem>>, %arg8: memref<1x64x64xf32, #tpu.memory_space<vmem>>, %arg9: memref<1x1x128xf32, #tpu.memory_space<vmem>>) attributes {dimension_semantics = [#tpu.dimension_semantics<parallel>], iteration_bounds = array<i64: 2>, scalar_prefetch = 0 : i64, scratch_operands = 0 : i64, tpu.core_type = #tpu.core_type<tc>, window_params = [{transform_indices = @transform_0, window_bounds = array<i64: 1, 128, 128>}, {transform_indices = @transform_1, window_bounds = array<i64: 1, 128, 128>}, {pipeline_mode = #tpu.pipeline_mode<synchronous>, transform_indices = @transform_2, window_bounds = array<i64: 64, 128>}, {pipeline_mode = #tpu.pipeline_mode<synchronous>, transform_indices = @transform_3, window_bounds = array<i64: 128, 64>}, {pipeline_mode = #tpu.pipeline_mode<synchronous>, transform_indices = @transform_4, window_bounds = array<i64: 128, 64>}, {pipeline_mode = #tpu.pipeline_mode<synchronous>, transform_indices = @transform_5, window_bounds = array<i64: 64, 128>}, {transform_indices = @transform_6, window_bounds = array<i64: 1, 64, 64>}, {transform_indices = @transform_7, window_bounds = array<i64: 1, 64, 64>}, {transform_indices = @transform_8, window_bounds = array<i64: 1, 1, 128>}]} {
    %c0 = arith.constant 0 : index
    %c0_0 = arith.constant 0 : index
    %0 = vector.load %arg3[%c0, %c0_0] : memref<64x128xf32, #tpu.memory_space<vmem>>, vector<64x128xf32>
    %c0_1 = arith.constant 0 : index
    %c0_2 = arith.constant 0 : index
    %1 = vector.load %arg4[%c0_1, %c0_2] : memref<128x64xf32, #tpu.memory_space<vmem>>, vector<128x64xf32>
    %c0_3 = arith.constant 0 : index
    %c0_4 = arith.constant 0 : index
    %2 = vector.load %arg5[%c0_3, %c0_4] : memref<128x64xf32, #tpu.memory_space<vmem>>, vector<128x64xf32>
    %c0_5 = arith.constant 0 : index
    %c0_6 = arith.constant 0 : index
    %3 = vector.load %arg6[%c0_5, %c0_6] : memref<64x128xf32, #tpu.memory_space<vmem>>, vector<64x128xf32>
    %c0_7 = arith.constant 0 : index
    %c0_8 = arith.constant 0 : index
    %c0_9 = arith.constant 0 : index
    %4 = vector.load %arg1[%c0_7, %c0_8, %c0_9] : memref<1x128x128xf32, #tpu.memory_space<vmem>>, vector<1x128x128xf32>
    %5 = vector.shape_cast %4 : vector<1x128x128xf32> to vector<128x128xf32>
    %c0_10 = arith.constant 0 : index
    %c0_11 = arith.constant 0 : index
    %c0_12 = arith.constant 0 : index
    %6 = vector.load %arg2[%c0_10, %c0_11, %c0_12] : memref<1x128x128xf32, #tpu.memory_space<vmem>>, vector<1x128x128xf32>
    %7 = vector.shape_cast %6 : vector<1x128x128xf32> to vector<128x128xf32>
    %cst = arith.constant dense<0.000000e+00> : vector<128x64xf32>
    %8 = tpu.matmul %5, %1, %cst {dimension_numbers = #tpu.dot_dimension_numbers<[1], [0], [0], [1], [0, 0, 1, 1], [], []>} : vector<128x128xf32>, vector<128x64xf32>, vector<128x64xf32> -> vector<128x64xf32>
    %cst_13 = arith.constant dense<0.000000e+00> : vector<64x64xf32>
    %9 = tpu.matmul %0, %8, %cst_13 {dimension_numbers = #tpu.dot_dimension_numbers<[1], [0], [0], [1], [0, 0, 1, 1], [], []>} : vector<64x128xf32>, vector<128x64xf32>, vector<64x64xf32> -> vector<64x64xf32>
    %cst_14 = arith.constant dense<0.000000e+00> : vector<128x64xf32>
    %10 = tpu.matmul %7, %1, %cst_14 {dimension_numbers = #tpu.dot_dimension_numbers<[1], [0], [0], [1], [0, 0, 1, 1], [], []>} : vector<128x128xf32>, vector<128x64xf32>, vector<128x64xf32> -> vector<128x64xf32>
    %cst_15 = arith.constant dense<0.000000e+00> : vector<64x64xf32>
    %11 = tpu.matmul %0, %10, %cst_15 {dimension_numbers = #tpu.dot_dimension_numbers<[1], [0], [0], [1], [0, 0, 1, 1], [], []>} : vector<64x128xf32>, vector<128x64xf32>, vector<64x64xf32> -> vector<64x64xf32>
    %c0_16 = arith.constant 0 : index
    %c0_17 = arith.constant 0 : index
    %c0_18 = arith.constant 0 : index
    %12 = vector.load %arg7[%c0_16, %c0_17, %c0_18] : memref<1x64x64xf32, #tpu.memory_space<vmem>>, vector<1x64x64xf32>
    %13 = vector.shape_cast %12 : vector<1x64x64xf32> to vector<64x64xf32>
    %14 = vector.shape_cast %9 : vector<64x64xf32> to vector<1x64x64xf32>
    tpu.vector_store %arg7[%c0_16, %c0_17, %c0_18], %14 {strides = array<i32>} : memref<1x64x64xf32, #tpu.memory_space<vmem>>, vector<1x64x64xf32>,
    %c0_19 = arith.constant 0 : index
    %c0_20 = arith.constant 0 : index
    %c0_21 = arith.constant 0 : index
    %15 = vector.load %arg8[%c0_19, %c0_20, %c0_21] : memref<1x64x64xf32, #tpu.memory_space<vmem>>, vector<1x64x64xf32>
    %16 = vector.shape_cast %15 : vector<1x64x64xf32> to vector<64x64xf32>
    %17 = vector.shape_cast %11 : vector<64x64xf32> to vector<1x64x64xf32>
    tpu.vector_store %arg8[%c0_19, %c0_20, %c0_21], %17 {strides = array<i32>} : memref<1x64x64xf32, #tpu.memory_space<vmem>>, vector<1x64x64xf32>,
    %cst_22 = arith.constant dense<0.000000e+00> : vector<64x128xf32>
    %18 = tpu.matmul %9, %3, %cst_22 {dimension_numbers = #tpu.dot_dimension_numbers<[1], [0], [0], [1], [0, 0, 1, 1], [], []>} : vector<64x64xf32>, vector<64x128xf32>, vector<64x128xf32> -> vector<64x128xf32>
    %cst_23 = arith.constant dense<0.000000e+00> : vector<128x128xf32>
    %19 = tpu.matmul %2, %18, %cst_23 {dimension_numbers = #tpu.dot_dimension_numbers<[1], [0], [0], [1], [0, 0, 1, 1], [], []>} : vector<128x64xf32>, vector<64x128xf32>, vector<128x128xf32> -> vector<128x128xf32>
    %cst_24 = arith.constant dense<0.000000e+00> : vector<64x128xf32>
    %20 = tpu.matmul %11, %3, %cst_24 {dimension_numbers = #tpu.dot_dimension_numbers<[1], [0], [0], [1], [0, 0, 1, 1], [], []>} : vector<64x64xf32>, vector<64x128xf32>, vector<64x128xf32> -> vector<64x128xf32>
    %cst_25 = arith.constant dense<0.000000e+00> : vector<128x128xf32>
    %21 = tpu.matmul %2, %20, %cst_25 {dimension_numbers = #tpu.dot_dimension_numbers<[1], [0], [0], [1], [0, 0, 1, 1], [], []>} : vector<128x64xf32>, vector<64x128xf32>, vector<128x128xf32> -> vector<128x128xf32>
    %22 = arith.subf %5, %19 : vector<128x128xf32>
    %23 = arith.subf %7, %21 : vector<128x128xf32>
    %24 = arith.subf %22, %23 : vector<128x128xf32>
    %25 = math.absf %24 : vector<128x128xf32>
    %26 = vector.shape_cast %25 : vector<128x128xf32> to vector<1x128x128xf32>
    %cst_26 = arith.constant dense<0.000000e+00> : vector<1xf32>
    %27 = vector.multi_reduction <add>, %26, %cst_26 [1, 2] : vector<1x128x128xf32> to vector<1xf32>
    %28 = vector.shape_cast %27 : vector<1xf32> to vector<1x1x1xf32>
    %29 = vector.extract %28[0, 0, 0] : f32 from vector<1x1x1xf32>
    %cst_27 = arith.constant 0.000000e+00 : f32
    %30 = arith.addf %cst_27, %29 : f32
    %31 = vector.broadcast %30 : f32 to vector<1x128xf32>
    %c0_28 = arith.constant 0 : index
    %c0_29 = arith.constant 0 : index
    %c0_30 = arith.constant 0 : index
    %32 = vector.load %arg9[%c0_28, %c0_29, %c0_30] : memref<1x1x128xf32, #tpu.memory_space<vmem>>, vector<1x1x128xf32>
    %33 = vector.shape_cast %32 : vector<1x1x128xf32> to vector<1x128xf32>
    %34 = vector.shape_cast %31 : vector<1x128xf32> to vector<1x1x128xf32>
    tpu.vector_store %arg9[%c0_28, %c0_29, %c0_30], %34 {strides = array<i32>} : memref<1x1x128xf32, #tpu.memory_space<vmem>>, vector<1x1x128xf32>,
    return
  }
  func.func @transform_0(%arg0: i32) -> (i32, i32, i32) {
    %c0_i32 = arith.constant 0 : i32
    %c0_i32_0 = arith.constant 0 : i32
    %c0_i32_1 = arith.constant 0 : i32
    return %arg0, %c0_i32, %c0_i32_0 : i32, i32, i32
  }
  func.func @transform_1(%arg0: i32) -> (i32, i32, i32) {
    %c0_i32 = arith.constant 0 : i32
    %c0_i32_0 = arith.constant 0 : i32
    %c0_i32_1 = arith.constant 0 : i32
    return %arg0, %c0_i32, %c0_i32_0 : i32, i32, i32
  }
  func.func @transform_2(%arg0: i32) -> (i32, i32) {
    %c0_i32 = arith.constant 0 : i32
    %c0_i32_0 = arith.constant 0 : i32
    %c0_i32_1 = arith.constant 0 : i32
    return %c0_i32, %c0_i32_0 : i32, i32
  }
  func.func @transform_3(%arg0: i32) -> (i32, i32) {
    %c0_i32 = arith.constant 0 : i32
    %c0_i32_0 = arith.constant 0 : i32
    %c0_i32_1 = arith.constant 0 : i32
    return %c0_i32, %c0_i32_0 : i32, i32
  }
  func.func @transform_4(%arg0: i32) -> (i32, i32) {
    %c0_i32 = arith.constant 0 : i32
    %c0_i32_0 = arith.constant 0 : i32
    %c0_i32_1 = arith.constant 0 : i32
    return %c0_i32, %c0_i32_0 : i32, i32
  }
  func.func @transform_5(%arg0: i32) -> (i32, i32) {
    %c0_i32 = arith.constant 0 : i32
    %c0_i32_0 = arith.constant 0 : i32
    %c0_i32_1 = arith.constant 0 : i32
    return %c0_i32, %c0_i32_0 : i32, i32
  }
  func.func @transform_6(%arg0: i32) -> (i32, i32, i32) {
    %c0_i32 = arith.constant 0 : i32
    %c0_i32_0 = arith.constant 0 : i32
    %c0_i32_1 = arith.constant 0 : i32
    return %arg0, %c0_i32, %c0_i32_0 : i32, i32, i32
  }
  func.func @transform_7(%arg0: i32) -> (i32, i32, i32) {
    %c0_i32 = arith.constant 0 : i32
    %c0_i32_0 = arith.constant 0 : i32
    %c0_i32_1 = arith.constant 0 : i32
    return %arg0, %c0_i32, %c0_i32_0 : i32, i32, i32
  }
  func.func @transform_8(%arg0: i32) -> (i32, i32, i32) {
    %c0_i32 = arith.constant 0 : i32
    %c0_i32_0 = arith.constant 0 : i32
    %c0_i32_1 = arith.constant 0 : i32
    return %arg0, %c0_i32, %c0_i32_0 : i32, i32, i32
  }
}

module attributes {stable_mosaic.version = 11 : i64} {
  func.func @_pyr_level_kernel(%arg0: i32, %arg1: memref<2x64x64xf32, #tpu.memory_space<vmem>>, %arg2: memref<2x64x64xf32, #tpu.memory_space<vmem>>, %arg3: memref<32x64xf32, #tpu.memory_space<vmem>>, %arg4: memref<64x32xf32, #tpu.memory_space<vmem>>, %arg5: memref<64x32xf32, #tpu.memory_space<vmem>>, %arg6: memref<32x64xf32, #tpu.memory_space<vmem>>, %arg7: memref<2x32x32xf32, #tpu.memory_space<vmem>>, %arg8: memref<2x32x32xf32, #tpu.memory_space<vmem>>, %arg9: memref<1x1x128xf32, #tpu.memory_space<vmem>>) attributes {dimension_semantics = [#tpu.dimension_semantics<parallel>], iteration_bounds = array<i64: 1>, scalar_prefetch = 0 : i64, scratch_operands = 0 : i64, tpu.core_type = #tpu.core_type<tc>, window_params = [{transform_indices = @transform_0, window_bounds = array<i64: 2, 64, 64>}, {transform_indices = @transform_1, window_bounds = array<i64: 2, 64, 64>}, {pipeline_mode = #tpu.pipeline_mode<synchronous>, transform_indices = @transform_2, window_bounds = array<i64: 32, 64>}, {pipeline_mode = #tpu.pipeline_mode<synchronous>, transform_indices = @transform_3, window_bounds = array<i64: 64, 32>}, {pipeline_mode = #tpu.pipeline_mode<synchronous>, transform_indices = @transform_4, window_bounds = array<i64: 64, 32>}, {pipeline_mode = #tpu.pipeline_mode<synchronous>, transform_indices = @transform_5, window_bounds = array<i64: 32, 64>}, {transform_indices = @transform_6, window_bounds = array<i64: 2, 32, 32>}, {transform_indices = @transform_7, window_bounds = array<i64: 2, 32, 32>}, {transform_indices = @transform_8, window_bounds = array<i64: 1, 1, 128>}]} {
    %c0 = arith.constant 0 : index
    %c0_0 = arith.constant 0 : index
    %0 = vector.load %arg3[%c0, %c0_0] : memref<32x64xf32, #tpu.memory_space<vmem>>, vector<32x64xf32>
    %c0_1 = arith.constant 0 : index
    %c0_2 = arith.constant 0 : index
    %1 = vector.load %arg4[%c0_1, %c0_2] : memref<64x32xf32, #tpu.memory_space<vmem>>, vector<64x32xf32>
    %c0_3 = arith.constant 0 : index
    %c0_4 = arith.constant 0 : index
    %2 = vector.load %arg5[%c0_3, %c0_4] : memref<64x32xf32, #tpu.memory_space<vmem>>, vector<64x32xf32>
    %c0_5 = arith.constant 0 : index
    %c0_6 = arith.constant 0 : index
    %3 = vector.load %arg6[%c0_5, %c0_6] : memref<32x64xf32, #tpu.memory_space<vmem>>, vector<32x64xf32>
    %c0_7 = arith.constant 0 : index
    %c0_8 = arith.constant 0 : index
    %c0_9 = arith.constant 0 : index
    %4 = vector.load %arg1[%c0_7, %c0_8, %c0_9] : memref<2x64x64xf32, #tpu.memory_space<vmem>>, vector<1x64x64xf32>
    %5 = vector.shape_cast %4 : vector<1x64x64xf32> to vector<64x64xf32>
    %c0_10 = arith.constant 0 : index
    %c0_11 = arith.constant 0 : index
    %c0_12 = arith.constant 0 : index
    %6 = vector.load %arg2[%c0_10, %c0_11, %c0_12] : memref<2x64x64xf32, #tpu.memory_space<vmem>>, vector<1x64x64xf32>
    %7 = vector.shape_cast %6 : vector<1x64x64xf32> to vector<64x64xf32>
    %cst = arith.constant dense<0.000000e+00> : vector<64x32xf32>
    %8 = tpu.matmul %5, %1, %cst {dimension_numbers = #tpu.dot_dimension_numbers<[1], [0], [0], [1], [0, 0, 1, 1], [], []>} : vector<64x64xf32>, vector<64x32xf32>, vector<64x32xf32> -> vector<64x32xf32>
    %cst_13 = arith.constant dense<0.000000e+00> : vector<32x32xf32>
    %9 = tpu.matmul %0, %8, %cst_13 {dimension_numbers = #tpu.dot_dimension_numbers<[1], [0], [0], [1], [0, 0, 1, 1], [], []>} : vector<32x64xf32>, vector<64x32xf32>, vector<32x32xf32> -> vector<32x32xf32>
    %cst_14 = arith.constant dense<0.000000e+00> : vector<64x32xf32>
    %10 = tpu.matmul %7, %1, %cst_14 {dimension_numbers = #tpu.dot_dimension_numbers<[1], [0], [0], [1], [0, 0, 1, 1], [], []>} : vector<64x64xf32>, vector<64x32xf32>, vector<64x32xf32> -> vector<64x32xf32>
    %cst_15 = arith.constant dense<0.000000e+00> : vector<32x32xf32>
    %11 = tpu.matmul %0, %10, %cst_15 {dimension_numbers = #tpu.dot_dimension_numbers<[1], [0], [0], [1], [0, 0, 1, 1], [], []>} : vector<32x64xf32>, vector<64x32xf32>, vector<32x32xf32> -> vector<32x32xf32>
    %c0_16 = arith.constant 0 : index
    %c0_17 = arith.constant 0 : index
    %c0_18 = arith.constant 0 : index
    %12 = vector.load %arg7[%c0_16, %c0_17, %c0_18] : memref<2x32x32xf32, #tpu.memory_space<vmem>>, vector<1x32x32xf32>
    %13 = vector.shape_cast %12 : vector<1x32x32xf32> to vector<32x32xf32>
    %14 = vector.shape_cast %9 : vector<32x32xf32> to vector<1x32x32xf32>
    tpu.vector_store %arg7[%c0_16, %c0_17, %c0_18], %14 {strides = array<i32>} : memref<2x32x32xf32, #tpu.memory_space<vmem>>, vector<1x32x32xf32>,
    %c0_19 = arith.constant 0 : index
    %c0_20 = arith.constant 0 : index
    %c0_21 = arith.constant 0 : index
    %15 = vector.load %arg8[%c0_19, %c0_20, %c0_21] : memref<2x32x32xf32, #tpu.memory_space<vmem>>, vector<1x32x32xf32>
    %16 = vector.shape_cast %15 : vector<1x32x32xf32> to vector<32x32xf32>
    %17 = vector.shape_cast %11 : vector<32x32xf32> to vector<1x32x32xf32>
    tpu.vector_store %arg8[%c0_19, %c0_20, %c0_21], %17 {strides = array<i32>} : memref<2x32x32xf32, #tpu.memory_space<vmem>>, vector<1x32x32xf32>,
    %cst_22 = arith.constant dense<0.000000e+00> : vector<32x64xf32>
    %18 = tpu.matmul %9, %3, %cst_22 {dimension_numbers = #tpu.dot_dimension_numbers<[1], [0], [0], [1], [0, 0, 1, 1], [], []>} : vector<32x32xf32>, vector<32x64xf32>, vector<32x64xf32> -> vector<32x64xf32>
    %cst_23 = arith.constant dense<0.000000e+00> : vector<64x64xf32>
    %19 = tpu.matmul %2, %18, %cst_23 {dimension_numbers = #tpu.dot_dimension_numbers<[1], [0], [0], [1], [0, 0, 1, 1], [], []>} : vector<64x32xf32>, vector<32x64xf32>, vector<64x64xf32> -> vector<64x64xf32>
    %cst_24 = arith.constant dense<0.000000e+00> : vector<32x64xf32>
    %20 = tpu.matmul %11, %3, %cst_24 {dimension_numbers = #tpu.dot_dimension_numbers<[1], [0], [0], [1], [0, 0, 1, 1], [], []>} : vector<32x32xf32>, vector<32x64xf32>, vector<32x64xf32> -> vector<32x64xf32>
    %cst_25 = arith.constant dense<0.000000e+00> : vector<64x64xf32>
    %21 = tpu.matmul %2, %20, %cst_25 {dimension_numbers = #tpu.dot_dimension_numbers<[1], [0], [0], [1], [0, 0, 1, 1], [], []>} : vector<64x32xf32>, vector<32x64xf32>, vector<64x64xf32> -> vector<64x64xf32>
    %22 = arith.subf %5, %19 : vector<64x64xf32>
    %23 = arith.subf %7, %21 : vector<64x64xf32>
    %24 = arith.subf %22, %23 : vector<64x64xf32>
    %25 = math.absf %24 : vector<64x64xf32>
    %26 = vector.shape_cast %25 : vector<64x64xf32> to vector<1x64x64xf32>
    %cst_26 = arith.constant dense<0.000000e+00> : vector<1xf32>
    %27 = vector.multi_reduction <add>, %26, %cst_26 [1, 2] : vector<1x64x64xf32> to vector<1xf32>
    %28 = vector.shape_cast %27 : vector<1xf32> to vector<1x1x1xf32>
    %29 = vector.extract %28[0, 0, 0] : f32 from vector<1x1x1xf32>
    %cst_27 = arith.constant 0.000000e+00 : f32
    %30 = arith.addf %cst_27, %29 : f32
    %c1 = arith.constant 1 : index
    %c0_28 = arith.constant 0 : index
    %c0_29 = arith.constant 0 : index
    %31 = vector.load %arg1[%c1, %c0_28, %c0_29] : memref<2x64x64xf32, #tpu.memory_space<vmem>>, vector<1x64x64xf32>
    %32 = vector.shape_cast %31 : vector<1x64x64xf32> to vector<64x64xf32>
    %c1_30 = arith.constant 1 : index
    %c0_31 = arith.constant 0 : index
    %c0_32 = arith.constant 0 : index
    %33 = vector.load %arg2[%c1_30, %c0_31, %c0_32] : memref<2x64x64xf32, #tpu.memory_space<vmem>>, vector<1x64x64xf32>
    %34 = vector.shape_cast %33 : vector<1x64x64xf32> to vector<64x64xf32>
    %cst_33 = arith.constant dense<0.000000e+00> : vector<64x32xf32>
    %35 = tpu.matmul %32, %1, %cst_33 {dimension_numbers = #tpu.dot_dimension_numbers<[1], [0], [0], [1], [0, 0, 1, 1], [], []>} : vector<64x64xf32>, vector<64x32xf32>, vector<64x32xf32> -> vector<64x32xf32>
    %cst_34 = arith.constant dense<0.000000e+00> : vector<32x32xf32>
    %36 = tpu.matmul %0, %35, %cst_34 {dimension_numbers = #tpu.dot_dimension_numbers<[1], [0], [0], [1], [0, 0, 1, 1], [], []>} : vector<32x64xf32>, vector<64x32xf32>, vector<32x32xf32> -> vector<32x32xf32>
    %cst_35 = arith.constant dense<0.000000e+00> : vector<64x32xf32>
    %37 = tpu.matmul %34, %1, %cst_35 {dimension_numbers = #tpu.dot_dimension_numbers<[1], [0], [0], [1], [0, 0, 1, 1], [], []>} : vector<64x64xf32>, vector<64x32xf32>, vector<64x32xf32> -> vector<64x32xf32>
    %cst_36 = arith.constant dense<0.000000e+00> : vector<32x32xf32>
    %38 = tpu.matmul %0, %37, %cst_36 {dimension_numbers = #tpu.dot_dimension_numbers<[1], [0], [0], [1], [0, 0, 1, 1], [], []>} : vector<32x64xf32>, vector<64x32xf32>, vector<32x32xf32> -> vector<32x32xf32>
    %c1_37 = arith.constant 1 : index
    %c0_38 = arith.constant 0 : index
    %c0_39 = arith.constant 0 : index
    %39 = vector.load %arg7[%c1_37, %c0_38, %c0_39] : memref<2x32x32xf32, #tpu.memory_space<vmem>>, vector<1x32x32xf32>
    %40 = vector.shape_cast %39 : vector<1x32x32xf32> to vector<32x32xf32>
    %41 = vector.shape_cast %36 : vector<32x32xf32> to vector<1x32x32xf32>
    tpu.vector_store %arg7[%c1_37, %c0_38, %c0_39], %41 {strides = array<i32>} : memref<2x32x32xf32, #tpu.memory_space<vmem>>, vector<1x32x32xf32>,
    %c1_40 = arith.constant 1 : index
    %c0_41 = arith.constant 0 : index
    %c0_42 = arith.constant 0 : index
    %42 = vector.load %arg8[%c1_40, %c0_41, %c0_42] : memref<2x32x32xf32, #tpu.memory_space<vmem>>, vector<1x32x32xf32>
    %43 = vector.shape_cast %42 : vector<1x32x32xf32> to vector<32x32xf32>
    %44 = vector.shape_cast %38 : vector<32x32xf32> to vector<1x32x32xf32>
    tpu.vector_store %arg8[%c1_40, %c0_41, %c0_42], %44 {strides = array<i32>} : memref<2x32x32xf32, #tpu.memory_space<vmem>>, vector<1x32x32xf32>,
    %cst_43 = arith.constant dense<0.000000e+00> : vector<32x64xf32>
    %45 = tpu.matmul %36, %3, %cst_43 {dimension_numbers = #tpu.dot_dimension_numbers<[1], [0], [0], [1], [0, 0, 1, 1], [], []>} : vector<32x32xf32>, vector<32x64xf32>, vector<32x64xf32> -> vector<32x64xf32>
    %cst_44 = arith.constant dense<0.000000e+00> : vector<64x64xf32>
    %46 = tpu.matmul %2, %45, %cst_44 {dimension_numbers = #tpu.dot_dimension_numbers<[1], [0], [0], [1], [0, 0, 1, 1], [], []>} : vector<64x32xf32>, vector<32x64xf32>, vector<64x64xf32> -> vector<64x64xf32>
    %cst_45 = arith.constant dense<0.000000e+00> : vector<32x64xf32>
    %47 = tpu.matmul %38, %3, %cst_45 {dimension_numbers = #tpu.dot_dimension_numbers<[1], [0], [0], [1], [0, 0, 1, 1], [], []>} : vector<32x32xf32>, vector<32x64xf32>, vector<32x64xf32> -> vector<32x64xf32>
    %cst_46 = arith.constant dense<0.000000e+00> : vector<64x64xf32>
    %48 = tpu.matmul %2, %47, %cst_46 {dimension_numbers = #tpu.dot_dimension_numbers<[1], [0], [0], [1], [0, 0, 1, 1], [], []>} : vector<64x32xf32>, vector<32x64xf32>, vector<64x64xf32> -> vector<64x64xf32>
    %49 = arith.subf %32, %46 : vector<64x64xf32>
    %50 = arith.subf %34, %48 : vector<64x64xf32>
    %51 = arith.subf %49, %50 : vector<64x64xf32>
    %52 = math.absf %51 : vector<64x64xf32>
    %53 = vector.shape_cast %52 : vector<64x64xf32> to vector<1x64x64xf32>
    %cst_47 = arith.constant dense<0.000000e+00> : vector<1xf32>
    %54 = vector.multi_reduction <add>, %53, %cst_47 [1, 2] : vector<1x64x64xf32> to vector<1xf32>
    %55 = vector.shape_cast %54 : vector<1xf32> to vector<1x1x1xf32>
    %56 = vector.extract %55[0, 0, 0] : f32 from vector<1x1x1xf32>
    %57 = arith.addf %30, %56 : f32
    %58 = vector.broadcast %57 : f32 to vector<1x128xf32>
    %c0_48 = arith.constant 0 : index
    %c0_49 = arith.constant 0 : index
    %c0_50 = arith.constant 0 : index
    %59 = vector.load %arg9[%c0_48, %c0_49, %c0_50] : memref<1x1x128xf32, #tpu.memory_space<vmem>>, vector<1x1x128xf32>
    %60 = vector.shape_cast %59 : vector<1x1x128xf32> to vector<1x128xf32>
    %61 = vector.shape_cast %58 : vector<1x128xf32> to vector<1x1x128xf32>
    tpu.vector_store %arg9[%c0_48, %c0_49, %c0_50], %61 {strides = array<i32>} : memref<1x1x128xf32, #tpu.memory_space<vmem>>, vector<1x1x128xf32>,
    return
  }
  func.func @transform_0(%arg0: i32) -> (i32, i32, i32) {
    %c0_i32 = arith.constant 0 : i32
    %c0_i32_0 = arith.constant 0 : i32
    %c0_i32_1 = arith.constant 0 : i32
    return %arg0, %c0_i32, %c0_i32_0 : i32, i32, i32
  }
  func.func @transform_1(%arg0: i32) -> (i32, i32, i32) {
    %c0_i32 = arith.constant 0 : i32
    %c0_i32_0 = arith.constant 0 : i32
    %c0_i32_1 = arith.constant 0 : i32
    return %arg0, %c0_i32, %c0_i32_0 : i32, i32, i32
  }
  func.func @transform_2(%arg0: i32) -> (i32, i32) {
    %c0_i32 = arith.constant 0 : i32
    %c0_i32_0 = arith.constant 0 : i32
    %c0_i32_1 = arith.constant 0 : i32
    return %c0_i32, %c0_i32_0 : i32, i32
  }
  func.func @transform_3(%arg0: i32) -> (i32, i32) {
    %c0_i32 = arith.constant 0 : i32
    %c0_i32_0 = arith.constant 0 : i32
    %c0_i32_1 = arith.constant 0 : i32
    return %c0_i32, %c0_i32_0 : i32, i32
  }
  func.func @transform_4(%arg0: i32) -> (i32, i32) {
    %c0_i32 = arith.constant 0 : i32
    %c0_i32_0 = arith.constant 0 : i32
    %c0_i32_1 = arith.constant 0 : i32
    return %c0_i32, %c0_i32_0 : i32, i32
  }
  func.func @transform_5(%arg0: i32) -> (i32, i32) {
    %c0_i32 = arith.constant 0 : i32
    %c0_i32_0 = arith.constant 0 : i32
    %c0_i32_1 = arith.constant 0 : i32
    return %c0_i32, %c0_i32_0 : i32, i32
  }
  func.func @transform_6(%arg0: i32) -> (i32, i32, i32) {
    %c0_i32 = arith.constant 0 : i32
    %c0_i32_0 = arith.constant 0 : i32
    %c0_i32_1 = arith.constant 0 : i32
    return %arg0, %c0_i32, %c0_i32_0 : i32, i32, i32
  }
  func.func @transform_7(%arg0: i32) -> (i32, i32, i32) {
    %c0_i32 = arith.constant 0 : i32
    %c0_i32_0 = arith.constant 0 : i32
    %c0_i32_1 = arith.constant 0 : i32
    return %arg0, %c0_i32, %c0_i32_0 : i32, i32, i32
  }
  func.func @transform_8(%arg0: i32) -> (i32, i32, i32) {
    %c0_i32 = arith.constant 0 : i32
    %c0_i32_0 = arith.constant 0 : i32
    %c0_i32_1 = arith.constant 0 : i32
    return %arg0, %c0_i32, %c0_i32_0 : i32, i32, i32
  }
}

module attributes {stable_mosaic.version = 11 : i64} {
  func.func @_pixel_losses_kernel(%arg0: i32, %arg1: memref<1x128x128xf32, #tpu.memory_space<vmem>>, %arg2: memref<1x128x128xf32, #tpu.memory_space<vmem>>, %arg3: memref<1x128x128xf32, #tpu.memory_space<vmem>>, %arg4: memref<1x5x128xf32, #tpu.memory_space<vmem>>, %arg5: memref<1x130x130xf32, #tpu.memory_space<vmem>>, %arg6: memref<1x130x130xf32, #tpu.memory_space<vmem>>) attributes {dimension_semantics = [#tpu.dimension_semantics<parallel>], iteration_bounds = array<i64: 2>, scalar_prefetch = 0 : i64, scratch_operands = 2 : i64, tpu.core_type = #tpu.core_type<tc>, window_params = [{transform_indices = @transform_0, window_bounds = array<i64: 1, 128, 128>}, {transform_indices = @transform_1, window_bounds = array<i64: 1, 128, 128>}, {transform_indices = @transform_2, window_bounds = array<i64: 1, 128, 128>}, {transform_indices = @transform_3, window_bounds = array<i64: 1, 5, 128>}]} {
    %cst = arith.constant 0.000000e+00 : f32
    %0 = vector.broadcast %cst : f32 to vector<1x130x130xf32>
    %c0 = arith.constant 0 : index
    %c0_0 = arith.constant 0 : index
    %c0_1 = arith.constant 0 : index
    %1 = vector.load %arg5[%c0, %c0_0, %c0_1] : memref<1x130x130xf32, #tpu.memory_space<vmem>>, vector<1x130x130xf32>
    tpu.vector_store %arg5[%c0, %c0_0, %c0_1], %0 {strides = array<i32>} : memref<1x130x130xf32, #tpu.memory_space<vmem>>, vector<1x130x130xf32>,
    %cst_2 = arith.constant 0.000000e+00 : f32
    %2 = vector.broadcast %cst_2 : f32 to vector<1x130x130xf32>
    %c0_3 = arith.constant 0 : index
    %c0_4 = arith.constant 0 : index
    %c0_5 = arith.constant 0 : index
    %3 = vector.load %arg6[%c0_3, %c0_4, %c0_5] : memref<1x130x130xf32, #tpu.memory_space<vmem>>, vector<1x130x130xf32>
    tpu.vector_store %arg6[%c0_3, %c0_4, %c0_5], %2 {strides = array<i32>} : memref<1x130x130xf32, #tpu.memory_space<vmem>>, vector<1x130x130xf32>,
    %c0_6 = arith.constant 0 : index
    %c0_7 = arith.constant 0 : index
    %c0_8 = arith.constant 0 : index
    %4 = vector.load %arg1[%c0_6, %c0_7, %c0_8] : memref<1x128x128xf32, #tpu.memory_space<vmem>>, vector<1x128x128xf32>
    %c0_9 = arith.constant 0 : index
    %c1 = arith.constant 1 : index
    %c1_10 = arith.constant 1 : index
    %5 = vector.load %arg5[%c0_9, %c1, %c1_10] : memref<1x130x130xf32, #tpu.memory_space<vmem>>, vector<1x128x128xf32>
    tpu.vector_store %arg5[%c0_9, %c1, %c1_10], %4 {strides = array<i32>} : memref<1x130x130xf32, #tpu.memory_space<vmem>>, vector<1x128x128xf32>,
    %c0_11 = arith.constant 0 : index
    %c0_12 = arith.constant 0 : index
    %c0_13 = arith.constant 0 : index
    %6 = vector.load %arg2[%c0_11, %c0_12, %c0_13] : memref<1x128x128xf32, #tpu.memory_space<vmem>>, vector<1x128x128xf32>
    %c0_14 = arith.constant 0 : index
    %c1_15 = arith.constant 1 : index
    %c1_16 = arith.constant 1 : index
    %7 = vector.load %arg6[%c0_14, %c1_15, %c1_16] : memref<1x130x130xf32, #tpu.memory_space<vmem>>, vector<1x128x128xf32>
    tpu.vector_store %arg6[%c0_14, %c1_15, %c1_16], %6 {strides = array<i32>} : memref<1x130x130xf32, #tpu.memory_space<vmem>>, vector<1x128x128xf32>,
    %c0_17 = arith.constant 0 : index
    %c0_18 = arith.constant 0 : index
    %c0_19 = arith.constant 0 : index
    %8 = vector.load %arg5[%c0_17, %c0_18, %c0_19] : memref<1x130x130xf32, #tpu.memory_space<vmem>>, vector<1x130x130xf32>
    %c0_20 = arith.constant 0 : index
    %c0_21 = arith.constant 0 : index
    %c0_22 = arith.constant 0 : index
    %9 = vector.load %arg6[%c0_20, %c0_21, %c0_22] : memref<1x130x130xf32, #tpu.memory_space<vmem>>, vector<1x130x130xf32>
    %c0_23 = arith.constant 0 : index
    %c0_24 = arith.constant 0 : index
    %c0_25 = arith.constant 0 : index
    %10 = vector.load %arg3[%c0_23, %c0_24, %c0_25] : memref<1x128x128xf32, #tpu.memory_space<vmem>>, vector<1x128x128xf32>
    %11 = vector.extract_strided_slice %8 {offsets = [0, 0, 0], sizes = [1, 128, 130], strides = [1, 1, 1]} : vector<1x130x130xf32> to vector<1x128x130xf32>
    %12 = vector.extract_strided_slice %8 {offsets = [0, 1, 0], sizes = [1, 128, 130], strides = [1, 1, 1]} : vector<1x130x130xf32> to vector<1x128x130xf32>
    %cst_26 = arith.constant 2.000000e+00 : f32
    %13 = vector.broadcast %cst_26 : f32 to vector<1x128x130xf32>
    %14 = arith.mulf %13, %12 : vector<1x128x130xf32>
    %15 = arith.addf %11, %14 : vector<1x128x130xf32>
    %16 = vector.extract_strided_slice %8 {offsets = [0, 2, 0], sizes = [1, 128, 130], strides = [1, 1, 1]} : vector<1x130x130xf32> to vector<1x128x130xf32>
    %17 = arith.addf %15, %16 : vector<1x128x130xf32>
    %18 = vector.extract_strided_slice %8 {offsets = [0, 2, 0], sizes = [1, 128, 130], strides = [1, 1, 1]} : vector<1x130x130xf32> to vector<1x128x130xf32>
    %19 = vector.extract_strided_slice %8 {offsets = [0, 0, 0], sizes = [1, 128, 130], strides = [1, 1, 1]} : vector<1x130x130xf32> to vector<1x128x130xf32>
    %20 = arith.subf %18, %19 : vector<1x128x130xf32>
    %21 = vector.extract_strided_slice %9 {offsets = [0, 0, 0], sizes = [1, 128, 130], strides = [1, 1, 1]} : vector<1x130x130xf32> to vector<1x128x130xf32>
    %22 = vector.extract_strided_slice %9 {offsets = [0, 1, 0], sizes = [1, 128, 130], strides = [1, 1, 1]} : vector<1x130x130xf32> to vector<1x128x130xf32>
    %cst_27 = arith.constant 2.000000e+00 : f32
    %23 = vector.broadcast %cst_27 : f32 to vector<1x128x130xf32>
    %24 = arith.mulf %23, %22 : vector<1x128x130xf32>
    %25 = arith.addf %21, %24 : vector<1x128x130xf32>
    %26 = vector.extract_strided_slice %9 {offsets = [0, 2, 0], sizes = [1, 128, 130], strides = [1, 1, 1]} : vector<1x130x130xf32> to vector<1x128x130xf32>
    %27 = arith.addf %25, %26 : vector<1x128x130xf32>
    %28 = vector.extract_strided_slice %9 {offsets = [0, 2, 0], sizes = [1, 128, 130], strides = [1, 1, 1]} : vector<1x130x130xf32> to vector<1x128x130xf32>
    %29 = vector.extract_strided_slice %9 {offsets = [0, 0, 0], sizes = [1, 128, 130], strides = [1, 1, 1]} : vector<1x130x130xf32> to vector<1x128x130xf32>
    %30 = arith.subf %28, %29 : vector<1x128x130xf32>
    %31 = vector.extract_strided_slice %17 {offsets = [0, 0, 2], sizes = [1, 128, 128], strides = [1, 1, 1]} : vector<1x128x130xf32> to vector<1x128x128xf32>
    %32 = vector.extract_strided_slice %17 {offsets = [0, 0, 0], sizes = [1, 128, 128], strides = [1, 1, 1]} : vector<1x128x130xf32> to vector<1x128x128xf32>
    %33 = arith.subf %31, %32 : vector<1x128x128xf32>
    %34 = vector.extract_strided_slice %27 {offsets = [0, 0, 2], sizes = [1, 128, 128], strides = [1, 1, 1]} : vector<1x128x130xf32> to vector<1x128x128xf32>
    %35 = vector.extract_strided_slice %27 {offsets = [0, 0, 0], sizes = [1, 128, 128], strides = [1, 1, 1]} : vector<1x128x130xf32> to vector<1x128x128xf32>
    %36 = arith.subf %34, %35 : vector<1x128x128xf32>
    %37 = vector.extract_strided_slice %20 {offsets = [0, 0, 0], sizes = [1, 128, 128], strides = [1, 1, 1]} : vector<1x128x130xf32> to vector<1x128x128xf32>
    %38 = vector.extract_strided_slice %20 {offsets = [0, 0, 1], sizes = [1, 128, 128], strides = [1, 1, 1]} : vector<1x128x130xf32> to vector<1x128x128xf32>
    %cst_28 = arith.constant 2.000000e+00 : f32
    %39 = vector.broadcast %cst_28 : f32 to vector<1x128x128xf32>
    %40 = arith.mulf %39, %38 : vector<1x128x128xf32>
    %41 = arith.addf %37, %40 : vector<1x128x128xf32>
    %42 = vector.extract_strided_slice %20 {offsets = [0, 0, 2], sizes = [1, 128, 128], strides = [1, 1, 1]} : vector<1x128x130xf32> to vector<1x128x128xf32>
    %43 = arith.addf %41, %42 : vector<1x128x128xf32>
    %44 = vector.extract_strided_slice %30 {offsets = [0, 0, 0], sizes = [1, 128, 128], strides = [1, 1, 1]} : vector<1x128x130xf32> to vector<1x128x128xf32>
    %45 = vector.extract_strided_slice %30 {offsets = [0, 0, 1], sizes = [1, 128, 128], strides = [1, 1, 1]} : vector<1x128x130xf32> to vector<1x128x128xf32>
    %cst_29 = arith.constant 2.000000e+00 : f32
    %46 = vector.broadcast %cst_29 : f32 to vector<1x128x128xf32>
    %47 = arith.mulf %46, %45 : vector<1x128x128xf32>
    %48 = arith.addf %44, %47 : vector<1x128x128xf32>
    %49 = vector.extract_strided_slice %30 {offsets = [0, 0, 2], sizes = [1, 128, 128], strides = [1, 1, 1]} : vector<1x128x130xf32> to vector<1x128x128xf32>
    %50 = arith.addf %48, %49 : vector<1x128x128xf32>
    %51 = arith.subf %33, %36 : vector<1x128x128xf32>
    %52 = math.absf %51 : vector<1x128x128xf32>
    %53 = arith.subf %43, %50 : vector<1x128x128xf32>
    %54 = math.absf %53 : vector<1x128x128xf32>
    %55 = arith.addf %52, %54 : vector<1x128x128xf32>
    %56 = math.absf %33 : vector<1x128x128xf32>
    %cst_30 = arith.constant 0.00999999977 : f32
    %57 = vector.broadcast %cst_30 : f32 to vector<1x128x128xf32>
    %58 = arith.mulf %57, %56 : vector<1x128x128xf32>
    %59 = arith.addf %55, %58 : vector<1x128x128xf32>
    %60 = math.absf %43 : vector<1x128x128xf32>
    %cst_31 = arith.constant 0.00999999977 : f32
    %61 = vector.broadcast %cst_31 : f32 to vector<1x128x128xf32>
    %62 = arith.mulf %61, %60 : vector<1x128x128xf32>
    %63 = arith.addf %59, %62 : vector<1x128x128xf32>
    %64 = arith.mulf %63, %10 : vector<1x128x128xf32>
    %c0_32 = arith.constant 0 : index
    %c0_33 = arith.constant 0 : index
    %c0_34 = arith.constant 0 : index
    %65 = vector.load %arg1[%c0_32, %c0_33, %c0_34] : memref<1x128x128xf32, #tpu.memory_space<vmem>>, vector<1x128x128xf32>
    %c0_35 = arith.constant 0 : index
    %c0_36 = arith.constant 0 : index
    %c0_37 = arith.constant 0 : index
    %66 = vector.load %arg2[%c0_35, %c0_36, %c0_37] : memref<1x128x128xf32, #tpu.memory_space<vmem>>, vector<1x128x128xf32>
    %67 = arith.subf %65, %66 : vector<1x128x128xf32>
    %68 = math.absf %67 : vector<1x128x128xf32>
    %cst_38 = arith.constant 0.000000e+00 : f32
    %69 = vector.broadcast %cst_38 : f32 to vector<1x128x128xf32>
    %70 = arith.cmpf oeq, %10, %69 : vector<1x128x128xf32>
    %71 = arith.extui %70 : vector<1x128x128xi1> to vector<1x128x128xi32>
    %72 = arith.sitofp %71 : vector<1x128x128xi32> to vector<1x128x128xf32>
    %73 = vector.shape_cast %64 : vector<1x128x128xf32> to vector<1x1x128x128xf32>
    %cst_39 = arith.constant dense<0.000000e+00> : vector<1xf32>
    %74 = vector.multi_reduction <add>, %73, %cst_39 [1, 2, 3] : vector<1x1x128x128xf32> to vector<1xf32>
    %75 = vector.shape_cast %74 : vector<1xf32> to vector<1x1x1x1xf32>
    %76 = vector.extract %75[0, 0, 0, 0] : f32 from vector<1x1x1x1xf32>
    %77 = vector.shape_cast %10 : vector<1x128x128xf32> to vector<1x1x128x128xf32>
    %cst_40 = arith.constant dense<0.000000e+00> : vector<1xf32>
    %78 = vector.multi_reduction <add>, %77, %cst_40 [1, 2, 3] : vector<1x1x128x128xf32> to vector<1xf32>
    %79 = vector.shape_cast %78 : vector<1xf32> to vector<1x1x1x1xf32>
    %80 = vector.extract %79[0, 0, 0, 0] : f32 from vector<1x1x1x1xf32>
    %81 = arith.mulf %68, %10 : vector<1x128x128xf32>
    %82 = vector.shape_cast %81 : vector<1x128x128xf32> to vector<1x1x128x128xf32>
    %cst_41 = arith.constant dense<0.000000e+00> : vector<1xf32>
    %83 = vector.multi_reduction <add>, %82, %cst_41 [1, 2, 3] : vector<1x1x128x128xf32> to vector<1xf32>
    %84 = vector.shape_cast %83 : vector<1xf32> to vector<1x1x1x1xf32>
    %85 = vector.extract %84[0, 0, 0, 0] : f32 from vector<1x1x1x1xf32>
    %86 = arith.mulf %68, %72 : vector<1x128x128xf32>
    %87 = vector.shape_cast %86 : vector<1x128x128xf32> to vector<1x1x128x128xf32>
    %cst_42 = arith.constant dense<0.000000e+00> : vector<1xf32>
    %88 = vector.multi_reduction <add>, %87, %cst_42 [1, 2, 3] : vector<1x1x128x128xf32> to vector<1xf32>
    %89 = vector.shape_cast %88 : vector<1xf32> to vector<1x1x1x1xf32>
    %90 = vector.extract %89[0, 0, 0, 0] : f32 from vector<1x1x1x1xf32>
    %91 = vector.shape_cast %72 : vector<1x128x128xf32> to vector<1x1x128x128xf32>
    %cst_43 = arith.constant dense<0.000000e+00> : vector<1xf32>
    %92 = vector.multi_reduction <add>, %91, %cst_43 [1, 2, 3] : vector<1x1x128x128xf32> to vector<1xf32>
    %93 = vector.shape_cast %92 : vector<1xf32> to vector<1x1x1x1xf32>
    %94 = vector.extract %93[0, 0, 0, 0] : f32 from vector<1x1x1x1xf32>
    %95 = vector.broadcast %76 : f32 to vector<1x1x128xf32>
    %96 = vector.broadcast %80 : f32 to vector<1x1x128xf32>
    %97 = vector.broadcast %85 : f32 to vector<1x1x128xf32>
    %98 = vector.broadcast %90 : f32 to vector<1x1x128xf32>
    %99 = vector.broadcast %94 : f32 to vector<1x1x128xf32>
    %100 = tpu.concatenate %95, %96, %97, %98, %99 in 1 : vector<1x1x128xf32>, vector<1x1x128xf32>, vector<1x1x128xf32>, vector<1x1x128xf32>, vector<1x1x128xf32> -> vector<1x5x128xf32>
    %c0_44 = arith.constant 0 : index
    %c0_45 = arith.constant 0 : index
    %c0_46 = arith.constant 0 : index
    %101 = vector.load %arg4[%c0_44, %c0_45, %c0_46] : memref<1x5x128xf32, #tpu.memory_space<vmem>>, vector<1x5x128xf32>
    tpu.vector_store %arg4[%c0_44, %c0_45, %c0_46], %100 {strides = array<i32>} : memref<1x5x128xf32, #tpu.memory_space<vmem>>, vector<1x5x128xf32>,
    return
  }
  func.func @transform_0(%arg0: i32) -> (i32, i32, i32) {
    %c0_i32 = arith.constant 0 : i32
    %c0_i32_0 = arith.constant 0 : i32
    %c0_i32_1 = arith.constant 0 : i32
    return %arg0, %c0_i32, %c0_i32_0 : i32, i32, i32
  }
  func.func @transform_1(%arg0: i32) -> (i32, i32, i32) {
    %c0_i32 = arith.constant 0 : i32
    %c0_i32_0 = arith.constant 0 : i32
    %c0_i32_1 = arith.constant 0 : i32
    return %arg0, %c0_i32, %c0_i32_0 : i32, i32, i32
  }
  func.func @transform_2(%arg0: i32) -> (i32, i32, i32) {
    %c0_i32 = arith.constant 0 : i32
    %c0_i32_0 = arith.constant 0 : i32
    %c0_i32_1 = arith.constant 0 : i32
    return %arg0, %c0_i32, %c0_i32_0 : i32, i32, i32
  }
  func.func @transform_3(%arg0: i32) -> (i32, i32, i32) {
    %c0_i32 = arith.constant 0 : i32
    %c0_i32_0 = arith.constant 0 : i32
    %c0_i32_1 = arith.constant 0 : i32
    return %arg0, %c0_i32, %c0_i32_0 : i32, i32, i32
  }
}

</mosaic_0001>

<llo_original>
// kernel: _lambda_.9
$region0: #{_lambda_.9}
  #allocation0 [shape = 'u32[]', space=smem, size = 0x4, offset = 0x4, fixed_abs, tag = 'smem constant byte address 0x4 - core index']
  #allocation1 [shape = 'u32[72,128]{1,0:T(1,128)}', space=vmem, size = 0x9000, scoped, tag = 'internal scratch']
  %s0 = inlined_call_operand.vmem [shape: f32[2,16,16], index: 0, kind: input, shape index: {}]
  %s1 = inlined_call_operand.vmem [shape: f32[2,16,16], index: 1, kind: input, shape index: {}]
  %s2 = inlined_call_operand.hbm [shape: f32[8,16], index: 2, kind: input, shape index: {}]
  %s3 = inlined_call_operand.hbm [shape: f32[16,8], index: 3, kind: input, shape index: {}]
  %s4 = inlined_call_operand.hbm [shape: f32[16,8], index: 4, kind: input, shape index: {}]
  %s5 = inlined_call_operand.hbm [shape: f32[8,16], index: 5, kind: input, shape index: {}]
  %s6 = inlined_call_operand.vmem [shape: f32[2,8,8], index: 6, kind: output, shape index: {0}]
  %s7 = inlined_call_operand.vmem [shape: f32[2,8,8], index: 7, kind: output, shape index: {1}]
  %s8 = inlined_call_operand.vmem [shape: f32[1,1,128], index: 8, kind: output, shape index: {2}]
  %9 = xla_tuple %s6, %s7, %s8
  %s10 = sld [smem:[#allocation0]]
  $region66: #{_lambda_.9} parent=0
    _
  %s12 = ssub.s32 1, %s10
  %s13 = scalar_select 0, %s12, %s10
  $region1: #{_lambda_.9} parent=0
    #allocation2 [shape = 'u8[4096]{0}', space=vmem, size = 0x1000, scoped, tag = 'input window, operand 2, single buffered']
    #allocation3 [shape = 's32[1]{0}', space=sflag, size = 0x4, scoped, tag = 'scoped memory for _lambda_.9']
    #allocation4 [shape = 'u8[8192]{0}', space=vmem, size = 0x2000, scoped, tag = 'input window, operand 3, single buffered']
    #allocation5 [shape = 's32[1]{0}', space=sflag, size = 0x4, scoped, tag = 'scoped memory for _lambda_.9']
    #allocation6 [shape = 'u8[8192]{0}', space=vmem, size = 0x2000, scoped, tag = 'input window, operand 4, single buffered']
    #allocation7 [shape = 'u8[4096]{0}', space=vmem, size = 0x1000, scoped, tag = 'input window, operand 5, single buffered']
    #allocation8 [shape = 's32[1]{0}', space=sflag, size = 0x4, scoped, tag = 'scoped memory for _lambda_.9']
    %14 = vsyncpa [#allocation3], 0
    %15 = vsyncpa [#allocation5], 0
    %16 = vsyncpa [#allocation8], 0
    // Predicated region
    $region2: #{_lambda_.9} parent=1 // pred_check
      _
    $region3: #{_lambda_.9} parent=1 // pred_check_branch
      %18 = sbr.rel (0) target = $region5
    $region4: #{_lambda_.9} parent=1 // pred_region
      _
    $region5: #{_lambda_.9} parent=1 // pred_fallthru
      _
    // Predicated region
    $region6: #{_lambda_.9} parent=1 // pred_check
      _
    $region7: #{_lambda_.9} parent=1 // pred_check_branch
      %20 = sbr.rel (0) target = $region9
    $region8: #{_lambda_.9} parent=1 // pred_region
      _
    $region9: #{_lambda_.9} parent=1 // pred_fallthru
      _
    // Predicated region
    $region10: #{_lambda_.9} parent=1 // pred_check
      _
    $region11: #{_lambda_.9} parent=1 // pred_check_branch
      %22 = sbr.rel (0) target = $region13
    $region12: #{_lambda_.9} parent=1 // pred_region
      %24 = vsyncadd [#allocation3], 0
      %s26 = sshll.u32 %s2, 4
      %s27 = int_to_ptr.hbm [resolvable:$true] %s26
      %s28 = sshll.u32 [#allocation2], 4
      %s29 = int_to_ptr.vmem [resolvable:$true] %s28
      %31 = dma.hbm_to_vmem [thread:$0]  %s27, 128, %s29, [#allocation3]
    $region13: #{_lambda_.9} parent=1 // pred_fallthru
      _
    // Predicated region
    $region14: #{_lambda_.9} parent=1 // pred_check
      _
    $region15: #{_lambda_.9} parent=1 // pred_check_branch
      %33 = sbr.rel (0) target = $region17
    $region16: #{_lambda_.9} parent=1 // pred_region
      %35 = vsyncadd [#allocation5], 0
      %s36 = sshll.u32 %s3, 4
      %s37 = int_to_ptr.hbm [resolvable:$true] %s36
      %s38 = sshll.u32 [#allocation4], 4
      %s39 = int_to_ptr.vmem [resolvable:$true] %s38
      %44 = dma.hbm_to_vmem [thread:$0]  %s37, 256, %s39, [#allocation5], 128, 128, 8
    $region17: #{_lambda_.9} parent=1 // pred_fallthru
      _
    // Predicated region
    $region18: #{_lambda_.9} parent=1 // pred_check
      _
    $region19: #{_lambda_.9} parent=1 // pred_check_branch
      %46 = sbr.rel (0) target = $region21
    $region20: #{_lambda_.9} parent=1 // pred_region
      %48 = vsyncadd [#allocation5], 0
      %s49 = sshll.u32 %s4, 4
      %s50 = int_to_ptr.hbm [resolvable:$true] %s49
      %s51 = sshll.u32 [#allocation6], 4
      %s52 = int_to_ptr.vmem [resolvable:$true] %s51
      %57 = dma.hbm_to_vmem [thread:$0]  %s50, 256, %s52, [#allocation5], 128, 128, 8
    $region21: #{_lambda_.9} parent=1 // pred_fallthru
      _
    // Predicated region
    $region22: #{_lambda_.9} parent=1 // pred_check
      _
    $region23: #{_lambda_.9} parent=1 // pred_check_branch
      %59 = sbr.rel (0) target = $region25
    $region24: #{_lambda_.9} parent=1 // pred_region
      %61 = vsyncadd [#allocation8], 0
      %s63 = sshll.u32 %s5, 4
      %s64 = int_to_ptr.hbm [resolvable:$true] %s63
      %s65 = sshll.u32 [#allocation7], 4
      %s66 = int_to_ptr.vmem [resolvable:$true] %s65
      %68 = dma.hbm_to_vmem [thread:$0]  %s64, 128, %s66, [#allocation8]
    $region25: #{_lambda_.9} parent=1 // pred_fallthru
      _
    // Predicated region
    $region26: #{_lambda_.9} parent=1 // pred_check
      _
    $region27: #{_lambda_.9} parent=1 // pred_check_branch
      %70 = sbr.rel (0) target = $region29
    $region28: #{_lambda_.9} parent=1 // pred_region
      %72 = dma.done [#allocation3], 128
    $region29: #{_lambda_.9} parent=1 // pred_fallthru
      _
    // Predicated region
    $region30: #{_lambda_.9} parent=1 // pred_check
      _
    $region31: #{_lambda_.9} parent=1 // pred_check_branch
      %74 = sbr.rel (0) target = $region33
    $region32: #{_lambda_.9} parent=1 // pred_region
      %76 = dma.done [#allocation5], 256
    $region33: #{_lambda_.9} parent=1 // pred_fallthru
      _
    // Predicated region
    $region34: #{_lambda_.9} parent=1 // pred_check
      _
    $region35: #{_lambda_.9} parent=1 // pred_check_branch
      %78 = sbr.rel (0) target = $region37
    $region36: #{_lambda_.9} parent=1 // pred_region
      %80 = dma.done [#allocation5], 256
    $region37: #{_lambda_.9} parent=1 // pred_fallthru
      _
    // Predicated region
    $region38: #{_lambda_.9} parent=1 // pred_check
      _
    $region39: #{_lambda_.9} parent=1 // pred_check_branch
      %82 = sbr.rel (0) target = $region41
    $region40: #{_lambda_.9} parent=1 // pred_region
      %84 = dma.done [#allocation8], 128
    $region41: #{_lambda_.9} parent=1 // pred_fallthru
      _
    %v85 = vld [vmem:[#allocation2] sm:$0xff]
    %v86 = vld [vmem:[#allocation4] sm:$0xff]
    %v87 = vld [vmem:[#allocation4 + $0x8] sm:$0xff]
    %v88 = vld [vmem:[#allocation6] sm:$0xff]
    %v89 = vld [vmem:[#allocation6 + $0x8] sm:$0xff]
    %v90 = vld [vmem:[#allocation7] sm:$0xff]
    %v91 = vld [vmem:[%s0] sm:$0xff]
    %v92 = vld [vmem:[%s0 + $0x8] sm:$0xff]
    %v93 = vld [vmem:[%s1] sm:$0xff]
    %v94 = vld [vmem:[%s1 + $0x8] sm:$0xff]
    %vm95 = vcmask 130048
    %v97 = vsel %vm95, %v91, 0
    %v100 = vsel %vm95, %v92, 0
    %102 = vmatpush.msra.mxu0 0.0
    %103 = vmatpush.msra.mxu0 0.0
    %104 = vmatpush.msra.mxu0 0.0
    %105 = vmatpush.msra.mxu0 0.0
    %106 = vmatpush.msra.mxu0 0.0
    %107 = vmatpush.msra.mxu0 0.0
    %108 = vmatpush.msra.mxu0 0.0
    %109 = vmatpush.msra.mxu0 0.0
    %110 = vmatpush.msra.mxu0 0.0
    %111 = vmatpush.msra.mxu0 0.0
    %112 = vmatpush.msra.mxu0 0.0
    %113 = vmatpush.msra.mxu0 0.0
    %114 = vmatpush.msra.mxu0 0.0
    %115 = vmatpush.msra.mxu0 0.0
    %116 = vmatpush.msra.mxu0 %v87
    %117 = vmatpush.msra.mxu0 %v86
    %118 = vmatmul.f32.gmra.mxu0 %v97
    %v119 = vpop.f32.mrf.mxu0
    %v120 = vadd.f32 0.0, %v119
    %121 = vmatmul.f32.gmra.mxu0 %v100
    %v122 = vpop.f32.mrf.mxu0
    %v123 = vadd.f32 0.0, %v122
    %124 = vdwg.mxu0
    %v126 = vsel %vm95, %v85, 0
    %128 = vmatpush.msra.mxu0 0.0
    %129 = vmatpush.msra.mxu0 0.0
    %130 = vmatpush.msra.mxu0 0.0
    %131 = vmatpush.msra.mxu0 0.0
    %132 = vmatpush.msra.mxu0 0.0
    %133 = vmatpush.msra.mxu0 0.0
    %134 = vmatpush.msra.mxu0 0.0
    %135 = vmatpush.msra.mxu0 0.0
    %136 = vmatpush.msra.mxu0 0.0
    %137 = vmatpush.msra.mxu0 0.0
    %138 = vmatpush.msra.mxu0 0.0
    %139 = vmatpush.msra.mxu0 0.0
    %140 = vmatpush.msra.mxu0 0.0
    %141 = vmatpush.msra.mxu0 0.0
    %142 = vmatpush.msra.mxu0 %v123
    %143 = vmatpush.msra.mxu0 %v120
    %144 = vmatmul.f32.gmra.mxu0 %v126
    %v145 = vpop.f32.mrf.mxu0
    %v146 = vadd.f32 0.0, %v145
    %147 = vdwg.mxu0
    %v149 = vsel %vm95, %v93, 0
    %v152 = vsel %vm95, %v94, 0
    %154 = vmatpush.msra.mxu0 0.0
    %155 = vmatpush.msra.mxu0 0.0
    %156 = vmatpush.msra.mxu0 0.0
    %157 = vmatpush.msra.mxu0 0.0
    %158 = vmatpush.msra.mxu0 0.0
    %159 = vmatpush.msra.mxu0 0.0
    %160 = vmatpush.msra.mxu0 0.0
    %161 = vmatpush.msra.mxu0 0.0
    %162 = vmatpush.msra.mxu0 0.0
    %163 = vmatpush.msra.mxu0 0.0
    %164 = vmatpush.msra.mxu0 0.0
    %165 = vmatpush.msra.mxu0 0.0
    %166 = vmatpush.msra.mxu0 0.0
    %167 = vmatpush.msra.mxu0 0.0
    %168 = vmatpush.msra.mxu0 %v87
    %169 = vmatpush.msra.mxu0 %v86
    %170 = vmatmul.f32.gmra.mxu0 %v149
    %v171 = vpop.f32.mrf.mxu0
    %v172 = vadd.f32 0.0, %v171
    %173 = vmatmul.f32.gmra.mxu0 %v152
    %v174 = vpop.f32.mrf.mxu0
    %v175 = vadd.f32 0.0, %v174
    %176 = vdwg.mxu0
    %177 = vmatpush.msra.mxu0 0.0
    %178 = vmatpush.msra.mxu0 0.0
    %179 = vmatpush.msra.mxu0 0.0
    %180 = vmatpush.msra.mxu0 0.0
    %181 = vmatpush.msra.mxu0 0.0
    %182 = vmatpush.msra.mxu0 0.0
    %183 = vmatpush.msra.mxu0 0.0
    %184 = vmatpush.msra.mxu0 0.0
    %185 = vmatpush.msra.mxu0 0.0
    %186 = vmatpush.msra.mxu0 0.0
    %187 = vmatpush.msra.mxu0 0.0
    %188 = vmatpush.msra.mxu0 0.0
    %189 = vmatpush.msra.mxu0 0.0
    %190 = vmatpush.msra.mxu0 0.0
    %191 = vmatpush.msra.mxu0 %v175
    %192 = vmatpush.msra.mxu0 %v172
    %193 = vmatmul.f32.gmra.mxu0 %v126
    %v194 = vpop.f32.mrf.mxu0
    %v195 = vadd.f32 0.0, %v194
    %196 = vdwg.mxu0
    %vm197 = vcmask 64512
    %198 = vst.msk [vmem:[%s6] sm:$0xff] %vm197, %v146
    %199 = vst.msk [vmem:[%s7] sm:$0xff] %vm197, %v195
    %v201 = vsel %vm197, %v146, 0
    %203 = vmatpush.msra.mxu0 0.0
    %204 = vmatpush.msra.mxu0 0.0
    %205 = vmatpush.msra.mxu0 0.0
    %206 = vmatpush.msra.mxu0 0.0
    %207 = vmatpush.msra.mxu0 0.0
    %208 = vmatpush.msra.mxu0 0.0
    %209 = vmatpush.msra.mxu0 0.0
    %210 = vmatpush.msra.mxu0 0.0
    %211 = vmatpush.msra.mxu0 0.0
    %212 = vmatpush.msra.mxu0 0.0
    %213 = vmatpush.msra.mxu0 0.0
    %214 = vmatpush.msra.mxu0 0.0
    %215 = vmatpush.msra.mxu0 0.0
    %216 = vmatpush.msra.mxu0 0.0
    %217 = vmatpush.msra.mxu0 0.0
    %218 = vmatpush.msra.mxu0 %v90
    %219 = vmatmul.f32.gmra.mxu0 %v201
    %v220 = vpop.f32.mrf.mxu0
    %v221 = vadd.f32 0.0, %v220
    %222 = vdwg.mxu0
    %v224 = vsel %vm197, %v88, 0
    %v227 = vsel %vm197, %v89, 0
    %229 = vmatpush.msra.mxu0 0.0
    %230 = vmatpush.msra.mxu0 0.0
    %231 = vmatpush.msra.mxu0 0.0
    %232 = vmatpush.msra.mxu0 0.0
    %233 = vmatpush.msra.mxu0 0.0
    %234 = vmatpush.msra.mxu0 0.0
    %235 = vmatpush.msra.mxu0 0.0
    %236 = vmatpush.msra.mxu0 0.0
    %237 = vmatpush.msra.mxu0 0.0
    %238 = vmatpush.msra.mxu0 0.0
    %239 = vmatpush.msra.mxu0 0.0
    %240 = vmatpush.msra.mxu0 0.0
    %241 = vmatpush.msra.mxu0 0.0
    %242 = vmatpush.msra.mxu0 0.0
    %243 = vmatpush.msra.mxu0 0.0
    %244 = vmatpush.msra.mxu0 %v221
    %245 = vmatmul.f32.gmra.mxu0 %v224
    %v246 = vpop.f32.mrf.mxu0
    %v247 = vadd.f32 0.0, %v246
    %248 = vmatmul.f32.gmra.mxu0 %v227
    %v249 = vpop.f32.mrf.mxu0
    %v250 = vadd.f32 0.0, %v249
    %251 = vdwg.mxu0
    %v253 = vsel %vm197, %v195, 0
    %255 = vmatpush.msra.mxu0 0.0
    %256 = vmatpush.msra.mxu0 0.0
    %257 = vmatpush.msra.mxu0 0.0
    %258 = vmatpush.msra.mxu0 0.0
    %259 = vmatpush.msra.mxu0 0.0
    %260 = vmatpush.msra.mxu0 0.0
    %261 = vmatpush.msra.mxu0 0.0
    %262 = vmatpush.msra.mxu0 0.0
    %263 = vmatpush.msra.mxu0 0.0
    %264 = vmatpush.msra.mxu0 0.0
    %265 = vmatpush.msra.mxu0 0.0
    %266 = vmatpush.msra.mxu0 0.0
    %267 = vmatpush.msra.mxu0 0.0
    %268 = vmatpush.msra.mxu0 0.0
    %269 = vmatpush.msra.mxu0 0.0
    %270 = vmatpush.msra.mxu0 %v90
    %271 = vmatmul.f32.gmra.mxu0 %v253
    %v272 = vpop.f32.mrf.mxu0
    %v273 = vadd.f32 0.0, %v272
    %274 = vdwg.mxu0
    %275 = vmatpush.msra.mxu0 0.0
    %276 = vmatpush.msra.mxu0 0.0
    %277 = vmatpush.msra.mxu0 0.0
    %278 = vmatpush.msra.mxu0 0.0
    %279 = vmatpush.msra.mxu0 0.0
    %280 = vmatpush.msra.mxu0 0.0
    %281 = vmatpush.msra.mxu0 0.0
    %282 = vmatpush.msra.mxu0 0.0
    %283 = vmatpush.msra.mxu0 0.0
    %284 = vmatpush.msra.mxu0 0.0
    %285 = vmatpush.msra.mxu0 0.0
    %286 = vmatpush.msra.mxu0 0.0
    %287 = vmatpush.msra.mxu0 0.0
    %288 = vmatpush.msra.mxu0 0.0
    %289 = vmatpush.msra.mxu0 0.0
    %290 = vmatpush.msra.mxu0 %v273
    %291 = vmatmul.f32.gmra.mxu0 %v224
    %v292 = vpop.f32.mrf.mxu0
    %v293 = vadd.f32 0.0, %v292
    %294 = vmatmul.f32.gmra.mxu0 %v227
    %v295 = vpop.f32.mrf.mxu0
    %v296 = vadd.f32 0.0, %v295
    %297 = vdwg.mxu0
    %v298 = vsub.f32 %v91, %v247
    %v299 = vsub.f32 %v92, %v250
    %v300 = vsub.f32 %v93, %v293
    %v301 = vsub.f32 %v94, %v296
    %v302 = vsub.f32 %v298, %v300
    %v303 = vsub.f32 %v299, %v301
    %v304 = vand.u32 2147483647, %v302
    %v305 = vand.u32 2147483647, %v303
    %v306 = vsel %vm95, %v304, 0.0
    %v307 = vsel %vm95, %v305, 0.0
    %v308 = vadd.f32 %v306, %v307
    %309 = vadd.xlane.f32.xlu0 %v308
    %v310 = vpop.xlane.xlu0 %309
    %v311 = vrot.slane %v310, 4
    %v312 = vadd.f32 %v310, %v311
    %v313 = vrot.slane %v312, 2
    %v314 = vadd.f32 %v312, %v313
    %v315 = vrot.slane %v314, 1
    %v316 = vadd.f32 %v314, %v315
    %s317 = vtos %v316
    %s318 = sadd.f32 %s317, 0.0
    %s319 = scalar_lea.vmem %s0, 16
    %v320 = vld [vmem:[%s319] sm:$0xff]
    %v321 = vld [vmem:[%s319 + $0x8] sm:$0xff]
    %s322 = scalar_lea.vmem %s1, 16
    %v323 = vld [vmem:[%s322] sm:$0xff]
    %v324 = vld [vmem:[%s322 + $0x8] sm:$0xff]
    %v326 = vsel %vm95, %v320, 0
    %v329 = vsel %vm95, %v321, 0
    %331 = vmatpush.msra.mxu0 0.0
    %332 = vmatpush.msra.mxu0 0.0
    %333 = vmatpush.msra.mxu0 0.0
    %334 = vmatpush.msra.mxu0 0.0
    %335 = vmatpush.msra.mxu0 0.0
    %336 = vmatpush.msra.mxu0 0.0
    %337 = vmatpush.msra.mxu0 0.0
    %338 = vmatpush.msra.mxu0 0.0
    %339 = vmatpush.msra.mxu0 0.0
    %340 = vmatpush.msra.mxu0 0.0
    %341 = vmatpush.msra.mxu0 0.0
    %342 = vmatpush.msra.mxu0 0.0
    %343 = vmatpush.msra.mxu0 0.0
    %344 = vmatpush.msra.mxu0 0.0
    %345 = vmatpush.msra.mxu0 %v87
    %346 = vmatpush.msra.mxu0 %v86
    %347 = vmatmul.f32.gmra.mxu0 %v326
    %v348 = vpop.f32.mrf.mxu0
    %v349 = vadd.f32 0.0, %v348
    %350 = vmatmul.f32.gmra.mxu0 %v329
    %v351 = vpop.f32.mrf.mxu0
    %v352 = vadd.f32 0.0, %v351
    %353 = vdwg.mxu0
    %354 = vmatpush.msra.mxu0 0.0
    %355 = vmatpush.msra.mxu0 0.0
    %356 = vmatpush.msra.mxu0 0.0
    %357 = vmatpush.msra.mxu0 0.0
    %358 = vmatpush.msra.mxu0 0.0
    %359 = vmatpush.msra.mxu0 0.0
    %360 = vmatpush.msra.mxu0 0.0
    %361 = vmatpush.msra.mxu0 0.0
    %362 = vmatpush.msra.mxu0 0.0
    %363 = vmatpush.msra.mxu0 0.0
    %364 = vmatpush.msra.mxu0 0.0
    %365 = vmatpush.msra.mxu0 0.0
    %366 = vmatpush.msra.mxu0 0.0
    %367 = vmatpush.msra.mxu0 0.0
    %368 = vmatpush.msra.mxu0 %v352
    %369 = vmatpush.msra.mxu0 %v349
    %370 = vmatmul.f32.gmra.mxu0 %v126
    %v371 = vpop.f32.mrf.mxu0
    %v372 = vadd.f32 0.0, %v371
    %373 = vdwg.mxu0
    %v375 = vsel %vm95, %v323, 0
    %v378 = vsel %vm95, %v324, 0
    %380 = vmatpush.msra.mxu0 0.0
    %381 = vmatpush.msra.mxu0 0.0
    %382 = vmatpush.msra.mxu0 0.0
    %383 = vmatpush.msra.mxu0 0.0
    %384 = vmatpush.msra.mxu0 0.0
    %385 = vmatpush.msra.mxu0 0.0
    %386 = vmatpush.msra.mxu0 0.0
    %387 = vmatpush.msra.mxu0 0.0
    %388 = vmatpush.msra.mxu0 0.0
    %389 = vmatpush.msra.mxu0 0.0
    %390 = vmatpush.msra.mxu0 0.0
    %391 = vmatpush.msra.mxu0 0.0
    %392 = vmatpush.msra.mxu0 0.0
    %393 = vmatpush.msra.mxu0 0.0
    %394 = vmatpush.msra.mxu0 %v87
    %395 = vmatpush.msra.mxu0 %v86
    %396 = vmatmul.f32.gmra.mxu0 %v375
    %v397 = vpop.f32.mrf.mxu0
    %v398 = vadd.f32 0.0, %v397
    %399 = vmatmul.f32.gmra.mxu0 %v378
    %v400 = vpop.f32.mrf.mxu0
    %v401 = vadd.f32 0.0, %v400
    %402 = vdwg.mxu0
    %403 = vmatpush.msra.mxu0 0.0
    %404 = vmatpush.msra.mxu0 0.0
    %405 = vmatpush.msra.mxu0 0.0
    %406 = vmatpush.msra.mxu0 0.0
    %407 = vmatpush.msra.mxu0 0.0
    %408 = vmatpush.msra.mxu0 0.0
    %409 = vmatpush.msra.mxu0 0.0
    %410 = vmatpush.msra.mxu0 0.0
    %411 = vmatpush.msra.mxu0 0.0
    %412 = vmatpush.msra.mxu0 0.0
    %413 = vmatpush.msra.mxu0 0.0
    %414 = vmatpush.msra.mxu0 0.0
    %415 = vmatpush.msra.mxu0 0.0
    %416 = vmatpush.msra.mxu0 0.0
    %417 = vmatpush.msra.mxu0 %v401
    %418 = vmatpush.msra.mxu0 %v398
    %419 = vmatmul.f32.gmra.mxu0 %v126
    %v420 = vpop.f32.mrf.mxu0
    %v421 = vadd.f32 0.0, %v420
    %422 = vdwg.mxu0
    %s423 = scalar_lea.vmem %s6, 8
    %424 = vst.msk [vmem:[%s423] sm:$0xff] %vm197, %v372
    %s425 = scalar_lea.vmem %s7, 8
    %426 = vst.msk [vmem:[%s425] sm:$0xff] %vm197, %v421
    %v428 = vsel %vm197, %v372, 0
    %430 = vmatpush.msra.mxu0 0.0
    %431 = vmatpush.msra.mxu0 0.0
    %432 = vmatpush.msra.mxu0 0.0
    %433 = vmatpush.msra.mxu0 0.0
    %434 = vmatpush.msra.mxu0 0.0
    %435 = vmatpush.msra.mxu0 0.0
    %436 = vmatpush.msra.mxu0 0.0
    %437 = vmatpush.msra.mxu0 0.0
    %438 = vmatpush.msra.mxu0 0.0
    %439 = vmatpush.msra.mxu0 0.0
    %440 = vmatpush.msra.mxu0 0.0
    %441 = vmatpush.msra.mxu0 0.0
    %442 = vmatpush.msra.mxu0 0.0
    %443 = vmatpush.msra.mxu0 0.0
    %444 = vmatpush.msra.mxu0 0.0
    %445 = vmatpush.msra.mxu0 %v90
    %446 = vmatmul.f32.gmra.mxu0 %v428
    %v447 = vpop.f32.mrf.mxu0
    %v448 = vadd.f32 0.0, %v447
    %449 = vdwg.mxu0
    %450 = vmatpush.msra.mxu0 0.0
    %451 = vmatpush.msra.mxu0 0.0
    %452 = vmatpush.msra.mxu0 0.0
    %453 = vmatpush.msra.mxu0 0.0
    %454 = vmatpush.msra.mxu0 0.0
    %455 = vmatpush.msra.mxu0 0.0
    %456 = vmatpush.msra.mxu0 0.0
    %457 = vmatpush.msra.mxu0 0.0
    %458 = vmatpush.msra.mxu0 0.0
    %459 = vmatpush.msra.mxu0 0.0
    %460 = vmatpush.msra.mxu0 0.0
    %461 = vmatpush.msra.mxu0 0.0
    %462 = vmatpush.msra.mxu0 0.0
    %463 = vmatpush.msra.mxu0 0.0
    %464 = vmatpush.msra.mxu0 0.0
    %465 = vmatpush.msra.mxu0 %v448
    %466 = vmatmul.f32.gmra.mxu0 %v224
    %v467 = vpop.f32.mrf.mxu0
    %v468 = vadd.f32 0.0, %v467
    %469 = vmatmul.f32.gmra.mxu0 %v227
    %v470 = vpop.f32.mrf.mxu0
    %v471 = vadd.f32 0.0, %v470
    %472 = vdwg.mxu0
    %v474 = vsel %vm197, %v421, 0
    %476 = vmatpush.msra.mxu0 0.0
    %477 = vmatpush.msra.mxu0 0.0
    %478 = vmatpush.msra.mxu0 0.0
    %479 = vmatpush.msra.mxu0 0.0
    %480 = vmatpush.msra.mxu0 0.0
    %481 = vmatpush.msra.mxu0 0.0
    %482 = vmatpush.msra.mxu0 0.0
    %483 = vmatpush.msra.mxu0 0.0
    %484 = vmatpush.msra.mxu0 0.0
    %485 = vmatpush.msra.mxu0 0.0
    %486 = vmatpush.msra.mxu0 0.0
    %487 = vmatpush.msra.mxu0 0.0
    %488 = vmatpush.msra.mxu0 0.0
    %489 = vmatpush.msra.mxu0 0.0
    %490 = vmatpush.msra.mxu0 0.0
    %491 = vmatpush.msra.mxu0 %v90
    %492 = vmatmul.f32.gmra.mxu0 %v474
    %v493 = vpop.f32.mrf.mxu0
    %v494 = vadd.f32 0.0, %v493
    %495 = vdwg.mxu0
    %496 = vmatpush.msra.mxu0 0.0
    %497 = vmatpush.msra.mxu0 0.0
    %498 = vmatpush.msra.mxu0 0.0
    %499 = vmatpush.msra.mxu0 0.0
    %500 = vmatpush.msra.mxu0 0.0
    %501 = vmatpush.msra.mxu0 0.0
    %502 = vmatpush.msra.mxu0 0.0
    %503 = vmatpush.msra.mxu0 0.0
    %504 = vmatpush.msra.mxu0 0.0
    %505 = vmatpush.msra.mxu0 0.0
    %506 = vmatpush.msra.mxu0 0.0
    %507 = vmatpush.msra.mxu0 0.0
    %508 = vmatpush.msra.mxu0 0.0
    %509 = vmatpush.msra.mxu0 0.0
    %510 = vmatpush.msra.mxu0 0.0
    %511 = vmatpush.msra.mxu0 %v494
    %512 = vmatmul.f32.gmra.mxu0 %v224
    %v513 = vpop.f32.mrf.mxu0
    %v514 = vadd.f32 0.0, %v513
    %515 = vmatmul.f32.gmra.mxu0 %v227
    %v516 = vpop.f32.mrf.mxu0
    %v517 = vadd.f32 0.0, %v516
    %518 = vdwg.mxu0
    %v519 = vsub.f32 %v320, %v468
    %v520 = vsub.f32 %v321, %v471
    %v521 = vsub.f32 %v323, %v514
    %v522 = vsub.f32 %v324, %v517
    %v523 = vsub.f32 %v519, %v521
    %v524 = vsub.f32 %v520, %v522
    %v525 = vand.u32 2147483647, %v523
    %v526 = vand.u32 2147483647, %v524
    %v527 = vsel %vm95, %v525, 0.0
    %v528 = vsel %vm95, %v526, 0.0
    %v529 = vadd.f32 %v527, %v528
    %530 = vadd.xlane.f32.xlu0 %v529
    %v531 = vpop.xlane.xlu0 %530
    %v532 = vrot.slane %v531, 4
    %v533 = vadd.f32 %v531, %v532
    %v534 = vrot.slane %v533, 2
    %v535 = vadd.f32 %v533, %v534
    %v536 = vrot.slane %v535, 1
    %v537 = vadd.f32 %v535, %v536
    %s538 = vtos %v537
    %s539 = sadd.f32 %s318, %s538
    %v540 = vstv %s539
    %541 = vst [vmem:[%s8] sm:$0x1] %v540
    // Predicated region
    $region42: #{_lambda_.9} parent=1 // pred_check
      _
    $region43: #{_lambda_.9} parent=1 // pred_check_branch
      %543 = sbr.rel (0) target = $region45
    $region44: #{_lambda_.9} parent=1 // pred_region
      _
    $region45: #{_lambda_.9} parent=1 // pred_fallthru
      _
    // Predicated region
    $region46: #{_lambda_.9} parent=1 // pred_check
      _
    $region47: #{_lambda_.9} parent=1 // pred_check_branch
      %545 = sbr.rel (0) target = $region49
    $region48: #{_lambda_.9} parent=1 // pred_region
      _
    $region49: #{_lambda_.9} parent=1 // pred_fallthru
      _
    // Predicated region
    $region50: #{_lambda_.9} parent=1 // pred_check
      _
    $region51: #{_lambda_.9} parent=1 // pred_check_branch
      %547 = sbr.rel (0) target = $region53
    $region52: #{_lambda_.9} parent=1 // pred_region
      _
    $region53: #{_lambda_.9} parent=1 // pred_fallthru
      _
    // Predicated region
    $region54: #{_lambda_.9} parent=1 // pred_check
      _
    $region55: #{_lambda_.9} parent=1 // pred_check_branch
      %549 = sbr.rel (0) target = $region57
    $region56: #{_lambda_.9} parent=1 // pred_region
      _
    $region57: #{_lambda_.9} parent=1 // pred_fallthru
      _
    // Predicated region
    $region58: #{_lambda_.9} parent=1 // pred_check
      _
    $region59: #{_lambda_.9} parent=1 // pred_check_branch
      %551 = sbr.rel (0) target = $region61
    $region60: #{_lambda_.9} parent=1 // pred_region
      _
    $region61: #{_lambda_.9} parent=1 // pred_fallthru
      _
    // Predicated region
    $region62: #{_lambda_.9} parent=1 // pred_check
      _
    $region63: #{_lambda_.9} parent=1 // pred_check_branch
      %553 = sbr.rel (0) target = $region65
    $region64: #{_lambda_.9} parent=1 // pred_region
      _
    $region65: #{_lambda_.9} parent=1 // pred_fallthru
      _
    %554 = vsyncpa [#allocation3], 1
    %555 = vsyncpa [#allocation5], 1
    %556 = vsyncpa [#allocation8], 1

// kernel: _lambda_.8
$region0: #{_lambda_.8}
  #allocation0 [shape = 'u32[]', space=smem, size = 0x4, offset = 0x4, fixed_abs, tag = 'smem constant byte address 0x4 - core index']
  #allocation1 [shape = 'u32[72,128]{1,0:T(1,128)}', space=vmem, size = 0x9000, scoped, tag = 'internal scratch']
  %s0 = inlined_call_operand.vmem [shape: f32[2,32,32], index: 0, kind: input, shape index: {}]
  %s1 = inlined_call_operand.vmem [shape: f32[2,32,32], index: 1, kind: input, shape index: {}]
  %s2 = inlined_call_operand.hbm [shape: f32[16,32], index: 2, kind: input, shape index: {}]
  %s3 = inlined_call_operand.hbm [shape: f32[32,16], index: 3, kind: input, shape index: {}]
  %s4 = inlined_call_operand.hbm [shape: f32[32,16], index: 4, kind: input, shape index: {}]
  %s5 = inlined_call_operand.hbm [shape: f32[16,32], index: 5, kind: input, shape index: {}]
  %s6 = inlined_call_operand.vmem [shape: f32[2,16,16], index: 6, kind: output, shape index: {0}]
  %s7 = inlined_call_operand.vmem [shape: f32[2,16,16], index: 7, kind: output, shape index: {1}]
  %s8 = inlined_call_operand.vmem [shape: f32[1,1,128], index: 8, kind: output, shape index: {2}]
  %9 = xla_tuple %s6, %s7, %s8
  %s10 = sld [smem:[#allocation0]]
  $region66: #{_lambda_.8} parent=0
    _
  %s12 = ssub.s32 1, %s10
  %s13 = scalar_select 0, %s12, %s10
  $region1: #{_lambda_.8} parent=0
    #allocation2 [shape = 'u8[8192]{0}', space=vmem, size = 0x2000, scoped, tag = 'input window, operand 2, single buffered']
    #allocation3 [shape = 's32[1]{0}', space=sflag, size = 0x4, scoped, tag = 'scoped memory for _lambda_.8']
    #allocation4 [shape = 'u8[16384]{0}', space=vmem, size = 0x4000, scoped, tag = 'input window, operand 3, single buffered']
    #allocation5 [shape = 's32[1]{0}', space=sflag, size = 0x4, scoped, tag = 'scoped memory for _lambda_.8']
    #allocation6 [shape = 'u8[16384]{0}', space=vmem, size = 0x4000, scoped, tag = 'input window, operand 4, single buffered']
    #allocation7 [shape = 'u8[8192]{0}', space=vmem, size = 0x2000, scoped, tag = 'input window, operand 5, single buffered']
    #allocation8 [shape = 's32[1]{0}', space=sflag, size = 0x4, scoped, tag = 'scoped memory for _lambda_.8']
    %14 = vsyncpa [#allocation3], 0
    %15 = vsyncpa [#allocation5], 0
    %16 = vsyncpa [#allocation8], 0
    // Predicated region
    $region2: #{_lambda_.8} parent=1 // pred_check
      _
    $region3: #{_lambda_.8} parent=1 // pred_check_branch
      %18 = sbr.rel (0) target = $region5
    $region4: #{_lambda_.8} parent=1 // pred_region
      _
    $region5: #{_lambda_.8} parent=1 // pred_fallthru
      _
    // Predicated region
    $region6: #{_lambda_.8} parent=1 // pred_check
      _
    $region7: #{_lambda_.8} parent=1 // pred_check_branch
      %20 = sbr.rel (0) target = $region9
    $region8: #{_lambda_.8} parent=1 // pred_region
      _
    $region9: #{_lambda_.8} parent=1 // pred_fallthru
      _
    // Predicated region
    $region10: #{_lambda_.8} parent=1 // pred_check
      _
    $region11: #{_lambda_.8} parent=1 // pred_check_branch
      %22 = sbr.rel (0) target = $region13
    $region12: #{_lambda_.8} parent=1 // pred_region
      %24 = vsyncadd [#allocation3], 0
      %s25 = sshll.u32 %s2, 4
      %s26 = int_to_ptr.hbm [resolvable:$true] %s25
      %s27 = sshll.u32 [#allocation2], 4
      %s28 = int_to_ptr.vmem [resolvable:$true] %s27
      %33 = dma.hbm_to_vmem [thread:$0]  %s26, 256, %s28, [#allocation3], 128, 128, 8
    $region13: #{_lambda_.8} parent=1 // pred_fallthru
      _
    // Predicated region
    $region14: #{_lambda_.8} parent=1 // pred_check
      _
    $region15: #{_lambda_.8} parent=1 // pred_check_branch
      %35 = sbr.rel (0) target = $region17
    $region16: #{_lambda_.8} parent=1 // pred_region
      %37 = vsyncadd [#allocation5], 0
      %s38 = sshll.u32 %s3, 4
      %s39 = int_to_ptr.hbm [resolvable:$true] %s38
      %s40 = sshll.u32 [#allocation4], 4
      %s41 = int_to_ptr.vmem [resolvable:$true] %s40
      %46 = dma.hbm_to_vmem [thread:$0]  %s39, 512, %s41, [#allocation5], 128, 128, 8
    $region17: #{_lambda_.8} parent=1 // pred_fallthru
      _
    // Predicated region
    $region18: #{_lambda_.8} parent=1 // pred_check
      _
    $region19: #{_lambda_.8} parent=1 // pred_check_branch
      %48 = sbr.rel (0) target = $region21
    $region20: #{_lambda_.8} parent=1 // pred_region
      %50 = vsyncadd [#allocation5], 0
      %s51 = sshll.u32 %s4, 4
      %s52 = int_to_ptr.hbm [resolvable:$true] %s51
      %s53 = sshll.u32 [#allocation6], 4
      %s54 = int_to_ptr.vmem [resolvable:$true] %s53
      %59 = dma.hbm_to_vmem [thread:$0]  %s52, 512, %s54, [#allocation5], 128, 128, 8
    $region21: #{_lambda_.8} parent=1 // pred_fallthru
      _
    // Predicated region
    $region22: #{_lambda_.8} parent=1 // pred_check
      _
    $region23: #{_lambda_.8} parent=1 // pred_check_branch
      %61 = sbr.rel (0) target = $region25
    $region24: #{_lambda_.8} parent=1 // pred_region
      %63 = vsyncadd [#allocation8], 0
      %s64 = sshll.u32 %s5, 4
      %s65 = int_to_ptr.hbm [resolvable:$true] %s64
      %s66 = sshll.u32 [#allocation7], 4
      %s67 = int_to_ptr.vmem [resolvable:$true] %s66
      %72 = dma.hbm_to_vmem [thread:$0]  %s65, 256, %s67, [#allocation8], 128, 128, 8
    $region25: #{_lambda_.8} parent=1 // pred_fallthru
      _
    // Predicated region
    $region26: #{_lambda_.8} parent=1 // pred_check
      _
    $region27: #{_lambda_.8} parent=1 // pred_check_branch
      %74 = sbr.rel (0) target = $region29
    $region28: #{_lambda_.8} parent=1 // pred_region
      %76 = dma.done [#allocation3], 256
    $region29: #{_lambda_.8} parent=1 // pred_fallthru
      _
    // Predicated region
    $region30: #{_lambda_.8} parent=1 // pred_check
      _
    $region31: #{_lambda_.8} parent=1 // pred_check_branch
      %78 = sbr.rel (0) target = $region33
    $region32: #{_lambda_.8} parent=1 // pred_region
      %80 = dma.done [#allocation5], 512
    $region33: #{_lambda_.8} parent=1 // pred_fallthru
      _
    // Predicated region
    $region34: #{_lambda_.8} parent=1 // pred_check
      _
    $region35: #{_lambda_.8} parent=1 // pred_check_branch
      %82 = sbr.rel (0) target = $region37
    $region36: #{_lambda_.8} parent=1 // pred_region
      %84 = dma.done [#allocation5], 512
    $region37: #{_lambda_.8} parent=1 // pred_fallthru
      _
    // Predicated region
    $region38: #{_lambda_.8} parent=1 // pred_check
      _
    $region39: #{_lambda_.8} parent=1 // pred_check_branch
      %86 = sbr.rel (0) target = $region41
    $region40: #{_lambda_.8} parent=1 // pred_region
      %88 = dma.done [#allocation8], 256
    $region41: #{_lambda_.8} parent=1 // pred_fallthru
      _
    %v89 = vld [vmem:[#allocation2] sm:$0xff]
    %v90 = vld [vmem:[#allocation2 + $0x8] sm:$0xff]
    %v91 = vld [vmem:[#allocation4] sm:$0xff]
    %v92 = vld [vmem:[#allocation4 + $0x8] sm:$0xff]
    %v93 = vld [vmem:[#allocation4 + $0x10] sm:$0xff]
    %v94 = vld [vmem:[#allocation4 + $0x18] sm:$0xff]
    %v95 = vld [vmem:[#allocation6] sm:$0xff]
    %v96 = vld [vmem:[#allocation6 + $0x8] sm:$0xff]
    %v97 = vld [vmem:[#allocation6 + $0x10] sm:$0xff]
    %v98 = vld [vmem:[#allocation6 + $0x18] sm:$0xff]
    %v99 = vld [vmem:[#allocation7] sm:$0xff]
    %v100 = vld [vmem:[#allocation7 + $0x8] sm:$0xff]
    %v101 = vld [vmem:[%s0] sm:$0xff]
    %v102 = vld [vmem:[%s0 + $0x8] sm:$0xff]
    %v103 = vld [vmem:[%s0 + $0x10] sm:$0xff]
    %v104 = vld [vmem:[%s0 + $0x18] sm:$0xff]
    %v105 = vld [vmem:[%s1] sm:$0xff]
    %v106 = vld [vmem:[%s1 + $0x8] sm:$0xff]
    %v107 = vld [vmem:[%s1 + $0x10] sm:$0xff]
    %v108 = vld [vmem:[%s1 + $0x18] sm:$0xff]
    %vm109 = vcmask 261120
    %v111 = vsel %vm109, %v101, 0
    %v114 = vsel %vm109, %v102, 0
    %v117 = vsel %vm109, %v103, 0
    %v120 = vsel %vm109, %v104, 0
    %122 = vmatpush.msra.mxu0 0.0
    %123 = vmatpush.msra.mxu0 0.0
    %124 = vmatpush.msra.mxu0 0.0
    %125 = vmatpush.msra.mxu0 0.0
    %126 = vmatpush.msra.mxu0 0.0
    %127 = vmatpush.msra.mxu0 0.0
    %128 = vmatpush.msra.mxu0 0.0
    %129 = vmatpush.msra.mxu0 0.0
    %130 = vmatpush.msra.mxu0 0.0
    %131 = vmatpush.msra.mxu0 0.0
    %132 = vmatpush.msra.mxu0 0.0
    %133 = vmatpush.msra.mxu0 0.0
    %134 = vmatpush.msra.mxu0 %v94
    %135 = vmatpush.msra.mxu0 %v93
    %136 = vmatpush.msra.mxu0 %v92
    %137 = vmatpush.msra.mxu0 %v91
    %138 = vmatmul.f32.gmra.mxu0 %v111
    %v139 = vpop.f32.mrf.mxu0
    %v140 = vadd.f32 0.0, %v139
    %141 = vmatmul.f32.gmra.mxu0 %v114
    %v142 = vpop.f32.mrf.mxu0
    %v143 = vadd.f32 0.0, %v142
    %144 = vmatmul.f32.gmra.mxu0 %v117
    %v145 = vpop.f32.mrf.mxu0
    %v146 = vadd.f32 0.0, %v145
    %147 = vmatmul.f32.gmra.mxu0 %v120
    %v148 = vpop.f32.mrf.mxu0
    %v149 = vadd.f32 0.0, %v148
    %150 = vdwg.mxu0
    %v152 = vsel %vm109, %v89, 0
    %v155 = vsel %vm109, %v90, 0
    %157 = vmatpush.msra.mxu0 0.0
    %158 = vmatpush.msra.mxu0 0.0
    %159 = vmatpush.msra.mxu0 0.0
    %160 = vmatpush.msra.mxu0 0.0
    %161 = vmatpush.msra.mxu0 0.0
    %162 = vmatpush.msra.mxu0 0.0
    %163 = vmatpush.msra.mxu0 0.0
    %164 = vmatpush.msra.mxu0 0.0
    %165 = vmatpush.msra.mxu0 0.0
    %166 = vmatpush.msra.mxu0 0.0
    %167 = vmatpush.msra.mxu0 0.0
    %168 = vmatpush.msra.mxu0 0.0
    %169 = vmatpush.msra.mxu0 %v149
    %170 = vmatpush.msra.mxu0 %v146
    %171 = vmatpush.msra.mxu0 %v143
    %172 = vmatpush.msra.mxu0 %v140
    %173 = vmatmul.f32.gmra.mxu0 %v152
    %v174 = vpop.f32.mrf.mxu0
    %v175 = vadd.f32 0.0, %v174
    %176 = vmatmul.f32.gmra.mxu0 %v155
    %v177 = vpop.f32.mrf.mxu0
    %v178 = vadd.f32 0.0, %v177
    %179 = vdwg.mxu0
    %v181 = vsel %vm109, %v105, 0
    %v184 = vsel %vm109, %v106, 0
    %v187 = vsel %vm109, %v107, 0
    %v190 = vsel %vm109, %v108, 0
    %192 = vmatpush.msra.mxu0 0.0
    %193 = vmatpush.msra.mxu0 0.0
    %194 = vmatpush.msra.mxu0 0.0
    %195 = vmatpush.msra.mxu0 0.0
    %196 = vmatpush.msra.mxu0 0.0
    %197 = vmatpush.msra.mxu0 0.0
    %198 = vmatpush.msra.mxu0 0.0
    %199 = vmatpush.msra.mxu0 0.0
    %200 = vmatpush.msra.mxu0 0.0
    %201 = vmatpush.msra.mxu0 0.0
    %202 = vmatpush.msra.mxu0 0.0
    %203 = vmatpush.msra.mxu0 0.0
    %204 = vmatpush.msra.mxu0 %v94
    %205 = vmatpush.msra.mxu0 %v93
    %206 = vmatpush.msra.mxu0 %v92
    %207 = vmatpush.msra.mxu0 %v91
    %208 = vmatmul.f32.gmra.mxu0 %v181
    %v209 = vpop.f32.mrf.mxu0
    %v210 = vadd.f32 0.0, %v209
    %211 = vmatmul.f32.gmra.mxu0 %v184
    %v212 = vpop.f32.mrf.mxu0
    %v213 = vadd.f32 0.0, %v212
    %214 = vmatmul.f32.gmra.mxu0 %v187
    %v215 = vpop.f32.mrf.mxu0
    %v216 = vadd.f32 0.0, %v215
    %217 = vmatmul.f32.gmra.mxu0 %v190
    %v218 = vpop.f32.mrf.mxu0
    %v219 = vadd.f32 0.0, %v218
    %220 = vdwg.mxu0
    %221 = vmatpush.msra.mxu0 0.0
    %222 = vmatpush.msra.mxu0 0.0
    %223 = vmatpush.msra.mxu0 0.0
    %224 = vmatpush.msra.mxu0 0.0
    %225 = vmatpush.msra.mxu0 0.0
    %226 = vmatpush.msra.mxu0 0.0
    %227 = vmatpush.msra.mxu0 0.0
    %228 = vmatpush.msra.mxu0 0.0
    %229 = vmatpush.msra.mxu0 0.0
    %230 = vmatpush.msra.mxu0 0.0
    %231 = vmatpush.msra.mxu0 0.0
    %232 = vmatpush.msra.mxu0 0.0
    %233 = vmatpush.msra.mxu0 %v219
    %234 = vmatpush.msra.mxu0 %v216
    %235 = vmatpush.msra.mxu0 %v213
    %236 = vmatpush.msra.mxu0 %v210
    %237 = vmatmul.f32.gmra.mxu0 %v152
    %v238 = vpop.f32.mrf.mxu0
    %v239 = vadd.f32 0.0, %v238
    %240 = vmatmul.f32.gmra.mxu0 %v155
    %v241 = vpop.f32.mrf.mxu0
    %v242 = vadd.f32 0.0, %v241
    %243 = vdwg.mxu0
    %vm244 = vcmask 130048
    %245 = vst.msk [vmem:[%s6] sm:$0xff] %vm244, %v175
    %246 = vst.msk [vmem:[%s6 + $0x8] sm:$0xff] %vm244, %v178
    %247 = vst.msk [vmem:[%s7] sm:$0xff] %vm244, %v239
    %248 = vst.msk [vmem:[%s7 + $0x8] sm:$0xff] %vm244, %v242
    %v250 = vsel %vm244, %v175, 0
    %v253 = vsel %vm244, %v178, 0
    %255 = vmatpush.msra.mxu0 0.0
    %256 = vmatpush.msra.mxu0 0.0
    %257 = vmatpush.msra.mxu0 0.0
    %258 = vmatpush.msra.mxu0 0.0
    %259 = vmatpush.msra.mxu0 0.0
    %260 = vmatpush.msra.mxu0 0.0
    %261 = vmatpush.msra.mxu0 0.0
    %262 = vmatpush.msra.mxu0 0.0
    %263 = vmatpush.msra.mxu0 0.0
    %264 = vmatpush.msra.mxu0 0.0
    %265 = vmatpush.msra.mxu0 0.0
    %266 = vmatpush.msra.mxu0 0.0
    %267 = vmatpush.msra.mxu0 0.0
    %268 = vmatpush.msra.mxu0 0.0
    %269 = vmatpush.msra.mxu0 %v100
    %270 = vmatpush.msra.mxu0 %v99
    %271 = vmatmul.f32.gmra.mxu0 %v250
    %v272 = vpop.f32.mrf.mxu0
    %v273 = vadd.f32 0.0, %v272
    %274 = vmatmul.f32.gmra.mxu0 %v253
    %v275 = vpop.f32.mrf.mxu0
    %v276 = vadd.f32 0.0, %v275
    %277 = vdwg.mxu0
    %v279 = vsel %vm244, %v95, 0
    %v282 = vsel %vm244, %v96, 0
    %v285 = vsel %vm244, %v97, 0
    %v288 = vsel %vm244, %v98, 0
    %290 = vmatpush.msra.mxu0 0.0
    %291 = vmatpush.msra.mxu0 0.0
    %292 = vmatpush.msra.mxu0 0.0
    %293 = vmatpush.msra.mxu0 0.0
    %294 = vmatpush.msra.mxu0 0.0
    %295 = vmatpush.msra.mxu0 0.0
    %296 = vmatpush.msra.mxu0 0.0
    %297 = vmatpush.msra.mxu0 0.0
    %298 = vmatpush.msra.mxu0 0.0
    %299 = vmatpush.msra.mxu0 0.0
    %300 = vmatpush.msra.mxu0 0.0
    %301 = vmatpush.msra.mxu0 0.0
    %302 = vmatpush.msra.mxu0 0.0
    %303 = vmatpush.msra.mxu0 0.0
    %304 = vmatpush.msra.mxu0 %v276
    %305 = vmatpush.msra.mxu0 %v273
    %306 = vmatmul.f32.gmra.mxu0 %v279
    %v307 = vpop.f32.mrf.mxu0
    %v308 = vadd.f32 0.0, %v307
    %309 = vmatmul.f32.gmra.mxu0 %v282
    %v310 = vpop.f32.mrf.mxu0
    %v311 = vadd.f32 0.0, %v310
    %312 = vmatmul.f32.gmra.mxu0 %v285
    %v313 = vpop.f32.mrf.mxu0
    %v314 = vadd.f32 0.0, %v313
    %315 = vmatmul.f32.gmra.mxu0 %v288
    %v316 = vpop.f32.mrf.mxu0
    %v317 = vadd.f32 0.0, %v316
    %318 = vdwg.mxu0
    %v320 = vsel %vm244, %v239, 0
    %v323 = vsel %vm244, %v242, 0
    %325 = vmatpush.msra.mxu0 0.0
    %326 = vmatpush.msra.mxu0 0.0
    %327 = vmatpush.msra.mxu0 0.0
    %328 = vmatpush.msra.mxu0 0.0
    %329 = vmatpush.msra.mxu0 0.0
    %330 = vmatpush.msra.mxu0 0.0
    %331 = vmatpush.msra.mxu0 0.0
    %332 = vmatpush.msra.mxu0 0.0
    %333 = vmatpush.msra.mxu0 0.0
    %334 = vmatpush.msra.mxu0 0.0
    %335 = vmatpush.msra.mxu0 0.0
    %336 = vmatpush.msra.mxu0 0.0
    %337 = vmatpush.msra.mxu0 0.0
    %338 = vmatpush.msra.mxu0 0.0
    %339 = vmatpush.msra.mxu0 %v100
    %340 = vmatpush.msra.mxu0 %v99
    %341 = vmatmul.f32.gmra.mxu0 %v320
    %v342 = vpop.f32.mrf.mxu0
    %v343 = vadd.f32 0.0, %v342
    %344 = vmatmul.f32.gmra.mxu0 %v323
    %v345 = vpop.f32.mrf.mxu0
    %v346 = vadd.f32 0.0, %v345
    %347 = vdwg.mxu0
    %348 = vmatpush.msra.mxu0 0.0
    %349 = vmatpush.msra.mxu0 0.0
    %350 = vmatpush.msra.mxu0 0.0
    %351 = vmatpush.msra.mxu0 0.0
    %352 = vmatpush.msra.mxu0 0.0
    %353 = vmatpush.msra.mxu0 0.0
    %354 = vmatpush.msra.mxu0 0.0
    %355 = vmatpush.msra.mxu0 0.0
    %356 = vmatpush.msra.mxu0 0.0
    %357 = vmatpush.msra.mxu0 0.0
    %358 = vmatpush.msra.mxu0 0.0
    %359 = vmatpush.msra.mxu0 0.0
    %360 = vmatpush.msra.mxu0 0.0
    %361 = vmatpush.msra.mxu0 0.0
    %362 = vmatpush.msra.mxu0 %v346
    %363 = vmatpush.msra.mxu0 %v343
    %364 = vmatmul.f32.gmra.mxu0 %v279
    %v365 = vpop.f32.mrf.mxu0
    %v366 = vadd.f32 0.0, %v365
    %367 = vmatmul.f32.gmra.mxu0 %v282
    %v368 = vpop.f32.mrf.mxu0
    %v369 = vadd.f32 0.0, %v368
    %370 = vmatmul.f32.gmra.mxu0 %v285
    %v371 = vpop.f32.mrf.mxu0
    %v372 = vadd.f32 0.0, %v371
    %373 = vmatmul.f32.gmra.mxu0 %v288
    %v374 = vpop.f32.mrf.mxu0
    %v375 = vadd.f32 0.0, %v374
    %376 = vdwg.mxu0
    %v377 = vsub.f32 %v101, %v308
    %v378 = vsub.f32 %v102, %v311
    %v379 = vsub.f32 %v103, %v314
    %v380 = vsub.f32 %v104, %v317
    %v381 = vsub.f32 %v105, %v366
    %v382 = vsub.f32 %v106, %v369
    %v383 = vsub.f32 %v107, %v372
    %v384 = vsub.f32 %v108, %v375
    %v385 = vsub.f32 %v377, %v381
    %v386 = vsub.f32 %v378, %v382
    %v387 = vsub.f32 %v379, %v383
    %v388 = vsub.f32 %v380, %v384
    %v389 = vand.u32 2147483647, %v385
    %v390 = vand.u32 2147483647, %v386
    %v391 = vand.u32 2147483647, %v387
    %v392 = vand.u32 2147483647, %v388
    %v393 = vsel %vm109, %v389, 0.0
    %v394 = vsel %vm109, %v390, 0.0
    %v395 = vadd.f32 %v393, %v394
    %v396 = vsel %vm109, %v391, 0.0
    %v397 = vadd.f32 %v395, %v396
    %v398 = vsel %vm109, %v392, 0.0
    %v399 = vadd.f32 %v397, %v398
    %400 = vadd.xlane.f32.xlu0 %v399
    %v401 = vpop.xlane.xlu0 %400
    %v402 = vrot.slane %v401, 4
    %v403 = vadd.f32 %v401, %v402
    %v404 = vrot.slane %v403, 2
    %v405 = vadd.f32 %v403, %v404
    %v406 = vrot.slane %v405, 1
    %v407 = vadd.f32 %v405, %v406
    %s408 = vtos %v407
    %s409 = sadd.f32 %s408, 0.0
    %s410 = scalar_lea.vmem %s0, 32
    %v411 = vld [vmem:[%s410] sm:$0xff]
    %v412 = vld [vmem:[%s410 + $0x8] sm:$0xff]
    %v413 = vld [vmem:[%s410 + $0x10] sm:$0xff]
    %v414 = vld [vmem:[%s410 + $0x18] sm:$0xff]
    %s415 = scalar_lea.vmem %s1, 32
    %v416 = vld [vmem:[%s415] sm:$0xff]
    %v417 = vld [vmem:[%s415 + $0x8] sm:$0xff]
    %v418 = vld [vmem:[%s415 + $0x10] sm:$0xff]
    %v419 = vld [vmem:[%s415 + $0x18] sm:$0xff]
    %v421 = vsel %vm109, %v411, 0
    %v424 = vsel %vm109, %v412, 0
    %v427 = vsel %vm109, %v413, 0
    %v430 = vsel %vm109, %v414, 0
    %432 = vmatpush.msra.mxu0 0.0
    %433 = vmatpush.msra.mxu0 0.0
    %434 = vmatpush.msra.mxu0 0.0
    %435 = vmatpush.msra.mxu0 0.0
    %436 = vmatpush.msra.mxu0 0.0
    %437 = vmatpush.msra.mxu0 0.0
    %438 = vmatpush.msra.mxu0 0.0
    %439 = vmatpush.msra.mxu0 0.0
    %440 = vmatpush.msra.mxu0 0.0
    %441 = vmatpush.msra.mxu0 0.0
    %442 = vmatpush.msra.mxu0 0.0
    %443 = vmatpush.msra.mxu0 0.0
    %444 = vmatpush.msra.mxu0 %v94
    %445 = vmatpush.msra.mxu0 %v93
    %446 = vmatpush.msra.mxu0 %v92
    %447 = vmatpush.msra.mxu0 %v91
    %448 = vmatmul.f32.gmra.mxu0 %v421
    %v449 = vpop.f32.mrf.mxu0
    %v450 = vadd.f32 0.0, %v449
    %451 = vmatmul.f32.gmra.mxu0 %v424
    %v452 = vpop.f32.mrf.mxu0
    %v453 = vadd.f32 0.0, %v452
    %454 = vmatmul.f32.gmra.mxu0 %v427
    %v455 = vpop.f32.mrf.mxu0
    %v456 = vadd.f32 0.0, %v455
    %457 = vmatmul.f32.gmra.mxu0 %v430
    %v458 = vpop.f32.mrf.mxu0
    %v459 = vadd.f32 0.0, %v458
    %460 = vdwg.mxu0
    %461 = vmatpush.msra.mxu0 0.0
    %462 = vmatpush.msra.mxu0 0.0
    %463 = vmatpush.msra.mxu0 0.0
    %464 = vmatpush.msra.mxu0 0.0
    %465 = vmatpush.msra.mxu0 0.0
    %466 = vmatpush.msra.mxu0 0.0
    %467 = vmatpush.msra.mxu0 0.0
    %468 = vmatpush.msra.mxu0 0.0
    %469 = vmatpush.msra.mxu0 0.0
    %470 = vmatpush.msra.mxu0 0.0
    %471 = vmatpush.msra.mxu0 0.0
    %472 = vmatpush.msra.mxu0 0.0
    %473 = vmatpush.msra.mxu0 %v459
    %474 = vmatpush.msra.mxu0 %v456
    %475 = vmatpush.msra.mxu0 %v453
    %476 = vmatpush.msra.mxu0 %v450
    %477 = vmatmul.f32.gmra.mxu0 %v152
    %v478 = vpop.f32.mrf.mxu0
    %v479 = vadd.f32 0.0, %v478
    %480 = vmatmul.f32.gmra.mxu0 %v155
    %v481 = vpop.f32.mrf.mxu0
    %v482 = vadd.f32 0.0, %v481
    %483 = vdwg.mxu0
    %v485 = vsel %vm109, %v416, 0
    %v488 = vsel %vm109, %v417, 0
    %v491 = vsel %vm109, %v418, 0
    %v494 = vsel %vm109, %v419, 0
    %496 = vmatpush.msra.mxu0 0.0
    %497 = vmatpush.msra.mxu0 0.0
    %498 = vmatpush.msra.mxu0 0.0
    %499 = vmatpush.msra.mxu0 0.0
    %500 = vmatpush.msra.mxu0 0.0
    %501 = vmatpush.msra.mxu0 0.0
    %502 = vmatpush.msra.mxu0 0.0
    %503 = vmatpush.msra.mxu0 0.0
    %504 = vmatpush.msra.mxu0 0.0
    %505 = vmatpush.msra.mxu0 0.0
    %506 = vmatpush.msra.mxu0 0.0
    %507 = vmatpush.msra.mxu0 0.0
    %508 = vmatpush.msra.mxu0 %v94
    %509 = vmatpush.msra.mxu0 %v93
    %510 = vmatpush.msra.mxu0 %v92
    %511 = vmatpush.msra.mxu0 %v91
    %512 = vmatmul.f32.gmra.mxu0 %v485
    %v513 = vpop.f32.mrf.mxu0
    %v514 = vadd.f32 0.0, %v513
    %515 = vmatmul.f32.gmra.mxu0 %v488
    %v516 = vpop.f32.mrf.mxu0
    %v517 = vadd.f32 0.0, %v516
    %518 = vmatmul.f32.gmra.mxu0 %v491
    %v519 = vpop.f32.mrf.mxu0
    %v520 = vadd.f32 0.0, %v519
    %521 = vmatmul.f32.gmra.mxu0 %v494
    %v522 = vpop.f32.mrf.mxu0
    %v523 = vadd.f32 0.0, %v522
    %524 = vdwg.mxu0
    %525 = vmatpush.msra.mxu0 0.0
    %526 = vmatpush.msra.mxu0 0.0
    %527 = vmatpush.msra.mxu0 0.0
    %528 = vmatpush.msra.mxu0 0.0
    %529 = vmatpush.msra.mxu0 0.0
    %530 = vmatpush.msra.mxu0 0.0
    %531 = vmatpush.msra.mxu0 0.0
    %532 = vmatpush.msra.mxu0 0.0
    %533 = vmatpush.msra.mxu0 0.0
    %534 = vmatpush.msra.mxu0 0.0
    %535 = vmatpush.msra.mxu0 0.0
    %536 = vmatpush.msra.mxu0 0.0
    %537 = vmatpush.msra.mxu0 %v523
    %538 = vmatpush.msra.mxu0 %v520
    %539 = vmatpush.msra.mxu0 %v517
    %540 = vmatpush.msra.mxu0 %v514
    %541 = vmatmul.f32.gmra.mxu0 %v152
    %v542 = vpop.f32.mrf.mxu0
    %v543 = vadd.f32 0.0, %v542
    %544 = vmatmul.f32.gmra.mxu0 %v155
    %v545 = vpop.f32.mrf.mxu0
    %v546 = vadd.f32 0.0, %v545
    %547 = vdwg.mxu0
    %s548 = scalar_lea.vmem %s6, 16
    %549 = vst.msk [vmem:[%s548] sm:$0xff] %vm244, %v479
    %550 = vst.msk [vmem:[%s548 + $0x8] sm:$0xff] %vm244, %v482
    %s551 = scalar_lea.vmem %s7, 16
    %552 = vst.msk [vmem:[%s551] sm:$0xff] %vm244, %v543
    %553 = vst.msk [vmem:[%s551 + $0x8] sm:$0xff] %vm244, %v546
    %v555 = vsel %vm244, %v479, 0
    %v558 = vsel %vm244, %v482, 0
    %560 = vmatpush.msra.mxu0 0.0
    %561 = vmatpush.msra.mxu0 0.0
    %562 = vmatpush.msra.mxu0 0.0
    %563 = vmatpush.msra.mxu0 0.0
    %564 = vmatpush.msra.mxu0 0.0
    %565 = vmatpush.msra.mxu0 0.0
    %566 = vmatpush.msra.mxu0 0.0
    %567 = vmatpush.msra.mxu0 0.0
    %568 = vmatpush.msra.mxu0 0.0
    %569 = vmatpush.msra.mxu0 0.0
    %570 = vmatpush.msra.mxu0 0.0
    %571 = vmatpush.msra.mxu0 0.0
    %572 = vmatpush.msra.mxu0 0.0
    %573 = vmatpush.msra.mxu0 0.0
    %574 = vmatpush.msra.mxu0 %v100
    %575 = vmatpush.msra.mxu0 %v99
    %576 = vmatmul.f32.gmra.mxu0 %v555
    %v577 = vpop.f32.mrf.mxu0
    %v578 = vadd.f32 0.0, %v577
    %579 = vmatmul.f32.gmra.mxu0 %v558
    %v580 = vpop.f32.mrf.mxu0
    %v581 = vadd.f32 0.0, %v580
    %582 = vdwg.mxu0
    %583 = vmatpush.msra.mxu0 0.0
    %584 = vmatpush.msra.mxu0 0.0
    %585 = vmatpush.msra.mxu0 0.0
    %586 = vmatpush.msra.mxu0 0.0
    %587 = vmatpush.msra.mxu0 0.0
    %588 = vmatpush.msra.mxu0 0.0
    %589 = vmatpush.msra.mxu0 0.0
    %590 = vmatpush.msra.mxu0 0.0
    %591 = vmatpush.msra.mxu0 0.0
    %592 = vmatpush.msra.mxu0 0.0
    %593 = vmatpush.msra.mxu0 0.0
    %594 = vmatpush.msra.mxu0 0.0
    %595 = vmatpush.msra.mxu0 0.0
    %596 = vmatpush.msra.mxu0 0.0
    %597 = vmatpush.msra.mxu0 %v581
    %598 = vmatpush.msra.mxu0 %v578
    %599 = vmatmul.f32.gmra.mxu0 %v279
    %v600 = vpop.f32.mrf.mxu0
    %v601 = vadd.f32 0.0, %v600
    %602 = vmatmul.f32.gmra.mxu0 %v282
    %v603 = vpop.f32.mrf.mxu0
    %v604 = vadd.f32 0.0, %v603
    %605 = vmatmul.f32.gmra.mxu0 %v285
    %v606 = vpop.f32.mrf.mxu0
    %v607 = vadd.f32 0.0, %v606
    %608 = vmatmul.f32.gmra.mxu0 %v288
    %v609 = vpop.f32.mrf.mxu0
    %v610 = vadd.f32 0.0, %v609
    %611 = vdwg.mxu0
    %v613 = vsel %vm244, %v543, 0
    %v616 = vsel %vm244, %v546, 0
    %618 = vmatpush.msra.mxu0 0.0
    %619 = vmatpush.msra.mxu0 0.0
    %620 = vmatpush.msra.mxu0 0.0
    %621 = vmatpush.msra.mxu0 0.0
    %622 = vmatpush.msra.mxu0 0.0
    %623 = vmatpush.msra.mxu0 0.0
    %624 = vmatpush.msra.mxu0 0.0
    %625 = vmatpush.msra.mxu0 0.0
    %626 = vmatpush.msra.mxu0 0.0
    %627 = vmatpush.msra.mxu0 0.0
    %628 = vmatpush.msra.mxu0 0.0
    %629 = vmatpush.msra.mxu0 0.0
    %630 = vmatpush.msra.mxu0 0.0
    %631 = vmatpush.msra.mxu0 0.0
    %632 = vmatpush.msra.mxu0 %v100
    %633 = vmatpush.msra.mxu0 %v99
    %634 = vmatmul.f32.gmra.mxu0 %v613
    %v635 = vpop.f32.mrf.mxu0
    %v636 = vadd.f32 0.0, %v635
    %637 = vmatmul.f32.gmra.mxu0 %v616
    %v638 = vpop.f32.mrf.mxu0
    %v639 = vadd.f32 0.0, %v638
    %640 = vdwg.mxu0
    %641 = vmatpush.msra.mxu0 0.0
    %642 = vmatpush.msra.mxu0 0.0
    %643 = vmatpush.msra.mxu0 0.0
    %644 = vmatpush.msra.mxu0 0.0
    %645 = vmatpush.msra.mxu0 0.0
    %646 = vmatpush.msra.mxu0 0.0
    %647 = vmatpush.msra.mxu0 0.0
    %648 = vmatpush.msra.mxu0 0.0
    %649 = vmatpush.msra.mxu0 0.0
    %650 = vmatpush.msra.mxu0 0.0
    %651 = vmatpush.msra.mxu0 0.0
    %652 = vmatpush.msra.mxu0 0.0
    %653 = vmatpush.msra.mxu0 0.0
    %654 = vmatpush.msra.mxu0 0.0
    %655 = vmatpush.msra.mxu0 %v639
    %656 = vmatpush.msra.mxu0 %v636
    %657 = vmatmul.f32.gmra.mxu0 %v279
    %v658 = vpop.f32.mrf.mxu0
    %v659 = vadd.f32 0.0, %v658
    %660 = vmatmul.f32.gmra.mxu0 %v282
    %v661 = vpop.f32.mrf.mxu0
    %v662 = vadd.f32 0.0, %v661
    %663 = vmatmul.f32.gmra.mxu0 %v285
    %v664 = vpop.f32.mrf.mxu0
    %v665 = vadd.f32 0.0, %v664
    %666 = vmatmul.f32.gmra.mxu0 %v288
    %v667 = vpop.f32.mrf.mxu0
    %v668 = vadd.f32 0.0, %v667
    %669 = vdwg.mxu0
    %v670 = vsub.f32 %v411, %v601
    %v671 = vsub.f32 %v412, %v604
    %v672 = vsub.f32 %v413, %v607
    %v673 = vsub.f32 %v414, %v610
    %v674 = vsub.f32 %v416, %v659
    %v675 = vsub.f32 %v417, %v662
    %v676 = vsub.f32 %v418, %v665
    %v677 = vsub.f32 %v419, %v668
    %v678 = vsub.f32 %v670, %v674
    %v679 = vsub.f32 %v671, %v675
    %v680 = vsub.f32 %v672, %v676
    %v681 = vsub.f32 %v673, %v677
    %v682 = vand.u32 2147483647, %v678
    %v683 = vand.u32 2147483647, %v679
    %v684 = vand.u32 2147483647, %v680
    %v685 = vand.u32 2147483647, %v681
    %v686 = vsel %vm109, %v682, 0.0
    %v687 = vsel %vm109, %v683, 0.0
    %v688 = vadd.f32 %v686, %v687
    %v689 = vsel %vm109, %v684, 0.0
    %v690 = vadd.f32 %v688, %v689
    %v691 = vsel %vm109, %v685, 0.0
    %v692 = vadd.f32 %v690, %v691
    %693 = vadd.xlane.f32.xlu0 %v692
    %v694 = vpop.xlane.xlu0 %693
    %v695 = vrot.slane %v694, 4
    %v696 = vadd.f32 %v694, %v695
    %v697 = vrot.slane %v696, 2
    %v698 = vadd.f32 %v696, %v697
    %v699 = vrot.slane %v698, 1
    %v700 = vadd.f32 %v698, %v699
    %s701 = vtos %v700
    %s702 = sadd.f32 %s409, %s701
    %v703 = vstv %s702
    %704 = vst [vmem:[%s8] sm:$0x1] %v703
    // Predicated region
    $region42: #{_lambda_.8} parent=1 // pred_check
      _
    $region43: #{_lambda_.8} parent=1 // pred_check_branch
      %706 = sbr.rel (0) target = $region45
    $region44: #{_lambda_.8} parent=1 // pred_region
      _
    $region45: #{_lambda_.8} parent=1 // pred_fallthru
      _
    // Predicated region
    $region46: #{_lambda_.8} parent=1 // pred_check
      _
    $region47: #{_lambda_.8} parent=1 // pred_check_branch
      %708 = sbr.rel (0) target = $region49
    $region48: #{_lambda_.8} parent=1 // pred_region
      _
    $region49: #{_lambda_.8} parent=1 // pred_fallthru
      _
    // Predicated region
    $region50: #{_lambda_.8} parent=1 // pred_check
      _
    $region51: #{_lambda_.8} parent=1 // pred_check_branch
      %710 = sbr.rel (0) target = $region53
    $region52: #{_lambda_.8} parent=1 // pred_region
      _
    $region53: #{_lambda_.8} parent=1 // pred_fallthru
      _
    // Predicated region
    $region54: #{_lambda_.8} parent=1 // pred_check
      _
    $region55: #{_lambda_.8} parent=1 // pred_check_branch
      %712 = sbr.rel (0) target = $region57
    $region56: #{_lambda_.8} parent=1 // pred_region
      _
    $region57: #{_lambda_.8} parent=1 // pred_fallthru
      _
    // Predicated region
    $region58: #{_lambda_.8} parent=1 // pred_check
      _
    $region59: #{_lambda_.8} parent=1 // pred_check_branch
      %714 = sbr.rel (0) target = $region61
    $region60: #{_lambda_.8} parent=1 // pred_region
      _
    $region61: #{_lambda_.8} parent=1 // pred_fallthru
      _
    // Predicated region
    $region62: #{_lambda_.8} parent=1 // pred_check
      _
    $region63: #{_lambda_.8} parent=1 // pred_check_branch
      %716 = sbr.rel (0) target = $region65
    $region64: #{_lambda_.8} parent=1 // pred_region
      _
    $region65: #{_lambda_.8} parent=1 // pred_fallthru
      _
    %717 = vsyncpa [#allocation3], 1
    %718 = vsyncpa [#allocation5], 1
    %719 = vsyncpa [#allocation8], 1

// kernel: _lambda_.6
$region0: #{_lambda_.6}
  #allocation0 [shape = 'u32[]', space=smem, size = 0x4, offset = 0x4, fixed_abs, tag = 'smem constant byte address 0x4 - core index']
  #allocation1 [shape = 'u32[72,128]{1,0:T(1,128)}', space=vmem, size = 0x9000, scoped, tag = 'internal scratch']
  %s0 = inlined_call_operand.hbm [shape: f32[2,128,128], index: 0, kind: input, shape index: {}]
  %s1 = inlined_call_operand.hbm [shape: f32[2,128,128], index: 1, kind: input, shape index: {}]
  %s2 = inlined_call_operand.hbm [shape: f32[64,128], index: 2, kind: input, shape index: {}]
  %s3 = inlined_call_operand.hbm [shape: f32[128,64], index: 3, kind: input, shape index: {}]
  %s4 = inlined_call_operand.hbm [shape: f32[128,64], index: 4, kind: input, shape index: {}]
  %s5 = inlined_call_operand.hbm [shape: f32[64,128], index: 5, kind: input, shape index: {}]
  %s6 = inlined_call_operand.vmem [shape: f32[2,64,64], index: 6, kind: output, shape index: {0}]
  %s7 = inlined_call_operand.vmem [shape: f32[2,64,64], index: 7, kind: output, shape index: {1}]
  %s8 = inlined_call_operand.vmem [shape: f32[2,1,128], index: 8, kind: output, shape index: {2}]
  %9 = xla_tuple %s6, %s7, %s8
  %s10 = sld [smem:[#allocation0]]
  $region97: #{_lambda_.6} parent=0
    _
  %s12 = ssub.s32 1, %s10
  %s13 = scalar_select 0, %s12, %s10
  $region1: #{_lambda_.6} parent=0
    #allocation2 [shape = 'u8[131072]{0}', space=vmem, size = 0x20000, scoped, tag = 'input window, operand 0']
    #allocation3 [shape = 's32[2]{0}', space=sflag, size = 0x8, scoped, tag = 'scoped memory for _lambda_.6']
    #allocation4 [shape = 'u8[131072]{0}', space=vmem, size = 0x20000, scoped, tag = 'input window, operand 1']
    #allocation5 [shape = 's32[2]{0}', space=sflag, size = 0x8, scoped, tag = 'scoped memory for _lambda_.6']
    #allocation6 [shape = 'u8[32768]{0}', space=vmem, size = 0x8000, scoped, tag = 'input window, operand 2, single buffered']
    #allocation7 [shape = 'u8[65536]{0}', space=vmem, size = 0x10000, scoped, tag = 'input window, operand 3, single buffered']
    #allocation8 [shape = 's32[1]{0}', space=sflag, size = 0x4, scoped, tag = 'scoped memory for _lambda_.6']
    #allocation9 [shape = 'u8[65536]{0}', space=vmem, size = 0x10000, scoped, tag = 'input window, operand 4, single buffered']
    #allocation10 [shape = 'u8[32768]{0}', space=vmem, size = 0x8000, scoped, tag = 'input window, operand 5, single buffered']
    #allocation11 [shape = 's32[1]{0}', space=sflag, size = 0x4, scoped, tag = 'scoped memory for _lambda_.6']
    %14 = vsyncpa [#allocation3], 0
    %s15 = scalar_lea.sflag [#allocation3], 1
    %16 = vsyncpa %s15, 0
    %17 = vsyncpa [#allocation5], 0
    %s18 = scalar_lea.sflag [#allocation5], 1
    %19 = vsyncpa %s18, 0
    %20 = vsyncpa [#allocation8], 0
    %21 = vsyncpa [#allocation11], 0
    loop: start=0, step=1, limit=4
    $region2: #{_lambda_.6} parent=1 // loop_pre_header
      _
    $region3: #{_lambda_.6} parent=1 // loop_header
      %s23 = sphi 0, %s27
      %p24 = scmp.ge.s32.totalorder %s23, 4
      %s33 = sphi 0, %s35
      %s36 = sphi 0, %s33
      %s37 = sphi 0, %s36
      %s53 = sphi 0, %s37
      %s59 = sphi 0, %s61
      %s62 = sphi 0, %s59
      %s63 = sphi 0, %s62
      %s79 = sphi 0, %s63
      %s83 = sphi 0, %s83
      %s85 = sphi 0, %s83
      %s86 = sphi 0, %s85
      %s100 = sphi 0, %s86
      %s104 = sphi 0, %s104
      %s106 = sphi 0, %s104
      %s107 = sphi 0, %s106
      %s121 = sphi 0, %s107
      %s125 = sphi 0, %s125
      %s127 = sphi 0, %s125
      %s128 = sphi 0, %s127
      %s142 = sphi 0, %s128
      %s146 = sphi 0, %s146
      %s148 = sphi 0, %s146
      %s149 = sphi 0, %s148
      %s163 = sphi 0, %s149
      %s169 = sphi 0, %s171
      %s172 = sphi 0, %s169
      %s173 = sphi 0, %s172
      %s189 = sphi 0, %s173
      %s195 = sphi 0, %s197
      %s198 = sphi 0, %s195
      %s199 = sphi 0, %s198
      %s215 = sphi 0, %s199
      %s221 = sphi 0, %s223
      %s224 = sphi 0, %s221
      %s225 = sphi 0, %s224
      %s241 = sphi 0, %s225
    $region4: #{_lambda_.6} parent=1 // loop_header_branch
      %26 = sbr.rel (%p24) target = $region8
    $region5: #{_lambda_.6} parent=1 // loop_body
      %s28 = ssub.s32 %s23, 1
      %s29 = ssub.s32 %s23, 2
      %s30 = sadd.s32 %s23, 1
      %s31 = ssub.s32 %s23, %s30
      %p32 = scmp.eq.s32.totalorder %s31, 0
      %s34 = sadd.s32 %s33, 1
      %s35 = scalar_select %p32, %s33, %s34
      %p38 = pneg %p32
      %p39 = scmp.eq.s32.totalorder %s23, 1
      %p40 = por %p38, %p39
      %p41 = scmp.ne.s32.totalorder %s33, %s36
      %p42 = scmp.eq.s32.totalorder %s23, 0
      %p43 = por %p41, %p42
      %p44 = scmp.ne.s32.totalorder %s33, %s36
      %p45 = scmp.eq.s32.totalorder %s28, 1
      %p46 = por %p44, %p45
      %p47 = scmp.ne.s32.totalorder %s36, %s37
      %p48 = scmp.eq.s32.totalorder %s28, 0
      %p49 = por %p47, %p48
      %p50 = scmp.ne.s32.totalorder %s36, %s37
      %p51 = scmp.eq.s32.totalorder %s29, 1
      %p52 = por %p50, %p51
      %p54 = scmp.ne.s32.totalorder %s37, %s53
      %p55 = scmp.eq.s32.totalorder %s29, 0
      %p56 = por %p54, %p55
      %s57 = ssub.s32 %s23, %s30
      %p58 = scmp.eq.s32.totalorder %s57, 0
      %s60 = sadd.s32 %s59, 1
      %s61 = scalar_select %p58, %s59, %s60
      %p64 = pneg %p58
      %p65 = scmp.eq.s32.totalorder %s23, 1
      %p66 = por %p64, %p65
      %p67 = scmp.ne.s32.totalorder %s59, %s62
      %p68 = scmp.eq.s32.totalorder %s23, 0
      %p69 = por %p67, %p68
      %p70 = scmp.ne.s32.totalorder %s59, %s62
      %p71 = scmp.eq.s32.totalorder %s28, 1
      %p72 = por %p70, %p71
      %p73 = scmp.ne.s32.totalorder %s62, %s63
      %p74 = scmp.eq.s32.totalorder %s28, 0
      %p75 = por %p73, %p74
      %p76 = scmp.ne.s32.totalorder %s62, %s63
      %p77 = scmp.eq.s32.totalorder %s29, 1
      %p78 = por %p76, %p77
      %p80 = scmp.ne.s32.totalorder %s63, %s79
      %p81 = scmp.eq.s32.totalorder %s29, 0
      %p82 = por %p80, %p81
      %s84 = sadd.s32 %s83, 1
      %p87 = scmp.eq.s32.totalorder %s23, 1
      %p88 = scmp.ne.s32.totalorder %s83, %s85
      %p89 = scmp.eq.s32.totalorder %s23, 0
      %p90 = por %p88, %p89
      %p91 = scmp.ne.s32.totalorder %s83, %s85
      %p92 = scmp.eq.s32.totalorder %s28, 1
      %p93 = por %p91, %p92
      %p94 = scmp.ne.s32.totalorder %s85, %s86
      %p95 = scmp.eq.s32.totalorder %s28, 0
      %p96 = por %p94, %p95
      %p97 = scmp.ne.s32.totalorder %s85, %s86
      %p98 = scmp.eq.s32.totalorder %s29, 1
      %p99 = por %p97, %p98
      %p101 = scmp.ne.s32.totalorder %s86, %s100
      %p102 = scmp.eq.s32.totalorder %s29, 0
      %p103 = por %p101, %p102
      %s105 = sadd.s32 %s104, 1
      %p108 = scmp.eq.s32.totalorder %s23, 1
      %p109 = scmp.ne.s32.totalorder %s104, %s106
      %p110 = scmp.eq.s32.totalorder %s23, 0
      %p111 = por %p109, %p110
      %p112 = scmp.ne.s32.totalorder %s104, %s106
      %p113 = scmp.eq.s32.totalorder %s28, 1
      %p114 = por %p112, %p113
      %p115 = scmp.ne.s32.totalorder %s106, %s107
      %p116 = scmp.eq.s32.totalorder %s28, 0
      %p117 = por %p115, %p116
      %p118 = scmp.ne.s32.totalorder %s106, %s107
      %p119 = scmp.eq.s32.totalorder %s29, 1
      %p120 = por %p118, %p119
      %p122 = scmp.ne.s32.totalorder %s107, %s121
      %p123 = scmp.eq.s32.totalorder %s29, 0
      %p124 = por %p122, %p123
      %s126 = sadd.s32 %s125, 1
      %p129 = scmp.eq.s32.totalorder %s23, 1
      %p130 = scmp.ne.s32.totalorder %s125, %s127
      %p131 = scmp.eq.s32.totalorder %s23, 0
      %p132 = por %p130, %p131
      %p133 = scmp.ne.s32.totalorder %s125, %s127
      %p134 = scmp.eq.s32.totalorder %s28, 1
      %p135 = por %p133, %p134
      %p136 = scmp.ne.s32.totalorder %s127, %s128
      %p137 = scmp.eq.s32.totalorder %s28, 0
      %p138 = por %p136, %p137
      %p139 = scmp.ne.s32.totalorder %s127, %s128
      %p140 = scmp.eq.s32.totalorder %s29, 1
      %p141 = por %p139, %p140
      %p143 = scmp.ne.s32.totalorder %s128, %s142
      %p144 = scmp.eq.s32.totalorder %s29, 0
      %p145 = por %p143, %p144
      %s147 = sadd.s32 %s146, 1
      %p150 = scmp.eq.s32.totalorder %s23, 1
      %p151 = scmp.ne.s32.totalorder %s146, %s148
      %p152 = scmp.eq.s32.totalorder %s23, 0
      %p153 = por %p151, %p152
      %p154 = scmp.ne.s32.totalorder %s146, %s148
      %p155 = scmp.eq.s32.totalorder %s28, 1
      %p156 = por %p154, %p155
      %p157 = scmp.ne.s32.totalorder %s148, %s149
      %p158 = scmp.eq.s32.totalorder %s28, 0
      %p159 = por %p157, %p158
      %p160 = scmp.ne.s32.totalorder %s148, %s149
      %p161 = scmp.eq.s32.totalorder %s29, 1
      %p162 = por %p160, %p161
      %p164 = scmp.ne.s32.totalorder %s149, %s163
      %p165 = scmp.eq.s32.totalorder %s29, 0
      %p166 = por %p164, %p165
      %s167 = ssub.s32 %s23, %s30
      %p168 = scmp.eq.s32.totalorder %s167, 0
      %s170 = sadd.s32 %s169, 1
      %s171 = scalar_select %p168, %s169, %s170
      %p174 = pneg %p168
      %p175 = scmp.eq.s32.totalorder %s23, 1
      %p176 = por %p174, %p175
      %p177 = scmp.ne.s32.totalorder %s169, %s172
      %p178 = scmp.eq.s32.totalorder %s23, 0
      %p179 = por %p177, %p178
      %p180 = scmp.ne.s32.totalorder %s169, %s172
      %p181 = scmp.eq.s32.totalorder %s28, 1
      %p182 = por %p180, %p181
      %p183 = scmp.ne.s32.totalorder %s172, %s173
      %p184 = scmp.eq.s32.totalorder %s28, 0
      %p185 = por %p183, %p184
      %p186 = scmp.ne.s32.totalorder %s172, %s173
      %p187 = scmp.eq.s32.totalorder %s29, 1
      %p188 = por %p186, %p187
      %p190 = scmp.ne.s32.totalorder %s173, %s189
      %p191 = scmp.eq.s32.totalorder %s29, 0
      %p192 = por %p190, %p191
      %s193 = ssub.s32 %s23, %s30
      %p194 = scmp.eq.s32.totalorder %s193, 0
      %s196 = sadd.s32 %s195, 1
      %s197 = scalar_select %p194, %s195, %s196
      %p200 = pneg %p194
      %p201 = scmp.eq.s32.totalorder %s23, 1
      %p202 = por %p200, %p201
      %p203 = scmp.ne.s32.totalorder %s195, %s198
      %p204 = scmp.eq.s32.totalorder %s23, 0
      %p205 = por %p203, %p204
      %p206 = scmp.ne.s32.totalorder %s195, %s198
      %p207 = scmp.eq.s32.totalorder %s28, 1
      %p208 = por %p206, %p207
      %p209 = scmp.ne.s32.totalorder %s198, %s199
      %p210 = scmp.eq.s32.totalorder %s28, 0
      %p211 = por %p209, %p210
      %p212 = scmp.ne.s32.totalorder %s198, %s199
      %p213 = scmp.eq.s32.totalorder %s29, 1
      %p214 = por %p212, %p213
      %p216 = scmp.ne.s32.totalorder %s199, %s215
      %p217 = scmp.eq.s32.totalorder %s29, 0
      %p218 = por %p216, %p217
      %s219 = ssub.s32 %s23, %s30
      %p220 = scmp.eq.s32.totalorder %s219, 0
      %s222 = sadd.s32 %s221, 1
      %s223 = scalar_select %p220, %s221, %s222
      %p226 = pneg %p220
      %p227 = scmp.eq.s32.totalorder %s23, 1
      %p228 = por %p226, %p227
      %p229 = scmp.ne.s32.totalorder %s221, %s224
      %p230 = scmp.eq.s32.totalorder %s23, 0
      %p231 = por %p229, %p230
      %p232 = scmp.ne.s32.totalorder %s221, %s224
      %p233 = scmp.eq.s32.totalorder %s28, 1
      %p234 = por %p232, %p233
      %p235 = scmp.ne.s32.totalorder %s224, %s225
      %p236 = scmp.eq.s32.totalorder %s28, 0
      %p237 = por %p235, %p236
      %p238 = scmp.ne.s32.totalorder %s224, %s225
      %p239 = scmp.eq.s32.totalorder %s29, 1
      %p240 = por %p238, %p239
      %p242 = scmp.ne.s32.totalorder %s225, %s241
      %p243 = scmp.eq.s32.totalorder %s29, 0
      %p244 = por %p242, %p243
      %p245 = scmp.le.s32.totalorder 1, %s23
      %p246 = scmp.lt.s32.totalorder %s23, 3
      %p247 = pnand %p245, %p246
      %p248 = pneg %p247
      // Predicated region
      $region9: #{_lambda_.6} parent=5 // pred_check
        _
      $region10: #{_lambda_.6} parent=5 // pred_check_branch
        %250 = sbr.rel (%p247) target = $region12
      $region11: #{_lambda_.6} parent=5 // pred_region
        %s251 = ssub.s32 %s23, 1
        // Predicated region
        $region13: #{_lambda_.6} parent=11 // pred_check
          %p252 = pneg %p96
        $region14: #{_lambda_.6} parent=11 // pred_check_branch
          %254 = sbr.rel (%p252) target = $region16
        $region15: #{_lambda_.6} parent=11 // pred_region
          %256 = vsyncadd [#allocation5], 0
          %s257 = sshll.u32 %s2, 4
          %s258 = int_to_ptr.hbm [resolvable:$true] %s257
          %s259 = sshll.u32 [#allocation6], 4
          %s260 = int_to_ptr.vmem [resolvable:$true] %s259
          %265 = dma.hbm_to_vmem [thread:$0]  %s258, 1024, %s260, [#allocation5], 128, 128, 8
        $region16: #{_lambda_.6} parent=11 // pred_fallthru
          _
        // Predicated region
        $region17: #{_lambda_.6} parent=11 // pred_check
          %p266 = pneg %p117
        $region18: #{_lambda_.6} parent=11 // pred_check_branch
          %268 = sbr.rel (%p266) target = $region20
        $region19: #{_lambda_.6} parent=11 // pred_region
          %270 = vsyncadd [#allocation8], 0
          %s271 = sshll.u32 %s3, 4
          %s272 = int_to_ptr.hbm [resolvable:$true] %s271
          %s273 = sshll.u32 [#allocation7], 4
          %s274 = int_to_ptr.vmem [resolvable:$true] %s273
          %279 = dma.hbm_to_vmem [thread:$0]  %s272, 2048, %s274, [#allocation8], 128, 128, 8
        $region20: #{_lambda_.6} parent=11 // pred_fallthru
          _
        // Predicated region
        $region21: #{_lambda_.6} parent=11 // pred_check
          %p280 = pneg %p138
        $region22: #{_lambda_.6} parent=11 // pred_check_branch
          %282 = sbr.rel (%p280) target = $region24
        $region23: #{_lambda_.6} parent=11 // pred_region
          %284 = vsyncadd [#allocation8], 0
          %s285 = sshll.u32 %s4, 4
          %s286 = int_to_ptr.hbm [resolvable:$true] %s285
          %s287 = sshll.u32 [#allocation9], 4
          %s288 = int_to_ptr.vmem [resolvable:$true] %s287
          %293 = dma.hbm_to_vmem [thread:$0]  %s286, 2048, %s288, [#allocation8], 128, 128, 8
        $region24: #{_lambda_.6} parent=11 // pred_fallthru
          _
        // Predicated region
        $region25: #{_lambda_.6} parent=11 // pred_check
          %p294 = pneg %p159
        $region26: #{_lambda_.6} parent=11 // pred_check_branch
          %296 = sbr.rel (%p294) target = $region28
        $region27: #{_lambda_.6} parent=11 // pred_region
          %298 = vsyncadd [#allocation11], 0
          %s299 = sshll.u32 %s5, 4
          %s300 = int_to_ptr.hbm [resolvable:$true] %s299
          %s301 = sshll.u32 [#allocation10], 4
          %s302 = int_to_ptr.vmem [resolvable:$true] %s301
          %307 = dma.hbm_to_vmem [thread:$0]  %s300, 1024, %s302, [#allocation11], 128, 128, 8
        $region28: #{_lambda_.6} parent=11 // pred_fallthru
          _
      $region12: #{_lambda_.6} parent=5 // pred_fallthru
        _
      %p308 = scmp.lt.s32.totalorder %s23, 2
      // Predicated region
      $region29: #{_lambda_.6} parent=5 // pred_check
        %p309 = pneg %p308
      $region30: #{_lambda_.6} parent=5 // pred_check_branch
        %311 = sbr.rel (%p309) target = $region32
      $region31: #{_lambda_.6} parent=5 // pred_region
        // Predicated region
        $region33: #{_lambda_.6} parent=31 // pred_check
          %p312 = pneg %p43
        $region34: #{_lambda_.6} parent=31 // pred_check_branch
          %314 = sbr.rel (%p312) target = $region36
        $region35: #{_lambda_.6} parent=31 // pred_region
          %s315 = sand.u32 %s33, 1
          %s316 = scalar_lea.sflag [#allocation3], %s315
          %s317 = sand.u32 %s33, 1
          %s318 = smul.addr %s317, 128
          %s319 = scalar_lea.vmem [#allocation2], %s318
          %321 = vsyncadd %s316, 0
          %s322 = smul.addr %s23, 16
          %s323 = smul.addr %s322, 8
          %s324 = scalar_lea.hbm %s0, %s323
          %s325 = sshll.u32 %s324, 4
          %s326 = int_to_ptr.hbm [resolvable:$true] %s325
          %s327 = sshll.u32 %s319, 4
          %s328 = int_to_ptr.vmem [resolvable:$true] %s327
          %333 = dma.hbm_to_vmem [thread:$0]  %s326, 2048, %s328, %s316, 128, 128, 8
        $region36: #{_lambda_.6} parent=31 // pred_fallthru
          _
        // Predicated region
        $region37: #{_lambda_.6} parent=31 // pred_check
          %p334 = pneg %p69
        $region38: #{_lambda_.6} parent=31 // pred_check_branch
          %336 = sbr.rel (%p334) target = $region40
        $region39: #{_lambda_.6} parent=31 // pred_region
          %s337 = sand.u32 %s23, 1
          %s338 = scalar_lea.sflag [#allocation5], %s337
          %s339 = sand.u32 %s59, 1
          %s340 = smul.addr %s339, 128
          %s341 = scalar_lea.vmem [#allocation4], %s340
          %343 = vsyncadd %s338, 0
          %s344 = smul.addr %s23, 16
          %s345 = smul.addr %s344, 8
          %s346 = scalar_lea.hbm %s1, %s345
          %s347 = sshll.u32 %s346, 4
          %s348 = int_to_ptr.hbm [resolvable:$true] %s347
          %s349 = sshll.u32 %s341, 4
          %s350 = int_to_ptr.vmem [resolvable:$true] %s349
          %355 = dma.hbm_to_vmem [thread:$0]  %s348, 2048, %s350, %s338, 128, 128, 8
        $region40: #{_lambda_.6} parent=31 // pred_fallthru
          _
      $region32: #{_lambda_.6} parent=5 // pred_fallthru
        _
      %p356 = scmp.le.s32.totalorder 1, %s23
      %p357 = scmp.lt.s32.totalorder %s23, 3
      %p358 = pnand %p356, %p357
      %p359 = pneg %p358
      // Predicated region
      $region41: #{_lambda_.6} parent=5 // pred_check
        _
      $region42: #{_lambda_.6} parent=5 // pred_check_branch
        %361 = sbr.rel (%p358) target = $region44
      $region43: #{_lambda_.6} parent=5 // pred_region
        %s362 = ssub.s32 %s23, 1
        %s363 = sand.u32 %s36, 1
        %s364 = scalar_lea.sflag [#allocation3], %s363
        %s365 = sand.u32 %s36, 1
        %s366 = smul.addr %s365, 128
        %s367 = scalar_lea.vmem [#allocation2], %s366
        // Predicated region
        $region45: #{_lambda_.6} parent=43 // pred_check
          %p368 = pneg %p49
        $region46: #{_lambda_.6} parent=43 // pred_check_branch
          %370 = sbr.rel (%p368) target = $region48
        $region47: #{_lambda_.6} parent=43 // pred_region
          %372 = dma.done %s364, 2048
        $region48: #{_lambda_.6} parent=43 // pred_fallthru
          _
        %s373 = sand.u32 %s28, 1
        %s374 = scalar_lea.sflag [#allocation5], %s373
        %s375 = sand.u32 %s62, 1
        %s376 = smul.addr %s375, 128
        %s377 = scalar_lea.vmem [#allocation4], %s376
        // Predicated region
        $region49: #{_lambda_.6} parent=43 // pred_check
          %p378 = pneg %p75
        $region50: #{_lambda_.6} parent=43 // pred_check_branch
          %380 = sbr.rel (%p378) target = $region52
        $region51: #{_lambda_.6} parent=43 // pred_region
          %382 = dma.done %s374, 2048
        $region52: #{_lambda_.6} parent=43 // pred_fallthru
          _
        // Predicated region
        $region53: #{_lambda_.6} parent=43 // pred_check
          %p383 = pneg %p96
        $region54: #{_lambda_.6} parent=43 // pred_check_branch
          %385 = sbr.rel (%p383) target = $region56
        $region55: #{_lambda_.6} parent=43 // pred_region
          %387 = dma.done [#allocation5], 1024
        $region56: #{_lambda_.6} parent=43 // pred_fallthru
          _
        // Predicated region
        $region57: #{_lambda_.6} parent=43 // pred_check
          %p388 = pneg %p117
        $region58: #{_lambda_.6} parent=43 // pred_check_branch
          %390 = sbr.rel (%p388) target = $region60
        $region59: #{_lambda_.6} parent=43 // pred_region
          %392 = dma.done [#allocation8], 2048
        $region60: #{_lambda_.6} parent=43 // pred_fallthru
          _
        // Predicated region
        $region61: #{_lambda_.6} parent=43 // pred_check
          %p393 = pneg %p138
        $region62: #{_lambda_.6} parent=43 // pred_check_branch
          %395 = sbr.rel (%p393) target = $region64
        $region63: #{_lambda_.6} parent=43 // pred_region
          %397 = dma.done [#allocation8], 2048
        $region64: #{_lambda_.6} parent=43 // pred_fallthru
          _
        // Predicated region
        $region65: #{_lambda_.6} parent=43 // pred_check
          %p398 = pneg %p159
        $region66: #{_lambda_.6} parent=43 // pred_check_branch
          %400 = sbr.rel (%p398) target = $region68
        $region67: #{_lambda_.6} parent=43 // pred_region
          %402 = dma.done [#allocation11], 1024
        $region68: #{_lambda_.6} parent=43 // pred_fallthru
          _
        %s403 = sand.u32 %s36, 1
        %s404 = scalar_lea.sflag [#allocation3], %s403
        %s405 = sand.u32 %s36, 1
        %s406 = smul.addr %s405, 128
        %s407 = scalar_lea.vmem [#allocation2], %s406
        %p408 = pneg %p49
        %p409 = pneg %p46
        %s410 = sand.u32 %s28, 1
        %s411 = scalar_lea.sflag [#allocation5], %s410
        %s412 = sand.u32 %s62, 1
        %s413 = smul.addr %s412, 128
        %s414 = scalar_lea.vmem [#allocation4], %s413
        %p415 = pneg %p75
        %p416 = pneg %p72
        %p417 = pneg %p96
        %p418 = pneg %p93
        %p419 = pneg %p117
        %p420 = pneg %p114
        %p421 = pneg %p138
        %p422 = pneg %p135
        %p423 = pneg %p159
        %p424 = pneg %p156
        %p425 = pneg %p185
        %p426 = pneg %p182
        %p427 = scmp.lt.s32.totalorder %s28, 1
        %s428 = scalar_select %p427, %s28, 1
        %s429 = smul.addr %s428, 8
        %s430 = smul.addr %s429, 8
        %s431 = scalar_lea.vmem %s6, %s430
        %p432 = pneg %p211
        %p433 = pneg %p208
        %p434 = scmp.lt.s32.totalorder %s28, 1
        %s435 = scalar_select %p434, %s28, 1
        %s436 = smul.addr %s435, 8
        %s437 = smul.addr %s436, 8
        %s438 = scalar_lea.vmem %s7, %s437
        %p439 = pneg %p237
        %p440 = pneg %p234
        %p441 = scmp.lt.s32.totalorder %s28, 1
        %s442 = scalar_select %p441, %s28, 1
        %s443 = scalar_lea.vmem %s8, %s442
        %p444 = scmp.lt.s32.totalorder %s28, 1
        %s445 = scalar_select %p444, %s28, 1
        %s446 = smul.addr %s445, 8
        %s447 = smul.addr %s446, 8
        %s448 = scalar_lea.vmem %s6, %s447
        %p449 = scmp.lt.s32.totalorder %s28, 1
        %s450 = scalar_select %p449, %s28, 1
        %s451 = smul.addr %s450, 8
        %s452 = smul.addr %s451, 8
        %s453 = scalar_lea.vmem %s7, %s452
        %p454 = scmp.lt.s32.totalorder %s28, 1
        %s455 = scalar_select %p454, %s28, 1
        %s456 = scalar_lea.vmem %s8, %s455
        %v457 = vld [vmem:[#allocation6] sm:$0xff]
        %v458 = vld [vmem:[#allocation6 + $0x8] sm:$0xff]
        %v459 = vld [vmem:[#allocation6 + $0x10] sm:$0xff]
        %v460 = vld [vmem:[#allocation6 + $0x18] sm:$0xff]
        %v461 = vld [vmem:[#allocation6 + $0x20] sm:$0xff]
        %v462 = vld [vmem:[#allocation6 + $0x28] sm:$0xff]
        %v463 = vld [vmem:[#allocation6 + $0x30] sm:$0xff]
        %v464 = vld [vmem:[#allocation6 + $0x38] sm:$0xff]
        %v465 = vld [vmem:[#allocation7] sm:$0xff]
        %v466 = vld [vmem:[#allocation7 + $0x8] sm:$0xff]
        %v467 = vld [vmem:[#allocation7 + $0x10] sm:$0xff]
        %v468 = vld [vmem:[#allocation7 + $0x18] sm:$0xff]
        %v469 = vld [vmem:[#allocation7 + $0x20] sm:$0xff]
        %v470 = vld [vmem:[#allocation7 + $0x28] sm:$0xff]
        %v471 = vld [vmem:[#allocation7 + $0x30] sm:$0xff]
        %v472 = vld [vmem:[#allocation7 + $0x38] sm:$0xff]
        %v473 = vld [vmem:[#allocation7 + $0x40] sm:$0xff]
        %v474 = vld [vmem:[#allocation7 + $0x48] sm:$0xff]
        %v475 = vld [vmem:[#allocation7 + $0x50] sm:$0xff]
        %v476 = vld [vmem:[#allocation7 + $0x58] sm:$0xff]
        %v477 = vld [vmem:[#allocation7 + $0x60] sm:$0xff]
        %v478 = vld [vmem:[#allocation7 + $0x68] sm:$0xff]
        %v479 = vld [vmem:[#allocation7 + $0x70] sm:$0xff]
        %v480 = vld [vmem:[#allocation7 + $0x78] sm:$0xff]
        %v481 = vld [vmem:[#allocation9] sm:$0xff]
        %v482 = vld [vmem:[#allocation9 + $0x8] sm:$0xff]
        %v483 = vld [vmem:[#allocation9 + $0x10] sm:$0xff]
        %v484 = vld [vmem:[#allocation9 + $0x18] sm:$0xff]
        %v485 = vld [vmem:[#allocation9 + $0x20] sm:$0xff]
        %v486 = vld [vmem:[#allocation9 + $0x28] sm:$0xff]
        %v487 = vld [vmem:[#allocation9 + $0x30] sm:$0xff]
        %v488 = vld [vmem:[#allocation9 + $0x38] sm:$0xff]
        %v489 = vld [vmem:[#allocation9 + $0x40] sm:$0xff]
        %v490 = vld [vmem:[#allocation9 + $0x48] sm:$0xff]
        %v491 = vld [vmem:[#allocation9 + $0x50] sm:$0xff]
        %v492 = vld [vmem:[#allocation9 + $0x58] sm:$0xff]
        %v493 = vld [vmem:[#allocation9 + $0x60] sm:$0xff]
        %v494 = vld [vmem:[#allocation9 + $0x68] sm:$0xff]
        %v495 = vld [vmem:[#allocation9 + $0x70] sm:$0xff]
        %v496 = vld [vmem:[#allocation9 + $0x78] sm:$0xff]
        %v497 = vld [vmem:[#allocation10] sm:$0xff]
        %v498 = vld [vmem:[#allocation10 + $0x8] sm:$0xff]
        %v499 = vld [vmem:[#allocation10 + $0x10] sm:$0xff]
        %v500 = vld [vmem:[#allocation10 + $0x18] sm:$0xff]
        %v501 = vld [vmem:[#allocation10 + $0x20] sm:$0xff]
        %v502 = vld [vmem:[#allocation10 + $0x28] sm:$0xff]
        %v503 = vld [vmem:[#allocation10 + $0x30] sm:$0xff]
        %v504 = vld [vmem:[#allocation10 + $0x38] sm:$0xff]
        %v505 = vld [vmem:[%s367] sm:$0xff]
        %v506 = vld [vmem:[%s367 + $0x8] sm:$0xff]
        %v507 = vld [vmem:[%s367 + $0x10] sm:$0xff]
        %v508 = vld [vmem:[%s367 + $0x18] sm:$0xff]
        %v509 = vld [vmem:[%s367 + $0x20] sm:$0xff]
        %v510 = vld [vmem:[%s367 + $0x28] sm:$0xff]
        %v511 = vld [vmem:[%s367 + $0x30] sm:$0xff]
        %v512 = vld [vmem:[%s367 + $0x38] sm:$0xff]
        %v513 = vld [vmem:[%s367 + $0x40] sm:$0xff]
        %v514 = vld [vmem:[%s367 + $0x48] sm:$0xff]
        %v515 = vld [vmem:[%s367 + $0x50] sm:$0xff]
        %v516 = vld [vmem:[%s367 + $0x58] sm:$0xff]
        %v517 = vld [vmem:[%s367 + $0x60] sm:$0xff]
        %v518 = vld [vmem:[%s367 + $0x68] sm:$0xff]
        %v519 = vld [vmem:[%s367 + $0x70] sm:$0xff]
        %v520 = vld [vmem:[%s367 + $0x78] sm:$0xff]
        %v521 = vld [vmem:[%s377] sm:$0xff]
        %v522 = vld [vmem:[%s377 + $0x8] sm:$0xff]
        %v523 = vld [vmem:[%s377 + $0x10] sm:$0xff]
        %v524 = vld [vmem:[%s377 + $0x18] sm:$0xff]
        %v525 = vld [vmem:[%s377 + $0x20] sm:$0xff]
        %v526 = vld [vmem:[%s377 + $0x28] sm:$0xff]
        %v527 = vld [vmem:[%s377 + $0x30] sm:$0xff]
        %v528 = vld [vmem:[%s377 + $0x38] sm:$0xff]
        %v529 = vld [vmem:[%s377 + $0x40] sm:$0xff]
        %v530 = vld [vmem:[%s377 + $0x48] sm:$0xff]
        %v531 = vld [vmem:[%s377 + $0x50] sm:$0xff]
        %v532 = vld [vmem:[%s377 + $0x58] sm:$0xff]
        %v533 = vld [vmem:[%s377 + $0x60] sm:$0xff]
        %v534 = vld [vmem:[%s377 + $0x68] sm:$0xff]
        %v535 = vld [vmem:[%s377 + $0x70] sm:$0xff]
        %v536 = vld [vmem:[%s377 + $0x78] sm:$0xff]
        %537 = vmatpush.msra.mxu0 %v480
        %538 = vmatpush.msra.mxu0 %v479
        %539 = vmatpush.msra.mxu0 %v478
        %540 = vmatpush.msra.mxu0 %v477
        %541 = vmatpush.msra.mxu0 %v476
        %542 = vmatpush.msra.mxu0 %v475
        %543 = vmatpush.msra.mxu0 %v474
        %544 = vmatpush.msra.mxu0 %v473
        %545 = vmatpush.msra.mxu0 %v472
        %546 = vmatpush.msra.mxu0 %v471
        %547 = vmatpush.msra.mxu0 %v470
        %548 = vmatpush.msra.mxu0 %v469
        %549 = vmatpush.msra.mxu0 %v468
        %550 = vmatpush.msra.mxu0 %v467
        %551 = vmatpush.msra.mxu0 %v466
        %552 = vmatpush.msra.mxu0 %v465
        %553 = vmatmul.f32.gmra.mxu0 %v505
        %v554 = vpop.f32.mrf.mxu0
        %v555 = vadd.f32 0.0, %v554
        %556 = vmatmul.f32.gmra.mxu0 %v506
        %v557 = vpop.f32.mrf.mxu0
        %v558 = vadd.f32 0.0, %v557
        %559 = vmatmul.f32.gmra.mxu0 %v507
        %v560 = vpop.f32.mrf.mxu0
        %v561 = vadd.f32 0.0, %v560
        %562 = vmatmul.f32.gmra.mxu0 %v508
        %v563 = vpop.f32.mrf.mxu0
        %v564 = vadd.f32 0.0, %v563
        %565 = vmatmul.f32.gmra.mxu0 %v509
        %v566 = vpop.f32.mrf.mxu0
        %v567 = vadd.f32 0.0, %v566
        %568 = vmatmul.f32.gmra.mxu0 %v510
        %v569 = vpop.f32.mrf.mxu0
        %v570 = vadd.f32 0.0, %v569
        %571 = vmatmul.f32.gmra.mxu0 %v511
        %v572 = vpop.f32.mrf.mxu0
        %v573 = vadd.f32 0.0, %v572
        %574 = vmatmul.f32.gmra.mxu0 %v512
        %v575 = vpop.f32.mrf.mxu0
        %v576 = vadd.f32 0.0, %v575
        %577 = vmatmul.f32.gmra.mxu0 %v513
        %v578 = vpop.f32.mrf.mxu0
        %v579 = vadd.f32 0.0, %v578
        %580 = vmatmul.f32.gmra.mxu0 %v514
        %v581 = vpop.f32.mrf.mxu0
        %v582 = vadd.f32 0.0, %v581
        %583 = vmatmul.f32.gmra.mxu0 %v515
        %v584 = vpop.f32.mrf.mxu0
        %v585 = vadd.f32 0.0, %v584
        %586 = vmatmul.f32.gmra.mxu0 %v516
        %v587 = vpop.f32.mrf.mxu0
        %v588 = vadd.f32 0.0, %v587
        %589 = vmatmul.f32.gmra.mxu0 %v517
        %v590 = vpop.f32.mrf.mxu0
        %v591 = vadd.f32 0.0, %v590
        %592 = vmatmul.f32.gmra.mxu0 %v518
        %v593 = vpop.f32.mrf.mxu0
        %v594 = vadd.f32 0.0, %v593
        %595 = vmatmul.f32.gmra.mxu0 %v519
        %v596 = vpop.f32.mrf.mxu0
        %v597 = vadd.f32 0.0, %v596
        %598 = vmatmul.f32.gmra.mxu0 %v520
        %v599 = vpop.f32.mrf.mxu0
        %v600 = vadd.f32 0.0, %v599
        %601 = vdwg.mxu0
        %602 = vmatpush.msra.mxu0 %v600
        %603 = vmatpush.msra.mxu0 %v597
        %604 = vmatpush.msra.mxu0 %v594
        %605 = vmatpush.msra.mxu0 %v591
        %606 = vmatpush.msra.mxu0 %v588
        %607 = vmatpush.msra.mxu0 %v585
        %608 = vmatpush.msra.mxu0 %v582
        %609 = vmatpush.msra.mxu0 %v579
        %610 = vmatpush.msra.mxu0 %v576
        %611 = vmatpush.msra.mxu0 %v573
        %612 = vmatpush.msra.mxu0 %v570
        %613 = vmatpush.msra.mxu0 %v567
        %614 = vmatpush.msra.mxu0 %v564
        %615 = vmatpush.msra.mxu0 %v561
        %616 = vmatpush.msra.mxu0 %v558
        %617 = vmatpush.msra.mxu0 %v555
        %618 = vmatmul.f32.gmra.mxu0 %v457
        %v619 = vpop.f32.mrf.mxu0
        %v620 = vadd.f32 0.0, %v619
        %621 = vmatmul.f32.gmra.mxu0 %v458
        %v622 = vpop.f32.mrf.mxu0
        %v623 = vadd.f32 0.0, %v622
        %624 = vmatmul.f32.gmra.mxu0 %v459
        %v625 = vpop.f32.mrf.mxu0
        %v626 = vadd.f32 0.0, %v625
        %627 = vmatmul.f32.gmra.mxu0 %v460
        %v628 = vpop.f32.mrf.mxu0
        %v629 = vadd.f32 0.0, %v628
        %630 = vmatmul.f32.gmra.mxu0 %v461
        %v631 = vpop.f32.mrf.mxu0
        %v632 = vadd.f32 0.0, %v631
        %633 = vmatmul.f32.gmra.mxu0 %v462
        %v634 = vpop.f32.mrf.mxu0
        %v635 = vadd.f32 0.0, %v634
        %636 = vmatmul.f32.gmra.mxu0 %v463
        %v637 = vpop.f32.mrf.mxu0
        %v638 = vadd.f32 0.0, %v637
        %639 = vmatmul.f32.gmra.mxu0 %v464
        %v640 = vpop.f32.mrf.mxu0
        %v641 = vadd.f32 0.0, %v640
        %642 = vdwg.mxu0
        %643 = vmatpush.msra.mxu0 %v480
        %644 = vmatpush.msra.mxu0 %v479
        %645 = vmatpush.msra.mxu0 %v478
        %646 = vmatpush.msra.mxu0 %v477
        %647 = vmatpush.msra.mxu0 %v476
        %648 = vmatpush.msra.mxu0 %v475
        %649 = vmatpush.msra.mxu0 %v474
        %650 = vmatpush.msra.mxu0 %v473
        %651 = vmatpush.msra.mxu0 %v472
        %652 = vmatpush.msra.mxu0 %v471
        %653 = vmatpush.msra.mxu0 %v470
        %654 = vmatpush.msra.mxu0 %v469
        %655 = vmatpush.msra.mxu0 %v468
        %656 = vmatpush.msra.mxu0 %v467
        %657 = vmatpush.msra.mxu0 %v466
        %658 = vmatpush.msra.mxu0 %v465
        %659 = vmatmul.f32.gmra.mxu0 %v521
        %v660 = vpop.f32.mrf.mxu0
        %v661 = vadd.f32 0.0, %v660
        %662 = vmatmul.f32.gmra.mxu0 %v522
        %v663 = vpop.f32.mrf.mxu0
        %v664 = vadd.f32 0.0, %v663
        %665 = vmatmul.f32.gmra.mxu0 %v523
        %v666 = vpop.f32.mrf.mxu0
        %v667 = vadd.f32 0.0, %v666
        %668 = vmatmul.f32.gmra.mxu0 %v524
        %v669 = vpop.f32.mrf.mxu0
        %v670 = vadd.f32 0.0, %v669
        %671 = vmatmul.f32.gmra.mxu0 %v525
        %v672 = vpop.f32.mrf.mxu0
        %v673 = vadd.f32 0.0, %v672
        %674 = vmatmul.f32.gmra.mxu0 %v526
        %v675 = vpop.f32.mrf.mxu0
        %v676 = vadd.f32 0.0, %v675
        %677 = vmatmul.f32.gmra.mxu0 %v527
        %v678 = vpop.f32.mrf.mxu0
        %v679 = vadd.f32 0.0, %v678
        %680 = vmatmul.f32.gmra.mxu0 %v528
        %v681 = vpop.f32.mrf.mxu0
        %v682 = vadd.f32 0.0, %v681
        %683 = vmatmul.f32.gmra.mxu0 %v529
        %v684 = vpop.f32.mrf.mxu0
        %v685 = vadd.f32 0.0, %v684
        %686 = vmatmul.f32.gmra.mxu0 %v530
        %v687 = vpop.f32.mrf.mxu0
        %v688 = vadd.f32 0.0, %v687
        %689 = vmatmul.f32.gmra.mxu0 %v531
        %v690 = vpop.f32.mrf.mxu0
        %v691 = vadd.f32 0.0, %v690
        %692 = vmatmul.f32.gmra.mxu0 %v532
        %v693 = vpop.f32.mrf.mxu0
        %v694 = vadd.f32 0.0, %v693
        %695 = vmatmul.f32.gmra.mxu0 %v533
        %v696 = vpop.f32.mrf.mxu0
        %v697 = vadd.f32 0.0, %v696
        %698 = vmatmul.f32.gmra.mxu0 %v534
        %v699 = vpop.f32.mrf.mxu0
        %v700 = vadd.f32 0.0, %v699
        %701 = vmatmul.f32.gmra.mxu0 %v535
        %v702 = vpop.f32.mrf.mxu0
        %v703 = vadd.f32 0.0, %v702
        %704 = vmatmul.f32.gmra.mxu0 %v536
        %v705 = vpop.f32.mrf.mxu0
        %v706 = vadd.f32 0.0, %v705
        %707 = vdwg.mxu0
        %708 = vmatpush.msra.mxu0 %v706
        %709 = vmatpush.msra.mxu0 %v703
        %710 = vmatpush.msra.mxu0 %v700
        %711 = vmatpush.msra.mxu0 %v697
        %712 = vmatpush.msra.mxu0 %v694
        %713 = vmatpush.msra.mxu0 %v691
        %714 = vmatpush.msra.mxu0 %v688
        %715 = vmatpush.msra.mxu0 %v685
        %716 = vmatpush.msra.mxu0 %v682
        %717 = vmatpush.msra.mxu0 %v679
        %718 = vmatpush.msra.mxu0 %v676
        %719 = vmatpush.msra.mxu0 %v673
        %720 = vmatpush.msra.mxu0 %v670
        %721 = vmatpush.msra.mxu0 %v667
        %722 = vmatpush.msra.mxu0 %v664
        %723 = vmatpush.msra.mxu0 %v661
        %724 = vmatmul.f32.gmra.mxu0 %v457
        %v725 = vpop.f32.mrf.mxu0
        %v726 = vadd.f32 0.0, %v725
        %727 = vmatmul.f32.gmra.mxu0 %v458
        %v728 = vpop.f32.mrf.mxu0
        %v729 = vadd.f32 0.0, %v728
        %730 = vmatmul.f32.gmra.mxu0 %v459
        %v731 = vpop.f32.mrf.mxu0
        %v732 = vadd.f32 0.0, %v731
        %733 = vmatmul.f32.gmra.mxu0 %v460
        %v734 = vpop.f32.mrf.mxu0
        %v735 = vadd.f32 0.0, %v734
        %736 = vmatmul.f32.gmra.mxu0 %v461
        %v737 = vpop.f32.mrf.mxu0
        %v738 = vadd.f32 0.0, %v737
        %739 = vmatmul.f32.gmra.mxu0 %v462
        %v740 = vpop.f32.mrf.mxu0
        %v741 = vadd.f32 0.0, %v740
        %742 = vmatmul.f32.gmra.mxu0 %v463
        %v743 = vpop.f32.mrf.mxu0
        %v744 = vadd.f32 0.0, %v743
        %745 = vmatmul.f32.gmra.mxu0 %v464
        %v746 = vpop.f32.mrf.mxu0
        %v747 = vadd.f32 0.0, %v746
        %748 = vdwg.mxu0
        %vm749 = vcmask 523264
        %750 = vst.msk [vmem:[%s448] sm:$0xff] %vm749, %v620
        %751 = vst.msk [vmem:[%s448 + $0x8] sm:$0xff] %vm749, %v623
        %752 = vst.msk [vmem:[%s448 + $0x10] sm:$0xff] %vm749, %v626
        %753 = vst.msk [vmem:[%s448 + $0x18] sm:$0xff] %vm749, %v629
        %754 = vst.msk [vmem:[%s448 + $0x20] sm:$0xff] %vm749, %v632
        %755 = vst.msk [vmem:[%s448 + $0x28] sm:$0xff] %vm749, %v635
        %756 = vst.msk [vmem:[%s448 + $0x30] sm:$0xff] %vm749, %v638
        %757 = vst.msk [vmem:[%s448 + $0x38] sm:$0xff] %vm749, %v641
        %758 = vst.msk [vmem:[%s453] sm:$0xff] %vm749, %v726
        %759 = vst.msk [vmem:[%s453 + $0x8] sm:$0xff] %vm749, %v729
        %760 = vst.msk [vmem:[%s453 + $0x10] sm:$0xff] %vm749, %v732
        %761 = vst.msk [vmem:[%s453 + $0x18] sm:$0xff] %vm749, %v735
        %762 = vst.msk [vmem:[%s453 + $0x20] sm:$0xff] %vm749, %v738
        %763 = vst.msk [vmem:[%s453 + $0x28] sm:$0xff] %vm749, %v741
        %764 = vst.msk [vmem:[%s453 + $0x30] sm:$0xff] %vm749, %v744
        %765 = vst.msk [vmem:[%s453 + $0x38] sm:$0xff] %vm749, %v747
        %v767 = vsel %vm749, %v620, 0
        %v770 = vsel %vm749, %v623, 0
        %v773 = vsel %vm749, %v626, 0
        %v776 = vsel %vm749, %v629, 0
        %v779 = vsel %vm749, %v632, 0
        %v782 = vsel %vm749, %v635, 0
        %v785 = vsel %vm749, %v638, 0
        %v788 = vsel %vm749, %v641, 0
        %790 = vmatpush.msra.mxu0 0.0
        %791 = vmatpush.msra.mxu0 0.0
        %792 = vmatpush.msra.mxu0 0.0
        %793 = vmatpush.msra.mxu0 0.0
        %794 = vmatpush.msra.mxu0 0.0
        %795 = vmatpush.msra.mxu0 0.0
        %796 = vmatpush.msra.mxu0 0.0
        %797 = vmatpush.msra.mxu0 0.0
        %798 = vmatpush.msra.mxu0 %v504
        %799 = vmatpush.msra.mxu0 %v503
        %800 = vmatpush.msra.mxu0 %v502
        %801 = vmatpush.msra.mxu0 %v501
        %802 = vmatpush.msra.mxu0 %v500
        %803 = vmatpush.msra.mxu0 %v499
        %804 = vmatpush.msra.mxu0 %v498
        %805 = vmatpush.msra.mxu0 %v497
        %806 = vmatmul.f32.gmra.mxu0 %v767
        %v807 = vpop.f32.mrf.mxu0
        %v808 = vadd.f32 0.0, %v807
        %809 = vmatmul.f32.gmra.mxu0 %v770
        %v810 = vpop.f32.mrf.mxu0
        %v811 = vadd.f32 0.0, %v810
        %812 = vmatmul.f32.gmra.mxu0 %v773
        %v813 = vpop.f32.mrf.mxu0
        %v814 = vadd.f32 0.0, %v813
        %815 = vmatmul.f32.gmra.mxu0 %v776
        %v816 = vpop.f32.mrf.mxu0
        %v817 = vadd.f32 0.0, %v816
        %818 = vmatmul.f32.gmra.mxu0 %v779
        %v819 = vpop.f32.mrf.mxu0
        %v820 = vadd.f32 0.0, %v819
        %821 = vmatmul.f32.gmra.mxu0 %v782
        %v822 = vpop.f32.mrf.mxu0
        %v823 = vadd.f32 0.0, %v822
        %824 = vmatmul.f32.gmra.mxu0 %v785
        %v825 = vpop.f32.mrf.mxu0
        %v826 = vadd.f32 0.0, %v825
        %827 = vmatmul.f32.gmra.mxu0 %v788
        %v828 = vpop.f32.mrf.mxu0
        %v829 = vadd.f32 0.0, %v828
        %830 = vdwg.mxu0
        %v832 = vsel %vm749, %v481, 0
        %v835 = vsel %vm749, %v482, 0
        %v838 = vsel %vm749, %v483, 0
        %v841 = vsel %vm749, %v484, 0
        %v844 = vsel %vm749, %v485, 0
        %v847 = vsel %vm749, %v486, 0
        %v850 = vsel %vm749, %v487, 0
        %v853 = vsel %vm749, %v488, 0
        %v856 = vsel %vm749, %v489, 0
        %v859 = vsel %vm749, %v490, 0
        %v862 = vsel %vm749, %v491, 0
        %v865 = vsel %vm749, %v492, 0
        %v868 = vsel %vm749, %v493, 0
        %v871 = vsel %vm749, %v494, 0
        %v874 = vsel %vm749, %v495, 0
        %v877 = vsel %vm749, %v496, 0
        %879 = vmatpush.msra.mxu0 0.0
        %880 = vmatpush.msra.mxu0 0.0
        %881 = vmatpush.msra.mxu0 0.0
        %882 = vmatpush.msra.mxu0 0.0
        %883 = vmatpush.msra.mxu0 0.0
        %884 = vmatpush.msra.mxu0 0.0
        %885 = vmatpush.msra.mxu0 0.0
        %886 = vmatpush.msra.mxu0 0.0
        %887 = vmatpush.msra.mxu0 %v829
        %888 = vmatpush.msra.mxu0 %v826
        %889 = vmatpush.msra.mxu0 %v823
        %890 = vmatpush.msra.mxu0 %v820
        %891 = vmatpush.msra.mxu0 %v817
        %892 = vmatpush.msra.mxu0 %v814
        %893 = vmatpush.msra.mxu0 %v811
        %894 = vmatpush.msra.mxu0 %v808
        %895 = vmatmul.f32.gmra.mxu0 %v832
        %v896 = vpop.f32.mrf.mxu0
        %v897 = vadd.f32 0.0, %v896
        %898 = vmatmul.f32.gmra.mxu0 %v835
        %v899 = vpop.f32.mrf.mxu0
        %v900 = vadd.f32 0.0, %v899
        %901 = vmatmul.f32.gmra.mxu0 %v838
        %v902 = vpop.f32.mrf.mxu0
        %v903 = vadd.f32 0.0, %v902
        %904 = vmatmul.f32.gmra.mxu0 %v841
        %v905 = vpop.f32.mrf.mxu0
        %v906 = vadd.f32 0.0, %v905
        %907 = vmatmul.f32.gmra.mxu0 %v844
        %v908 = vpop.f32.mrf.mxu0
        %v909 = vadd.f32 0.0, %v908
        %910 = vmatmul.f32.gmra.mxu0 %v847
        %v911 = vpop.f32.mrf.mxu0
        %v912 = vadd.f32 0.0, %v911
        %913 = vmatmul.f32.gmra.mxu0 %v850
        %v914 = vpop.f32.mrf.mxu0
        %v915 = vadd.f32 0.0, %v914
        %916 = vmatmul.f32.gmra.mxu0 %v853
        %v917 = vpop.f32.mrf.mxu0
        %v918 = vadd.f32 0.0, %v917
        %919 = vmatmul.f32.gmra.mxu0 %v856
        %v920 = vpop.f32.mrf.mxu0
        %v921 = vadd.f32 0.0, %v920
        %922 = vmatmul.f32.gmra.mxu0 %v859
        %v923 = vpop.f32.mrf.mxu0
        %v924 = vadd.f32 0.0, %v923
        %925 = vmatmul.f32.gmra.mxu0 %v862
        %v926 = vpop.f32.mrf.mxu0
        %v927 = vadd.f32 0.0, %v926
        %928 = vmatmul.f32.gmra.mxu0 %v865
        %v929 = vpop.f32.mrf.mxu0
        %v930 = vadd.f32 0.0, %v929
        %931 = vmatmul.f32.gmra.mxu0 %v868
        %v932 = vpop.f32.mrf.mxu0
        %v933 = vadd.f32 0.0, %v932
        %934 = vmatmul.f32.gmra.mxu0 %v871
        %v935 = vpop.f32.mrf.mxu0
        %v936 = vadd.f32 0.0, %v935
        %937 = vmatmul.f32.gmra.mxu0 %v874
        %v938 = vpop.f32.mrf.mxu0
        %v939 = vadd.f32 0.0, %v938
        %940 = vmatmul.f32.gmra.mxu0 %v877
        %v941 = vpop.f32.mrf.mxu0
        %v942 = vadd.f32 0.0, %v941
        %943 = vdwg.mxu0
        %v945 = vsel %vm749, %v726, 0
        %v948 = vsel %vm749, %v729, 0
        %v951 = vsel %vm749, %v732, 0
        %v954 = vsel %vm749, %v735, 0
        %v957 = vsel %vm749, %v738, 0
        %v960 = vsel %vm749, %v741, 0
        %v963 = vsel %vm749, %v744, 0
        %v966 = vsel %vm749, %v747, 0
        %968 = vmatpush.msra.mxu0 0.0
        %969 = vmatpush.msra.mxu0 0.0
        %970 = vmatpush.msra.mxu0 0.0
        %971 = vmatpush.msra.mxu0 0.0
        %972 = vmatpush.msra.mxu0 0.0
        %973 = vmatpush.msra.mxu0 0.0
        %974 = vmatpush.msra.mxu0 0.0
        %975 = vmatpush.msra.mxu0 0.0
        %976 = vmatpush.msra.mxu0 %v504
        %977 = vmatpush.msra.mxu0 %v503
        %978 = vmatpush.msra.mxu0 %v502
        %979 = vmatpush.msra.mxu0 %v501
        %980 = vmatpush.msra.mxu0 %v500
        %981 = vmatpush.msra.mxu0 %v499
        %982 = vmatpush.msra.mxu0 %v498
        %983 = vmatpush.msra.mxu0 %v497
        %984 = vmatmul.f32.gmra.mxu0 %v945
        %v985 = vpop.f32.mrf.mxu0
        %v986 = vadd.f32 0.0, %v985
        %987 = vmatmul.f32.gmra.mxu0 %v948
        %v988 = vpop.f32.mrf.mxu0
        %v989 = vadd.f32 0.0, %v988
        %990 = vmatmul.f32.gmra.mxu0 %v951
        %v991 = vpop.f32.mrf.mxu0
        %v992 = vadd.f32 0.0, %v991
        %993 = vmatmul.f32.gmra.mxu0 %v954
        %v994 = vpop.f32.mrf.mxu0
        %v995 = vadd.f32 0.0, %v994
        %996 = vmatmul.f32.gmra.mxu0 %v957
        %v997 = vpop.f32.mrf.mxu0
        %v998 = vadd.f32 0.0, %v997
        %999 = vmatmul.f32.gmra.mxu0 %v960
        %v1000 = vpop.f32.mrf.mxu0
        %v1001 = vadd.f32 0.0, %v1000
        %1002 = vmatmul.f32.gmra.mxu0 %v963
        %v1003 = vpop.f32.mrf.mxu0
        %v1004 = vadd.f32 0.0, %v1003
        %1005 = vmatmul.f32.gmra.mxu0 %v966
        %v1006 = vpop.f32.mrf.mxu0
        %v1007 = vadd.f32 0.0, %v1006
        %1008 = vdwg.mxu0
        %1009 = vmatpush.msra.mxu0 0.0
        %1010 = vmatpush.msra.mxu0 0.0
        %1011 = vmatpush.msra.mxu0 0.0
        %1012 = vmatpush.msra.mxu0 0.0
        %1013 = vmatpush.msra.mxu0 0.0
        %1014 = vmatpush.msra.mxu0 0.0
        %1015 = vmatpush.msra.mxu0 0.0
        %1016 = vmatpush.msra.mxu0 0.0
        %1017 = vmatpush.msra.mxu0 %v1007
        %1018 = vmatpush.msra.mxu0 %v1004
        %1019 = vmatpush.msra.mxu0 %v1001
        %1020 = vmatpush.msra.mxu0 %v998
        %1021 = vmatpush.msra.mxu0 %v995
        %1022 = vmatpush.msra.mxu0 %v992
        %1023 = vmatpush.msra.mxu0 %v989
        %1024 = vmatpush.msra.mxu0 %v986
        %1025 = vmatmul.f32.gmra.mxu0 %v832
        %v1026 = vpop.f32.mrf.mxu0
        %v1027 = vadd.f32 0.0, %v1026
        %1028 = vmatmul.f32.gmra.mxu0 %v835
        %v1029 = vpop.f32.mrf.mxu0
        %v1030 = vadd.f32 0.0, %v1029
        %1031 = vmatmul.f32.gmra.mxu0 %v838
        %v1032 = vpop.f32.mrf.mxu0
        %v1033 = vadd.f32 0.0, %v1032
        %1034 = vmatmul.f32.gmra.mxu0 %v841
        %v1035 = vpop.f32.mrf.mxu0
        %v1036 = vadd.f32 0.0, %v1035
        %1037 = vmatmul.f32.gmra.mxu0 %v844
        %v1038 = vpop.f32.mrf.mxu0
        %v1039 = vadd.f32 0.0, %v1038
        %1040 = vmatmul.f32.gmra.mxu0 %v847
        %v1041 = vpop.f32.mrf.mxu0
        %v1042 = vadd.f32 0.0, %v1041
        %1043 = vmatmul.f32.gmra.mxu0 %v850
        %v1044 = vpop.f32.mrf.mxu0
        %v1045 = vadd.f32 0.0, %v1044
        %1046 = vmatmul.f32.gmra.mxu0 %v853
        %v1047 = vpop.f32.mrf.mxu0
        %v1048 = vadd.f32 0.0, %v1047
        %1049 = vmatmul.f32.gmra.mxu0 %v856
        %v1050 = vpop.f32.mrf.mxu0
        %v1051 = vadd.f32 0.0, %v1050
        %1052 = vmatmul.f32.gmra.mxu0 %v859
        %v1053 = vpop.f32.mrf.mxu0
        %v1054 = vadd.f32 0.0, %v1053
        %1055 = vmatmul.f32.gmra.mxu0 %v862
        %v1056 = vpop.f32.mrf.mxu0
        %v1057 = vadd.f32 0.0, %v1056
        %1058 = vmatmul.f32.gmra.mxu0 %v865
        %v1059 = vpop.f32.mrf.mxu0
        %v1060 = vadd.f32 0.0, %v1059
        %1061 = vmatmul.f32.gmra.mxu0 %v868
        %v1062 = vpop.f32.mrf.mxu0
        %v1063 = vadd.f32 0.0, %v1062
        %1064 = vmatmul.f32.gmra.mxu0 %v871
        %v1065 = vpop.f32.mrf.mxu0
        %v1066 = vadd.f32 0.0, %v1065
        %1067 = vmatmul.f32.gmra.mxu0 %v874
        %v1068 = vpop.f32.mrf.mxu0
        %v1069 = vadd.f32 0.0, %v1068
        %1070 = vmatmul.f32.gmra.mxu0 %v877
        %v1071 = vpop.f32.mrf.mxu0
        %v1072 = vadd.f32 0.0, %v1071
        %1073 = vdwg.mxu0
        %v1074 = vsub.f32 %v505, %v897
        %v1075 = vsub.f32 %v506, %v900
        %v1076 = vsub.f32 %v507, %v903
        %v1077 = vsub.f32 %v508, %v906
        %v1078 = vsub.f32 %v509, %v909
        %v1079 = vsub.f32 %v510, %v912
        %v1080 = vsub.f32 %v511, %v915
        %v1081 = vsub.f32 %v512, %v918
        %v1082 = vsub.f32 %v513, %v921
        %v1083 = vsub.f32 %v514, %v924
        %v1084 = vsub.f32 %v515, %v927
        %v1085 = vsub.f32 %v516, %v930
        %v1086 = vsub.f32 %v517, %v933
        %v1087 = vsub.f32 %v518, %v936
        %v1088 = vsub.f32 %v519, %v939
        %v1089 = vsub.f32 %v520, %v942
        %v1090 = vsub.f32 %v521, %v1027
        %v1091 = vsub.f32 %v522, %v1030
        %v1092 = vsub.f32 %v523, %v1033
        %v1093 = vsub.f32 %v524, %v1036
        %v1094 = vsub.f32 %v525, %v1039
        %v1095 = vsub.f32 %v526, %v1042
        %v1096 = vsub.f32 %v527, %v1045
        %v1097 = vsub.f32 %v528, %v1048
        %v1098 = vsub.f32 %v529, %v1051
        %v1099 = vsub.f32 %v530, %v1054
        %v1100 = vsub.f32 %v531, %v1057
        %v1101 = vsub.f32 %v532, %v1060
        %v1102 = vsub.f32 %v533, %v1063
        %v1103 = vsub.f32 %v534, %v1066
        %v1104 = vsub.f32 %v535, %v1069
        %v1105 = vsub.f32 %v536, %v1072
        %v1106 = vsub.f32 %v1074, %v1090
        %v1107 = vsub.f32 %v1075, %v1091
        %v1108 = vsub.f32 %v1076, %v1092
        %v1109 = vsub.f32 %v1077, %v1093
        %v1110 = vsub.f32 %v1078, %v1094
        %v1111 = vsub.f32 %v1079, %v1095
        %v1112 = vsub.f32 %v1080, %v1096
        %v1113 = vsub.f32 %v1081, %v1097
        %v1114 = vsub.f32 %v1082, %v1098
        %v1115 = vsub.f32 %v1083, %v1099
        %v1116 = vsub.f32 %v1084, %v1100
        %v1117 = vsub.f32 %v1085, %v1101
        %v1118 = vsub.f32 %v1086, %v1102
        %v1119 = vsub.f32 %v1087, %v1103
        %v1120 = vsub.f32 %v1088, %v1104
        %v1121 = vsub.f32 %v1089, %v1105
        %v1122 = vand.u32 2147483647, %v1106
        %v1123 = vand.u32 2147483647, %v1107
        %v1124 = vand.u32 2147483647, %v1108
        %v1125 = vand.u32 2147483647, %v1109
        %v1126 = vand.u32 2147483647, %v1110
        %v1127 = vand.u32 2147483647, %v1111
        %v1128 = vand.u32 2147483647, %v1112
        %v1129 = vand.u32 2147483647, %v1113
        %v1130 = vand.u32 2147483647, %v1114
        %v1131 = vand.u32 2147483647, %v1115
        %v1132 = vand.u32 2147483647, %v1116
        %v1133 = vand.u32 2147483647, %v1117
        %v1134 = vand.u32 2147483647, %v1118
        %v1135 = vand.u32 2147483647, %v1119
        %v1136 = vand.u32 2147483647, %v1120
        %v1137 = vand.u32 2147483647, %v1121
        %v1138 = vadd.f32 %v1122, %v1123
        %v1139 = vadd.f32 %v1138, %v1124
        %v1140 = vadd.f32 %v1139, %v1125
        %v1141 = vadd.f32 %v1140, %v1126
        %v1142 = vadd.f32 %v1141, %v1127
        %v1143 = vadd.f32 %v1142, %v1128
        %v1144 = vadd.f32 %v1143, %v1129
        %v1145 = vadd.f32 %v1144, %v1130
        %v1146 = vadd.f32 %v1145, %v1131
        %v1147 = vadd.f32 %v1146, %v1132
        %v1148 = vadd.f32 %v1147, %v1133
        %v1149 = vadd.f32 %v1148, %v1134
        %v1150 = vadd.f32 %v1149, %v1135
        %v1151 = vadd.f32 %v1150, %v1136
        %v1152 = vadd.f32 %v1151, %v1137
        %1153 = vadd.xlane.f32.xlu0 %v1152
        %v1154 = vpop.xlane.xlu0 %1153
        %v1155 = vrot.slane %v1154, 4
        %v1156 = vadd.f32 %v1154, %v1155
        %v1157 = vrot.slane %v1156, 2
        %v1158 = vadd.f32 %v1156, %v1157
        %v1159 = vrot.slane %v1158, 1
        %v1160 = vadd.f32 %v1158, %v1159
        %s1161 = vtos %v1160
        %s1162 = sadd.f32 %s1161, 0.0
        %v1163 = vstv %s1162
        %1164 = vst [vmem:[%s456] sm:$0x1] %v1163
        %p1165 = scmp.lt.s32.totalorder %s28, 1
        %s1166 = scalar_select %p1165, %s28, 1
        %s1167 = smul.addr %s1166, 8
        %s1168 = smul.addr %s1167, 8
        %s1169 = scalar_lea.vmem %s6, %s1168
        %p1170 = scmp.lt.s32.totalorder %s28, 1
        %s1171 = scalar_select %p1170, %s28, 1
        %s1172 = smul.addr %s1171, 8
        %s1173 = smul.addr %s1172, 8
        %s1174 = scalar_lea.vmem %s7, %s1173
        %p1175 = scmp.lt.s32.totalorder %s28, 1
        %s1176 = scalar_select %p1175, %s28, 1
        %s1177 = scalar_lea.vmem %s8, %s1176
        // Predicated region
        $region69: #{_lambda_.6} parent=43 // pred_check
          %p1178 = pneg %p182
        $region70: #{_lambda_.6} parent=43 // pred_check_branch
          %1180 = sbr.rel (%p1178) target = $region72
        $region71: #{_lambda_.6} parent=43 // pred_region
          _
        $region72: #{_lambda_.6} parent=43 // pred_fallthru
          _
        // Predicated region
        $region73: #{_lambda_.6} parent=43 // pred_check
          %p1181 = pneg %p208
        $region74: #{_lambda_.6} parent=43 // pred_check_branch
          %1183 = sbr.rel (%p1181) target = $region76
        $region75: #{_lambda_.6} parent=43 // pred_region
          _
        $region76: #{_lambda_.6} parent=43 // pred_fallthru
          _
        // Predicated region
        $region77: #{_lambda_.6} parent=43 // pred_check
          %p1184 = pneg %p234
        $region78: #{_lambda_.6} parent=43 // pred_check_branch
          %1186 = sbr.rel (%p1184) target = $region80
        $region79: #{_lambda_.6} parent=43 // pred_region
          _
        $region80: #{_lambda_.6} parent=43 // pred_fallthru
          _
      $region44: #{_lambda_.6} parent=5 // pred_fallthru
        _
      %p1187 = scmp.le.s32.totalorder 2, %s23
      // Predicated region
      $region81: #{_lambda_.6} parent=5 // pred_check
        %p1188 = pneg %p1187
      $region82: #{_lambda_.6} parent=5 // pred_check_branch
        %1190 = sbr.rel (%p1188) target = $region84
      $region83: #{_lambda_.6} parent=5 // pred_region
        %s1191 = ssub.s32 %s23, 2
        // Predicated region
        $region85: #{_lambda_.6} parent=83 // pred_check
          %p1192 = pneg %p188
        $region86: #{_lambda_.6} parent=83 // pred_check_branch
          %1194 = sbr.rel (%p1192) target = $region88
        $region87: #{_lambda_.6} parent=83 // pred_region
          %p1195 = scmp.lt.s32.totalorder %s29, 1
          %s1196 = scalar_select %p1195, %s29, 1
          %s1197 = smul.addr %s1196, 8
          %s1198 = smul.addr %s1197, 8
          %s1199 = scalar_lea.vmem %s6, %s1198
        $region88: #{_lambda_.6} parent=83 // pred_fallthru
          _
        // Predicated region
        $region89: #{_lambda_.6} parent=83 // pred_check
          %p1200 = pneg %p214
        $region90: #{_lambda_.6} parent=83 // pred_check_branch
          %1202 = sbr.rel (%p1200) target = $region92
        $region91: #{_lambda_.6} parent=83 // pred_region
          %p1203 = scmp.lt.s32.totalorder %s29, 1
          %s1204 = scalar_select %p1203, %s29, 1
          %s1205 = smul.addr %s1204, 8
          %s1206 = smul.addr %s1205, 8
          %s1207 = scalar_lea.vmem %s7, %s1206
        $region92: #{_lambda_.6} parent=83 // pred_fallthru
          _
        // Predicated region
        $region93: #{_lambda_.6} parent=83 // pred_check
          %p1208 = pneg %p240
        $region94: #{_lambda_.6} parent=83 // pred_check_branch
          %1210 = sbr.rel (%p1208) target = $region96
        $region95: #{_lambda_.6} parent=83 // pred_region
          %p1211 = scmp.lt.s32.totalorder %s29, 1
          %s1212 = scalar_select %p1211, %s29, 1
          %s1213 = scalar_lea.vmem %s8, %s1212
        $region96: #{_lambda_.6} parent=83 // pred_fallthru
          _
      $region84: #{_lambda_.6} parent=5 // pred_fallthru
        _
    $region6: #{_lambda_.6} parent=1 // loop_footer
      %s27 = sadd.s32 1, %s23
    $region7: #{_lambda_.6} parent=1 // loop_footer_branch
      %22 = sbr.rel target = $region3
    $region8: #{_lambda_.6} parent=1 // loop_exit
      _
    %1214 = vsyncpa [#allocation3], 1
    %s1215 = scalar_lea.sflag [#allocation3], 1
    %1216 = vsyncpa %s1215, 1
    %1217 = vsyncpa [#allocation5], 1
    %s1218 = scalar_lea.sflag [#allocation5], 1
    %1219 = vsyncpa %s1218, 1
    %1220 = vsyncpa [#allocation8], 1
    %1221 = vsyncpa [#allocation11], 1

// kernel: _lambda_.7
$region0: #{_lambda_.7}
  #allocation0 [shape = 'u32[]', space=smem, size = 0x4, offset = 0x4, fixed_abs, tag = 'smem constant byte address 0x4 - core index']
  #allocation1 [shape = 'u32[72,128]{1,0:T(1,128)}', space=vmem, size = 0x9000, scoped, tag = 'internal scratch']
  %s0 = inlined_call_operand.vmem [shape: f32[2,64,64], index: 0, kind: input, shape index: {}]
  %s1 = inlined_call_operand.vmem [shape: f32[2,64,64], index: 1, kind: input, shape index: {}]
  %s2 = inlined_call_operand.vmem [shape: f32[32,64], index: 2, kind: input, shape index: {}]
  %s3 = inlined_call_operand.hbm [shape: f32[64,32], index: 3, kind: input, shape index: {}]
  %s4 = inlined_call_operand.hbm [shape: f32[64,32], index: 4, kind: input, shape index: {}]
  %s5 = inlined_call_operand.hbm [shape: f32[32,64], index: 5, kind: input, shape index: {}]
  %s6 = inlined_call_operand.vmem [shape: f32[2,32,32], index: 6, kind: output, shape index: {0}]
  %s7 = inlined_call_operand.vmem [shape: f32[2,32,32], index: 7, kind: output, shape index: {1}]
  %s8 = inlined_call_operand.vmem [shape: f32[1,1,128], index: 8, kind: output, shape index: {2}]
  %9 = xla_tuple %s6, %s7, %s8
  %s10 = sld [smem:[#allocation0]]
  $region62: #{_lambda_.7} parent=0
    _
  %s12 = ssub.s32 1, %s10
  %s13 = scalar_select 0, %s12, %s10
  $region1: #{_lambda_.7} parent=0
    #allocation2 [shape = 'u8[32768]{0}', space=vmem, size = 0x8000, scoped, tag = 'input window, operand 3, single buffered']
    #allocation3 [shape = 's32[1]{0}', space=sflag, size = 0x4, scoped, tag = 'scoped memory for _lambda_.7']
    #allocation4 [shape = 'u8[32768]{0}', space=vmem, size = 0x8000, scoped, tag = 'input window, operand 4, single buffered']
    #allocation5 [shape = 's32[1]{0}', space=sflag, size = 0x4, scoped, tag = 'scoped memory for _lambda_.7']
    #allocation6 [shape = 'u8[16384]{0}', space=vmem, size = 0x4000, scoped, tag = 'input window, operand 5, single buffered']
    %14 = vsyncpa [#allocation3], 0
    %15 = vsyncpa [#allocation5], 0
    // Predicated region
    $region2: #{_lambda_.7} parent=1 // pred_check
      _
    $region3: #{_lambda_.7} parent=1 // pred_check_branch
      %17 = sbr.rel (0) target = $region5
    $region4: #{_lambda_.7} parent=1 // pred_region
      _
    $region5: #{_lambda_.7} parent=1 // pred_fallthru
      _
    // Predicated region
    $region6: #{_lambda_.7} parent=1 // pred_check
      _
    $region7: #{_lambda_.7} parent=1 // pred_check_branch
      %19 = sbr.rel (0) target = $region9
    $region8: #{_lambda_.7} parent=1 // pred_region
      _
    $region9: #{_lambda_.7} parent=1 // pred_fallthru
      _
    // Predicated region
    $region10: #{_lambda_.7} parent=1 // pred_check
      _
    $region11: #{_lambda_.7} parent=1 // pred_check_branch
      %21 = sbr.rel (0) target = $region13
    $region12: #{_lambda_.7} parent=1 // pred_region
      _
    $region13: #{_lambda_.7} parent=1 // pred_fallthru
      _
    // Predicated region
    $region14: #{_lambda_.7} parent=1 // pred_check
      _
    $region15: #{_lambda_.7} parent=1 // pred_check_branch
      %23 = sbr.rel (0) target = $region17
    $region16: #{_lambda_.7} parent=1 // pred_region
      %25 = vsyncadd [#allocation3], 0
      %s26 = sshll.u32 %s3, 4
      %s27 = int_to_ptr.hbm [resolvable:$true] %s26
      %s28 = sshll.u32 [#allocation2], 4
      %s29 = int_to_ptr.vmem [resolvable:$true] %s28
      %34 = dma.hbm_to_vmem [thread:$0]  %s27, 1024, %s29, [#allocation3], 128, 128, 8
    $region17: #{_lambda_.7} parent=1 // pred_fallthru
      _
    // Predicated region
    $region18: #{_lambda_.7} parent=1 // pred_check
      _
    $region19: #{_lambda_.7} parent=1 // pred_check_branch
      %36 = sbr.rel (0) target = $region21
    $region20: #{_lambda_.7} parent=1 // pred_region
      %38 = vsyncadd [#allocation5], 0
      %s39 = sshll.u32 %s4, 4
      %s40 = int_to_ptr.hbm [resolvable:$true] %s39
      %s41 = sshll.u32 [#allocation4], 4
      %s42 = int_to_ptr.vmem [resolvable:$true] %s41
      %47 = dma.hbm_to_vmem [thread:$0]  %s40, 1024, %s42, [#allocation5], 128, 128, 8
    $region21: #{_lambda_.7} parent=1 // pred_fallthru
      _
    // Predicated region
    $region22: #{_lambda_.7} parent=1 // pred_check
      _
    $region23: #{_lambda_.7} parent=1 // pred_check_branch
      %49 = sbr.rel (0) target = $region25
    $region24: #{_lambda_.7} parent=1 // pred_region
      %51 = vsyncadd [#allocation5], 0
      %s52 = sshll.u32 %s5, 4
      %s53 = int_to_ptr.hbm [resolvable:$true] %s52
      %s54 = sshll.u32 [#allocation6], 4
      %s55 = int_to_ptr.vmem [resolvable:$true] %s54
      %60 = dma.hbm_to_vmem [thread:$0]  %s53, 512, %s55, [#allocation5], 128, 128, 8
    $region25: #{_lambda_.7} parent=1 // pred_fallthru
      _
    // Predicated region
    $region26: #{_lambda_.7} parent=1 // pred_check
      _
    $region27: #{_lambda_.7} parent=1 // pred_check_branch
      %62 = sbr.rel (0) target = $region29
    $region28: #{_lambda_.7} parent=1 // pred_region
      %64 = dma.done [#allocation3], 1024
    $region29: #{_lambda_.7} parent=1 // pred_fallthru
      _
    // Predicated region
    $region30: #{_lambda_.7} parent=1 // pred_check
      _
    $region31: #{_lambda_.7} parent=1 // pred_check_branch
      %66 = sbr.rel (0) target = $region33
    $region32: #{_lambda_.7} parent=1 // pred_region
      %68 = dma.done [#allocation5], 1024
    $region33: #{_lambda_.7} parent=1 // pred_fallthru
      _
    // Predicated region
    $region34: #{_lambda_.7} parent=1 // pred_check
      _
    $region35: #{_lambda_.7} parent=1 // pred_check_branch
      %70 = sbr.rel (0) target = $region37
    $region36: #{_lambda_.7} parent=1 // pred_region
      %72 = dma.done [#allocation5], 512
    $region37: #{_lambda_.7} parent=1 // pred_fallthru
      _
    %v73 = vld [vmem:[%s2] sm:$0xff]
    %v74 = vld [vmem:[%s2 + $0x8] sm:$0xff]
    %v75 = vld [vmem:[%s2 + $0x10] sm:$0xff]
    %v76 = vld [vmem:[%s2 + $0x18] sm:$0xff]
    %v77 = vld [vmem:[#allocation2] sm:$0xff]
    %v78 = vld [vmem:[#allocation2 + $0x8] sm:$0xff]
    %v79 = vld [vmem:[#allocation2 + $0x10] sm:$0xff]
    %v80 = vld [vmem:[#allocation2 + $0x18] sm:$0xff]
    %v81 = vld [vmem:[#allocation2 + $0x20] sm:$0xff]
    %v82 = vld [vmem:[#allocation2 + $0x28] sm:$0xff]
    %v83 = vld [vmem:[#allocation2 + $0x30] sm:$0xff]
    %v84 = vld [vmem:[#allocation2 + $0x38] sm:$0xff]
    %v85 = vld [vmem:[#allocation4] sm:$0xff]
    %v86 = vld [vmem:[#allocation4 + $0x8] sm:$0xff]
    %v87 = vld [vmem:[#allocation4 + $0x10] sm:$0xff]
    %v88 = vld [vmem:[#allocation4 + $0x18] sm:$0xff]
    %v89 = vld [vmem:[#allocation4 + $0x20] sm:$0xff]
    %v90 = vld [vmem:[#allocation4 + $0x28] sm:$0xff]
    %v91 = vld [vmem:[#allocation4 + $0x30] sm:$0xff]
    %v92 = vld [vmem:[#allocation4 + $0x38] sm:$0xff]
    %v93 = vld [vmem:[#allocation6] sm:$0xff]
    %v94 = vld [vmem:[#allocation6 + $0x8] sm:$0xff]
    %v95 = vld [vmem:[#allocation6 + $0x10] sm:$0xff]
    %v96 = vld [vmem:[#allocation6 + $0x18] sm:$0xff]
    %v97 = vld [vmem:[%s0] sm:$0xff]
    %v98 = vld [vmem:[%s0 + $0x8] sm:$0xff]
    %v99 = vld [vmem:[%s0 + $0x10] sm:$0xff]
    %v100 = vld [vmem:[%s0 + $0x18] sm:$0xff]
    %v101 = vld [vmem:[%s0 + $0x20] sm:$0xff]
    %v102 = vld [vmem:[%s0 + $0x28] sm:$0xff]
    %v103 = vld [vmem:[%s0 + $0x30] sm:$0xff]
    %v104 = vld [vmem:[%s0 + $0x38] sm:$0xff]
    %v105 = vld [vmem:[%s1] sm:$0xff]
    %v106 = vld [vmem:[%s1 + $0x8] sm:$0xff]
    %v107 = vld [vmem:[%s1 + $0x10] sm:$0xff]
    %v108 = vld [vmem:[%s1 + $0x18] sm:$0xff]
    %v109 = vld [vmem:[%s1 + $0x20] sm:$0xff]
    %v110 = vld [vmem:[%s1 + $0x28] sm:$0xff]
    %v111 = vld [vmem:[%s1 + $0x30] sm:$0xff]
    %v112 = vld [vmem:[%s1 + $0x38] sm:$0xff]
    %vm113 = vcmask 523264
    %v115 = vsel %vm113, %v97, 0
    %v118 = vsel %vm113, %v98, 0
    %v121 = vsel %vm113, %v99, 0
    %v124 = vsel %vm113, %v100, 0
    %v127 = vsel %vm113, %v101, 0
    %v130 = vsel %vm113, %v102, 0
    %v133 = vsel %vm113, %v103, 0
    %v136 = vsel %vm113, %v104, 0
    %138 = vmatpush.msra.mxu0 0.0
    %139 = vmatpush.msra.mxu0 0.0
    %140 = vmatpush.msra.mxu0 0.0
    %141 = vmatpush.msra.mxu0 0.0
    %142 = vmatpush.msra.mxu0 0.0
    %143 = vmatpush.msra.mxu0 0.0
    %144 = vmatpush.msra.mxu0 0.0
    %145 = vmatpush.msra.mxu0 0.0
    %146 = vmatpush.msra.mxu0 %v84
    %147 = vmatpush.msra.mxu0 %v83
    %148 = vmatpush.msra.mxu0 %v82
    %149 = vmatpush.msra.mxu0 %v81
    %150 = vmatpush.msra.mxu0 %v80
    %151 = vmatpush.msra.mxu0 %v79
    %152 = vmatpush.msra.mxu0 %v78
    %153 = vmatpush.msra.mxu0 %v77
    %154 = vmatmul.f32.gmra.mxu0 %v115
    %v155 = vpop.f32.mrf.mxu0
    %v156 = vadd.f32 0.0, %v155
    %157 = vmatmul.f32.gmra.mxu0 %v118
    %v158 = vpop.f32.mrf.mxu0
    %v159 = vadd.f32 0.0, %v158
    %160 = vmatmul.f32.gmra.mxu0 %v121
    %v161 = vpop.f32.mrf.mxu0
    %v162 = vadd.f32 0.0, %v161
    %163 = vmatmul.f32.gmra.mxu0 %v124
    %v164 = vpop.f32.mrf.mxu0
    %v165 = vadd.f32 0.0, %v164
    %166 = vmatmul.f32.gmra.mxu0 %v127
    %v167 = vpop.f32.mrf.mxu0
    %v168 = vadd.f32 0.0, %v167
    %169 = vmatmul.f32.gmra.mxu0 %v130
    %v170 = vpop.f32.mrf.mxu0
    %v171 = vadd.f32 0.0, %v170
    %172 = vmatmul.f32.gmra.mxu0 %v133
    %v173 = vpop.f32.mrf.mxu0
    %v174 = vadd.f32 0.0, %v173
    %175 = vmatmul.f32.gmra.mxu0 %v136
    %v176 = vpop.f32.mrf.mxu0
    %v177 = vadd.f32 0.0, %v176
    %178 = vdwg.mxu0
    %v180 = vsel %vm113, %v73, 0
    %v183 = vsel %vm113, %v74, 0
    %v186 = vsel %vm113, %v75, 0
    %v189 = vsel %vm113, %v76, 0
    %191 = vmatpush.msra.mxu0 0.0
    %192 = vmatpush.msra.mxu0 0.0
    %193 = vmatpush.msra.mxu0 0.0
    %194 = vmatpush.msra.mxu0 0.0
    %195 = vmatpush.msra.mxu0 0.0
    %196 = vmatpush.msra.mxu0 0.0
    %197 = vmatpush.msra.mxu0 0.0
    %198 = vmatpush.msra.mxu0 0.0
    %199 = vmatpush.msra.mxu0 %v177
    %200 = vmatpush.msra.mxu0 %v174
    %201 = vmatpush.msra.mxu0 %v171
    %202 = vmatpush.msra.mxu0 %v168
    %203 = vmatpush.msra.mxu0 %v165
    %204 = vmatpush.msra.mxu0 %v162
    %205 = vmatpush.msra.mxu0 %v159
    %206 = vmatpush.msra.mxu0 %v156
    %207 = vmatmul.f32.gmra.mxu0 %v180
    %v208 = vpop.f32.mrf.mxu0
    %v209 = vadd.f32 0.0, %v208
    %210 = vmatmul.f32.gmra.mxu0 %v183
    %v211 = vpop.f32.mrf.mxu0
    %v212 = vadd.f32 0.0, %v211
    %213 = vmatmul.f32.gmra.mxu0 %v186
    %v214 = vpop.f32.mrf.mxu0
    %v215 = vadd.f32 0.0, %v214
    %216 = vmatmul.f32.gmra.mxu0 %v189
    %v217 = vpop.f32.mrf.mxu0
    %v218 = vadd.f32 0.0, %v217
    %219 = vdwg.mxu0
    %v221 = vsel %vm113, %v105, 0
    %v224 = vsel %vm113, %v106, 0
    %v227 = vsel %vm113, %v107, 0
    %v230 = vsel %vm113, %v108, 0
    %v233 = vsel %vm113, %v109, 0
    %v236 = vsel %vm113, %v110, 0
    %v239 = vsel %vm113, %v111, 0
    %v242 = vsel %vm113, %v112, 0
    %244 = vmatpush.msra.mxu0 0.0
    %245 = vmatpush.msra.mxu0 0.0
    %246 = vmatpush.msra.mxu0 0.0
    %247 = vmatpush.msra.mxu0 0.0
    %248 = vmatpush.msra.mxu0 0.0
    %249 = vmatpush.msra.mxu0 0.0
    %250 = vmatpush.msra.mxu0 0.0
    %251 = vmatpush.msra.mxu0 0.0
    %252 = vmatpush.msra.mxu0 %v84
    %253 = vmatpush.msra.mxu0 %v83
    %254 = vmatpush.msra.mxu0 %v82
    %255 = vmatpush.msra.mxu0 %v81
    %256 = vmatpush.msra.mxu0 %v80
    %257 = vmatpush.msra.mxu0 %v79
    %258 = vmatpush.msra.mxu0 %v78
    %259 = vmatpush.msra.mxu0 %v77
    %260 = vmatmul.f32.gmra.mxu0 %v221
    %v261 = vpop.f32.mrf.mxu0
    %v262 = vadd.f32 0.0, %v261
    %263 = vmatmul.f32.gmra.mxu0 %v224
    %v264 = vpop.f32.mrf.mxu0
    %v265 = vadd.f32 0.0, %v264
    %266 = vmatmul.f32.gmra.mxu0 %v227
    %v267 = vpop.f32.mrf.mxu0
    %v268 = vadd.f32 0.0, %v267
    %269 = vmatmul.f32.gmra.mxu0 %v230
    %v270 = vpop.f32.mrf.mxu0
    %v271 = vadd.f32 0.0, %v270
    %272 = vmatmul.f32.gmra.mxu0 %v233
    %v273 = vpop.f32.mrf.mxu0
    %v274 = vadd.f32 0.0, %v273
    %275 = vmatmul.f32.gmra.mxu0 %v236
    %v276 = vpop.f32.mrf.mxu0
    %v277 = vadd.f32 0.0, %v276
    %278 = vmatmul.f32.gmra.mxu0 %v239
    %v279 = vpop.f32.mrf.mxu0
    %v280 = vadd.f32 0.0, %v279
    %281 = vmatmul.f32.gmra.mxu0 %v242
    %v282 = vpop.f32.mrf.mxu0
    %v283 = vadd.f32 0.0, %v282
    %284 = vdwg.mxu0
    %285 = vmatpush.msra.mxu0 0.0
    %286 = vmatpush.msra.mxu0 0.0
    %287 = vmatpush.msra.mxu0 0.0
    %288 = vmatpush.msra.mxu0 0.0
    %289 = vmatpush.msra.mxu0 0.0
    %290 = vmatpush.msra.mxu0 0.0
    %291 = vmatpush.msra.mxu0 0.0
    %292 = vmatpush.msra.mxu0 0.0
    %293 = vmatpush.msra.mxu0 %v283
    %294 = vmatpush.msra.mxu0 %v280
    %295 = vmatpush.msra.mxu0 %v277
    %296 = vmatpush.msra.mxu0 %v274
    %297 = vmatpush.msra.mxu0 %v271
    %298 = vmatpush.msra.mxu0 %v268
    %299 = vmatpush.msra.mxu0 %v265
    %300 = vmatpush.msra.mxu0 %v262
    %301 = vmatmul.f32.gmra.mxu0 %v180
    %v302 = vpop.f32.mrf.mxu0
    %v303 = vadd.f32 0.0, %v302
    %304 = vmatmul.f32.gmra.mxu0 %v183
    %v305 = vpop.f32.mrf.mxu0
    %v306 = vadd.f32 0.0, %v305
    %307 = vmatmul.f32.gmra.mxu0 %v186
    %v308 = vpop.f32.mrf.mxu0
    %v309 = vadd.f32 0.0, %v308
    %310 = vmatmul.f32.gmra.mxu0 %v189
    %v311 = vpop.f32.mrf.mxu0
    %v312 = vadd.f32 0.0, %v311
    %313 = vdwg.mxu0
    %vm314 = vcmask 261120
    %315 = vst.msk [vmem:[%s6] sm:$0xff] %vm314, %v209
    %316 = vst.msk [vmem:[%s6 + $0x8] sm:$0xff] %vm314, %v212
    %317 = vst.msk [vmem:[%s6 + $0x10] sm:$0xff] %vm314, %v215
    %318 = vst.msk [vmem:[%s6 + $0x18] sm:$0xff] %vm314, %v218
    %319 = vst.msk [vmem:[%s7] sm:$0xff] %vm314, %v303
    %320 = vst.msk [vmem:[%s7 + $0x8] sm:$0xff] %vm314, %v306
    %321 = vst.msk [vmem:[%s7 + $0x10] sm:$0xff] %vm314, %v309
    %322 = vst.msk [vmem:[%s7 + $0x18] sm:$0xff] %vm314, %v312
    %v324 = vsel %vm314, %v209, 0
    %v327 = vsel %vm314, %v212, 0
    %v330 = vsel %vm314, %v215, 0
    %v333 = vsel %vm314, %v218, 0
    %335 = vmatpush.msra.mxu0 0.0
    %336 = vmatpush.msra.mxu0 0.0
    %337 = vmatpush.msra.mxu0 0.0
    %338 = vmatpush.msra.mxu0 0.0
    %339 = vmatpush.msra.mxu0 0.0
    %340 = vmatpush.msra.mxu0 0.0
    %341 = vmatpush.msra.mxu0 0.0
    %342 = vmatpush.msra.mxu0 0.0
    %343 = vmatpush.msra.mxu0 0.0
    %344 = vmatpush.msra.mxu0 0.0
    %345 = vmatpush.msra.mxu0 0.0
    %346 = vmatpush.msra.mxu0 0.0
    %347 = vmatpush.msra.mxu0 %v96
    %348 = vmatpush.msra.mxu0 %v95
    %349 = vmatpush.msra.mxu0 %v94
    %350 = vmatpush.msra.mxu0 %v93
    %351 = vmatmul.f32.gmra.mxu0 %v324
    %v352 = vpop.f32.mrf.mxu0
    %v353 = vadd.f32 0.0, %v352
    %354 = vmatmul.f32.gmra.mxu0 %v327
    %v355 = vpop.f32.mrf.mxu0
    %v356 = vadd.f32 0.0, %v355
    %357 = vmatmul.f32.gmra.mxu0 %v330
    %v358 = vpop.f32.mrf.mxu0
    %v359 = vadd.f32 0.0, %v358
    %360 = vmatmul.f32.gmra.mxu0 %v333
    %v361 = vpop.f32.mrf.mxu0
    %v362 = vadd.f32 0.0, %v361
    %363 = vdwg.mxu0
    %v365 = vsel %vm314, %v85, 0
    %v368 = vsel %vm314, %v86, 0
    %v371 = vsel %vm314, %v87, 0
    %v374 = vsel %vm314, %v88, 0
    %v377 = vsel %vm314, %v89, 0
    %v380 = vsel %vm314, %v90, 0
    %v383 = vsel %vm314, %v91, 0
    %v386 = vsel %vm314, %v92, 0
    %388 = vmatpush.msra.mxu0 0.0
    %389 = vmatpush.msra.mxu0 0.0
    %390 = vmatpush.msra.mxu0 0.0
    %391 = vmatpush.msra.mxu0 0.0
    %392 = vmatpush.msra.mxu0 0.0
    %393 = vmatpush.msra.mxu0 0.0
    %394 = vmatpush.msra.mxu0 0.0
    %395 = vmatpush.msra.mxu0 0.0
    %396 = vmatpush.msra.mxu0 0.0
    %397 = vmatpush.msra.mxu0 0.0
    %398 = vmatpush.msra.mxu0 0.0
    %399 = vmatpush.msra.mxu0 0.0
    %400 = vmatpush.msra.mxu0 %v362
    %401 = vmatpush.msra.mxu0 %v359
    %402 = vmatpush.msra.mxu0 %v356
    %403 = vmatpush.msra.mxu0 %v353
    %404 = vmatmul.f32.gmra.mxu0 %v365
    %v405 = vpop.f32.mrf.mxu0
    %v406 = vadd.f32 0.0, %v405
    %407 = vmatmul.f32.gmra.mxu0 %v368
    %v408 = vpop.f32.mrf.mxu0
    %v409 = vadd.f32 0.0, %v408
    %410 = vmatmul.f32.gmra.mxu0 %v371
    %v411 = vpop.f32.mrf.mxu0
    %v412 = vadd.f32 0.0, %v411
    %413 = vmatmul.f32.gmra.mxu0 %v374
    %v414 = vpop.f32.mrf.mxu0
    %v415 = vadd.f32 0.0, %v414
    %416 = vmatmul.f32.gmra.mxu0 %v377
    %v417 = vpop.f32.mrf.mxu0
    %v418 = vadd.f32 0.0, %v417
    %419 = vmatmul.f32.gmra.mxu0 %v380
    %v420 = vpop.f32.mrf.mxu0
    %v421 = vadd.f32 0.0, %v420
    %422 = vmatmul.f32.gmra.mxu0 %v383
    %v423 = vpop.f32.mrf.mxu0
    %v424 = vadd.f32 0.0, %v423
    %425 = vmatmul.f32.gmra.mxu0 %v386
    %v426 = vpop.f32.mrf.mxu0
    %v427 = vadd.f32 0.0, %v426
    %428 = vdwg.mxu0
    %v430 = vsel %vm314, %v303, 0
    %v433 = vsel %vm314, %v306, 0
    %v436 = vsel %vm314, %v309, 0
    %v439 = vsel %vm314, %v312, 0
    %441 = vmatpush.msra.mxu0 0.0
    %442 = vmatpush.msra.mxu0 0.0
    %443 = vmatpush.msra.mxu0 0.0
    %444 = vmatpush.msra.mxu0 0.0
    %445 = vmatpush.msra.mxu0 0.0
    %446 = vmatpush.msra.mxu0 0.0
    %447 = vmatpush.msra.mxu0 0.0
    %448 = vmatpush.msra.mxu0 0.0
    %449 = vmatpush.msra.mxu0 0.0
    %450 = vmatpush.msra.mxu0 0.0
    %451 = vmatpush.msra.mxu0 0.0
    %452 = vmatpush.msra.mxu0 0.0
    %453 = vmatpush.msra.mxu0 %v96
    %454 = vmatpush.msra.mxu0 %v95
    %455 = vmatpush.msra.mxu0 %v94
    %456 = vmatpush.msra.mxu0 %v93
    %457 = vmatmul.f32.gmra.mxu0 %v430
    %v458 = vpop.f32.mrf.mxu0
    %v459 = vadd.f32 0.0, %v458
    %460 = vmatmul.f32.gmra.mxu0 %v433
    %v461 = vpop.f32.mrf.mxu0
    %v462 = vadd.f32 0.0, %v461
    %463 = vmatmul.f32.gmra.mxu0 %v436
    %v464 = vpop.f32.mrf.mxu0
    %v465 = vadd.f32 0.0, %v464
    %466 = vmatmul.f32.gmra.mxu0 %v439
    %v467 = vpop.f32.mrf.mxu0
    %v468 = vadd.f32 0.0, %v467
    %469 = vdwg.mxu0
    %470 = vmatpush.msra.mxu0 0.0
    %471 = vmatpush.msra.mxu0 0.0
    %472 = vmatpush.msra.mxu0 0.0
    %473 = vmatpush.msra.mxu0 0.0
    %474 = vmatpush.msra.mxu0 0.0
    %475 = vmatpush.msra.mxu0 0.0
    %476 = vmatpush.msra.mxu0 0.0
    %477 = vmatpush.msra.mxu0 0.0
    %478 = vmatpush.msra.mxu0 0.0
    %479 = vmatpush.msra.mxu0 0.0
    %480 = vmatpush.msra.mxu0 0.0
    %481 = vmatpush.msra.mxu0 0.0
    %482 = vmatpush.msra.mxu0 %v468
    %483 = vmatpush.msra.mxu0 %v465
    %484 = vmatpush.msra.mxu0 %v462
    %485 = vmatpush.msra.mxu0 %v459
    %486 = vmatmul.f32.gmra.mxu0 %v365
    %v487 = vpop.f32.mrf.mxu0
    %v488 = vadd.f32 0.0, %v487
    %489 = vmatmul.f32.gmra.mxu0 %v368
    %v490 = vpop.f32.mrf.mxu0
    %v491 = vadd.f32 0.0, %v490
    %492 = vmatmul.f32.gmra.mxu0 %v371
    %v493 = vpop.f32.mrf.mxu0
    %v494 = vadd.f32 0.0, %v493
    %495 = vmatmul.f32.gmra.mxu0 %v374
    %v496 = vpop.f32.mrf.mxu0
    %v497 = vadd.f32 0.0, %v496
    %498 = vmatmul.f32.gmra.mxu0 %v377
    %v499 = vpop.f32.mrf.mxu0
    %v500 = vadd.f32 0.0, %v499
    %501 = vmatmul.f32.gmra.mxu0 %v380
    %v502 = vpop.f32.mrf.mxu0
    %v503 = vadd.f32 0.0, %v502
    %504 = vmatmul.f32.gmra.mxu0 %v383
    %v505 = vpop.f32.mrf.mxu0
    %v506 = vadd.f32 0.0, %v505
    %507 = vmatmul.f32.gmra.mxu0 %v386
    %v508 = vpop.f32.mrf.mxu0
    %v509 = vadd.f32 0.0, %v508
    %510 = vdwg.mxu0
    %v511 = vsub.f32 %v97, %v406
    %v512 = vsub.f32 %v98, %v409
    %v513 = vsub.f32 %v99, %v412
    %v514 = vsub.f32 %v100, %v415
    %v515 = vsub.f32 %v101, %v418
    %v516 = vsub.f32 %v102, %v421
    %v517 = vsub.f32 %v103, %v424
    %v518 = vsub.f32 %v104, %v427
    %v519 = vsub.f32 %v105, %v488
    %v520 = vsub.f32 %v106, %v491
    %v521 = vsub.f32 %v107, %v494
    %v522 = vsub.f32 %v108, %v497
    %v523 = vsub.f32 %v109, %v500
    %v524 = vsub.f32 %v110, %v503
    %v525 = vsub.f32 %v111, %v506
    %v526 = vsub.f32 %v112, %v509
    %v527 = vsub.f32 %v511, %v519
    %v528 = vsub.f32 %v512, %v520
    %v529 = vsub.f32 %v513, %v521
    %v530 = vsub.f32 %v514, %v522
    %v531 = vsub.f32 %v515, %v523
    %v532 = vsub.f32 %v516, %v524
    %v533 = vsub.f32 %v517, %v525
    %v534 = vsub.f32 %v518, %v526
    %v535 = vand.u32 2147483647, %v527
    %v536 = vand.u32 2147483647, %v528
    %v537 = vand.u32 2147483647, %v529
    %v538 = vand.u32 2147483647, %v530
    %v539 = vand.u32 2147483647, %v531
    %v540 = vand.u32 2147483647, %v532
    %v541 = vand.u32 2147483647, %v533
    %v542 = vand.u32 2147483647, %v534
    %v543 = vsel %vm113, %v535, 0.0
    %v544 = vsel %vm113, %v536, 0.0
    %v545 = vadd.f32 %v543, %v544
    %v546 = vsel %vm113, %v537, 0.0
    %v547 = vadd.f32 %v545, %v546
    %v548 = vsel %vm113, %v538, 0.0
    %v549 = vadd.f32 %v547, %v548
    %v550 = vsel %vm113, %v539, 0.0
    %v551 = vadd.f32 %v549, %v550
    %v552 = vsel %vm113, %v540, 0.0
    %v553 = vadd.f32 %v551, %v552
    %v554 = vsel %vm113, %v541, 0.0
    %v555 = vadd.f32 %v553, %v554
    %v556 = vsel %vm113, %v542, 0.0
    %v557 = vadd.f32 %v555, %v556
    %558 = vadd.xlane.f32.xlu0 %v557
    %v559 = vpop.xlane.xlu0 %558
    %v560 = vrot.slane %v559, 4
    %v561 = vadd.f32 %v559, %v560
    %v562 = vrot.slane %v561, 2
    %v563 = vadd.f32 %v561, %v562
    %v564 = vrot.slane %v563, 1
    %v565 = vadd.f32 %v563, %v564
    %s566 = vtos %v565
    %s567 = sadd.f32 %s566, 0.0
    %s568 = scalar_lea.vmem %s0, 64
    %v569 = vld [vmem:[%s568] sm:$0xff]
    %v570 = vld [vmem:[%s568 + $0x8] sm:$0xff]
    %v571 = vld [vmem:[%s568 + $0x10] sm:$0xff]
    %v572 = vld [vmem:[%s568 + $0x18] sm:$0xff]
    %v573 = vld [vmem:[%s568 + $0x20] sm:$0xff]
    %v574 = vld [vmem:[%s568 + $0x28] sm:$0xff]
    %v575 = vld [vmem:[%s568 + $0x30] sm:$0xff]
    %v576 = vld [vmem:[%s568 + $0x38] sm:$0xff]
    %s577 = scalar_lea.vmem %s1, 64
    %v578 = vld [vmem:[%s577] sm:$0xff]
    %v579 = vld [vmem:[%s577 + $0x8] sm:$0xff]
    %v580 = vld [vmem:[%s577 + $0x10] sm:$0xff]
    %v581 = vld [vmem:[%s577 + $0x18] sm:$0xff]
    %v582 = vld [vmem:[%s577 + $0x20] sm:$0xff]
    %v583 = vld [vmem:[%s577 + $0x28] sm:$0xff]
    %v584 = vld [vmem:[%s577 + $0x30] sm:$0xff]
    %v585 = vld [vmem:[%s577 + $0x38] sm:$0xff]
    %v587 = vsel %vm113, %v569, 0
    %v590 = vsel %vm113, %v570, 0
    %v593 = vsel %vm113, %v571, 0
    %v596 = vsel %vm113, %v572, 0
    %v599 = vsel %vm113, %v573, 0
    %v602 = vsel %vm113, %v574, 0
    %v605 = vsel %vm113, %v575, 0
    %v608 = vsel %vm113, %v576, 0
    %610 = vmatpush.msra.mxu0 0.0
    %611 = vmatpush.msra.mxu0 0.0
    %612 = vmatpush.msra.mxu0 0.0
    %613 = vmatpush.msra.mxu0 0.0
    %614 = vmatpush.msra.mxu0 0.0
    %615 = vmatpush.msra.mxu0 0.0
    %616 = vmatpush.msra.mxu0 0.0
    %617 = vmatpush.msra.mxu0 0.0
    %618 = vmatpush.msra.mxu0 %v84
    %619 = vmatpush.msra.mxu0 %v83
    %620 = vmatpush.msra.mxu0 %v82
    %621 = vmatpush.msra.mxu0 %v81
    %622 = vmatpush.msra.mxu0 %v80
    %623 = vmatpush.msra.mxu0 %v79
    %624 = vmatpush.msra.mxu0 %v78
    %625 = vmatpush.msra.mxu0 %v77
    %626 = vmatmul.f32.gmra.mxu0 %v587
    %v627 = vpop.f32.mrf.mxu0
    %v628 = vadd.f32 0.0, %v627
    %629 = vmatmul.f32.gmra.mxu0 %v590
    %v630 = vpop.f32.mrf.mxu0
    %v631 = vadd.f32 0.0, %v630
    %632 = vmatmul.f32.gmra.mxu0 %v593
    %v633 = vpop.f32.mrf.mxu0
    %v634 = vadd.f32 0.0, %v633
    %635 = vmatmul.f32.gmra.mxu0 %v596
    %v636 = vpop.f32.mrf.mxu0
    %v637 = vadd.f32 0.0, %v636
    %638 = vmatmul.f32.gmra.mxu0 %v599
    %v639 = vpop.f32.mrf.mxu0
    %v640 = vadd.f32 0.0, %v639
    %641 = vmatmul.f32.gmra.mxu0 %v602
    %v642 = vpop.f32.mrf.mxu0
    %v643 = vadd.f32 0.0, %v642
    %644 = vmatmul.f32.gmra.mxu0 %v605
    %v645 = vpop.f32.mrf.mxu0
    %v646 = vadd.f32 0.0, %v645
    %647 = vmatmul.f32.gmra.mxu0 %v608
    %v648 = vpop.f32.mrf.mxu0
    %v649 = vadd.f32 0.0, %v648
    %650 = vdwg.mxu0
    %651 = vmatpush.msra.mxu0 0.0
    %652 = vmatpush.msra.mxu0 0.0
    %653 = vmatpush.msra.mxu0 0.0
    %654 = vmatpush.msra.mxu0 0.0
    %655 = vmatpush.msra.mxu0 0.0
    %656 = vmatpush.msra.mxu0 0.0
    %657 = vmatpush.msra.mxu0 0.0
    %658 = vmatpush.msra.mxu0 0.0
    %659 = vmatpush.msra.mxu0 %v649
    %660 = vmatpush.msra.mxu0 %v646
    %661 = vmatpush.msra.mxu0 %v643
    %662 = vmatpush.msra.mxu0 %v640
    %663 = vmatpush.msra.mxu0 %v637
    %664 = vmatpush.msra.mxu0 %v634
    %665 = vmatpush.msra.mxu0 %v631
    %666 = vmatpush.msra.mxu0 %v628
    %667 = vmatmul.f32.gmra.mxu0 %v180
    %v668 = vpop.f32.mrf.mxu0
    %v669 = vadd.f32 0.0, %v668
    %670 = vmatmul.f32.gmra.mxu0 %v183
    %v671 = vpop.f32.mrf.mxu0
    %v672 = vadd.f32 0.0, %v671
    %673 = vmatmul.f32.gmra.mxu0 %v186
    %v674 = vpop.f32.mrf.mxu0
    %v675 = vadd.f32 0.0, %v674
    %676 = vmatmul.f32.gmra.mxu0 %v189
    %v677 = vpop.f32.mrf.mxu0
    %v678 = vadd.f32 0.0, %v677
    %679 = vdwg.mxu0
    %v681 = vsel %vm113, %v578, 0
    %v684 = vsel %vm113, %v579, 0
    %v687 = vsel %vm113, %v580, 0
    %v690 = vsel %vm113, %v581, 0
    %v693 = vsel %vm113, %v582, 0
    %v696 = vsel %vm113, %v583, 0
    %v699 = vsel %vm113, %v584, 0
    %v702 = vsel %vm113, %v585, 0
    %704 = vmatpush.msra.mxu0 0.0
    %705 = vmatpush.msra.mxu0 0.0
    %706 = vmatpush.msra.mxu0 0.0
    %707 = vmatpush.msra.mxu0 0.0
    %708 = vmatpush.msra.mxu0 0.0
    %709 = vmatpush.msra.mxu0 0.0
    %710 = vmatpush.msra.mxu0 0.0
    %711 = vmatpush.msra.mxu0 0.0
    %712 = vmatpush.msra.mxu0 %v84
    %713 = vmatpush.msra.mxu0 %v83
    %714 = vmatpush.msra.mxu0 %v82
    %715 = vmatpush.msra.mxu0 %v81
    %716 = vmatpush.msra.mxu0 %v80
    %717 = vmatpush.msra.mxu0 %v79
    %718 = vmatpush.msra.mxu0 %v78
    %719 = vmatpush.msra.mxu0 %v77
    %720 = vmatmul.f32.gmra.mxu0 %v681
    %v721 = vpop.f32.mrf.mxu0
    %v722 = vadd.f32 0.0, %v721
    %723 = vmatmul.f32.gmra.mxu0 %v684
    %v724 = vpop.f32.mrf.mxu0
    %v725 = vadd.f32 0.0, %v724
    %726 = vmatmul.f32.gmra.mxu0 %v687
    %v727 = vpop.f32.mrf.mxu0
    %v728 = vadd.f32 0.0, %v727
    %729 = vmatmul.f32.gmra.mxu0 %v690
    %v730 = vpop.f32.mrf.mxu0
    %v731 = vadd.f32 0.0, %v730
    %732 = vmatmul.f32.gmra.mxu0 %v693
    %v733 = vpop.f32.mrf.mxu0
    %v734 = vadd.f32 0.0, %v733
    %735 = vmatmul.f32.gmra.mxu0 %v696
    %v736 = vpop.f32.mrf.mxu0
    %v737 = vadd.f32 0.0, %v736
    %738 = vmatmul.f32.gmra.mxu0 %v699
    %v739 = vpop.f32.mrf.mxu0
    %v740 = vadd.f32 0.0, %v739
    %741 = vmatmul.f32.gmra.mxu0 %v702
    %v742 = vpop.f32.mrf.mxu0
    %v743 = vadd.f32 0.0, %v742
    %744 = vdwg.mxu0
    %745 = vmatpush.msra.mxu0 0.0
    %746 = vmatpush.msra.mxu0 0.0
    %747 = vmatpush.msra.mxu0 0.0
    %748 = vmatpush.msra.mxu0 0.0
    %749 = vmatpush.msra.mxu0 0.0
    %750 = vmatpush.msra.mxu0 0.0
    %751 = vmatpush.msra.mxu0 0.0
    %752 = vmatpush.msra.mxu0 0.0
    %753 = vmatpush.msra.mxu0 %v743
    %754 = vmatpush.msra.mxu0 %v740
    %755 = vmatpush.msra.mxu0 %v737
    %756 = vmatpush.msra.mxu0 %v734
    %757 = vmatpush.msra.mxu0 %v731
    %758 = vmatpush.msra.mxu0 %v728
    %759 = vmatpush.msra.mxu0 %v725
    %760 = vmatpush.msra.mxu0 %v722
    %761 = vmatmul.f32.gmra.mxu0 %v180
    %v762 = vpop.f32.mrf.mxu0
    %v763 = vadd.f32 0.0, %v762
    %764 = vmatmul.f32.gmra.mxu0 %v183
    %v765 = vpop.f32.mrf.mxu0
    %v766 = vadd.f32 0.0, %v765
    %767 = vmatmul.f32.gmra.mxu0 %v186
    %v768 = vpop.f32.mrf.mxu0
    %v769 = vadd.f32 0.0, %v768
    %770 = vmatmul.f32.gmra.mxu0 %v189
    %v771 = vpop.f32.mrf.mxu0
    %v772 = vadd.f32 0.0, %v771
    %773 = vdwg.mxu0
    %s774 = scalar_lea.vmem %s6, 32
    %775 = vst.msk [vmem:[%s774] sm:$0xff] %vm314, %v669
    %776 = vst.msk [vmem:[%s774 + $0x8] sm:$0xff] %vm314, %v672
    %777 = vst.msk [vmem:[%s774 + $0x10] sm:$0xff] %vm314, %v675
    %778 = vst.msk [vmem:[%s774 + $0x18] sm:$0xff] %vm314, %v678
    %s779 = scalar_lea.vmem %s7, 32
    %780 = vst.msk [vmem:[%s779] sm:$0xff] %vm314, %v763
    %781 = vst.msk [vmem:[%s779 + $0x8] sm:$0xff] %vm314, %v766
    %782 = vst.msk [vmem:[%s779 + $0x10] sm:$0xff] %vm314, %v769
    %783 = vst.msk [vmem:[%s779 + $0x18] sm:$0xff] %vm314, %v772
    %v785 = vsel %vm314, %v669, 0
    %v788 = vsel %vm314, %v672, 0
    %v791 = vsel %vm314, %v675, 0
    %v794 = vsel %vm314, %v678, 0
    %796 = vmatpush.msra.mxu0 0.0
    %797 = vmatpush.msra.mxu0 0.0
    %798 = vmatpush.msra.mxu0 0.0
    %799 = vmatpush.msra.mxu0 0.0
    %800 = vmatpush.msra.mxu0 0.0
    %801 = vmatpush.msra.mxu0 0.0
    %802 = vmatpush.msra.mxu0 0.0
    %803 = vmatpush.msra.mxu0 0.0
    %804 = vmatpush.msra.mxu0 0.0
    %805 = vmatpush.msra.mxu0 0.0
    %806 = vmatpush.msra.mxu0 0.0
    %807 = vmatpush.msra.mxu0 0.0
    %808 = vmatpush.msra.mxu0 %v96
    %809 = vmatpush.msra.mxu0 %v95
    %810 = vmatpush.msra.mxu0 %v94
    %811 = vmatpush.msra.mxu0 %v93
    %812 = vmatmul.f32.gmra.mxu0 %v785
    %v813 = vpop.f32.mrf.mxu0
    %v814 = vadd.f32 0.0, %v813
    %815 = vmatmul.f32.gmra.mxu0 %v788
    %v816 = vpop.f32.mrf.mxu0
    %v817 = vadd.f32 0.0, %v816
    %818 = vmatmul.f32.gmra.mxu0 %v791
    %v819 = vpop.f32.mrf.mxu0
    %v820 = vadd.f32 0.0, %v819
    %821 = vmatmul.f32.gmra.mxu0 %v794
    %v822 = vpop.f32.mrf.mxu0
    %v823 = vadd.f32 0.0, %v822
    %824 = vdwg.mxu0
    %825 = vmatpush.msra.mxu0 0.0
    %826 = vmatpush.msra.mxu0 0.0
    %827 = vmatpush.msra.mxu0 0.0
    %828 = vmatpush.msra.mxu0 0.0
    %829 = vmatpush.msra.mxu0 0.0
    %830 = vmatpush.msra.mxu0 0.0
    %831 = vmatpush.msra.mxu0 0.0
    %832 = vmatpush.msra.mxu0 0.0
    %833 = vmatpush.msra.mxu0 0.0
    %834 = vmatpush.msra.mxu0 0.0
    %835 = vmatpush.msra.mxu0 0.0
    %836 = vmatpush.msra.mxu0 0.0
    %837 = vmatpush.msra.mxu0 %v823
    %838 = vmatpush.msra.mxu0 %v820
    %839 = vmatpush.msra.mxu0 %v817
    %840 = vmatpush.msra.mxu0 %v814
    %841 = vmatmul.f32.gmra.mxu0 %v365
    %v842 = vpop.f32.mrf.mxu0
    %v843 = vadd.f32 0.0, %v842
    %844 = vmatmul.f32.gmra.mxu0 %v368
    %v845 = vpop.f32.mrf.mxu0
    %v846 = vadd.f32 0.0, %v845
    %847 = vmatmul.f32.gmra.mxu0 %v371
    %v848 = vpop.f32.mrf.mxu0
    %v849 = vadd.f32 0.0, %v848
    %850 = vmatmul.f32.gmra.mxu0 %v374
    %v851 = vpop.f32.mrf.mxu0
    %v852 = vadd.f32 0.0, %v851
    %853 = vmatmul.f32.gmra.mxu0 %v377
    %v854 = vpop.f32.mrf.mxu0
    %v855 = vadd.f32 0.0, %v854
    %856 = vmatmul.f32.gmra.mxu0 %v380
    %v857 = vpop.f32.mrf.mxu0
    %v858 = vadd.f32 0.0, %v857
    %859 = vmatmul.f32.gmra.mxu0 %v383
    %v860 = vpop.f32.mrf.mxu0
    %v861 = vadd.f32 0.0, %v860
    %862 = vmatmul.f32.gmra.mxu0 %v386
    %v863 = vpop.f32.mrf.mxu0
    %v864 = vadd.f32 0.0, %v863
    %865 = vdwg.mxu0
    %v867 = vsel %vm314, %v763, 0
    %v870 = vsel %vm314, %v766, 0
    %v873 = vsel %vm314, %v769, 0
    %v876 = vsel %vm314, %v772, 0
    %878 = vmatpush.msra.mxu0 0.0
    %879 = vmatpush.msra.mxu0 0.0
    %880 = vmatpush.msra.mxu0 0.0
    %881 = vmatpush.msra.mxu0 0.0
    %882 = vmatpush.msra.mxu0 0.0
    %883 = vmatpush.msra.mxu0 0.0
    %884 = vmatpush.msra.mxu0 0.0
    %885 = vmatpush.msra.mxu0 0.0
    %886 = vmatpush.msra.mxu0 0.0
    %887 = vmatpush.msra.mxu0 0.0
    %888 = vmatpush.msra.mxu0 0.0
    %889 = vmatpush.msra.mxu0 0.0
    %890 = vmatpush.msra.mxu0 %v96
    %891 = vmatpush.msra.mxu0 %v95
    %892 = vmatpush.msra.mxu0 %v94
    %893 = vmatpush.msra.mxu0 %v93
    %894 = vmatmul.f32.gmra.mxu0 %v867
    %v895 = vpop.f32.mrf.mxu0
    %v896 = vadd.f32 0.0, %v895
    %897 = vmatmul.f32.gmra.mxu0 %v870
    %v898 = vpop.f32.mrf.mxu0
    %v899 = vadd.f32 0.0, %v898
    %900 = vmatmul.f32.gmra.mxu0 %v873
    %v901 = vpop.f32.mrf.mxu0
    %v902 = vadd.f32 0.0, %v901
    %903 = vmatmul.f32.gmra.mxu0 %v876
    %v904 = vpop.f32.mrf.mxu0
    %v905 = vadd.f32 0.0, %v904
    %906 = vdwg.mxu0
    %907 = vmatpush.msra.mxu0 0.0
    %908 = vmatpush.msra.mxu0 0.0
    %909 = vmatpush.msra.mxu0 0.0
    %910 = vmatpush.msra.mxu0 0.0
    %911 = vmatpush.msra.mxu0 0.0
    %912 = vmatpush.msra.mxu0 0.0
    %913 = vmatpush.msra.mxu0 0.0
    %914 = vmatpush.msra.mxu0 0.0
    %915 = vmatpush.msra.mxu0 0.0
    %916 = vmatpush.msra.mxu0 0.0
    %917 = vmatpush.msra.mxu0 0.0
    %918 = vmatpush.msra.mxu0 0.0
    %919 = vmatpush.msra.mxu0 %v905
    %920 = vmatpush.msra.mxu0 %v902
    %921 = vmatpush.msra.mxu0 %v899
    %922 = vmatpush.msra.mxu0 %v896
    %923 = vmatmul.f32.gmra.mxu0 %v365
    %v924 = vpop.f32.mrf.mxu0
    %v925 = vadd.f32 0.0, %v924
    %926 = vmatmul.f32.gmra.mxu0 %v368
    %v927 = vpop.f32.mrf.mxu0
    %v928 = vadd.f32 0.0, %v927
    %929 = vmatmul.f32.gmra.mxu0 %v371
    %v930 = vpop.f32.mrf.mxu0
    %v931 = vadd.f32 0.0, %v930
    %932 = vmatmul.f32.gmra.mxu0 %v374
    %v933 = vpop.f32.mrf.mxu0
    %v934 = vadd.f32 0.0, %v933
    %935 = vmatmul.f32.gmra.mxu0 %v377
    %v936 = vpop.f32.mrf.mxu0
    %v937 = vadd.f32 0.0, %v936
    %938 = vmatmul.f32.gmra.mxu0 %v380
    %v939 = vpop.f32.mrf.mxu0
    %v940 = vadd.f32 0.0, %v939
    %941 = vmatmul.f32.gmra.mxu0 %v383
    %v942 = vpop.f32.mrf.mxu0
    %v943 = vadd.f32 0.0, %v942
    %944 = vmatmul.f32.gmra.mxu0 %v386
    %v945 = vpop.f32.mrf.mxu0
    %v946 = vadd.f32 0.0, %v945
    %947 = vdwg.mxu0
    %v948 = vsub.f32 %v569, %v843
    %v949 = vsub.f32 %v570, %v846
    %v950 = vsub.f32 %v571, %v849
    %v951 = vsub.f32 %v572, %v852
    %v952 = vsub.f32 %v573, %v855
    %v953 = vsub.f32 %v574, %v858
    %v954 = vsub.f32 %v575, %v861
    %v955 = vsub.f32 %v576, %v864
    %v956 = vsub.f32 %v578, %v925
    %v957 = vsub.f32 %v579, %v928
    %v958 = vsub.f32 %v580, %v931
    %v959 = vsub.f32 %v581, %v934
    %v960 = vsub.f32 %v582, %v937
    %v961 = vsub.f32 %v583, %v940
    %v962 = vsub.f32 %v584, %v943
    %v963 = vsub.f32 %v585, %v946
    %v964 = vsub.f32 %v948, %v956
    %v965 = vsub.f32 %v949, %v957
    %v966 = vsub.f32 %v950, %v958
    %v967 = vsub.f32 %v951, %v959
    %v968 = vsub.f32 %v952, %v960
    %v969 = vsub.f32 %v953, %v961
    %v970 = vsub.f32 %v954, %v962
    %v971 = vsub.f32 %v955, %v963
    %v972 = vand.u32 2147483647, %v964
    %v973 = vand.u32 2147483647, %v965
    %v974 = vand.u32 2147483647, %v966
    %v975 = vand.u32 2147483647, %v967
    %v976 = vand.u32 2147483647, %v968
    %v977 = vand.u32 2147483647, %v969
    %v978 = vand.u32 2147483647, %v970
    %v979 = vand.u32 2147483647, %v971
    %v980 = vsel %vm113, %v972, 0.0
    %v981 = vsel %vm113, %v973, 0.0
    %v982 = vadd.f32 %v980, %v981
    %v983 = vsel %vm113, %v974, 0.0
    %v984 = vadd.f32 %v982, %v983
    %v985 = vsel %vm113, %v975, 0.0
    %v986 = vadd.f32 %v984, %v985
    %v987 = vsel %vm113, %v976, 0.0
    %v988 = vadd.f32 %v986, %v987
    %v989 = vsel %vm113, %v977, 0.0
    %v990 = vadd.f32 %v988, %v989
    %v991 = vsel %vm113, %v978, 0.0
    %v992 = vadd.f32 %v990, %v991
    %v993 = vsel %vm113, %v979, 0.0
    %v994 = vadd.f32 %v992, %v993
    %995 = vadd.xlane.f32.xlu0 %v994
    %v996 = vpop.xlane.xlu0 %995
    %v997 = vrot.slane %v996, 4
    %v998 = vadd.f32 %v996, %v997
    %v999 = vrot.slane %v998, 2
    %v1000 = vadd.f32 %v998, %v999
    %v1001 = vrot.slane %v1000, 1
    %v1002 = vadd.f32 %v1000, %v1001
    %s1003 = vtos %v1002
    %s1004 = sadd.f32 %s567, %s1003
    %v1005 = vstv %s1004
    %1006 = vst [vmem:[%s8] sm:$0x1] %v1005
    // Predicated region
    $region38: #{_lambda_.7} parent=1 // pred_check
      _
    $region39: #{_lambda_.7} parent=1 // pred_check_branch
      %1008 = sbr.rel (0) target = $region41
    $region40: #{_lambda_.7} parent=1 // pred_region
      _
    $region41: #{_lambda_.7} parent=1 // pred_fallthru
      _
    // Predicated region
    $region42: #{_lambda_.7} parent=1 // pred_check
      _
    $region43: #{_lambda_.7} parent=1 // pred_check_branch
      %1010 = sbr.rel (0) target = $region45
    $region44: #{_lambda_.7} parent=1 // pred_region
      _
    $region45: #{_lambda_.7} parent=1 // pred_fallthru
      _
    // Predicated region
    $region46: #{_lambda_.7} parent=1 // pred_check
      _
    $region47: #{_lambda_.7} parent=1 // pred_check_branch
      %1012 = sbr.rel (0) target = $region49
    $region48: #{_lambda_.7} parent=1 // pred_region
      _
    $region49: #{_lambda_.7} parent=1 // pred_fallthru
      _
    // Predicated region
    $region50: #{_lambda_.7} parent=1 // pred_check
      _
    $region51: #{_lambda_.7} parent=1 // pred_check_branch
      %1014 = sbr.rel (0) target = $region53
    $region52: #{_lambda_.7} parent=1 // pred_region
      _
    $region53: #{_lambda_.7} parent=1 // pred_fallthru
      _
    // Predicated region
    $region54: #{_lambda_.7} parent=1 // pred_check
      _
    $region55: #{_lambda_.7} parent=1 // pred_check_branch
      %1016 = sbr.rel (0) target = $region57
    $region56: #{_lambda_.7} parent=1 // pred_region
      _
    $region57: #{_lambda_.7} parent=1 // pred_fallthru
      _
    // Predicated region
    $region58: #{_lambda_.7} parent=1 // pred_check
      _
    $region59: #{_lambda_.7} parent=1 // pred_check_branch
      %1018 = sbr.rel (0) target = $region61
    $region60: #{_lambda_.7} parent=1 // pred_region
      _
    $region61: #{_lambda_.7} parent=1 // pred_fallthru
      _
    %1019 = vsyncpa [#allocation3], 1
    %1020 = vsyncpa [#allocation5], 1

// kernel: _lambda_.5
$region0: #{_lambda_.5}
  #allocation0 [shape = 'u32[]', space=smem, size = 0x4, offset = 0x4, fixed_abs, tag = 'smem constant byte address 0x4 - core index']
  #allocation1 [shape = 'u32[72,128]{1,0:T(1,128)}', space=vmem, size = 0x9000, scoped, tag = 'internal scratch']
  #allocation2 [shape = 'f32[1,130,130]{2,1,0:T(8,128)}', space=vmem, size = 0x22000, scoped, tag = 'scratch operand']
  #allocation3 [shape = 'f32[1,130,130]{2,1,0:T(8,128)}', space=vmem, size = 0x22000, scoped, tag = 'scratch operand']
  %s0 = inlined_call_operand.hbm [shape: f32[2,128,128], index: 0, kind: input, shape index: {}]
  %s1 = inlined_call_operand.hbm [shape: f32[2,128,128], index: 1, kind: input, shape index: {}]
  %s2 = inlined_call_operand.hbm [shape: f32[2,128,128], index: 2, kind: input, shape index: {}]
  %s3 = inlined_call_operand.vmem [shape: f32[2,5,128], index: 3, kind: output, shape index: {}]
  %s4 = sld [smem:[#allocation0]]
  $region57: #{_lambda_.5} parent=0
    _
  %s6 = ssub.s32 1, %s4
  %s7 = scalar_select 0, %s6, %s4
  $region1: #{_lambda_.5} parent=0
    #allocation4 [shape = 'u8[131072]{0}', space=vmem, size = 0x20000, scoped, tag = 'input window, operand 0']
    #allocation5 [shape = 's32[2]{0}', space=sflag, size = 0x8, scoped, tag = 'scoped memory for _lambda_.5']
    #allocation6 [shape = 'u8[131072]{0}', space=vmem, size = 0x20000, scoped, tag = 'input window, operand 1']
    #allocation7 [shape = 's32[2]{0}', space=sflag, size = 0x8, scoped, tag = 'scoped memory for _lambda_.5']
    #allocation8 [shape = 'u8[131072]{0}', space=vmem, size = 0x20000, scoped, tag = 'input window, operand 2']
    %8 = vsyncpa [#allocation5], 0
    %s9 = scalar_lea.sflag [#allocation5], 1
    %10 = vsyncpa %s9, 0
    %11 = vsyncpa [#allocation7], 0
    %s12 = scalar_lea.sflag [#allocation7], 1
    %13 = vsyncpa %s12, 0
    loop: start=0, step=1, limit=4
    $region2: #{_lambda_.5} parent=1 // loop_pre_header
      _
    $region3: #{_lambda_.5} parent=1 // loop_header
      %s15 = sphi 0, %s19
      %p16 = scmp.ge.s32.totalorder %s15, 4
      %s25 = sphi 0, %s27
      %s28 = sphi 0, %s25
      %s29 = sphi 0, %s28
      %s45 = sphi 0, %s29
      %s51 = sphi 0, %s53
      %s54 = sphi 0, %s51
      %s55 = sphi 0, %s54
      %s71 = sphi 0, %s55
      %s77 = sphi 0, %s79
      %s80 = sphi 0, %s77
      %s81 = sphi 0, %s80
      %s97 = sphi 0, %s81
      %s103 = sphi 0, %s105
      %s106 = sphi 0, %s103
      %s107 = sphi 0, %s106
      %s123 = sphi 0, %s107
    $region4: #{_lambda_.5} parent=1 // loop_header_branch
      %18 = sbr.rel (%p16) target = $region8
    $region5: #{_lambda_.5} parent=1 // loop_body
      %s20 = ssub.s32 %s15, 1
      %s21 = ssub.s32 %s15, 2
      %s22 = sadd.s32 %s15, 1
      %s23 = ssub.s32 %s15, %s22
      %p24 = scmp.eq.s32.totalorder %s23, 0
      %s26 = sadd.s32 %s25, 1
      %s27 = scalar_select %p24, %s25, %s26
      %p30 = pneg %p24
      %p31 = scmp.eq.s32.totalorder %s15, 1
      %p32 = por %p30, %p31
      %p33 = scmp.ne.s32.totalorder %s25, %s28
      %p34 = scmp.eq.s32.totalorder %s15, 0
      %p35 = por %p33, %p34
      %p36 = scmp.ne.s32.totalorder %s25, %s28
      %p37 = scmp.eq.s32.totalorder %s20, 1
      %p38 = por %p36, %p37
      %p39 = scmp.ne.s32.totalorder %s28, %s29
      %p40 = scmp.eq.s32.totalorder %s20, 0
      %p41 = por %p39, %p40
      %p42 = scmp.ne.s32.totalorder %s28, %s29
      %p43 = scmp.eq.s32.totalorder %s21, 1
      %p44 = por %p42, %p43
      %p46 = scmp.ne.s32.totalorder %s29, %s45
      %p47 = scmp.eq.s32.totalorder %s21, 0
      %p48 = por %p46, %p47
      %s49 = ssub.s32 %s15, %s22
      %p50 = scmp.eq.s32.totalorder %s49, 0
      %s52 = sadd.s32 %s51, 1
      %s53 = scalar_select %p50, %s51, %s52
      %p56 = pneg %p50
      %p57 = scmp.eq.s32.totalorder %s15, 1
      %p58 = por %p56, %p57
      %p59 = scmp.ne.s32.totalorder %s51, %s54
      %p60 = scmp.eq.s32.totalorder %s15, 0
      %p61 = por %p59, %p60
      %p62 = scmp.ne.s32.totalorder %s51, %s54
      %p63 = scmp.eq.s32.totalorder %s20, 1
      %p64 = por %p62, %p63
      %p65 = scmp.ne.s32.totalorder %s54, %s55
      %p66 = scmp.eq.s32.totalorder %s20, 0
      %p67 = por %p65, %p66
      %p68 = scmp.ne.s32.totalorder %s54, %s55
      %p69 = scmp.eq.s32.totalorder %s21, 1
      %p70 = por %p68, %p69
      %p72 = scmp.ne.s32.totalorder %s55, %s71
      %p73 = scmp.eq.s32.totalorder %s21, 0
      %p74 = por %p72, %p73
      %s75 = ssub.s32 %s15, %s22
      %p76 = scmp.eq.s32.totalorder %s75, 0
      %s78 = sadd.s32 %s77, 1
      %s79 = scalar_select %p76, %s77, %s78
      %p82 = pneg %p76
      %p83 = scmp.eq.s32.totalorder %s15, 1
      %p84 = por %p82, %p83
      %p85 = scmp.ne.s32.totalorder %s77, %s80
      %p86 = scmp.eq.s32.totalorder %s15, 0
      %p87 = por %p85, %p86
      %p88 = scmp.ne.s32.totalorder %s77, %s80
      %p89 = scmp.eq.s32.totalorder %s20, 1
      %p90 = por %p88, %p89
      %p91 = scmp.ne.s32.totalorder %s80, %s81
      %p92 = scmp.eq.s32.totalorder %s20, 0
      %p93 = por %p91, %p92
      %p94 = scmp.ne.s32.totalorder %s80, %s81
      %p95 = scmp.eq.s32.totalorder %s21, 1
      %p96 = por %p94, %p95
      %p98 = scmp.ne.s32.totalorder %s81, %s97
      %p99 = scmp.eq.s32.totalorder %s21, 0
      %p100 = por %p98, %p99
      %s101 = ssub.s32 %s15, %s22
      %p102 = scmp.eq.s32.totalorder %s101, 0
      %s104 = sadd.s32 %s103, 1
      %s105 = scalar_select %p102, %s103, %s104
      %p108 = pneg %p102
      %p109 = scmp.eq.s32.totalorder %s15, 1
      %p110 = por %p108, %p109
      %p111 = scmp.ne.s32.totalorder %s103, %s106
      %p112 = scmp.eq.s32.totalorder %s15, 0
      %p113 = por %p111, %p112
      %p114 = scmp.ne.s32.totalorder %s103, %s106
      %p115 = scmp.eq.s32.totalorder %s20, 1
      %p116 = por %p114, %p115
      %p117 = scmp.ne.s32.totalorder %s106, %s107
      %p118 = scmp.eq.s32.totalorder %s20, 0
      %p119 = por %p117, %p118
      %p120 = scmp.ne.s32.totalorder %s106, %s107
      %p121 = scmp.eq.s32.totalorder %s21, 1
      %p122 = por %p120, %p121
      %p124 = scmp.ne.s32.totalorder %s107, %s123
      %p125 = scmp.eq.s32.totalorder %s21, 0
      %p126 = por %p124, %p125
      %p127 = scmp.le.s32.totalorder 1, %s15
      %p128 = scmp.lt.s32.totalorder %s15, 3
      %p129 = pnand %p127, %p128
      %p130 = pneg %p129
      // Predicated region
      $region9: #{_lambda_.5} parent=5 // pred_check
        _
      $region10: #{_lambda_.5} parent=5 // pred_check_branch
        %132 = sbr.rel (%p129) target = $region12
      $region11: #{_lambda_.5} parent=5 // pred_region
        %s133 = ssub.s32 %s15, 1
      $region12: #{_lambda_.5} parent=5 // pred_fallthru
        _
      %p134 = scmp.lt.s32.totalorder %s15, 2
      // Predicated region
      $region13: #{_lambda_.5} parent=5 // pred_check
        %p135 = pneg %p134
      $region14: #{_lambda_.5} parent=5 // pred_check_branch
        %137 = sbr.rel (%p135) target = $region16
      $region15: #{_lambda_.5} parent=5 // pred_region
        // Predicated region
        $region17: #{_lambda_.5} parent=15 // pred_check
          %p138 = pneg %p35
        $region18: #{_lambda_.5} parent=15 // pred_check_branch
          %140 = sbr.rel (%p138) target = $region20
        $region19: #{_lambda_.5} parent=15 // pred_region
          %s141 = sand.u32 %s25, 1
          %s142 = scalar_lea.sflag [#allocation5], %s141
          %s143 = sand.u32 %s25, 1
          %s144 = smul.addr %s143, 128
          %s145 = scalar_lea.vmem [#allocation4], %s144
          %147 = vsyncadd %s142, 0
          %s148 = smul.addr %s15, 16
          %s149 = smul.addr %s148, 8
          %s150 = scalar_lea.hbm %s0, %s149
          %s151 = sshll.u32 %s150, 4
          %s152 = int_to_ptr.hbm [resolvable:$true] %s151
          %s153 = sshll.u32 %s145, 4
          %s154 = int_to_ptr.vmem [resolvable:$true] %s153
          %159 = dma.hbm_to_vmem [thread:$0]  %s152, 2048, %s154, %s142, 128, 128, 8
        $region20: #{_lambda_.5} parent=15 // pred_fallthru
          _
        // Predicated region
        $region21: #{_lambda_.5} parent=15 // pred_check
          %p160 = pneg %p61
        $region22: #{_lambda_.5} parent=15 // pred_check_branch
          %162 = sbr.rel (%p160) target = $region24
        $region23: #{_lambda_.5} parent=15 // pred_region
          %s163 = sand.u32 %s15, 1
          %s164 = scalar_lea.sflag [#allocation7], %s163
          %s165 = sand.u32 %s51, 1
          %s166 = smul.addr %s165, 128
          %s167 = scalar_lea.vmem [#allocation6], %s166
          %169 = vsyncadd %s164, 0
          %s170 = smul.addr %s15, 16
          %s171 = smul.addr %s170, 8
          %s172 = scalar_lea.hbm %s1, %s171
          %s173 = sshll.u32 %s172, 4
          %s174 = int_to_ptr.hbm [resolvable:$true] %s173
          %s175 = sshll.u32 %s167, 4
          %s176 = int_to_ptr.vmem [resolvable:$true] %s175
          %181 = dma.hbm_to_vmem [thread:$0]  %s174, 2048, %s176, %s164, 128, 128, 8
        $region24: #{_lambda_.5} parent=15 // pred_fallthru
          _
        // Predicated region
        $region25: #{_lambda_.5} parent=15 // pred_check
          %p182 = pneg %p87
        $region26: #{_lambda_.5} parent=15 // pred_check_branch
          %184 = sbr.rel (%p182) target = $region28
        $region27: #{_lambda_.5} parent=15 // pred_region
          %s185 = sand.u32 %s15, 1
          %s186 = scalar_lea.sflag [#allocation7], %s185
          %s187 = sand.u32 %s77, 1
          %s188 = smul.addr %s187, 128
          %s189 = scalar_lea.vmem [#allocation8], %s188
          %191 = vsyncadd %s186, 0
          %s192 = smul.addr %s15, 16
          %s193 = smul.addr %s192, 8
          %s194 = scalar_lea.hbm %s2, %s193
          %s195 = sshll.u32 %s194, 4
          %s196 = int_to_ptr.hbm [resolvable:$true] %s195
          %s197 = sshll.u32 %s189, 4
          %s198 = int_to_ptr.vmem [resolvable:$true] %s197
          %203 = dma.hbm_to_vmem [thread:$0]  %s196, 2048, %s198, %s186, 128, 128, 8
        $region28: #{_lambda_.5} parent=15 // pred_fallthru
          _
      $region16: #{_lambda_.5} parent=5 // pred_fallthru
        _
      %p204 = scmp.le.s32.totalorder 1, %s15
      %p205 = scmp.lt.s32.totalorder %s15, 3
      %p206 = pnand %p204, %p205
      %p207 = pneg %p206
      // Predicated region
      $region29: #{_lambda_.5} parent=5 // pred_check
        _
      $region30: #{_lambda_.5} parent=5 // pred_check_branch
        %209 = sbr.rel (%p206) target = $region32
      $region31: #{_lambda_.5} parent=5 // pred_region
        %s210 = ssub.s32 %s15, 1
        %s211 = sand.u32 %s28, 1
        %s212 = scalar_lea.sflag [#allocation5], %s211
        %s213 = sand.u32 %s28, 1
        %s214 = smul.addr %s213, 128
        %s215 = scalar_lea.vmem [#allocation4], %s214
        // Predicated region
        $region33: #{_lambda_.5} parent=31 // pred_check
          %p216 = pneg %p41
        $region34: #{_lambda_.5} parent=31 // pred_check_branch
          %218 = sbr.rel (%p216) target = $region36
        $region35: #{_lambda_.5} parent=31 // pred_region
          %220 = dma.done %s212, 2048
        $region36: #{_lambda_.5} parent=31 // pred_fallthru
          _
        %s221 = sand.u32 %s20, 1
        %s222 = scalar_lea.sflag [#allocation7], %s221
        %s223 = sand.u32 %s54, 1
        %s224 = smul.addr %s223, 128
        %s225 = scalar_lea.vmem [#allocation6], %s224
        // Predicated region
        $region37: #{_lambda_.5} parent=31 // pred_check
          %p226 = pneg %p67
        $region38: #{_lambda_.5} parent=31 // pred_check_branch
          %228 = sbr.rel (%p226) target = $region40
        $region39: #{_lambda_.5} parent=31 // pred_region
          %230 = dma.done %s222, 2048
        $region40: #{_lambda_.5} parent=31 // pred_fallthru
          _
        %s231 = sand.u32 %s20, 1
        %s232 = scalar_lea.sflag [#allocation7], %s231
        %s233 = sand.u32 %s80, 1
        %s234 = smul.addr %s233, 128
        %s235 = scalar_lea.vmem [#allocation8], %s234
        // Predicated region
        $region41: #{_lambda_.5} parent=31 // pred_check
          %p236 = pneg %p93
        $region42: #{_lambda_.5} parent=31 // pred_check_branch
          %238 = sbr.rel (%p236) target = $region44
        $region43: #{_lambda_.5} parent=31 // pred_region
          %240 = dma.done %s232, 2048
        $region44: #{_lambda_.5} parent=31 // pred_fallthru
          _
        %s241 = sand.u32 %s28, 1
        %s242 = scalar_lea.sflag [#allocation5], %s241
        %s243 = sand.u32 %s28, 1
        %s244 = smul.addr %s243, 128
        %s245 = scalar_lea.vmem [#allocation4], %s244
        %p246 = pneg %p41
        %p247 = pneg %p38
        %s248 = sand.u32 %s20, 1
        %s249 = scalar_lea.sflag [#allocation7], %s248
        %s250 = sand.u32 %s54, 1
        %s251 = smul.addr %s250, 128
        %s252 = scalar_lea.vmem [#allocation6], %s251
        %p253 = pneg %p67
        %p254 = pneg %p64
        %s255 = sand.u32 %s20, 1
        %s256 = scalar_lea.sflag [#allocation7], %s255
        %s257 = sand.u32 %s80, 1
        %s258 = smul.addr %s257, 128
        %s259 = scalar_lea.vmem [#allocation8], %s258
        %p260 = pneg %p93
        %p261 = pneg %p90
        %p262 = pneg %p119
        %p263 = pneg %p116
        %p264 = scmp.lt.s32.totalorder %s20, 1
        %s265 = scalar_select %p264, %s20, 1
        %s266 = smul.addr %s265, 8
        %s267 = scalar_lea.vmem %s3, %s266
        %p268 = scmp.lt.s32.totalorder %s20, 1
        %s269 = scalar_select %p268, %s20, 1
        %s270 = smul.addr %s269, 8
        %s271 = scalar_lea.vmem %s3, %s270
        %272 = vst [vmem:[#allocation2] sm:$0xff] 0.0
        %vm273 = vcmask 15360
        %274 = vst.msk [vmem:[#allocation2 + $0x8] sm:$0xff] %vm273, 0.0
        %275 = vst [vmem:[#allocation2 + $0x10] sm:$0xff] 0.0
        %276 = vst.msk [vmem:[#allocation2 + $0x18] sm:$0xff] %vm273, 0.0
        %277 = vst [vmem:[#allocation2 + $0x20] sm:$0xff] 0.0
        %278 = vst.msk [vmem:[#allocation2 + $0x28] sm:$0xff] %vm273, 0.0
        %279 = vst [vmem:[#allocation2 + $0x30] sm:$0xff] 0.0
        %280 = vst.msk [vmem:[#allocation2 + $0x38] sm:$0xff] %vm273, 0.0
        %281 = vst [vmem:[#allocation2 + $0x40] sm:$0xff] 0.0
        %282 = vst.msk [vmem:[#allocation2 + $0x48] sm:$0xff] %vm273, 0.0
        %283 = vst [vmem:[#allocation2 + $0x50] sm:$0xff] 0.0
        %284 = vst.msk [vmem:[#allocation2 + $0x58] sm:$0xff] %vm273, 0.0
        %285 = vst [vmem:[#allocation2 + $0x60] sm:$0xff] 0.0
        %286 = vst.msk [vmem:[#allocation2 + $0x68] sm:$0xff] %vm273, 0.0
        %287 = vst [vmem:[#allocation2 + $0x70] sm:$0xff] 0.0
        %288 = vst.msk [vmem:[#allocation2 + $0x78] sm:$0xff] %vm273, 0.0
        %289 = vst [vmem:[#allocation2 + $0x80] sm:$0xff] 0.0
        %290 = vst.msk [vmem:[#allocation2 + $0x88] sm:$0xff] %vm273, 0.0
        %291 = vst [vmem:[#allocation2 + $0x90] sm:$0xff] 0.0
        %292 = vst.msk [vmem:[#allocation2 + $0x98] sm:$0xff] %vm273, 0.0
        %293 = vst [vmem:[#allocation2 + $0xa0] sm:$0xff] 0.0
        %294 = vst.msk [vmem:[#allocation2 + $0xa8] sm:$0xff] %vm273, 0.0
        %295 = vst [vmem:[#allocation2 + $0xb0] sm:$0xff] 0.0
        %296 = vst.msk [vmem:[#allocation2 + $0xb8] sm:$0xff] %vm273, 0.0
        %297 = vst [vmem:[#allocation2 + $0xc0] sm:$0xff] 0.0
        %298 = vst.msk [vmem:[#allocation2 + $0xc8] sm:$0xff] %vm273, 0.0
        %299 = vst [vmem:[#allocation2 + $0xd0] sm:$0xff] 0.0
        %300 = vst.msk [vmem:[#allocation2 + $0xd8] sm:$0xff] %vm273, 0.0
        %301 = vst [vmem:[#allocation2 + $0xe0] sm:$0xff] 0.0
        %302 = vst.msk [vmem:[#allocation2 + $0xe8] sm:$0xff] %vm273, 0.0
        %303 = vst [vmem:[#allocation2 + $0xf0] sm:$0xff] 0.0
        %304 = vst.msk [vmem:[#allocation2 + $0xf8] sm:$0xff] %vm273, 0.0
        %305 = vst [vmem:[#allocation2 + $0x100] sm:$0x3] 0.0
        %vm306 = vcmask 9216
        %307 = vst.msk [vmem:[#allocation2 + $0x108] sm:$0x3] %vm306, 0.0
        %308 = vst [vmem:[#allocation3] sm:$0xff] 0.0
        %309 = vst.msk [vmem:[#allocation3 + $0x8] sm:$0xff] %vm273, 0.0
        %310 = vst [vmem:[#allocation3 + $0x10] sm:$0xff] 0.0
        %311 = vst.msk [vmem:[#allocation3 + $0x18] sm:$0xff] %vm273, 0.0
        %312 = vst [vmem:[#allocation3 + $0x20] sm:$0xff] 0.0
        %313 = vst.msk [vmem:[#allocation3 + $0x28] sm:$0xff] %vm273, 0.0
        %314 = vst [vmem:[#allocation3 + $0x30] sm:$0xff] 0.0
        %315 = vst.msk [vmem:[#allocation3 + $0x38] sm:$0xff] %vm273, 0.0
        %316 = vst [vmem:[#allocation3 + $0x40] sm:$0xff] 0.0
        %317 = vst.msk [vmem:[#allocation3 + $0x48] sm:$0xff] %vm273, 0.0
        %318 = vst [vmem:[#allocation3 + $0x50] sm:$0xff] 0.0
        %319 = vst.msk [vmem:[#allocation3 + $0x58] sm:$0xff] %vm273, 0.0
        %320 = vst [vmem:[#allocation3 + $0x60] sm:$0xff] 0.0
        %321 = vst.msk [vmem:[#allocation3 + $0x68] sm:$0xff] %vm273, 0.0
        %322 = vst [vmem:[#allocation3 + $0x70] sm:$0xff] 0.0
        %323 = vst.msk [vmem:[#allocation3 + $0x78] sm:$0xff] %vm273, 0.0
        %324 = vst [vmem:[#allocation3 + $0x80] sm:$0xff] 0.0
        %325 = vst.msk [vmem:[#allocation3 + $0x88] sm:$0xff] %vm273, 0.0
        %326 = vst [vmem:[#allocation3 + $0x90] sm:$0xff] 0.0
        %327 = vst.msk [vmem:[#allocation3 + $0x98] sm:$0xff] %vm273, 0.0
        %328 = vst [vmem:[#allocation3 + $0xa0] sm:$0xff] 0.0
        %329 = vst.msk [vmem:[#allocation3 + $0xa8] sm:$0xff] %vm273, 0.0
        %330 = vst [vmem:[#allocation3 + $0xb0] sm:$0xff] 0.0
        %331 = vst.msk [vmem:[#allocation3 + $0xb8] sm:$0xff] %vm273, 0.0
        %332 = vst [vmem:[#allocation3 + $0xc0] sm:$0xff] 0.0
        %333 = vst.msk [vmem:[#allocation3 + $0xc8] sm:$0xff] %vm273, 0.0
        %334 = vst [vmem:[#allocation3 + $0xd0] sm:$0xff] 0.0
        %335 = vst.msk [vmem:[#allocation3 + $0xd8] sm:$0xff] %vm273, 0.0
        %336 = vst [vmem:[#allocation3 + $0xe0] sm:$0xff] 0.0
        %337 = vst.msk [vmem:[#allocation3 + $0xe8] sm:$0xff] %vm273, 0.0
        %338 = vst [vmem:[#allocation3 + $0xf0] sm:$0xff] 0.0
        %339 = vst.msk [vmem:[#allocation3 + $0xf8] sm:$0xff] %vm273, 0.0
        %340 = vst [vmem:[#allocation3 + $0x100] sm:$0x3] 0.0
        %341 = vst.msk [vmem:[#allocation3 + $0x108] sm:$0x3] %vm306, 0.0
        %v342 = vld [vmem:[%s215] sm:$0xff]
        %v343 = vld [vmem:[%s215 + $0x8] sm:$0xff]
        %v344 = vld [vmem:[%s215 + $0x10] sm:$0xff]
        %v345 = vld [vmem:[%s215 + $0x18] sm:$0xff]
        %v346 = vld [vmem:[%s215 + $0x20] sm:$0xff]
        %v347 = vld [vmem:[%s215 + $0x28] sm:$0xff]
        %v348 = vld [vmem:[%s215 + $0x30] sm:$0xff]
        %v349 = vld [vmem:[%s215 + $0x38] sm:$0xff]
        %v350 = vld [vmem:[%s215 + $0x40] sm:$0xff]
        %v351 = vld [vmem:[%s215 + $0x48] sm:$0xff]
        %v352 = vld [vmem:[%s215 + $0x50] sm:$0xff]
        %v353 = vld [vmem:[%s215 + $0x58] sm:$0xff]
        %v354 = vld [vmem:[%s215 + $0x60] sm:$0xff]
        %v355 = vld [vmem:[%s215 + $0x68] sm:$0xff]
        %v356 = vld [vmem:[%s215 + $0x70] sm:$0xff]
        %v357 = vld [vmem:[%s215 + $0x78] sm:$0xff]
        %vm374 = vcmask 1040384
        %v375 = vrot.slane %v342, 7
        %v376 = vrot.slane %v343, 7
        %v377 = vsel %vm374, %v375, %v376
        %v378 = vrot.slane %v344, 7
        %v379 = vsel %vm374, %v376, %v378
        %v380 = vrot.slane %v345, 7
        %v381 = vsel %vm374, %v378, %v380
        %v382 = vrot.slane %v346, 7
        %v383 = vsel %vm374, %v380, %v382
        %v384 = vrot.slane %v347, 7
        %v385 = vsel %vm374, %v382, %v384
        %v386 = vrot.slane %v348, 7
        %v387 = vsel %vm374, %v384, %v386
        %v388 = vrot.slane %v349, 7
        %v389 = vsel %vm374, %v386, %v388
        %v390 = vrot.slane %v350, 7
        %v391 = vsel %vm374, %v388, %v390
        %v392 = vrot.slane %v351, 7
        %v393 = vsel %vm374, %v390, %v392
        %v394 = vrot.slane %v352, 7
        %v395 = vsel %vm374, %v392, %v394
        %v396 = vrot.slane %v353, 7
        %v397 = vsel %vm374, %v394, %v396
        %v398 = vrot.slane %v354, 7
        %v399 = vsel %vm374, %v396, %v398
        %v400 = vrot.slane %v355, 7
        %v401 = vsel %vm374, %v398, %v400
        %v402 = vrot.slane %v356, 7
        %v403 = vsel %vm374, %v400, %v402
        %v404 = vrot.slane %v357, 7
        %v405 = vsel %vm374, %v402, %v404
        %406 = vrot.lane.b32.xlu0 %v375, 1
        %v407 = vpop.permute.xlu0 %406
        %408 = vrot.lane.b32.xlu0 %v377, 1
        %v409 = vpop.permute.xlu0 %408
        %410 = vrot.lane.b32.xlu0 %v379, 1
        %v411 = vpop.permute.xlu0 %410
        %412 = vrot.lane.b32.xlu0 %v381, 1
        %v413 = vpop.permute.xlu0 %412
        %414 = vrot.lane.b32.xlu0 %v383, 1
        %v415 = vpop.permute.xlu0 %414
        %416 = vrot.lane.b32.xlu0 %v385, 1
        %v417 = vpop.permute.xlu0 %416
        %418 = vrot.lane.b32.xlu0 %v387, 1
        %v419 = vpop.permute.xlu0 %418
        %420 = vrot.lane.b32.xlu0 %v389, 1
        %v421 = vpop.permute.xlu0 %420
        %422 = vrot.lane.b32.xlu0 %v391, 1
        %v423 = vpop.permute.xlu0 %422
        %424 = vrot.lane.b32.xlu0 %v393, 1
        %v425 = vpop.permute.xlu0 %424
        %426 = vrot.lane.b32.xlu0 %v395, 1
        %v427 = vpop.permute.xlu0 %426
        %428 = vrot.lane.b32.xlu0 %v397, 1
        %v429 = vpop.permute.xlu0 %428
        %430 = vrot.lane.b32.xlu0 %v399, 1
        %v431 = vpop.permute.xlu0 %430
        %432 = vrot.lane.b32.xlu0 %v401, 1
        %v433 = vpop.permute.xlu0 %432
        %434 = vrot.lane.b32.xlu0 %v403, 1
        %v435 = vpop.permute.xlu0 %434
        %436 = vrot.lane.b32.xlu0 %v405, 1
        %v437 = vpop.permute.xlu0 %436
        %438 = vrot.lane.b32.xlu0 %v404, 1
        %v439 = vpop.permute.xlu0 %438
        %vm457 = vcmask 1047561
        %458 = vst.msk [vmem:[#allocation2] sm:$0xfe] %vm457, %v407
        %vm459 = vcmask 7169
        %460 = vst.msk [vmem:[#allocation2 + $0x8] sm:$0xfe] %vm459, %v407
        %vm461 = vcmask 1047560
        %462 = vst.msk [vmem:[#allocation2 + $0x10] sm:$0xff] %vm461, %v409
        %vm463 = vcmask 7168
        %464 = vst.msk [vmem:[#allocation2 + $0x18] sm:$0xff] %vm463, %v409
        %465 = vst.msk [vmem:[#allocation2 + $0x20] sm:$0xff] %vm461, %v411
        %466 = vst.msk [vmem:[#allocation2 + $0x28] sm:$0xff] %vm463, %v411
        %467 = vst.msk [vmem:[#allocation2 + $0x30] sm:$0xff] %vm461, %v413
        %468 = vst.msk [vmem:[#allocation2 + $0x38] sm:$0xff] %vm463, %v413
        %469 = vst.msk [vmem:[#allocation2 + $0x40] sm:$0xff] %vm461, %v415
        %470 = vst.msk [vmem:[#allocation2 + $0x48] sm:$0xff] %vm463, %v415
        %471 = vst.msk [vmem:[#allocation2 + $0x50] sm:$0xff] %vm461, %v417
        %472 = vst.msk [vmem:[#allocation2 + $0x58] sm:$0xff] %vm463, %v417
        %473 = vst.msk [vmem:[#allocation2 + $0x60] sm:$0xff] %vm461, %v419
        %474 = vst.msk [vmem:[#allocation2 + $0x68] sm:$0xff] %vm463, %v419
        %475 = vst.msk [vmem:[#allocation2 + $0x70] sm:$0xff] %vm461, %v421
        %476 = vst.msk [vmem:[#allocation2 + $0x78] sm:$0xff] %vm463, %v421
        %477 = vst.msk [vmem:[#allocation2 + $0x80] sm:$0xff] %vm461, %v423
        %478 = vst.msk [vmem:[#allocation2 + $0x88] sm:$0xff] %vm463, %v423
        %479 = vst.msk [vmem:[#allocation2 + $0x90] sm:$0xff] %vm461, %v425
        %480 = vst.msk [vmem:[#allocation2 + $0x98] sm:$0xff] %vm463, %v425
        %481 = vst.msk [vmem:[#allocation2 + $0xa0] sm:$0xff] %vm461, %v427
        %482 = vst.msk [vmem:[#allocation2 + $0xa8] sm:$0xff] %vm463, %v427
        %483 = vst.msk [vmem:[#allocation2 + $0xb0] sm:$0xff] %vm461, %v429
        %484 = vst.msk [vmem:[#allocation2 + $0xb8] sm:$0xff] %vm463, %v429
        %485 = vst.msk [vmem:[#allocation2 + $0xc0] sm:$0xff] %vm461, %v431
        %486 = vst.msk [vmem:[#allocation2 + $0xc8] sm:$0xff] %vm463, %v431
        %487 = vst.msk [vmem:[#allocation2 + $0xd0] sm:$0xff] %vm461, %v433
        %488 = vst.msk [vmem:[#allocation2 + $0xd8] sm:$0xff] %vm463, %v433
        %489 = vst.msk [vmem:[#allocation2 + $0xe0] sm:$0xff] %vm461, %v435
        %490 = vst.msk [vmem:[#allocation2 + $0xe8] sm:$0xff] %vm463, %v435
        %491 = vst.msk [vmem:[#allocation2 + $0xf0] sm:$0xff] %vm461, %v437
        %492 = vst.msk [vmem:[#allocation2 + $0xf8] sm:$0xff] %vm463, %v437
        %vm493 = vcmask 1040392
        %494 = vst.msk [vmem:[#allocation2 + $0x100] sm:$0x1] %vm493, %v439
        %vm495 = vcmask 0
        %496 = vst.msk [vmem:[#allocation2 + $0x108] sm:$0x1] %vm495, %v439
        %v497 = vld [vmem:[%s225] sm:$0xff]
        %v498 = vld [vmem:[%s225 + $0x8] sm:$0xff]
        %v499 = vld [vmem:[%s225 + $0x10] sm:$0xff]
        %v500 = vld [vmem:[%s225 + $0x18] sm:$0xff]
        %v501 = vld [vmem:[%s225 + $0x20] sm:$0xff]
        %v502 = vld [vmem:[%s225 + $0x28] sm:$0xff]
        %v503 = vld [vmem:[%s225 + $0x30] sm:$0xff]
        %v504 = vld [vmem:[%s225 + $0x38] sm:$0xff]
        %v505 = vld [vmem:[%s225 + $0x40] sm:$0xff]
        %v506 = vld [vmem:[%s225 + $0x48] sm:$0xff]
        %v507 = vld [vmem:[%s225 + $0x50] sm:$0xff]
        %v508 = vld [vmem:[%s225 + $0x58] sm:$0xff]
        %v509 = vld [vmem:[%s225 + $0x60] sm:$0xff]
        %v510 = vld [vmem:[%s225 + $0x68] sm:$0xff]
        %v511 = vld [vmem:[%s225 + $0x70] sm:$0xff]
        %v512 = vld [vmem:[%s225 + $0x78] sm:$0xff]
        %v529 = vrot.slane %v497, 7
        %v530 = vrot.slane %v498, 7
        %v531 = vsel %vm374, %v529, %v530
        %v532 = vrot.slane %v499, 7
        %v533 = vsel %vm374, %v530, %v532
        %v534 = vrot.slane %v500, 7
        %v535 = vsel %vm374, %v532, %v534
        %v536 = vrot.slane %v501, 7
        %v537 = vsel %vm374, %v534, %v536
        %v538 = vrot.slane %v502, 7
        %v539 = vsel %vm374, %v536, %v538
        %v540 = vrot.slane %v503, 7
        %v541 = vsel %vm374, %v538, %v540
        %v542 = vrot.slane %v504, 7
        %v543 = vsel %vm374, %v540, %v542
        %v544 = vrot.slane %v505, 7
        %v545 = vsel %vm374, %v542, %v544
        %v546 = vrot.slane %v506, 7
        %v547 = vsel %vm374, %v544, %v546
        %v548 = vrot.slane %v507, 7
        %v549 = vsel %vm374, %v546, %v548
        %v550 = vrot.slane %v508, 7
        %v551 = vsel %vm374, %v548, %v550
        %v552 = vrot.slane %v509, 7
        %v553 = vsel %vm374, %v550, %v552
        %v554 = vrot.slane %v510, 7
        %v555 = vsel %vm374, %v552, %v554
        %v556 = vrot.slane %v511, 7
        %v557 = vsel %vm374, %v554, %v556
        %v558 = vrot.slane %v512, 7
        %v559 = vsel %vm374, %v556, %v558
        %560 = vrot.lane.b32.xlu0 %v529, 1
        %v561 = vpop.permute.xlu0 %560
        %562 = vrot.lane.b32.xlu0 %v531, 1
        %v563 = vpop.permute.xlu0 %562
        %564 = vrot.lane.b32.xlu0 %v533, 1
        %v565 = vpop.permute.xlu0 %564
        %566 = vrot.lane.b32.xlu0 %v535, 1
        %v567 = vpop.permute.xlu0 %566
        %568 = vrot.lane.b32.xlu0 %v537, 1
        %v569 = vpop.permute.xlu0 %568
        %570 = vrot.lane.b32.xlu0 %v539, 1
        %v571 = vpop.permute.xlu0 %570
        %572 = vrot.lane.b32.xlu0 %v541, 1
        %v573 = vpop.permute.xlu0 %572
        %574 = vrot.lane.b32.xlu0 %v543, 1
        %v575 = vpop.permute.xlu0 %574
        %576 = vrot.lane.b32.xlu0 %v545, 1
        %v577 = vpop.permute.xlu0 %576
        %578 = vrot.lane.b32.xlu0 %v547, 1
        %v579 = vpop.permute.xlu0 %578
        %580 = vrot.lane.b32.xlu0 %v549, 1
        %v581 = vpop.permute.xlu0 %580
        %582 = vrot.lane.b32.xlu0 %v551, 1
        %v583 = vpop.permute.xlu0 %582
        %584 = vrot.lane.b32.xlu0 %v553, 1
        %v585 = vpop.permute.xlu0 %584
        %586 = vrot.lane.b32.xlu0 %v555, 1
        %v587 = vpop.permute.xlu0 %586
        %588 = vrot.lane.b32.xlu0 %v557, 1
        %v589 = vpop.permute.xlu0 %588
        %590 = vrot.lane.b32.xlu0 %v559, 1
        %v591 = vpop.permute.xlu0 %590
        %592 = vrot.lane.b32.xlu0 %v558, 1
        %v593 = vpop.permute.xlu0 %592
        %611 = vst.msk [vmem:[#allocation3] sm:$0xfe] %vm457, %v561
        %612 = vst.msk [vmem:[#allocation3 + $0x8] sm:$0xfe] %vm459, %v561
        %613 = vst.msk [vmem:[#allocation3 + $0x10] sm:$0xff] %vm461, %v563
        %614 = vst.msk [vmem:[#allocation3 + $0x18] sm:$0xff] %vm463, %v563
        %615 = vst.msk [vmem:[#allocation3 + $0x20] sm:$0xff] %vm461, %v565
        %616 = vst.msk [vmem:[#allocation3 + $0x28] sm:$0xff] %vm463, %v565
        %617 = vst.msk [vmem:[#allocation3 + $0x30] sm:$0xff] %vm461, %v567
        %618 = vst.msk [vmem:[#allocation3 + $0x38] sm:$0xff] %vm463, %v567
        %619 = vst.msk [vmem:[#allocation3 + $0x40] sm:$0xff] %vm461, %v569
        %620 = vst.msk [vmem:[#allocation3 + $0x48] sm:$0xff] %vm463, %v569
        %621 = vst.msk [vmem:[#allocation3 + $0x50] sm:$0xff] %vm461, %v571
        %622 = vst.msk [vmem:[#allocation3 + $0x58] sm:$0xff] %vm463, %v571
        %623 = vst.msk [vmem:[#allocation3 + $0x60] sm:$0xff] %vm461, %v573
        %624 = vst.msk [vmem:[#allocation3 + $0x68] sm:$0xff] %vm463, %v573
        %625 = vst.msk [vmem:[#allocation3 + $0x70] sm:$0xff] %vm461, %v575
        %626 = vst.msk [vmem:[#allocation3 + $0x78] sm:$0xff] %vm463, %v575
        %627 = vst.msk [vmem:[#allocation3 + $0x80] sm:$0xff] %vm461, %v577
        %628 = vst.msk [vmem:[#allocation3 + $0x88] sm:$0xff] %vm463, %v577
        %629 = vst.msk [vmem:[#allocation3 + $0x90] sm:$0xff] %vm461, %v579
        %630 = vst.msk [vmem:[#allocation3 + $0x98] sm:$0xff] %vm463, %v579
        %631 = vst.msk [vmem:[#allocation3 + $0xa0] sm:$0xff] %vm461, %v581
        %632 = vst.msk [vmem:[#allocation3 + $0xa8] sm:$0xff] %vm463, %v581
        %633 = vst.msk [vmem:[#allocation3 + $0xb0] sm:$0xff] %vm461, %v583
        %634 = vst.msk [vmem:[#allocation3 + $0xb8] sm:$0xff] %vm463, %v583
        %635 = vst.msk [vmem:[#allocation3 + $0xc0] sm:$0xff] %vm461, %v585
        %636 = vst.msk [vmem:[#allocation3 + $0xc8] sm:$0xff] %vm463, %v585
        %637 = vst.msk [vmem:[#allocation3 + $0xd0] sm:$0xff] %vm461, %v587
        %638 = vst.msk [vmem:[#allocation3 + $0xd8] sm:$0xff] %vm463, %v587
        %639 = vst.msk [vmem:[#allocation3 + $0xe0] sm:$0xff] %vm461, %v589
        %640 = vst.msk [vmem:[#allocation3 + $0xe8] sm:$0xff] %vm463, %v589
        %641 = vst.msk [vmem:[#allocation3 + $0xf0] sm:$0xff] %vm461, %v591
        %642 = vst.msk [vmem:[#allocation3 + $0xf8] sm:$0xff] %vm463, %v591
        %643 = vst.msk [vmem:[#allocation3 + $0x100] sm:$0x1] %vm493, %v593
        %644 = vst.msk [vmem:[#allocation3 + $0x108] sm:$0x1] %vm495, %v593
        %v645 = vld [vmem:[#allocation2] sm:$0xff]
        %v646 = vld [vmem:[#allocation2 + $0x8] sm:$0xff]
        %v647 = vld [vmem:[#allocation2 + $0x10] sm:$0xff]
        %v648 = vld [vmem:[#allocation2 + $0x18] sm:$0xff]
        %v649 = vld [vmem:[#allocation2 + $0x20] sm:$0xff]
        %v650 = vld [vmem:[#allocation2 + $0x28] sm:$0xff]
        %v651 = vld [vmem:[#allocation2 + $0x30] sm:$0xff]
        %v652 = vld [vmem:[#allocation2 + $0x38] sm:$0xff]
        %v653 = vld [vmem:[#allocation2 + $0x40] sm:$0xff]
        %v654 = vld [vmem:[#allocation2 + $0x48] sm:$0xff]
        %v655 = vld [vmem:[#allocation2 + $0x50] sm:$0xff]
        %v656 = vld [vmem:[#allocation2 + $0x58] sm:$0xff]
        %v657 = vld [vmem:[#allocation2 + $0x60] sm:$0xff]
        %v658 = vld [vmem:[#allocation2 + $0x68] sm:$0xff]
        %v659 = vld [vmem:[#allocation2 + $0x70] sm:$0xff]
        %v660 = vld [vmem:[#allocation2 + $0x78] sm:$0xff]
        %v661 = vld [vmem:[#allocation2 + $0x80] sm:$0xff]
        %v662 = vld [vmem:[#allocation2 + $0x88] sm:$0xff]
        %v663 = vld [vmem:[#allocation2 + $0x90] sm:$0xff]
        %v664 = vld [vmem:[#allocation2 + $0x98] sm:$0xff]
        %v665 = vld [vmem:[#allocation2 + $0xa0] sm:$0xff]
        %v666 = vld [vmem:[#allocation2 + $0xa8] sm:$0xff]
        %v667 = vld [vmem:[#allocation2 + $0xb0] sm:$0xff]
        %v668 = vld [vmem:[#allocation2 + $0xb8] sm:$0xff]
        %v669 = vld [vmem:[#allocation2 + $0xc0] sm:$0xff]
        %v670 = vld [vmem:[#allocation2 + $0xc8] sm:$0xff]
        %v671 = vld [vmem:[#allocation2 + $0xd0] sm:$0xff]
        %v672 = vld [vmem:[#allocation2 + $0xd8] sm:$0xff]
        %v673 = vld [vmem:[#allocation2 + $0xe0] sm:$0xff]
        %v674 = vld [vmem:[#allocation2 + $0xe8] sm:$0xff]
        %v675 = vld [vmem:[#allocation2 + $0xf0] sm:$0xff]
        %v676 = vld [vmem:[#allocation2 + $0xf8] sm:$0xff]
        %v677 = vld [vmem:[#allocation2 + $0x100] sm:$0x3]
        %v678 = vld [vmem:[#allocation2 + $0x108] sm:$0x3]
        %v679 = vld [vmem:[#allocation3] sm:$0xff]
        %v680 = vld [vmem:[#allocation3 + $0x8] sm:$0xff]
        %v681 = vld [vmem:[#allocation3 + $0x10] sm:$0xff]
        %v682 = vld [vmem:[#allocation3 + $0x18] sm:$0xff]
        %v683 = vld [vmem:[#allocation3 + $0x20] sm:$0xff]
        %v684 = vld [vmem:[#allocation3 + $0x28] sm:$0xff]
        %v685 = vld [vmem:[#allocation3 + $0x30] sm:$0xff]
        %v686 = vld [vmem:[#allocation3 + $0x38] sm:$0xff]
        %v687 = vld [vmem:[#allocation3 + $0x40] sm:$0xff]
        %v688 = vld [vmem:[#allocation3 + $0x48] sm:$0xff]
        %v689 = vld [vmem:[#allocation3 + $0x50] sm:$0xff]
        %v690 = vld [vmem:[#allocation3 + $0x58] sm:$0xff]
        %v691 = vld [vmem:[#allocation3 + $0x60] sm:$0xff]
        %v692 = vld [vmem:[#allocation3 + $0x68] sm:$0xff]
        %v693 = vld [vmem:[#allocation3 + $0x70] sm:$0xff]
        %v694 = vld [vmem:[#allocation3 + $0x78] sm:$0xff]
        %v695 = vld [vmem:[#allocation3 + $0x80] sm:$0xff]
        %v696 = vld [vmem:[#allocation3 + $0x88] sm:$0xff]
        %v697 = vld [vmem:[#allocation3 + $0x90] sm:$0xff]
        %v698 = vld [vmem:[#allocation3 + $0x98] sm:$0xff]
        %v699 = vld [vmem:[#allocation3 + $0xa0] sm:$0xff]
        %v700 = vld [vmem:[#allocation3 + $0xa8] sm:$0xff]
        %v701 = vld [vmem:[#allocation3 + $0xb0] sm:$0xff]
        %v702 = vld [vmem:[#allocation3 + $0xb8] sm:$0xff]
        %v703 = vld [vmem:[#allocation3 + $0xc0] sm:$0xff]
        %v704 = vld [vmem:[#allocation3 + $0xc8] sm:$0xff]
        %v705 = vld [vmem:[#allocation3 + $0xd0] sm:$0xff]
        %v706 = vld [vmem:[#allocation3 + $0xd8] sm:$0xff]
        %v707 = vld [vmem:[#allocation3 + $0xe0] sm:$0xff]
        %v708 = vld [vmem:[#allocation3 + $0xe8] sm:$0xff]
        %v709 = vld [vmem:[#allocation3 + $0xf0] sm:$0xff]
        %v710 = vld [vmem:[#allocation3 + $0xf8] sm:$0xff]
        %v711 = vld [vmem:[#allocation3 + $0x100] sm:$0x3]
        %v712 = vld [vmem:[#allocation3 + $0x108] sm:$0x3]
        %v713 = vld [vmem:[%s235] sm:$0xff]
        %v714 = vld [vmem:[%s235 + $0x8] sm:$0xff]
        %v715 = vld [vmem:[%s235 + $0x10] sm:$0xff]
        %v716 = vld [vmem:[%s235 + $0x18] sm:$0xff]
        %v717 = vld [vmem:[%s235 + $0x20] sm:$0xff]
        %v718 = vld [vmem:[%s235 + $0x28] sm:$0xff]
        %v719 = vld [vmem:[%s235 + $0x30] sm:$0xff]
        %v720 = vld [vmem:[%s235 + $0x38] sm:$0xff]
        %v721 = vld [vmem:[%s235 + $0x40] sm:$0xff]
        %v722 = vld [vmem:[%s235 + $0x48] sm:$0xff]
        %v723 = vld [vmem:[%s235 + $0x50] sm:$0xff]
        %v724 = vld [vmem:[%s235 + $0x58] sm:$0xff]
        %v725 = vld [vmem:[%s235 + $0x60] sm:$0xff]
        %v726 = vld [vmem:[%s235 + $0x68] sm:$0xff]
        %v727 = vld [vmem:[%s235 + $0x70] sm:$0xff]
        %v728 = vld [vmem:[%s235 + $0x78] sm:$0xff]
        %v729 = vmul.f32 %v645, 2.0
        %v730 = vmul.f32 %v646, 2.0
        %v731 = vmul.f32 %v647, 2.0
        %v732 = vmul.f32 %v648, 2.0
        %v733 = vmul.f32 %v649, 2.0
        %v734 = vmul.f32 %v650, 2.0
        %v735 = vmul.f32 %v651, 2.0
        %v736 = vmul.f32 %v652, 2.0
        %v737 = vmul.f32 %v653, 2.0
        %v738 = vmul.f32 %v654, 2.0
        %v739 = vmul.f32 %v655, 2.0
        %v740 = vmul.f32 %v656, 2.0
        %v741 = vmul.f32 %v657, 2.0
        %v742 = vmul.f32 %v658, 2.0
        %v743 = vmul.f32 %v659, 2.0
        %v744 = vmul.f32 %v660, 2.0
        %v745 = vmul.f32 %v661, 2.0
        %v746 = vmul.f32 %v662, 2.0
        %v747 = vmul.f32 %v663, 2.0
        %v748 = vmul.f32 %v664, 2.0
        %v749 = vmul.f32 %v665, 2.0
        %v750 = vmul.f32 %v666, 2.0
        %v751 = vmul.f32 %v667, 2.0
        %v752 = vmul.f32 %v668, 2.0
        %v753 = vmul.f32 %v669, 2.0
        %v754 = vmul.f32 %v670, 2.0
        %v755 = vmul.f32 %v671, 2.0
        %v756 = vmul.f32 %v672, 2.0
        %v757 = vmul.f32 %v673, 2.0
        %v758 = vmul.f32 %v674, 2.0
        %v759 = vmul.f32 %v675, 2.0
        %v760 = vmul.f32 %v676, 2.0
        %v761 = vmul.f32 %v677, 2.0
        %v762 = vmul.f32 %v678, 2.0
        %vm797 = vcmask 1046528
        %v798 = vrot.slane %v729, 1
        %v799 = vrot.slane %v731, 1
        %v800 = vsel %vm797, %v798, %v799
        %v801 = vrot.slane %v730, 1
        %v802 = vrot.slane %v732, 1
        %v803 = vsel %vm797, %v801, %v802
        %v804 = vrot.slane %v733, 1
        %v805 = vsel %vm797, %v799, %v804
        %v806 = vrot.slane %v734, 1
        %v807 = vsel %vm797, %v802, %v806
        %v808 = vrot.slane %v735, 1
        %v809 = vsel %vm797, %v804, %v808
        %v810 = vrot.slane %v736, 1
        %v811 = vsel %vm797, %v806, %v810
        %v812 = vrot.slane %v737, 1
        %v813 = vsel %vm797, %v808, %v812
        %v814 = vrot.slane %v738, 1
        %v815 = vsel %vm797, %v810, %v814
        %v816 = vrot.slane %v739, 1
        %v817 = vsel %vm797, %v812, %v816
        %v818 = vrot.slane %v740, 1
        %v819 = vsel %vm797, %v814, %v818
        %v820 = vrot.slane %v741, 1
        %v821 = vsel %vm797, %v816, %v820
        %v822 = vrot.slane %v742, 1
        %v823 = vsel %vm797, %v818, %v822
        %v824 = vrot.slane %v743, 1
        %v825 = vsel %vm797, %v820, %v824
        %v826 = vrot.slane %v744, 1
        %v827 = vsel %vm797, %v822, %v826
        %v828 = vrot.slane %v745, 1
        %v829 = vsel %vm797, %v824, %v828
        %v830 = vrot.slane %v746, 1
        %v831 = vsel %vm797, %v826, %v830
        %v832 = vrot.slane %v747, 1
        %v833 = vsel %vm797, %v828, %v832
        %v834 = vrot.slane %v748, 1
        %v835 = vsel %vm797, %v830, %v834
        %v836 = vrot.slane %v749, 1
        %v837 = vsel %vm797, %v832, %v836
        %v838 = vrot.slane %v750, 1
        %v839 = vsel %vm797, %v834, %v838
        %v840 = vrot.slane %v751, 1
        %v841 = vsel %vm797, %v836, %v840
        %v842 = vrot.slane %v752, 1
        %v843 = vsel %vm797, %v838, %v842
        %v844 = vrot.slane %v753, 1
        %v845 = vsel %vm797, %v840, %v844
        %v846 = vrot.slane %v754, 1
        %v847 = vsel %vm797, %v842, %v846
        %v848 = vrot.slane %v755, 1
        %v849 = vsel %vm797, %v844, %v848
        %v850 = vrot.slane %v756, 1
        %v851 = vsel %vm797, %v846, %v850
        %v852 = vrot.slane %v757, 1
        %v853 = vsel %vm797, %v848, %v852
        %v854 = vrot.slane %v758, 1
        %v855 = vsel %vm797, %v850, %v854
        %v856 = vrot.slane %v759, 1
        %v857 = vsel %vm797, %v852, %v856
        %v858 = vrot.slane %v760, 1
        %v859 = vsel %vm797, %v854, %v858
        %v860 = vrot.slane %v761, 1
        %v861 = vsel %vm797, %v856, %v860
        %v862 = vrot.slane %v762, 1
        %v863 = vsel %vm797, %v858, %v862
        %v896 = vadd.f32 %v645, %v800
        %v897 = vadd.f32 %v646, %v803
        %v898 = vadd.f32 %v647, %v805
        %v899 = vadd.f32 %v648, %v807
        %v900 = vadd.f32 %v649, %v809
        %v901 = vadd.f32 %v650, %v811
        %v902 = vadd.f32 %v651, %v813
        %v903 = vadd.f32 %v652, %v815
        %v904 = vadd.f32 %v653, %v817
        %v905 = vadd.f32 %v654, %v819
        %v906 = vadd.f32 %v655, %v821
        %v907 = vadd.f32 %v656, %v823
        %v908 = vadd.f32 %v657, %v825
        %v909 = vadd.f32 %v658, %v827
        %v910 = vadd.f32 %v659, %v829
        %v911 = vadd.f32 %v660, %v831
        %v912 = vadd.f32 %v661, %v833
        %v913 = vadd.f32 %v662, %v835
        %v914 = vadd.f32 %v663, %v837
        %v915 = vadd.f32 %v664, %v839
        %v916 = vadd.f32 %v665, %v841
        %v917 = vadd.f32 %v666, %v843
        %v918 = vadd.f32 %v667, %v845
        %v919 = vadd.f32 %v668, %v847
        %v920 = vadd.f32 %v669, %v849
        %v921 = vadd.f32 %v670, %v851
        %v922 = vadd.f32 %v671, %v853
        %v923 = vadd.f32 %v672, %v855
        %v924 = vadd.f32 %v673, %v857
        %v925 = vadd.f32 %v674, %v859
        %v926 = vadd.f32 %v675, %v861
        %v927 = vadd.f32 %v676, %v863
        %vm962 = vcmask 1045504
        %v963 = vrot.slane %v645, 2
        %v964 = vrot.slane %v647, 2
        %v965 = vsel %vm962, %v963, %v964
        %v966 = vrot.slane %v646, 2
        %v967 = vrot.slane %v648, 2
        %v968 = vsel %vm962, %v966, %v967
        %v969 = vrot.slane %v649, 2
        %v970 = vsel %vm962, %v964, %v969
        %v971 = vrot.slane %v650, 2
        %v972 = vsel %vm962, %v967, %v971
        %v973 = vrot.slane %v651, 2
        %v974 = vsel %vm962, %v969, %v973
        %v975 = vrot.slane %v652, 2
        %v976 = vsel %vm962, %v971, %v975
        %v977 = vrot.slane %v653, 2
        %v978 = vsel %vm962, %v973, %v977
        %v979 = vrot.slane %v654, 2
        %v980 = vsel %vm962, %v975, %v979
        %v981 = vrot.slane %v655, 2
        %v982 = vsel %vm962, %v977, %v981
        %v983 = vrot.slane %v656, 2
        %v984 = vsel %vm962, %v979, %v983
        %v985 = vrot.slane %v657, 2
        %v986 = vsel %vm962, %v981, %v985
        %v987 = vrot.slane %v658, 2
        %v988 = vsel %vm962, %v983, %v987
        %v989 = vrot.slane %v659, 2
        %v990 = vsel %vm962, %v985, %v989
        %v991 = vrot.slane %v660, 2
        %v992 = vsel %vm962, %v987, %v991
        %v993 = vrot.slane %v661, 2
        %v994 = vsel %vm962, %v989, %v993
        %v995 = vrot.slane %v662, 2
        %v996 = vsel %vm962, %v991, %v995
        %v997 = vrot.slane %v663, 2
        %v998 = vsel %vm962, %v993, %v997
        %v999 = vrot.slane %v664, 2
        %v1000 = vsel %vm962, %v995, %v999
        %v1001 = vrot.slane %v665, 2
        %v1002 = vsel %vm962, %v997, %v1001
        %v1003 = vrot.slane %v666, 2
        %v1004 = vsel %vm962, %v999, %v1003
        %v1005 = vrot.slane %v667, 2
        %v1006 = vsel %vm962, %v1001, %v1005
        %v1007 = vrot.slane %v668, 2
        %v1008 = vsel %vm962, %v1003, %v1007
        %v1009 = vrot.slane %v669, 2
        %v1010 = vsel %vm962, %v1005, %v1009
        %v1011 = vrot.slane %v670, 2
        %v1012 = vsel %vm962, %v1007, %v1011
        %v1013 = vrot.slane %v671, 2
        %v1014 = vsel %vm962, %v1009, %v1013
        %v1015 = vrot.slane %v672, 2
        %v1016 = vsel %vm962, %v1011, %v1015
        %v1017 = vrot.slane %v673, 2
        %v1018 = vsel %vm962, %v1013, %v1017
        %v1019 = vrot.slane %v674, 2
        %v1020 = vsel %vm962, %v1015, %v1019
        %v1021 = vrot.slane %v675, 2
        %v1022 = vsel %vm962, %v1017, %v1021
        %v1023 = vrot.slane %v676, 2
        %v1024 = vsel %vm962, %v1019, %v1023
        %v1025 = vrot.slane %v677, 2
        %v1026 = vsel %vm962, %v1021, %v1025
        %v1027 = vrot.slane %v678, 2
        %v1028 = vsel %vm962, %v1023, %v1027
        %v1061 = vadd.f32 %v896, %v965
        %v1062 = vadd.f32 %v897, %v968
        %v1063 = vadd.f32 %v898, %v970
        %v1064 = vadd.f32 %v899, %v972
        %v1065 = vadd.f32 %v900, %v974
        %v1066 = vadd.f32 %v901, %v976
        %v1067 = vadd.f32 %v902, %v978
        %v1068 = vadd.f32 %v903, %v980
        %v1069 = vadd.f32 %v904, %v982
        %v1070 = vadd.f32 %v905, %v984
        %v1071 = vadd.f32 %v906, %v986
        %v1072 = vadd.f32 %v907, %v988
        %v1073 = vadd.f32 %v908, %v990
        %v1074 = vadd.f32 %v909, %v992
        %v1075 = vadd.f32 %v910, %v994
        %v1076 = vadd.f32 %v911, %v996
        %v1077 = vadd.f32 %v912, %v998
        %v1078 = vadd.f32 %v913, %v1000
        %v1079 = vadd.f32 %v914, %v1002
        %v1080 = vadd.f32 %v915, %v1004
        %v1081 = vadd.f32 %v916, %v1006
        %v1082 = vadd.f32 %v917, %v1008
        %v1083 = vadd.f32 %v918, %v1010
        %v1084 = vadd.f32 %v919, %v1012
        %v1085 = vadd.f32 %v920, %v1014
        %v1086 = vadd.f32 %v921, %v1016
        %v1087 = vadd.f32 %v922, %v1018
        %v1088 = vadd.f32 %v923, %v1020
        %v1089 = vadd.f32 %v924, %v1022
        %v1090 = vadd.f32 %v925, %v1024
        %v1091 = vadd.f32 %v926, %v1026
        %v1092 = vadd.f32 %v927, %v1028
        %vm1093 = vcmask 1041408
        %v1094 = vrot.slane %v645, 6
        %v1095 = vrot.slane %v646, 6
        %v1096 = vrot.slane %v647, 6
        %v1097 = vsel %vm1093, %v1094, %v1096
        %v1098 = vrot.slane %v648, 6
        %v1099 = vsel %vm1093, %v1095, %v1098
        %v1100 = vrot.slane %v649, 6
        %v1101 = vsel %vm1093, %v1096, %v1100
        %v1102 = vrot.slane %v650, 6
        %v1103 = vsel %vm1093, %v1098, %v1102
        %v1104 = vrot.slane %v651, 6
        %v1105 = vsel %vm1093, %v1100, %v1104
        %v1106 = vrot.slane %v652, 6
        %v1107 = vsel %vm1093, %v1102, %v1106
        %v1108 = vrot.slane %v653, 6
        %v1109 = vsel %vm1093, %v1104, %v1108
        %v1110 = vrot.slane %v654, 6
        %v1111 = vsel %vm1093, %v1106, %v1110
        %v1112 = vrot.slane %v655, 6
        %v1113 = vsel %vm1093, %v1108, %v1112
        %v1114 = vrot.slane %v656, 6
        %v1115 = vsel %vm1093, %v1110, %v1114
        %v1116 = vrot.slane %v657, 6
        %v1117 = vsel %vm1093, %v1112, %v1116
        %v1118 = vrot.slane %v658, 6
        %v1119 = vsel %vm1093, %v1114, %v1118
        %v1120 = vrot.slane %v659, 6
        %v1121 = vsel %vm1093, %v1116, %v1120
        %v1122 = vrot.slane %v660, 6
        %v1123 = vsel %vm1093, %v1118, %v1122
        %v1124 = vrot.slane %v661, 6
        %v1125 = vsel %vm1093, %v1120, %v1124
        %v1126 = vrot.slane %v662, 6
        %v1127 = vsel %vm1093, %v1122, %v1126
        %v1128 = vrot.slane %v663, 6
        %v1129 = vsel %vm1093, %v1124, %v1128
        %v1130 = vrot.slane %v664, 6
        %v1131 = vsel %vm1093, %v1126, %v1130
        %v1132 = vrot.slane %v665, 6
        %v1133 = vsel %vm1093, %v1128, %v1132
        %v1134 = vrot.slane %v666, 6
        %v1135 = vsel %vm1093, %v1130, %v1134
        %v1136 = vrot.slane %v667, 6
        %v1137 = vsel %vm1093, %v1132, %v1136
        %v1138 = vrot.slane %v668, 6
        %v1139 = vsel %vm1093, %v1134, %v1138
        %v1140 = vrot.slane %v669, 6
        %v1141 = vsel %vm1093, %v1136, %v1140
        %v1142 = vrot.slane %v670, 6
        %v1143 = vsel %vm1093, %v1138, %v1142
        %v1144 = vrot.slane %v671, 6
        %v1145 = vsel %vm1093, %v1140, %v1144
        %v1146 = vrot.slane %v672, 6
        %v1147 = vsel %vm1093, %v1142, %v1146
        %v1148 = vrot.slane %v673, 6
        %v1149 = vsel %vm1093, %v1144, %v1148
        %v1150 = vrot.slane %v674, 6
        %v1151 = vsel %vm1093, %v1146, %v1150
        %v1152 = vrot.slane %v675, 6
        %v1153 = vsel %vm1093, %v1148, %v1152
        %v1154 = vrot.slane %v676, 6
        %v1155 = vsel %vm1093, %v1150, %v1154
        %v1190 = vsub.f32 %v645, %v1094
        %v1191 = vsub.f32 %v646, %v1095
        %v1192 = vsub.f32 %v647, %v1097
        %v1193 = vsub.f32 %v648, %v1099
        %v1194 = vsub.f32 %v649, %v1101
        %v1195 = vsub.f32 %v650, %v1103
        %v1196 = vsub.f32 %v651, %v1105
        %v1197 = vsub.f32 %v652, %v1107
        %v1198 = vsub.f32 %v653, %v1109
        %v1199 = vsub.f32 %v654, %v1111
        %v1200 = vsub.f32 %v655, %v1113
        %v1201 = vsub.f32 %v656, %v1115
        %v1202 = vsub.f32 %v657, %v1117
        %v1203 = vsub.f32 %v658, %v1119
        %v1204 = vsub.f32 %v659, %v1121
        %v1205 = vsub.f32 %v660, %v1123
        %v1206 = vsub.f32 %v661, %v1125
        %v1207 = vsub.f32 %v662, %v1127
        %v1208 = vsub.f32 %v663, %v1129
        %v1209 = vsub.f32 %v664, %v1131
        %v1210 = vsub.f32 %v665, %v1133
        %v1211 = vsub.f32 %v666, %v1135
        %v1212 = vsub.f32 %v667, %v1137
        %v1213 = vsub.f32 %v668, %v1139
        %v1214 = vsub.f32 %v669, %v1141
        %v1215 = vsub.f32 %v670, %v1143
        %v1216 = vsub.f32 %v671, %v1145
        %v1217 = vsub.f32 %v672, %v1147
        %v1218 = vsub.f32 %v673, %v1149
        %v1219 = vsub.f32 %v674, %v1151
        %v1220 = vsub.f32 %v675, %v1153
        %v1221 = vsub.f32 %v676, %v1155
        %v1222 = vsub.f32 %v677, %v1152
        %v1223 = vsub.f32 %v678, %v1154
        %v1224 = vmul.f32 %v679, 2.0
        %v1225 = vmul.f32 %v680, 2.0
        %v1226 = vmul.f32 %v681, 2.0
        %v1227 = vmul.f32 %v682, 2.0
        %v1228 = vmul.f32 %v683, 2.0
        %v1229 = vmul.f32 %v684, 2.0
        %v1230 = vmul.f32 %v685, 2.0
        %v1231 = vmul.f32 %v686, 2.0
        %v1232 = vmul.f32 %v687, 2.0
        %v1233 = vmul.f32 %v688, 2.0
        %v1234 = vmul.f32 %v689, 2.0
        %v1235 = vmul.f32 %v690, 2.0
        %v1236 = vmul.f32 %v691, 2.0
        %v1237 = vmul.f32 %v692, 2.0
        %v1238 = vmul.f32 %v693, 2.0
        %v1239 = vmul.f32 %v694, 2.0
        %v1240 = vmul.f32 %v695, 2.0
        %v1241 = vmul.f32 %v696, 2.0
        %v1242 = vmul.f32 %v697, 2.0
        %v1243 = vmul.f32 %v698, 2.0
        %v1244 = vmul.f32 %v699, 2.0
        %v1245 = vmul.f32 %v700, 2.0
        %v1246 = vmul.f32 %v701, 2.0
        %v1247 = vmul.f32 %v702, 2.0
        %v1248 = vmul.f32 %v703, 2.0
        %v1249 = vmul.f32 %v704, 2.0
        %v1250 = vmul.f32 %v705, 2.0
        %v1251 = vmul.f32 %v706, 2.0
        %v1252 = vmul.f32 %v707, 2.0
        %v1253 = vmul.f32 %v708, 2.0
        %v1254 = vmul.f32 %v709, 2.0
        %v1255 = vmul.f32 %v710, 2.0
        %v1256 = vmul.f32 %v711, 2.0
        %v1257 = vmul.f32 %v712, 2.0
        %v1292 = vrot.slane %v1224, 1
        %v1293 = vrot.slane %v1226, 1
        %v1294 = vsel %vm797, %v1292, %v1293
        %v1295 = vrot.slane %v1225, 1
        %v1296 = vrot.slane %v1227, 1
        %v1297 = vsel %vm797, %v1295, %v1296
        %v1298 = vrot.slane %v1228, 1
        %v1299 = vsel %vm797, %v1293, %v1298
        %v1300 = vrot.slane %v1229, 1
        %v1301 = vsel %vm797, %v1296, %v1300
        %v1302 = vrot.slane %v1230, 1
        %v1303 = vsel %vm797, %v1298, %v1302
        %v1304 = vrot.slane %v1231, 1
        %v1305 = vsel %vm797, %v1300, %v1304
        %v1306 = vrot.slane %v1232, 1
        %v1307 = vsel %vm797, %v1302, %v1306
        %v1308 = vrot.slane %v1233, 1
        %v1309 = vsel %vm797, %v1304, %v1308
        %v1310 = vrot.slane %v1234, 1
        %v1311 = vsel %vm797, %v1306, %v1310
        %v1312 = vrot.slane %v1235, 1
        %v1313 = vsel %vm797, %v1308, %v1312
        %v1314 = vrot.slane %v1236, 1
        %v1315 = vsel %vm797, %v1310, %v1314
        %v1316 = vrot.slane %v1237, 1
        %v1317 = vsel %vm797, %v1312, %v1316
        %v1318 = vrot.slane %v1238, 1
        %v1319 = vsel %vm797, %v1314, %v1318
        %v1320 = vrot.slane %v1239, 1
        %v1321 = vsel %vm797, %v1316, %v1320
        %v1322 = vrot.slane %v1240, 1
        %v1323 = vsel %vm797, %v1318, %v1322
        %v1324 = vrot.slane %v1241, 1
        %v1325 = vsel %vm797, %v1320, %v1324
        %v1326 = vrot.slane %v1242, 1
        %v1327 = vsel %vm797, %v1322, %v1326
        %v1328 = vrot.slane %v1243, 1
        %v1329 = vsel %vm797, %v1324, %v1328
        %v1330 = vrot.slane %v1244, 1
        %v1331 = vsel %vm797, %v1326, %v1330
        %v1332 = vrot.slane %v1245, 1
        %v1333 = vsel %vm797, %v1328, %v1332
        %v1334 = vrot.slane %v1246, 1
        %v1335 = vsel %vm797, %v1330, %v1334
        %v1336 = vrot.slane %v1247, 1
        %v1337 = vsel %vm797, %v1332, %v1336
        %v1338 = vrot.slane %v1248, 1
        %v1339 = vsel %vm797, %v1334, %v1338
        %v1340 = vrot.slane %v1249, 1
        %v1341 = vsel %vm797, %v1336, %v1340
        %v1342 = vrot.slane %v1250, 1
        %v1343 = vsel %vm797, %v1338, %v1342
        %v1344 = vrot.slane %v1251, 1
        %v1345 = vsel %vm797, %v1340, %v1344
        %v1346 = vrot.slane %v1252, 1
        %v1347 = vsel %vm797, %v1342, %v1346
        %v1348 = vrot.slane %v1253, 1
        %v1349 = vsel %vm797, %v1344, %v1348
        %v1350 = vrot.slane %v1254, 1
        %v1351 = vsel %vm797, %v1346, %v1350
        %v1352 = vrot.slane %v1255, 1
        %v1353 = vsel %vm797, %v1348, %v1352
        %v1354 = vrot.slane %v1256, 1
        %v1355 = vsel %vm797, %v1350, %v1354
        %v1356 = vrot.slane %v1257, 1
        %v1357 = vsel %vm797, %v1352, %v1356
        %v1390 = vadd.f32 %v679, %v1294
        %v1391 = vadd.f32 %v680, %v1297
        %v1392 = vadd.f32 %v681, %v1299
        %v1393 = vadd.f32 %v682, %v1301
        %v1394 = vadd.f32 %v683, %v1303
        %v1395 = vadd.f32 %v684, %v1305
        %v1396 = vadd.f32 %v685, %v1307
        %v1397 = vadd.f32 %v686, %v1309
        %v1398 = vadd.f32 %v687, %v1311
        %v1399 = vadd.f32 %v688, %v1313
        %v1400 = vadd.f32 %v689, %v1315
        %v1401 = vadd.f32 %v690, %v1317
        %v1402 = vadd.f32 %v691, %v1319
        %v1403 = vadd.f32 %v692, %v1321
        %v1404 = vadd.f32 %v693, %v1323
        %v1405 = vadd.f32 %v694, %v1325
        %v1406 = vadd.f32 %v695, %v1327
        %v1407 = vadd.f32 %v696, %v1329
        %v1408 = vadd.f32 %v697, %v1331
        %v1409 = vadd.f32 %v698, %v1333
        %v1410 = vadd.f32 %v699, %v1335
        %v1411 = vadd.f32 %v700, %v1337
        %v1412 = vadd.f32 %v701, %v1339
        %v1413 = vadd.f32 %v702, %v1341
        %v1414 = vadd.f32 %v703, %v1343
        %v1415 = vadd.f32 %v704, %v1345
        %v1416 = vadd.f32 %v705, %v1347
        %v1417 = vadd.f32 %v706, %v1349
        %v1418 = vadd.f32 %v707, %v1351
        %v1419 = vadd.f32 %v708, %v1353
        %v1420 = vadd.f32 %v709, %v1355
        %v1421 = vadd.f32 %v710, %v1357
        %v1456 = vrot.slane %v679, 2
        %v1457 = vrot.slane %v681, 2
        %v1458 = vsel %vm962, %v1456, %v1457
        %v1459 = vrot.slane %v680, 2
        %v1460 = vrot.slane %v682, 2
        %v1461 = vsel %vm962, %v1459, %v1460
        %v1462 = vrot.slane %v683, 2
        %v1463 = vsel %vm962, %v1457, %v1462
        %v1464 = vrot.slane %v684, 2
        %v1465 = vsel %vm962, %v1460, %v1464
        %v1466 = vrot.slane %v685, 2
        %v1467 = vsel %vm962, %v1462, %v1466
        %v1468 = vrot.slane %v686, 2
        %v1469 = vsel %vm962, %v1464, %v1468
        %v1470 = vrot.slane %v687, 2
        %v1471 = vsel %vm962, %v1466, %v1470
        %v1472 = vrot.slane %v688, 2
        %v1473 = vsel %vm962, %v1468, %v1472
        %v1474 = vrot.slane %v689, 2
        %v1475 = vsel %vm962, %v1470, %v1474
        %v1476 = vrot.slane %v690, 2
        %v1477 = vsel %vm962, %v1472, %v1476
        %v1478 = vrot.slane %v691, 2
        %v1479 = vsel %vm962, %v1474, %v1478
        %v1480 = vrot.slane %v692, 2
        %v1481 = vsel %vm962, %v1476, %v1480
        %v1482 = vrot.slane %v693, 2
        %v1483 = vsel %vm962, %v1478, %v1482
        %v1484 = vrot.slane %v694, 2
        %v1485 = vsel %vm962, %v1480, %v1484
        %v1486 = vrot.slane %v695, 2
        %v1487 = vsel %vm962, %v1482, %v1486
        %v1488 = vrot.slane %v696, 2
        %v1489 = vsel %vm962, %v1484, %v1488
        %v1490 = vrot.slane %v697, 2
        %v1491 = vsel %vm962, %v1486, %v1490
        %v1492 = vrot.slane %v698, 2
        %v1493 = vsel %vm962, %v1488, %v1492
        %v1494 = vrot.slane %v699, 2
        %v1495 = vsel %vm962, %v1490, %v1494
        %v1496 = vrot.slane %v700, 2
        %v1497 = vsel %vm962, %v1492, %v1496
        %v1498 = vrot.slane %v701, 2
        %v1499 = vsel %vm962, %v1494, %v1498
        %v1500 = vrot.slane %v702, 2
        %v1501 = vsel %vm962, %v1496, %v1500
        %v1502 = vrot.slane %v703, 2
        %v1503 = vsel %vm962, %v1498, %v1502
        %v1504 = vrot.slane %v704, 2
        %v1505 = vsel %vm962, %v1500, %v1504
        %v1506 = vrot.slane %v705, 2
        %v1507 = vsel %vm962, %v1502, %v1506
        %v1508 = vrot.slane %v706, 2
        %v1509 = vsel %vm962, %v1504, %v1508
        %v1510 = vrot.slane %v707, 2
        %v1511 = vsel %vm962, %v1506, %v1510
        %v1512 = vrot.slane %v708, 2
        %v1513 = vsel %vm962, %v1508, %v1512
        %v1514 = vrot.slane %v709, 2
        %v1515 = vsel %vm962, %v1510, %v1514
        %v1516 = vrot.slane %v710, 2
        %v1517 = vsel %vm962, %v1512, %v1516
        %v1518 = vrot.slane %v711, 2
        %v1519 = vsel %vm962, %v1514, %v1518
        %v1520 = vrot.slane %v712, 2
        %v1521 = vsel %vm962, %v1516, %v1520
        %v1554 = vadd.f32 %v1390, %v1458
        %v1555 = vadd.f32 %v1391, %v1461
        %v1556 = vadd.f32 %v1392, %v1463
        %v1557 = vadd.f32 %v1393, %v1465
        %v1558 = vadd.f32 %v1394, %v1467
        %v1559 = vadd.f32 %v1395, %v1469
        %v1560 = vadd.f32 %v1396, %v1471
        %v1561 = vadd.f32 %v1397, %v1473
        %v1562 = vadd.f32 %v1398, %v1475
        %v1563 = vadd.f32 %v1399, %v1477
        %v1564 = vadd.f32 %v1400, %v1479
        %v1565 = vadd.f32 %v1401, %v1481
        %v1566 = vadd.f32 %v1402, %v1483
        %v1567 = vadd.f32 %v1403, %v1485
        %v1568 = vadd.f32 %v1404, %v1487
        %v1569 = vadd.f32 %v1405, %v1489
        %v1570 = vadd.f32 %v1406, %v1491
        %v1571 = vadd.f32 %v1407, %v1493
        %v1572 = vadd.f32 %v1408, %v1495
        %v1573 = vadd.f32 %v1409, %v1497
        %v1574 = vadd.f32 %v1410, %v1499
        %v1575 = vadd.f32 %v1411, %v1501
        %v1576 = vadd.f32 %v1412, %v1503
        %v1577 = vadd.f32 %v1413, %v1505
        %v1578 = vadd.f32 %v1414, %v1507
        %v1579 = vadd.f32 %v1415, %v1509
        %v1580 = vadd.f32 %v1416, %v1511
        %v1581 = vadd.f32 %v1417, %v1513
        %v1582 = vadd.f32 %v1418, %v1515
        %v1583 = vadd.f32 %v1419, %v1517
        %v1584 = vadd.f32 %v1420, %v1519
        %v1585 = vadd.f32 %v1421, %v1521
        %v1586 = vrot.slane %v679, 6
        %v1587 = vrot.slane %v680, 6
        %v1588 = vrot.slane %v681, 6
        %v1589 = vsel %vm1093, %v1586, %v1588
        %v1590 = vrot.slane %v682, 6
        %v1591 = vsel %vm1093, %v1587, %v1590
        %v1592 = vrot.slane %v683, 6
        %v1593 = vsel %vm1093, %v1588, %v1592
        %v1594 = vrot.slane %v684, 6
        %v1595 = vsel %vm1093, %v1590, %v1594
        %v1596 = vrot.slane %v685, 6
        %v1597 = vsel %vm1093, %v1592, %v1596
        %v1598 = vrot.slane %v686, 6
        %v1599 = vsel %vm1093, %v1594, %v1598
        %v1600 = vrot.slane %v687, 6
        %v1601 = vsel %vm1093, %v1596, %v1600
        %v1602 = vrot.slane %v688, 6
        %v1603 = vsel %vm1093, %v1598, %v1602
        %v1604 = vrot.slane %v689, 6
        %v1605 = vsel %vm1093, %v1600, %v1604
        %v1606 = vrot.slane %v690, 6
        %v1607 = vsel %vm1093, %v1602, %v1606
        %v1608 = vrot.slane %v691, 6
        %v1609 = vsel %vm1093, %v1604, %v1608
        %v1610 = vrot.slane %v692, 6
        %v1611 = vsel %vm1093, %v1606, %v1610
        %v1612 = vrot.slane %v693, 6
        %v1613 = vsel %vm1093, %v1608, %v1612
        %v1614 = vrot.slane %v694, 6
        %v1615 = vsel %vm1093, %v1610, %v1614
        %v1616 = vrot.slane %v695, 6
        %v1617 = vsel %vm1093, %v1612, %v1616
        %v1618 = vrot.slane %v696, 6
        %v1619 = vsel %vm1093, %v1614, %v1618
        %v1620 = vrot.slane %v697, 6
        %v1621 = vsel %vm1093, %v1616, %v1620
        %v1622 = vrot.slane %v698, 6
        %v1623 = vsel %vm1093, %v1618, %v1622
        %v1624 = vrot.slane %v699, 6
        %v1625 = vsel %vm1093, %v1620, %v1624
        %v1626 = vrot.slane %v700, 6
        %v1627 = vsel %vm1093, %v1622, %v1626
        %v1628 = vrot.slane %v701, 6
        %v1629 = vsel %vm1093, %v1624, %v1628
        %v1630 = vrot.slane %v702, 6
        %v1631 = vsel %vm1093, %v1626, %v1630
        %v1632 = vrot.slane %v703, 6
        %v1633 = vsel %vm1093, %v1628, %v1632
        %v1634 = vrot.slane %v704, 6
        %v1635 = vsel %vm1093, %v1630, %v1634
        %v1636 = vrot.slane %v705, 6
        %v1637 = vsel %vm1093, %v1632, %v1636
        %v1638 = vrot.slane %v706, 6
        %v1639 = vsel %vm1093, %v1634, %v1638
        %v1640 = vrot.slane %v707, 6
        %v1641 = vsel %vm1093, %v1636, %v1640
        %v1642 = vrot.slane %v708, 6
        %v1643 = vsel %vm1093, %v1638, %v1642
        %v1644 = vrot.slane %v709, 6
        %v1645 = vsel %vm1093, %v1640, %v1644
        %v1646 = vrot.slane %v710, 6
        %v1647 = vsel %vm1093, %v1642, %v1646
        %v1682 = vsub.f32 %v679, %v1586
        %v1683 = vsub.f32 %v680, %v1587
        %v1684 = vsub.f32 %v681, %v1589
        %v1685 = vsub.f32 %v682, %v1591
        %v1686 = vsub.f32 %v683, %v1593
        %v1687 = vsub.f32 %v684, %v1595
        %v1688 = vsub.f32 %v685, %v1597
        %v1689 = vsub.f32 %v686, %v1599
        %v1690 = vsub.f32 %v687, %v1601
        %v1691 = vsub.f32 %v688, %v1603
        %v1692 = vsub.f32 %v689, %v1605
        %v1693 = vsub.f32 %v690, %v1607
        %v1694 = vsub.f32 %v691, %v1609
        %v1695 = vsub.f32 %v692, %v1611
        %v1696 = vsub.f32 %v693, %v1613
        %v1697 = vsub.f32 %v694, %v1615
        %v1698 = vsub.f32 %v695, %v1617
        %v1699 = vsub.f32 %v696, %v1619
        %v1700 = vsub.f32 %v697, %v1621
        %v1701 = vsub.f32 %v698, %v1623
        %v1702 = vsub.f32 %v699, %v1625
        %v1703 = vsub.f32 %v700, %v1627
        %v1704 = vsub.f32 %v701, %v1629
        %v1705 = vsub.f32 %v702, %v1631
        %v1706 = vsub.f32 %v703, %v1633
        %v1707 = vsub.f32 %v704, %v1635
        %v1708 = vsub.f32 %v705, %v1637
        %v1709 = vsub.f32 %v706, %v1639
        %v1710 = vsub.f32 %v707, %v1641
        %v1711 = vsub.f32 %v708, %v1643
        %v1712 = vsub.f32 %v709, %v1645
        %v1713 = vsub.f32 %v710, %v1647
        %v1714 = vsub.f32 %v711, %v1644
        %v1715 = vsub.f32 %v712, %v1646
        %1732 = vrot.lane.b32.xlu0 %v1061, 2
        %v1733 = vpop.permute.xlu0 %1732
        %1734 = vrot.lane.b32.xlu0 %v1063, 2
        %v1735 = vpop.permute.xlu0 %1734
        %1736 = vrot.lane.b32.xlu0 %v1065, 2
        %v1737 = vpop.permute.xlu0 %1736
        %1738 = vrot.lane.b32.xlu0 %v1067, 2
        %v1739 = vpop.permute.xlu0 %1738
        %1740 = vrot.lane.b32.xlu0 %v1069, 2
        %v1741 = vpop.permute.xlu0 %1740
        %1742 = vrot.lane.b32.xlu0 %v1071, 2
        %v1743 = vpop.permute.xlu0 %1742
        %1744 = vrot.lane.b32.xlu0 %v1073, 2
        %v1745 = vpop.permute.xlu0 %1744
        %1746 = vrot.lane.b32.xlu0 %v1075, 2
        %v1747 = vpop.permute.xlu0 %1746
        %1748 = vrot.lane.b32.xlu0 %v1077, 2
        %v1749 = vpop.permute.xlu0 %1748
        %1750 = vrot.lane.b32.xlu0 %v1079, 2
        %v1751 = vpop.permute.xlu0 %1750
        %1752 = vrot.lane.b32.xlu0 %v1081, 2
        %v1753 = vpop.permute.xlu0 %1752
        %1754 = vrot.lane.b32.xlu0 %v1083, 2
        %v1755 = vpop.permute.xlu0 %1754
        %1756 = vrot.lane.b32.xlu0 %v1085, 2
        %v1757 = vpop.permute.xlu0 %1756
        %1758 = vrot.lane.b32.xlu0 %v1087, 2
        %v1759 = vpop.permute.xlu0 %1758
        %1760 = vrot.lane.b32.xlu0 %v1089, 2
        %v1761 = vpop.permute.xlu0 %1760
        %1762 = vrot.lane.b32.xlu0 %v1091, 2
        %v1763 = vpop.permute.xlu0 %1762
        %v1780 = vsub.f32 %v1061, %v1733
        %v1781 = vsub.f32 %v1062, %v1733
        %v1782 = vsub.f32 %v1063, %v1735
        %v1783 = vsub.f32 %v1064, %v1735
        %v1784 = vsub.f32 %v1065, %v1737
        %v1785 = vsub.f32 %v1066, %v1737
        %v1786 = vsub.f32 %v1067, %v1739
        %v1787 = vsub.f32 %v1068, %v1739
        %v1788 = vsub.f32 %v1069, %v1741
        %v1789 = vsub.f32 %v1070, %v1741
        %v1790 = vsub.f32 %v1071, %v1743
        %v1791 = vsub.f32 %v1072, %v1743
        %v1792 = vsub.f32 %v1073, %v1745
        %v1793 = vsub.f32 %v1074, %v1745
        %v1794 = vsub.f32 %v1075, %v1747
        %v1795 = vsub.f32 %v1076, %v1747
        %v1796 = vsub.f32 %v1077, %v1749
        %v1797 = vsub.f32 %v1078, %v1749
        %v1798 = vsub.f32 %v1079, %v1751
        %v1799 = vsub.f32 %v1080, %v1751
        %v1800 = vsub.f32 %v1081, %v1753
        %v1801 = vsub.f32 %v1082, %v1753
        %v1802 = vsub.f32 %v1083, %v1755
        %v1803 = vsub.f32 %v1084, %v1755
        %v1804 = vsub.f32 %v1085, %v1757
        %v1805 = vsub.f32 %v1086, %v1757
        %v1806 = vsub.f32 %v1087, %v1759
        %v1807 = vsub.f32 %v1088, %v1759
        %v1808 = vsub.f32 %v1089, %v1761
        %v1809 = vsub.f32 %v1090, %v1761
        %v1810 = vsub.f32 %v1091, %v1763
        %v1811 = vsub.f32 %v1092, %v1763
        %1828 = vrot.lane.b32.xlu0 %v1554, 2
        %v1829 = vpop.permute.xlu0 %1828
        %1830 = vrot.lane.b32.xlu0 %v1556, 2
        %v1831 = vpop.permute.xlu0 %1830
        %1832 = vrot.lane.b32.xlu0 %v1558, 2
        %v1833 = vpop.permute.xlu0 %1832
        %1834 = vrot.lane.b32.xlu0 %v1560, 2
        %v1835 = vpop.permute.xlu0 %1834
        %1836 = vrot.lane.b32.xlu0 %v1562, 2
        %v1837 = vpop.permute.xlu0 %1836
        %1838 = vrot.lane.b32.xlu0 %v1564, 2
        %v1839 = vpop.permute.xlu0 %1838
        %1840 = vrot.lane.b32.xlu0 %v1566, 2
        %v1841 = vpop.permute.xlu0 %1840
        %1842 = vrot.lane.b32.xlu0 %v1568, 2
        %v1843 = vpop.permute.xlu0 %1842
        %1844 = vrot.lane.b32.xlu0 %v1570, 2
        %v1845 = vpop.permute.xlu0 %1844
        %1846 = vrot.lane.b32.xlu0 %v1572, 2
        %v1847 = vpop.permute.xlu0 %1846
        %1848 = vrot.lane.b32.xlu0 %v1574, 2
        %v1849 = vpop.permute.xlu0 %1848
        %1850 = vrot.lane.b32.xlu0 %v1576, 2
        %v1851 = vpop.permute.xlu0 %1850
        %1852 = vrot.lane.b32.xlu0 %v1578, 2
        %v1853 = vpop.permute.xlu0 %1852
        %1854 = vrot.lane.b32.xlu0 %v1580, 2
        %v1855 = vpop.permute.xlu0 %1854
        %1856 = vrot.lane.b32.xlu0 %v1582, 2
        %v1857 = vpop.permute.xlu0 %1856
        %1858 = vrot.lane.b32.xlu0 %v1584, 2
        %v1859 = vpop.permute.xlu0 %1858
        %v1876 = vsub.f32 %v1554, %v1829
        %v1877 = vsub.f32 %v1555, %v1829
        %v1878 = vsub.f32 %v1556, %v1831
        %v1879 = vsub.f32 %v1557, %v1831
        %v1880 = vsub.f32 %v1558, %v1833
        %v1881 = vsub.f32 %v1559, %v1833
        %v1882 = vsub.f32 %v1560, %v1835
        %v1883 = vsub.f32 %v1561, %v1835
        %v1884 = vsub.f32 %v1562, %v1837
        %v1885 = vsub.f32 %v1563, %v1837
        %v1886 = vsub.f32 %v1564, %v1839
        %v1887 = vsub.f32 %v1565, %v1839
        %v1888 = vsub.f32 %v1566, %v1841
        %v1889 = vsub.f32 %v1567, %v1841
        %v1890 = vsub.f32 %v1568, %v1843
        %v1891 = vsub.f32 %v1569, %v1843
        %v1892 = vsub.f32 %v1570, %v1845
        %v1893 = vsub.f32 %v1571, %v1845
        %v1894 = vsub.f32 %v1572, %v1847
        %v1895 = vsub.f32 %v1573, %v1847
        %v1896 = vsub.f32 %v1574, %v1849
        %v1897 = vsub.f32 %v1575, %v1849
        %v1898 = vsub.f32 %v1576, %v1851
        %v1899 = vsub.f32 %v1577, %v1851
        %v1900 = vsub.f32 %v1578, %v1853
        %v1901 = vsub.f32 %v1579, %v1853
        %v1902 = vsub.f32 %v1580, %v1855
        %v1903 = vsub.f32 %v1581, %v1855
        %v1904 = vsub.f32 %v1582, %v1857
        %v1905 = vsub.f32 %v1583, %v1857
        %v1906 = vsub.f32 %v1584, %v1859
        %v1907 = vsub.f32 %v1585, %v1859
        %v1908 = vmul.f32 %v1190, 2.0
        %v1909 = vmul.f32 %v1191, 2.0
        %v1910 = vmul.f32 %v1192, 2.0
        %v1911 = vmul.f32 %v1193, 2.0
        %v1912 = vmul.f32 %v1194, 2.0
        %v1913 = vmul.f32 %v1195, 2.0
        %v1914 = vmul.f32 %v1196, 2.0
        %v1915 = vmul.f32 %v1197, 2.0
        %v1916 = vmul.f32 %v1198, 2.0
        %v1917 = vmul.f32 %v1199, 2.0
        %v1918 = vmul.f32 %v1200, 2.0
        %v1919 = vmul.f32 %v1201, 2.0
        %v1920 = vmul.f32 %v1202, 2.0
        %v1921 = vmul.f32 %v1203, 2.0
        %v1922 = vmul.f32 %v1204, 2.0
        %v1923 = vmul.f32 %v1205, 2.0
        %v1924 = vmul.f32 %v1206, 2.0
        %v1925 = vmul.f32 %v1207, 2.0
        %v1926 = vmul.f32 %v1208, 2.0
        %v1927 = vmul.f32 %v1209, 2.0
        %v1928 = vmul.f32 %v1210, 2.0
        %v1929 = vmul.f32 %v1211, 2.0
        %v1930 = vmul.f32 %v1212, 2.0
        %v1931 = vmul.f32 %v1213, 2.0
        %v1932 = vmul.f32 %v1214, 2.0
        %v1933 = vmul.f32 %v1215, 2.0
        %v1934 = vmul.f32 %v1216, 2.0
        %v1935 = vmul.f32 %v1217, 2.0
        %v1936 = vmul.f32 %v1218, 2.0
        %v1937 = vmul.f32 %v1219, 2.0
        %v1938 = vmul.f32 %v1220, 2.0
        %v1939 = vmul.f32 %v1221, 2.0
        %v1940 = vmul.f32 %v1222, 2.0
        %v1941 = vmul.f32 %v1223, 2.0
        %1976 = vrot.lane.b32.xlu0 %v1908, 127
        %v1977 = vpop.permute.xlu0 %1976
        %1978 = vrot.lane.b32.xlu0 %v1909, 127
        %v1979 = vpop.permute.xlu0 %1978
        %1980 = vrot.lane.b32.xlu0 %v1910, 127
        %v1981 = vpop.permute.xlu0 %1980
        %1982 = vrot.lane.b32.xlu0 %v1911, 127
        %v1983 = vpop.permute.xlu0 %1982
        %1984 = vrot.lane.b32.xlu0 %v1912, 127
        %v1985 = vpop.permute.xlu0 %1984
        %1986 = vrot.lane.b32.xlu0 %v1913, 127
        %v1987 = vpop.permute.xlu0 %1986
        %1988 = vrot.lane.b32.xlu0 %v1914, 127
        %v1989 = vpop.permute.xlu0 %1988
        %1990 = vrot.lane.b32.xlu0 %v1915, 127
        %v1991 = vpop.permute.xlu0 %1990
        %1992 = vrot.lane.b32.xlu0 %v1916, 127
        %v1993 = vpop.permute.xlu0 %1992
        %1994 = vrot.lane.b32.xlu0 %v1917, 127
        %v1995 = vpop.permute.xlu0 %1994
        %1996 = vrot.lane.b32.xlu0 %v1918, 127
        %v1997 = vpop.permute.xlu0 %1996
        %1998 = vrot.lane.b32.xlu0 %v1919, 127
        %v1999 = vpop.permute.xlu0 %1998
        %2000 = vrot.lane.b32.xlu0 %v1920, 127
        %v2001 = vpop.permute.xlu0 %2000
        %2002 = vrot.lane.b32.xlu0 %v1921, 127
        %v2003 = vpop.permute.xlu0 %2002
        %2004 = vrot.lane.b32.xlu0 %v1922, 127
        %v2005 = vpop.permute.xlu0 %2004
        %2006 = vrot.lane.b32.xlu0 %v1923, 127
        %v2007 = vpop.permute.xlu0 %2006
        %2008 = vrot.lane.b32.xlu0 %v1924, 127
        %v2009 = vpop.permute.xlu0 %2008
        %2010 = vrot.lane.b32.xlu0 %v1925, 127
        %v2011 = vpop.permute.xlu0 %2010
        %2012 = vrot.lane.b32.xlu0 %v1926, 127
        %v2013 = vpop.permute.xlu0 %2012
        %2014 = vrot.lane.b32.xlu0 %v1927, 127
        %v2015 = vpop.permute.xlu0 %2014
        %2016 = vrot.lane.b32.xlu0 %v1928, 127
        %v2017 = vpop.permute.xlu0 %2016
        %2018 = vrot.lane.b32.xlu0 %v1929, 127
        %v2019 = vpop.permute.xlu0 %2018
        %2020 = vrot.lane.b32.xlu0 %v1930, 127
        %v2021 = vpop.permute.xlu0 %2020
        %2022 = vrot.lane.b32.xlu0 %v1931, 127
        %v2023 = vpop.permute.xlu0 %2022
        %2024 = vrot.lane.b32.xlu0 %v1932, 127
        %v2025 = vpop.permute.xlu0 %2024
        %2026 = vrot.lane.b32.xlu0 %v1933, 127
        %v2027 = vpop.permute.xlu0 %2026
        %2028 = vrot.lane.b32.xlu0 %v1934, 127
        %v2029 = vpop.permute.xlu0 %2028
        %2030 = vrot.lane.b32.xlu0 %v1935, 127
        %v2031 = vpop.permute.xlu0 %2030
        %2032 = vrot.lane.b32.xlu0 %v1936, 127
        %v2033 = vpop.permute.xlu0 %2032
        %2034 = vrot.lane.b32.xlu0 %v1937, 127
        %v2035 = vpop.permute.xlu0 %2034
        %2036 = vrot.lane.b32.xlu0 %v1938, 127
        %v2037 = vpop.permute.xlu0 %2036
        %2038 = vrot.lane.b32.xlu0 %v1939, 127
        %v2039 = vpop.permute.xlu0 %2038
        %2040 = vrot.lane.b32.xlu0 %v1940, 127
        %v2041 = vpop.permute.xlu0 %2040
        %2042 = vrot.lane.b32.xlu0 %v1941, 127
        %v2043 = vpop.permute.xlu0 %2042
        %vm2044 = vcmask 1039360
        %v2045 = vsel %vm2044, %v1977, %v1979
        %v2046 = vsel %vm2044, %v1981, %v1983
        %v2047 = vsel %vm2044, %v1985, %v1987
        %v2048 = vsel %vm2044, %v1989, %v1991
        %v2049 = vsel %vm2044, %v1993, %v1995
        %v2050 = vsel %vm2044, %v1997, %v1999
        %v2051 = vsel %vm2044, %v2001, %v2003
        %v2052 = vsel %vm2044, %v2005, %v2007
        %v2053 = vsel %vm2044, %v2009, %v2011
        %v2054 = vsel %vm2044, %v2013, %v2015
        %v2055 = vsel %vm2044, %v2017, %v2019
        %v2056 = vsel %vm2044, %v2021, %v2023
        %v2057 = vsel %vm2044, %v2025, %v2027
        %v2058 = vsel %vm2044, %v2029, %v2031
        %v2059 = vsel %vm2044, %v2033, %v2035
        %v2060 = vsel %vm2044, %v2037, %v2039
        %v2061 = vsel %vm2044, %v2041, %v2043
        %v2079 = vadd.f32 %v1190, %v2045
        %v2080 = vadd.f32 %v1192, %v2046
        %v2081 = vadd.f32 %v1194, %v2047
        %v2082 = vadd.f32 %v1196, %v2048
        %v2083 = vadd.f32 %v1198, %v2049
        %v2084 = vadd.f32 %v1200, %v2050
        %v2085 = vadd.f32 %v1202, %v2051
        %v2086 = vadd.f32 %v1204, %v2052
        %v2087 = vadd.f32 %v1206, %v2053
        %v2088 = vadd.f32 %v1208, %v2054
        %v2089 = vadd.f32 %v1210, %v2055
        %v2090 = vadd.f32 %v1212, %v2056
        %v2091 = vadd.f32 %v1214, %v2057
        %v2092 = vadd.f32 %v1216, %v2058
        %v2093 = vadd.f32 %v1218, %v2059
        %v2094 = vadd.f32 %v1220, %v2060
        %v2095 = vadd.f32 %v1222, %v2061
        %2130 = vrot.lane.b32.xlu0 %v1190, 126
        %v2131 = vpop.permute.xlu0 %2130
        %2132 = vrot.lane.b32.xlu0 %v1191, 126
        %v2133 = vpop.permute.xlu0 %2132
        %2134 = vrot.lane.b32.xlu0 %v1192, 126
        %v2135 = vpop.permute.xlu0 %2134
        %2136 = vrot.lane.b32.xlu0 %v1193, 126
        %v2137 = vpop.permute.xlu0 %2136
        %2138 = vrot.lane.b32.xlu0 %v1194, 126
        %v2139 = vpop.permute.xlu0 %2138
        %2140 = vrot.lane.b32.xlu0 %v1195, 126
        %v2141 = vpop.permute.xlu0 %2140
        %2142 = vrot.lane.b32.xlu0 %v1196, 126
        %v2143 = vpop.permute.xlu0 %2142
        %2144 = vrot.lane.b32.xlu0 %v1197, 126
        %v2145 = vpop.permute.xlu0 %2144
        %2146 = vrot.lane.b32.xlu0 %v1198, 126
        %v2147 = vpop.permute.xlu0 %2146
        %2148 = vrot.lane.b32.xlu0 %v1199, 126
        %v2149 = vpop.permute.xlu0 %2148
        %2150 = vrot.lane.b32.xlu0 %v1200, 126
        %v2151 = vpop.permute.xlu0 %2150
        %2152 = vrot.lane.b32.xlu0 %v1201, 126
        %v2153 = vpop.permute.xlu0 %2152
        %2154 = vrot.lane.b32.xlu0 %v1202, 126
        %v2155 = vpop.permute.xlu0 %2154
        %2156 = vrot.lane.b32.xlu0 %v1203, 126
        %v2157 = vpop.permute.xlu0 %2156
        %2158 = vrot.lane.b32.xlu0 %v1204, 126
        %v2159 = vpop.permute.xlu0 %2158
        %2160 = vrot.lane.b32.xlu0 %v1205, 126
        %v2161 = vpop.permute.xlu0 %2160
        %2162 = vrot.lane.b32.xlu0 %v1206, 126
        %v2163 = vpop.permute.xlu0 %2162
        %2164 = vrot.lane.b32.xlu0 %v1207, 126
        %v2165 = vpop.permute.xlu0 %2164
        %2166 = vrot.lane.b32.xlu0 %v1208, 126
        %v2167 = vpop.permute.xlu0 %2166
        %2168 = vrot.lane.b32.xlu0 %v1209, 126
        %v2169 = vpop.permute.xlu0 %2168
        %2170 = vrot.lane.b32.xlu0 %v1210, 126
        %v2171 = vpop.permute.xlu0 %2170
        %2172 = vrot.lane.b32.xlu0 %v1211, 126
        %v2173 = vpop.permute.xlu0 %2172
        %2174 = vrot.lane.b32.xlu0 %v1212, 126
        %v2175 = vpop.permute.xlu0 %2174
        %2176 = vrot.lane.b32.xlu0 %v1213, 126
        %v2177 = vpop.permute.xlu0 %2176
        %2178 = vrot.lane.b32.xlu0 %v1214, 126
        %v2179 = vpop.permute.xlu0 %2178
        %2180 = vrot.lane.b32.xlu0 %v1215, 126
        %v2181 = vpop.permute.xlu0 %2180
        %2182 = vrot.lane.b32.xlu0 %v1216, 126
        %v2183 = vpop.permute.xlu0 %2182
        %2184 = vrot.lane.b32.xlu0 %v1217, 126
        %v2185 = vpop.permute.xlu0 %2184
        %2186 = vrot.lane.b32.xlu0 %v1218, 126
        %v2187 = vpop.permute.xlu0 %2186
        %2188 = vrot.lane.b32.xlu0 %v1219, 126
        %v2189 = vpop.permute.xlu0 %2188
        %2190 = vrot.lane.b32.xlu0 %v1220, 126
        %v2191 = vpop.permute.xlu0 %2190
        %2192 = vrot.lane.b32.xlu0 %v1221, 126
        %v2193 = vpop.permute.xlu0 %2192
        %2194 = vrot.lane.b32.xlu0 %v1222, 126
        %v2195 = vpop.permute.xlu0 %2194
        %2196 = vrot.lane.b32.xlu0 %v1223, 126
        %v2197 = vpop.permute.xlu0 %2196
        %vm2198 = vcmask 1031168
        %v2199 = vsel %vm2198, %v2131, %v2133
        %v2200 = vsel %vm2198, %v2135, %v2137
        %v2201 = vsel %vm2198, %v2139, %v2141
        %v2202 = vsel %vm2198, %v2143, %v2145
        %v2203 = vsel %vm2198, %v2147, %v2149
        %v2204 = vsel %vm2198, %v2151, %v2153
        %v2205 = vsel %vm2198, %v2155, %v2157
        %v2206 = vsel %vm2198, %v2159, %v2161
        %v2207 = vsel %vm2198, %v2163, %v2165
        %v2208 = vsel %vm2198, %v2167, %v2169
        %v2209 = vsel %vm2198, %v2171, %v2173
        %v2210 = vsel %vm2198, %v2175, %v2177
        %v2211 = vsel %vm2198, %v2179, %v2181
        %v2212 = vsel %vm2198, %v2183, %v2185
        %v2213 = vsel %vm2198, %v2187, %v2189
        %v2214 = vsel %vm2198, %v2191, %v2193
        %v2215 = vsel %vm2198, %v2195, %v2197
        %v2233 = vadd.f32 %v2079, %v2199
        %v2234 = vadd.f32 %v2080, %v2200
        %v2235 = vadd.f32 %v2081, %v2201
        %v2236 = vadd.f32 %v2082, %v2202
        %v2237 = vadd.f32 %v2083, %v2203
        %v2238 = vadd.f32 %v2084, %v2204
        %v2239 = vadd.f32 %v2085, %v2205
        %v2240 = vadd.f32 %v2086, %v2206
        %v2241 = vadd.f32 %v2087, %v2207
        %v2242 = vadd.f32 %v2088, %v2208
        %v2243 = vadd.f32 %v2089, %v2209
        %v2244 = vadd.f32 %v2090, %v2210
        %v2245 = vadd.f32 %v2091, %v2211
        %v2246 = vadd.f32 %v2092, %v2212
        %v2247 = vadd.f32 %v2093, %v2213
        %v2248 = vadd.f32 %v2094, %v2214
        %v2249 = vadd.f32 %v2095, %v2215
        %v2250 = vmul.f32 %v1682, 2.0
        %v2251 = vmul.f32 %v1683, 2.0
        %v2252 = vmul.f32 %v1684, 2.0
        %v2253 = vmul.f32 %v1685, 2.0
        %v2254 = vmul.f32 %v1686, 2.0
        %v2255 = vmul.f32 %v1687, 2.0
        %v2256 = vmul.f32 %v1688, 2.0
        %v2257 = vmul.f32 %v1689, 2.0
        %v2258 = vmul.f32 %v1690, 2.0
        %v2259 = vmul.f32 %v1691, 2.0
        %v2260 = vmul.f32 %v1692, 2.0
        %v2261 = vmul.f32 %v1693, 2.0
        %v2262 = vmul.f32 %v1694, 2.0
        %v2263 = vmul.f32 %v1695, 2.0
        %v2264 = vmul.f32 %v1696, 2.0
        %v2265 = vmul.f32 %v1697, 2.0
        %v2266 = vmul.f32 %v1698, 2.0
        %v2267 = vmul.f32 %v1699, 2.0
        %v2268 = vmul.f32 %v1700, 2.0
        %v2269 = vmul.f32 %v1701, 2.0
        %v2270 = vmul.f32 %v1702, 2.0
        %v2271 = vmul.f32 %v1703, 2.0
        %v2272 = vmul.f32 %v1704, 2.0
        %v2273 = vmul.f32 %v1705, 2.0
        %v2274 = vmul.f32 %v1706, 2.0
        %v2275 = vmul.f32 %v1707, 2.0
        %v2276 = vmul.f32 %v1708, 2.0
        %v2277 = vmul.f32 %v1709, 2.0
        %v2278 = vmul.f32 %v1710, 2.0
        %v2279 = vmul.f32 %v1711, 2.0
        %v2280 = vmul.f32 %v1712, 2.0
        %v2281 = vmul.f32 %v1713, 2.0
        %v2282 = vmul.f32 %v1714, 2.0
        %v2283 = vmul.f32 %v1715, 2.0
        %2318 = vrot.lane.b32.xlu0 %v2250, 127
        %v2319 = vpop.permute.xlu0 %2318
        %2320 = vrot.lane.b32.xlu0 %v2251, 127
        %v2321 = vpop.permute.xlu0 %2320
        %2322 = vrot.lane.b32.xlu0 %v2252, 127
        %v2323 = vpop.permute.xlu0 %2322
        %2324 = vrot.lane.b32.xlu0 %v2253, 127
        %v2325 = vpop.permute.xlu0 %2324
        %2326 = vrot.lane.b32.xlu0 %v2254, 127
        %v2327 = vpop.permute.xlu0 %2326
        %2328 = vrot.lane.b32.xlu0 %v2255, 127
        %v2329 = vpop.permute.xlu0 %2328
        %2330 = vrot.lane.b32.xlu0 %v2256, 127
        %v2331 = vpop.permute.xlu0 %2330
        %2332 = vrot.lane.b32.xlu0 %v2257, 127
        %v2333 = vpop.permute.xlu0 %2332
        %2334 = vrot.lane.b32.xlu0 %v2258, 127
        %v2335 = vpop.permute.xlu0 %2334
        %2336 = vrot.lane.b32.xlu0 %v2259, 127
        %v2337 = vpop.permute.xlu0 %2336
        %2338 = vrot.lane.b32.xlu0 %v2260, 127
        %v2339 = vpop.permute.xlu0 %2338
        %2340 = vrot.lane.b32.xlu0 %v2261, 127
        %v2341 = vpop.permute.xlu0 %2340
        %2342 = vrot.lane.b32.xlu0 %v2262, 127
        %v2343 = vpop.permute.xlu0 %2342
        %2344 = vrot.lane.b32.xlu0 %v2263, 127
        %v2345 = vpop.permute.xlu0 %2344
        %2346 = vrot.lane.b32.xlu0 %v2264, 127
        %v2347 = vpop.permute.xlu0 %2346
        %2348 = vrot.lane.b32.xlu0 %v2265, 127
        %v2349 = vpop.permute.xlu0 %2348
        %2350 = vrot.lane.b32.xlu0 %v2266, 127
        %v2351 = vpop.permute.xlu0 %2350
        %2352 = vrot.lane.b32.xlu0 %v2267, 127
        %v2353 = vpop.permute.xlu0 %2352
        %2354 = vrot.lane.b32.xlu0 %v2268, 127
        %v2355 = vpop.permute.xlu0 %2354
        %2356 = vrot.lane.b32.xlu0 %v2269, 127
        %v2357 = vpop.permute.xlu0 %2356
        %2358 = vrot.lane.b32.xlu0 %v2270, 127
        %v2359 = vpop.permute.xlu0 %2358
        %2360 = vrot.lane.b32.xlu0 %v2271, 127
        %v2361 = vpop.permute.xlu0 %2360
        %2362 = vrot.lane.b32.xlu0 %v2272, 127
        %v2363 = vpop.permute.xlu0 %2362
        %2364 = vrot.lane.b32.xlu0 %v2273, 127
        %v2365 = vpop.permute.xlu0 %2364
        %2366 = vrot.lane.b32.xlu0 %v2274, 127
        %v2367 = vpop.permute.xlu0 %2366
        %2368 = vrot.lane.b32.xlu0 %v2275, 127
        %v2369 = vpop.permute.xlu0 %2368
        %2370 = vrot.lane.b32.xlu0 %v2276, 127
        %v2371 = vpop.permute.xlu0 %2370
        %2372 = vrot.lane.b32.xlu0 %v2277, 127
        %v2373 = vpop.permute.xlu0 %2372
        %2374 = vrot.lane.b32.xlu0 %v2278, 127
        %v2375 = vpop.permute.xlu0 %2374
        %2376 = vrot.lane.b32.xlu0 %v2279, 127
        %v2377 = vpop.permute.xlu0 %2376
        %2378 = vrot.lane.b32.xlu0 %v2280, 127
        %v2379 = vpop.permute.xlu0 %2378
        %2380 = vrot.lane.b32.xlu0 %v2281, 127
        %v2381 = vpop.permute.xlu0 %2380
        %2382 = vrot.lane.b32.xlu0 %v2282, 127
        %v2383 = vpop.permute.xlu0 %2382
        %2384 = vrot.lane.b32.xlu0 %v2283, 127
        %v2385 = vpop.permute.xlu0 %2384
        %v2386 = vsel %vm2044, %v2319, %v2321
        %v2387 = vsel %vm2044, %v2323, %v2325
        %v2388 = vsel %vm2044, %v2327, %v2329
        %v2389 = vsel %vm2044, %v2331, %v2333
        %v2390 = vsel %vm2044, %v2335, %v2337
        %v2391 = vsel %vm2044, %v2339, %v2341
        %v2392 = vsel %vm2044, %v2343, %v2345
        %v2393 = vsel %vm2044, %v2347, %v2349
        %v2394 = vsel %vm2044, %v2351, %v2353
        %v2395 = vsel %vm2044, %v2355, %v2357
        %v2396 = vsel %vm2044, %v2359, %v2361
        %v2397 = vsel %vm2044, %v2363, %v2365
        %v2398 = vsel %vm2044, %v2367, %v2369
        %v2399 = vsel %vm2044, %v2371, %v2373
        %v2400 = vsel %vm2044, %v2375, %v2377
        %v2401 = vsel %vm2044, %v2379, %v2381
        %v2402 = vsel %vm2044, %v2383, %v2385
        %v2420 = vadd.f32 %v1682, %v2386
        %v2421 = vadd.f32 %v1684, %v2387
        %v2422 = vadd.f32 %v1686, %v2388
        %v2423 = vadd.f32 %v1688, %v2389
        %v2424 = vadd.f32 %v1690, %v2390
        %v2425 = vadd.f32 %v1692, %v2391
        %v2426 = vadd.f32 %v1694, %v2392
        %v2427 = vadd.f32 %v1696, %v2393
        %v2428 = vadd.f32 %v1698, %v2394
        %v2429 = vadd.f32 %v1700, %v2395
        %v2430 = vadd.f32 %v1702, %v2396
        %v2431 = vadd.f32 %v1704, %v2397
        %v2432 = vadd.f32 %v1706, %v2398
        %v2433 = vadd.f32 %v1708, %v2399
        %v2434 = vadd.f32 %v1710, %v2400
        %v2435 = vadd.f32 %v1712, %v2401
        %v2436 = vadd.f32 %v1714, %v2402
        %2471 = vrot.lane.b32.xlu0 %v1682, 126
        %v2472 = vpop.permute.xlu0 %2471
        %2473 = vrot.lane.b32.xlu0 %v1683, 126
        %v2474 = vpop.permute.xlu0 %2473
        %2475 = vrot.lane.b32.xlu0 %v1684, 126
        %v2476 = vpop.permute.xlu0 %2475
        %2477 = vrot.lane.b32.xlu0 %v1685, 126
        %v2478 = vpop.permute.xlu0 %2477
        %2479 = vrot.lane.b32.xlu0 %v1686, 126
        %v2480 = vpop.permute.xlu0 %2479
        %2481 = vrot.lane.b32.xlu0 %v1687, 126
        %v2482 = vpop.permute.xlu0 %2481
        %2483 = vrot.lane.b32.xlu0 %v1688, 126
        %v2484 = vpop.permute.xlu0 %2483
        %2485 = vrot.lane.b32.xlu0 %v1689, 126
        %v2486 = vpop.permute.xlu0 %2485
        %2487 = vrot.lane.b32.xlu0 %v1690, 126
        %v2488 = vpop.permute.xlu0 %2487
        %2489 = vrot.lane.b32.xlu0 %v1691, 126
        %v2490 = vpop.permute.xlu0 %2489
        %2491 = vrot.lane.b32.xlu0 %v1692, 126
        %v2492 = vpop.permute.xlu0 %2491
        %2493 = vrot.lane.b32.xlu0 %v1693, 126
        %v2494 = vpop.permute.xlu0 %2493
        %2495 = vrot.lane.b32.xlu0 %v1694, 126
        %v2496 = vpop.permute.xlu0 %2495
        %2497 = vrot.lane.b32.xlu0 %v1695, 126
        %v2498 = vpop.permute.xlu0 %2497
        %2499 = vrot.lane.b32.xlu0 %v1696, 126
        %v2500 = vpop.permute.xlu0 %2499
        %2501 = vrot.lane.b32.xlu0 %v1697, 126
        %v2502 = vpop.permute.xlu0 %2501
        %2503 = vrot.lane.b32.xlu0 %v1698, 126
        %v2504 = vpop.permute.xlu0 %2503
        %2505 = vrot.lane.b32.xlu0 %v1699, 126
        %v2506 = vpop.permute.xlu0 %2505
        %2507 = vrot.lane.b32.xlu0 %v1700, 126
        %v2508 = vpop.permute.xlu0 %2507
        %2509 = vrot.lane.b32.xlu0 %v1701, 126
        %v2510 = vpop.permute.xlu0 %2509
        %2511 = vrot.lane.b32.xlu0 %v1702, 126
        %v2512 = vpop.permute.xlu0 %2511
        %2513 = vrot.lane.b32.xlu0 %v1703, 126
        %v2514 = vpop.permute.xlu0 %2513
        %2515 = vrot.lane.b32.xlu0 %v1704, 126
        %v2516 = vpop.permute.xlu0 %2515
        %2517 = vrot.lane.b32.xlu0 %v1705, 126
        %v2518 = vpop.permute.xlu0 %2517
        %2519 = vrot.lane.b32.xlu0 %v1706, 126
        %v2520 = vpop.permute.xlu0 %2519
        %2521 = vrot.lane.b32.xlu0 %v1707, 126
        %v2522 = vpop.permute.xlu0 %2521
        %2523 = vrot.lane.b32.xlu0 %v1708, 126
        %v2524 = vpop.permute.xlu0 %2523
        %2525 = vrot.lane.b32.xlu0 %v1709, 126
        %v2526 = vpop.permute.xlu0 %2525
        %2527 = vrot.lane.b32.xlu0 %v1710, 126
        %v2528 = vpop.permute.xlu0 %2527
        %2529 = vrot.lane.b32.xlu0 %v1711, 126
        %v2530 = vpop.permute.xlu0 %2529
        %2531 = vrot.lane.b32.xlu0 %v1712, 126
        %v2532 = vpop.permute.xlu0 %2531
        %2533 = vrot.lane.b32.xlu0 %v1713, 126
        %v2534 = vpop.permute.xlu0 %2533
        %2535 = vrot.lane.b32.xlu0 %v1714, 126
        %v2536 = vpop.permute.xlu0 %2535
        %2537 = vrot.lane.b32.xlu0 %v1715, 126
        %v2538 = vpop.permute.xlu0 %2537
        %v2539 = vsel %vm2198, %v2472, %v2474
        %v2540 = vsel %vm2198, %v2476, %v2478
        %v2541 = vsel %vm2198, %v2480, %v2482
        %v2542 = vsel %vm2198, %v2484, %v2486
        %v2543 = vsel %vm2198, %v2488, %v2490
        %v2544 = vsel %vm2198, %v2492, %v2494
        %v2545 = vsel %vm2198, %v2496, %v2498
        %v2546 = vsel %vm2198, %v2500, %v2502
        %v2547 = vsel %vm2198, %v2504, %v2506
        %v2548 = vsel %vm2198, %v2508, %v2510
        %v2549 = vsel %vm2198, %v2512, %v2514
        %v2550 = vsel %vm2198, %v2516, %v2518
        %v2551 = vsel %vm2198, %v2520, %v2522
        %v2552 = vsel %vm2198, %v2524, %v2526
        %v2553 = vsel %vm2198, %v2528, %v2530
        %v2554 = vsel %vm2198, %v2532, %v2534
        %v2555 = vsel %vm2198, %v2536, %v2538
        %v2573 = vadd.f32 %v2420, %v2539
        %v2574 = vadd.f32 %v2421, %v2540
        %v2575 = vadd.f32 %v2422, %v2541
        %v2576 = vadd.f32 %v2423, %v2542
        %v2577 = vadd.f32 %v2424, %v2543
        %v2578 = vadd.f32 %v2425, %v2544
        %v2579 = vadd.f32 %v2426, %v2545
        %v2580 = vadd.f32 %v2427, %v2546
        %v2581 = vadd.f32 %v2428, %v2547
        %v2582 = vadd.f32 %v2429, %v2548
        %v2583 = vadd.f32 %v2430, %v2549
        %v2584 = vadd.f32 %v2431, %v2550
        %v2585 = vadd.f32 %v2432, %v2551
        %v2586 = vadd.f32 %v2433, %v2552
        %v2587 = vadd.f32 %v2434, %v2553
        %v2588 = vadd.f32 %v2435, %v2554
        %v2589 = vadd.f32 %v2436, %v2555
        %v2590 = vsub.f32 %v1780, %v1876
        %v2591 = vsub.f32 %v1781, %v1877
        %v2592 = vsub.f32 %v1782, %v1878
        %v2593 = vsub.f32 %v1783, %v1879
        %v2594 = vsub.f32 %v1784, %v1880
        %v2595 = vsub.f32 %v1785, %v1881
        %v2596 = vsub.f32 %v1786, %v1882
        %v2597 = vsub.f32 %v1787, %v1883
        %v2598 = vsub.f32 %v1788, %v1884
        %v2599 = vsub.f32 %v1789, %v1885
        %v2600 = vsub.f32 %v1790, %v1886
        %v2601 = vsub.f32 %v1791, %v1887
        %v2602 = vsub.f32 %v1792, %v1888
        %v2603 = vsub.f32 %v1793, %v1889
        %v2604 = vsub.f32 %v1794, %v1890
        %v2605 = vsub.f32 %v1795, %v1891
        %v2606 = vsub.f32 %v1796, %v1892
        %v2607 = vsub.f32 %v1797, %v1893
        %v2608 = vsub.f32 %v1798, %v1894
        %v2609 = vsub.f32 %v1799, %v1895
        %v2610 = vsub.f32 %v1800, %v1896
        %v2611 = vsub.f32 %v1801, %v1897
        %v2612 = vsub.f32 %v1802, %v1898
        %v2613 = vsub.f32 %v1803, %v1899
        %v2614 = vsub.f32 %v1804, %v1900
        %v2615 = vsub.f32 %v1805, %v1901
        %v2616 = vsub.f32 %v1806, %v1902
        %v2617 = vsub.f32 %v1807, %v1903
        %v2618 = vsub.f32 %v1808, %v1904
        %v2619 = vsub.f32 %v1809, %v1905
        %v2620 = vsub.f32 %v1810, %v1906
        %v2621 = vsub.f32 %v1811, %v1907
        %v2622 = vand.u32 2147483647, %v2590
        %v2623 = vand.u32 2147483647, %v2591
        %v2624 = vand.u32 2147483647, %v2592
        %v2625 = vand.u32 2147483647, %v2593
        %v2626 = vand.u32 2147483647, %v2594
        %v2627 = vand.u32 2147483647, %v2595
        %v2628 = vand.u32 2147483647, %v2596
        %v2629 = vand.u32 2147483647, %v2597
        %v2630 = vand.u32 2147483647, %v2598
        %v2631 = vand.u32 2147483647, %v2599
        %v2632 = vand.u32 2147483647, %v2600
        %v2633 = vand.u32 2147483647, %v2601
        %v2634 = vand.u32 2147483647, %v2602
        %v2635 = vand.u32 2147483647, %v2603
        %v2636 = vand.u32 2147483647, %v2604
        %v2637 = vand.u32 2147483647, %v2605
        %v2638 = vand.u32 2147483647, %v2606
        %v2639 = vand.u32 2147483647, %v2607
        %v2640 = vand.u32 2147483647, %v2608
        %v2641 = vand.u32 2147483647, %v2609
        %v2642 = vand.u32 2147483647, %v2610
        %v2643 = vand.u32 2147483647, %v2611
        %v2644 = vand.u32 2147483647, %v2612
        %v2645 = vand.u32 2147483647, %v2613
        %v2646 = vand.u32 2147483647, %v2614
        %v2647 = vand.u32 2147483647, %v2615
        %v2648 = vand.u32 2147483647, %v2616
        %v2649 = vand.u32 2147483647, %v2617
        %v2650 = vand.u32 2147483647, %v2618
        %v2651 = vand.u32 2147483647, %v2619
        %v2652 = vand.u32 2147483647, %v2620
        %v2653 = vand.u32 2147483647, %v2621
        %v2654 = vsub.f32 %v2233, %v2573
        %v2655 = vsub.f32 %v2234, %v2574
        %v2656 = vsub.f32 %v2235, %v2575
        %v2657 = vsub.f32 %v2236, %v2576
        %v2658 = vsub.f32 %v2237, %v2577
        %v2659 = vsub.f32 %v2238, %v2578
        %v2660 = vsub.f32 %v2239, %v2579
        %v2661 = vsub.f32 %v2240, %v2580
        %v2662 = vsub.f32 %v2241, %v2581
        %v2663 = vsub.f32 %v2242, %v2582
        %v2664 = vsub.f32 %v2243, %v2583
        %v2665 = vsub.f32 %v2244, %v2584
        %v2666 = vsub.f32 %v2245, %v2585
        %v2667 = vsub.f32 %v2246, %v2586
        %v2668 = vsub.f32 %v2247, %v2587
        %v2669 = vsub.f32 %v2248, %v2588
        %v2670 = vsub.f32 %v2249, %v2589
        %v2671 = vand.u32 2147483647, %v2654
        %v2672 = vand.u32 2147483647, %v2655
        %v2673 = vand.u32 2147483647, %v2656
        %v2674 = vand.u32 2147483647, %v2657
        %v2675 = vand.u32 2147483647, %v2658
        %v2676 = vand.u32 2147483647, %v2659
        %v2677 = vand.u32 2147483647, %v2660
        %v2678 = vand.u32 2147483647, %v2661
        %v2679 = vand.u32 2147483647, %v2662
        %v2680 = vand.u32 2147483647, %v2663
        %v2681 = vand.u32 2147483647, %v2664
        %v2682 = vand.u32 2147483647, %v2665
        %v2683 = vand.u32 2147483647, %v2666
        %v2684 = vand.u32 2147483647, %v2667
        %v2685 = vand.u32 2147483647, %v2668
        %v2686 = vand.u32 2147483647, %v2669
        %v2687 = vand.u32 2147483647, %v2670
        %v2705 = vrot.slane %v2671, 2
        %v2706 = vrot.slane %v2672, 2
        %v2707 = vsel %vm962, %v2705, %v2706
        %v2708 = vrot.slane %v2673, 2
        %v2709 = vsel %vm962, %v2706, %v2708
        %v2710 = vrot.slane %v2674, 2
        %v2711 = vsel %vm962, %v2708, %v2710
        %v2712 = vrot.slane %v2675, 2
        %v2713 = vsel %vm962, %v2710, %v2712
        %v2714 = vrot.slane %v2676, 2
        %v2715 = vsel %vm962, %v2712, %v2714
        %v2716 = vrot.slane %v2677, 2
        %v2717 = vsel %vm962, %v2714, %v2716
        %v2718 = vrot.slane %v2678, 2
        %v2719 = vsel %vm962, %v2716, %v2718
        %v2720 = vrot.slane %v2679, 2
        %v2721 = vsel %vm962, %v2718, %v2720
        %v2722 = vrot.slane %v2680, 2
        %v2723 = vsel %vm962, %v2720, %v2722
        %v2724 = vrot.slane %v2681, 2
        %v2725 = vsel %vm962, %v2722, %v2724
        %v2726 = vrot.slane %v2682, 2
        %v2727 = vsel %vm962, %v2724, %v2726
        %v2728 = vrot.slane %v2683, 2
        %v2729 = vsel %vm962, %v2726, %v2728
        %v2730 = vrot.slane %v2684, 2
        %v2731 = vsel %vm962, %v2728, %v2730
        %v2732 = vrot.slane %v2685, 2
        %v2733 = vsel %vm962, %v2730, %v2732
        %v2734 = vrot.slane %v2686, 2
        %v2735 = vsel %vm962, %v2732, %v2734
        %v2736 = vrot.slane %v2687, 2
        %v2737 = vsel %vm962, %v2734, %v2736
        %2738 = vrot.lane.b32.xlu0 %v2707, 2
        %v2739 = vpop.permute.xlu0 %2738
        %2740 = vrot.lane.b32.xlu0 %v2709, 2
        %v2741 = vpop.permute.xlu0 %2740
        %2742 = vrot.lane.b32.xlu0 %v2711, 2
        %v2743 = vpop.permute.xlu0 %2742
        %2744 = vrot.lane.b32.xlu0 %v2713, 2
        %v2745 = vpop.permute.xlu0 %2744
        %2746 = vrot.lane.b32.xlu0 %v2715, 2
        %v2747 = vpop.permute.xlu0 %2746
        %2748 = vrot.lane.b32.xlu0 %v2717, 2
        %v2749 = vpop.permute.xlu0 %2748
        %2750 = vrot.lane.b32.xlu0 %v2719, 2
        %v2751 = vpop.permute.xlu0 %2750
        %2752 = vrot.lane.b32.xlu0 %v2721, 2
        %v2753 = vpop.permute.xlu0 %2752
        %2754 = vrot.lane.b32.xlu0 %v2723, 2
        %v2755 = vpop.permute.xlu0 %2754
        %2756 = vrot.lane.b32.xlu0 %v2725, 2
        %v2757 = vpop.permute.xlu0 %2756
        %2758 = vrot.lane.b32.xlu0 %v2727, 2
        %v2759 = vpop.permute.xlu0 %2758
        %2760 = vrot.lane.b32.xlu0 %v2729, 2
        %v2761 = vpop.permute.xlu0 %2760
        %2762 = vrot.lane.b32.xlu0 %v2731, 2
        %v2763 = vpop.permute.xlu0 %2762
        %2764 = vrot.lane.b32.xlu0 %v2733, 2
        %v2765 = vpop.permute.xlu0 %2764
        %2766 = vrot.lane.b32.xlu0 %v2735, 2
        %v2767 = vpop.permute.xlu0 %2766
        %2768 = vrot.lane.b32.xlu0 %v2737, 2
        %v2769 = vpop.permute.xlu0 %2768
        %v2786 = vadd.f32 %v2622, %v2739
        %v2787 = vadd.f32 %v2623, %v2739
        %v2788 = vadd.f32 %v2624, %v2741
        %v2789 = vadd.f32 %v2625, %v2741
        %v2790 = vadd.f32 %v2626, %v2743
        %v2791 = vadd.f32 %v2627, %v2743
        %v2792 = vadd.f32 %v2628, %v2745
        %v2793 = vadd.f32 %v2629, %v2745
        %v2794 = vadd.f32 %v2630, %v2747
        %v2795 = vadd.f32 %v2631, %v2747
        %v2796 = vadd.f32 %v2632, %v2749
        %v2797 = vadd.f32 %v2633, %v2749
        %v2798 = vadd.f32 %v2634, %v2751
        %v2799 = vadd.f32 %v2635, %v2751
        %v2800 = vadd.f32 %v2636, %v2753
        %v2801 = vadd.f32 %v2637, %v2753
        %v2802 = vadd.f32 %v2638, %v2755
        %v2803 = vadd.f32 %v2639, %v2755
        %v2804 = vadd.f32 %v2640, %v2757
        %v2805 = vadd.f32 %v2641, %v2757
        %v2806 = vadd.f32 %v2642, %v2759
        %v2807 = vadd.f32 %v2643, %v2759
        %v2808 = vadd.f32 %v2644, %v2761
        %v2809 = vadd.f32 %v2645, %v2761
        %v2810 = vadd.f32 %v2646, %v2763
        %v2811 = vadd.f32 %v2647, %v2763
        %v2812 = vadd.f32 %v2648, %v2765
        %v2813 = vadd.f32 %v2649, %v2765
        %v2814 = vadd.f32 %v2650, %v2767
        %v2815 = vadd.f32 %v2651, %v2767
        %v2816 = vadd.f32 %v2652, %v2769
        %v2817 = vadd.f32 %v2653, %v2769
        %v2818 = vand.u32 2147483647, %v1780
        %v2819 = vand.u32 2147483647, %v1781
        %v2820 = vand.u32 2147483647, %v1782
        %v2821 = vand.u32 2147483647, %v1783
        %v2822 = vand.u32 2147483647, %v1784
        %v2823 = vand.u32 2147483647, %v1785
        %v2824 = vand.u32 2147483647, %v1786
        %v2825 = vand.u32 2147483647, %v1787
        %v2826 = vand.u32 2147483647, %v1788
        %v2827 = vand.u32 2147483647, %v1789
        %v2828 = vand.u32 2147483647, %v1790
        %v2829 = vand.u32 2147483647, %v1791
        %v2830 = vand.u32 2147483647, %v1792
        %v2831 = vand.u32 2147483647, %v1793
        %v2832 = vand.u32 2147483647, %v1794
        %v2833 = vand.u32 2147483647, %v1795
        %v2834 = vand.u32 2147483647, %v1796
        %v2835 = vand.u32 2147483647, %v1797
        %v2836 = vand.u32 2147483647, %v1798
        %v2837 = vand.u32 2147483647, %v1799
        %v2838 = vand.u32 2147483647, %v1800
        %v2839 = vand.u32 2147483647, %v1801
        %v2840 = vand.u32 2147483647, %v1802
        %v2841 = vand.u32 2147483647, %v1803
        %v2842 = vand.u32 2147483647, %v1804
        %v2843 = vand.u32 2147483647, %v1805
        %v2844 = vand.u32 2147483647, %v1806
        %v2845 = vand.u32 2147483647, %v1807
        %v2846 = vand.u32 2147483647, %v1808
        %v2847 = vand.u32 2147483647, %v1809
        %v2848 = vand.u32 2147483647, %v1810
        %v2849 = vand.u32 2147483647, %v1811
        %v2850 = vmul.f32 %v2818, 0.01
        %v2851 = vmul.f32 %v2819, 0.01
        %v2852 = vmul.f32 %v2820, 0.01
        %v2853 = vmul.f32 %v2821, 0.01
        %v2854 = vmul.f32 %v2822, 0.01
        %v2855 = vmul.f32 %v2823, 0.01
        %v2856 = vmul.f32 %v2824, 0.01
        %v2857 = vmul.f32 %v2825, 0.01
        %v2858 = vmul.f32 %v2826, 0.01
        %v2859 = vmul.f32 %v2827, 0.01
        %v2860 = vmul.f32 %v2828, 0.01
        %v2861 = vmul.f32 %v2829, 0.01
        %v2862 = vmul.f32 %v2830, 0.01
        %v2863 = vmul.f32 %v2831, 0.01
        %v2864 = vmul.f32 %v2832, 0.01
        %v2865 = vmul.f32 %v2833, 0.01
        %v2866 = vmul.f32 %v2834, 0.01
        %v2867 = vmul.f32 %v2835, 0.01
        %v2868 = vmul.f32 %v2836, 0.01
        %v2869 = vmul.f32 %v2837, 0.01
        %v2870 = vmul.f32 %v2838, 0.01
        %v2871 = vmul.f32 %v2839, 0.01
        %v2872 = vmul.f32 %v2840, 0.01
        %v2873 = vmul.f32 %v2841, 0.01
        %v2874 = vmul.f32 %v2842, 0.01
        %v2875 = vmul.f32 %v2843, 0.01
        %v2876 = vmul.f32 %v2844, 0.01
        %v2877 = vmul.f32 %v2845, 0.01
        %v2878 = vmul.f32 %v2846, 0.01
        %v2879 = vmul.f32 %v2847, 0.01
        %v2880 = vmul.f32 %v2848, 0.01
        %v2881 = vmul.f32 %v2849, 0.01
        %v2882 = vadd.f32 %v2786, %v2850
        %v2883 = vadd.f32 %v2787, %v2851
        %v2884 = vadd.f32 %v2788, %v2852
        %v2885 = vadd.f32 %v2789, %v2853
        %v2886 = vadd.f32 %v2790, %v2854
        %v2887 = vadd.f32 %v2791, %v2855
        %v2888 = vadd.f32 %v2792, %v2856
        %v2889 = vadd.f32 %v2793, %v2857
        %v2890 = vadd.f32 %v2794, %v2858
        %v2891 = vadd.f32 %v2795, %v2859
        %v2892 = vadd.f32 %v2796, %v2860
        %v2893 = vadd.f32 %v2797, %v2861
        %v2894 = vadd.f32 %v2798, %v2862
        %v2895 = vadd.f32 %v2799, %v2863
        %v2896 = vadd.f32 %v2800, %v2864
        %v2897 = vadd.f32 %v2801, %v2865
        %v2898 = vadd.f32 %v2802, %v2866
        %v2899 = vadd.f32 %v2803, %v2867
        %v2900 = vadd.f32 %v2804, %v2868
        %v2901 = vadd.f32 %v2805, %v2869
        %v2902 = vadd.f32 %v2806, %v2870
        %v2903 = vadd.f32 %v2807, %v2871
        %v2904 = vadd.f32 %v2808, %v2872
        %v2905 = vadd.f32 %v2809, %v2873
        %v2906 = vadd.f32 %v2810, %v2874
        %v2907 = vadd.f32 %v2811, %v2875
        %v2908 = vadd.f32 %v2812, %v2876
        %v2909 = vadd.f32 %v2813, %v2877
        %v2910 = vadd.f32 %v2814, %v2878
        %v2911 = vadd.f32 %v2815, %v2879
        %v2912 = vadd.f32 %v2816, %v2880
        %v2913 = vadd.f32 %v2817, %v2881
        %v2914 = vand.u32 2147483647, %v2233
        %v2915 = vand.u32 2147483647, %v2234
        %v2916 = vand.u32 2147483647, %v2235
        %v2917 = vand.u32 2147483647, %v2236
        %v2918 = vand.u32 2147483647, %v2237
        %v2919 = vand.u32 2147483647, %v2238
        %v2920 = vand.u32 2147483647, %v2239
        %v2921 = vand.u32 2147483647, %v2240
        %v2922 = vand.u32 2147483647, %v2241
        %v2923 = vand.u32 2147483647, %v2242
        %v2924 = vand.u32 2147483647, %v2243
        %v2925 = vand.u32 2147483647, %v2244
        %v2926 = vand.u32 2147483647, %v2245
        %v2927 = vand.u32 2147483647, %v2246
        %v2928 = vand.u32 2147483647, %v2247
        %v2929 = vand.u32 2147483647, %v2248
        %v2930 = vand.u32 2147483647, %v2249
        %v2931 = vmul.f32 %v2914, 0.01
        %v2932 = vmul.f32 %v2915, 0.01
        %v2933 = vmul.f32 %v2916, 0.01
        %v2934 = vmul.f32 %v2917, 0.01
        %v2935 = vmul.f32 %v2918, 0.01
        %v2936 = vmul.f32 %v2919, 0.01
        %v2937 = vmul.f32 %v2920, 0.01
        %v2938 = vmul.f32 %v2921, 0.01
        %v2939 = vmul.f32 %v2922, 0.01
        %v2940 = vmul.f32 %v2923, 0.01
        %v2941 = vmul.f32 %v2924, 0.01
        %v2942 = vmul.f32 %v2925, 0.01
        %v2943 = vmul.f32 %v2926, 0.01
        %v2944 = vmul.f32 %v2927, 0.01
        %v2945 = vmul.f32 %v2928, 0.01
        %v2946 = vmul.f32 %v2929, 0.01
        %v2947 = vmul.f32 %v2930, 0.01
        %v2965 = vrot.slane %v2931, 2
        %v2966 = vrot.slane %v2932, 2
        %v2967 = vsel %vm962, %v2965, %v2966
        %v2968 = vrot.slane %v2933, 2
        %v2969 = vsel %vm962, %v2966, %v2968
        %v2970 = vrot.slane %v2934, 2
        %v2971 = vsel %vm962, %v2968, %v2970
        %v2972 = vrot.slane %v2935, 2
        %v2973 = vsel %vm962, %v2970, %v2972
        %v2974 = vrot.slane %v2936, 2
        %v2975 = vsel %vm962, %v2972, %v2974
        %v2976 = vrot.slane %v2937, 2
        %v2977 = vsel %vm962, %v2974, %v2976
        %v2978 = vrot.slane %v2938, 2
        %v2979 = vsel %vm962, %v2976, %v2978
        %v2980 = vrot.slane %v2939, 2
        %v2981 = vsel %vm962, %v2978, %v2980
        %v2982 = vrot.slane %v2940, 2
        %v2983 = vsel %vm962, %v2980, %v2982
        %v2984 = vrot.slane %v2941, 2
        %v2985 = vsel %vm962, %v2982, %v2984
        %v2986 = vrot.slane %v2942, 2
        %v2987 = vsel %vm962, %v2984, %v2986
        %v2988 = vrot.slane %v2943, 2
        %v2989 = vsel %vm962, %v2986, %v2988
        %v2990 = vrot.slane %v2944, 2
        %v2991 = vsel %vm962, %v2988, %v2990
        %v2992 = vrot.slane %v2945, 2
        %v2993 = vsel %vm962, %v2990, %v2992
        %v2994 = vrot.slane %v2946, 2
        %v2995 = vsel %vm962, %v2992, %v2994
        %v2996 = vrot.slane %v2947, 2
        %v2997 = vsel %vm962, %v2994, %v2996
        %2998 = vrot.lane.b32.xlu0 %v2967, 2
        %v2999 = vpop.permute.xlu0 %2998
        %3000 = vrot.lane.b32.xlu0 %v2969, 2
        %v3001 = vpop.permute.xlu0 %3000
        %3002 = vrot.lane.b32.xlu0 %v2971, 2
        %v3003 = vpop.permute.xlu0 %3002
        %3004 = vrot.lane.b32.xlu0 %v2973, 2
        %v3005 = vpop.permute.xlu0 %3004
        %3006 = vrot.lane.b32.xlu0 %v2975, 2
        %v3007 = vpop.permute.xlu0 %3006
        %3008 = vrot.lane.b32.xlu0 %v2977, 2
        %v3009 = vpop.permute.xlu0 %3008
        %3010 = vrot.lane.b32.xlu0 %v2979, 2
        %v3011 = vpop.permute.xlu0 %3010
        %3012 = vrot.lane.b32.xlu0 %v2981, 2
        %v3013 = vpop.permute.xlu0 %3012
        %3014 = vrot.lane.b32.xlu0 %v2983, 2
        %v3015 = vpop.permute.xlu0 %3014
        %3016 = vrot.lane.b32.xlu0 %v2985, 2
        %v3017 = vpop.permute.xlu0 %3016
        %3018 = vrot.lane.b32.xlu0 %v2987, 2
        %v3019 = vpop.permute.xlu0 %3018
        %3020 = vrot.lane.b32.xlu0 %v2989, 2
        %v3021 = vpop.permute.xlu0 %3020
        %3022 = vrot.lane.b32.xlu0 %v2991, 2
        %v3023 = vpop.permute.xlu0 %3022
        %3024 = vrot.lane.b32.xlu0 %v2993, 2
        %v3025 = vpop.permute.xlu0 %3024
        %3026 = vrot.lane.b32.xlu0 %v2995, 2
        %v3027 = vpop.permute.xlu0 %3026
        %3028 = vrot.lane.b32.xlu0 %v2997, 2
        %v3029 = vpop.permute.xlu0 %3028
        %v3046 = vadd.f32 %v2882, %v2999
        %v3047 = vadd.f32 %v2883, %v2999
        %v3048 = vadd.f32 %v2884, %v3001
        %v3049 = vadd.f32 %v2885, %v3001
        %v3050 = vadd.f32 %v2886, %v3003
        %v3051 = vadd.f32 %v2887, %v3003
        %v3052 = vadd.f32 %v2888, %v3005
        %v3053 = vadd.f32 %v2889, %v3005
        %v3054 = vadd.f32 %v2890, %v3007
        %v3055 = vadd.f32 %v2891, %v3007
        %v3056 = vadd.f32 %v2892, %v3009
        %v3057 = vadd.f32 %v2893, %v3009
        %v3058 = vadd.f32 %v2894, %v3011
        %v3059 = vadd.f32 %v2895, %v3011
        %v3060 = vadd.f32 %v2896, %v3013
        %v3061 = vadd.f32 %v2897, %v3013
        %v3062 = vadd.f32 %v2898, %v3015
        %v3063 = vadd.f32 %v2899, %v3015
        %v3064 = vadd.f32 %v2900, %v3017
        %v3065 = vadd.f32 %v2901, %v3017
        %v3066 = vadd.f32 %v2902, %v3019
        %v3067 = vadd.f32 %v2903, %v3019
        %v3068 = vadd.f32 %v2904, %v3021
        %v3069 = vadd.f32 %v2905, %v3021
        %v3070 = vadd.f32 %v2906, %v3023
        %v3071 = vadd.f32 %v2907, %v3023
        %v3072 = vadd.f32 %v2908, %v3025
        %v3073 = vadd.f32 %v2909, %v3025
        %v3074 = vadd.f32 %v2910, %v3027
        %v3075 = vadd.f32 %v2911, %v3027
        %v3076 = vadd.f32 %v2912, %v3029
        %v3077 = vadd.f32 %v2913, %v3029
        %3094 = vrot.lane.b32.xlu0 %v713, 2
        %v3095 = vpop.permute.xlu0 %3094
        %3096 = vrot.lane.b32.xlu0 %v714, 2
        %v3097 = vpop.permute.xlu0 %3096
        %3098 = vrot.lane.b32.xlu0 %v715, 2
        %v3099 = vpop.permute.xlu0 %3098
        %3100 = vrot.lane.b32.xlu0 %v716, 2
        %v3101 = vpop.permute.xlu0 %3100
        %3102 = vrot.lane.b32.xlu0 %v717, 2
        %v3103 = vpop.permute.xlu0 %3102
        %3104 = vrot.lane.b32.xlu0 %v718, 2
        %v3105 = vpop.permute.xlu0 %3104
        %3106 = vrot.lane.b32.xlu0 %v719, 2
        %v3107 = vpop.permute.xlu0 %3106
        %3108 = vrot.lane.b32.xlu0 %v720, 2
        %v3109 = vpop.permute.xlu0 %3108
        %3110 = vrot.lane.b32.xlu0 %v721, 2
        %v3111 = vpop.permute.xlu0 %3110
        %3112 = vrot.lane.b32.xlu0 %v722, 2
        %v3113 = vpop.permute.xlu0 %3112
        %3114 = vrot.lane.b32.xlu0 %v723, 2
        %v3115 = vpop.permute.xlu0 %3114
        %3116 = vrot.lane.b32.xlu0 %v724, 2
        %v3117 = vpop.permute.xlu0 %3116
        %3118 = vrot.lane.b32.xlu0 %v725, 2
        %v3119 = vpop.permute.xlu0 %3118
        %3120 = vrot.lane.b32.xlu0 %v726, 2
        %v3121 = vpop.permute.xlu0 %3120
        %3122 = vrot.lane.b32.xlu0 %v727, 2
        %v3123 = vpop.permute.xlu0 %3122
        %3124 = vrot.lane.b32.xlu0 %v728, 2
        %v3125 = vpop.permute.xlu0 %3124
        %v3142 = vmul.f32 %v3046, %v3095
        %v3143 = vmul.f32 %v3047, %v3095
        %v3144 = vmul.f32 %v3048, %v3097
        %v3145 = vmul.f32 %v3049, %v3097
        %v3146 = vmul.f32 %v3050, %v3099
        %v3147 = vmul.f32 %v3051, %v3099
        %v3148 = vmul.f32 %v3052, %v3101
        %v3149 = vmul.f32 %v3053, %v3101
        %v3150 = vmul.f32 %v3054, %v3103
        %v3151 = vmul.f32 %v3055, %v3103
        %v3152 = vmul.f32 %v3056, %v3105
        %v3153 = vmul.f32 %v3057, %v3105
        %v3154 = vmul.f32 %v3058, %v3107
        %v3155 = vmul.f32 %v3059, %v3107
        %v3156 = vmul.f32 %v3060, %v3109
        %v3157 = vmul.f32 %v3061, %v3109
        %v3158 = vmul.f32 %v3062, %v3111
        %v3159 = vmul.f32 %v3063, %v3111
        %v3160 = vmul.f32 %v3064, %v3113
        %v3161 = vmul.f32 %v3065, %v3113
        %v3162 = vmul.f32 %v3066, %v3115
        %v3163 = vmul.f32 %v3067, %v3115
        %v3164 = vmul.f32 %v3068, %v3117
        %v3165 = vmul.f32 %v3069, %v3117
        %v3166 = vmul.f32 %v3070, %v3119
        %v3167 = vmul.f32 %v3071, %v3119
        %v3168 = vmul.f32 %v3072, %v3121
        %v3169 = vmul.f32 %v3073, %v3121
        %v3170 = vmul.f32 %v3074, %v3123
        %v3171 = vmul.f32 %v3075, %v3123
        %v3172 = vmul.f32 %v3076, %v3125
        %v3173 = vmul.f32 %v3077, %v3125
        %v3174 = vld [vmem:[%s215] sm:$0xff]
        %v3175 = vld [vmem:[%s215 + $0x8] sm:$0xff]
        %v3176 = vld [vmem:[%s215 + $0x10] sm:$0xff]
        %v3177 = vld [vmem:[%s215 + $0x18] sm:$0xff]
        %v3178 = vld [vmem:[%s215 + $0x20] sm:$0xff]
        %v3179 = vld [vmem:[%s215 + $0x28] sm:$0xff]
        %v3180 = vld [vmem:[%s215 + $0x30] sm:$0xff]
        %v3181 = vld [vmem:[%s215 + $0x38] sm:$0xff]
        %v3182 = vld [vmem:[%s215 + $0x40] sm:$0xff]
        %v3183 = vld [vmem:[%s215 + $0x48] sm:$0xff]
        %v3184 = vld [vmem:[%s215 + $0x50] sm:$0xff]
        %v3185 = vld [vmem:[%s215 + $0x58] sm:$0xff]
        %v3186 = vld [vmem:[%s215 + $0x60] sm:$0xff]
        %v3187 = vld [vmem:[%s215 + $0x68] sm:$0xff]
        %v3188 = vld [vmem:[%s215 + $0x70] sm:$0xff]
        %v3189 = vld [vmem:[%s215 + $0x78] sm:$0xff]
        %v3190 = vld [vmem:[%s225] sm:$0xff]
        %v3191 = vld [vmem:[%s225 + $0x8] sm:$0xff]
        %v3192 = vld [vmem:[%s225 + $0x10] sm:$0xff]
        %v3193 = vld [vmem:[%s225 + $0x18] sm:$0xff]
        %v3194 = vld [vmem:[%s225 + $0x20] sm:$0xff]
        %v3195 = vld [vmem:[%s225 + $0x28] sm:$0xff]
        %v3196 = vld [vmem:[%s225 + $0x30] sm:$0xff]
        %v3197 = vld [vmem:[%s225 + $0x38] sm:$0xff]
        %v3198 = vld [vmem:[%s225 + $0x40] sm:$0xff]
        %v3199 = vld [vmem:[%s225 + $0x48] sm:$0xff]
        %v3200 = vld [vmem:[%s225 + $0x50] sm:$0xff]
        %v3201 = vld [vmem:[%s225 + $0x58] sm:$0xff]
        %v3202 = vld [vmem:[%s225 + $0x60] sm:$0xff]
        %v3203 = vld [vmem:[%s225 + $0x68] sm:$0xff]
        %v3204 = vld [vmem:[%s225 + $0x70] sm:$0xff]
        %v3205 = vld [vmem:[%s225 + $0x78] sm:$0xff]
        %v3206 = vsub.f32 %v3174, %v3190
        %v3207 = vsub.f32 %v3175, %v3191
        %v3208 = vsub.f32 %v3176, %v3192
        %v3209 = vsub.f32 %v3177, %v3193
        %v3210 = vsub.f32 %v3178, %v3194
        %v3211 = vsub.f32 %v3179, %v3195
        %v3212 = vsub.f32 %v3180, %v3196
        %v3213 = vsub.f32 %v3181, %v3197
        %v3214 = vsub.f32 %v3182, %v3198
        %v3215 = vsub.f32 %v3183, %v3199
        %v3216 = vsub.f32 %v3184, %v3200
        %v3217 = vsub.f32 %v3185, %v3201
        %v3218 = vsub.f32 %v3186, %v3202
        %v3219 = vsub.f32 %v3187, %v3203
        %v3220 = vsub.f32 %v3188, %v3204
        %v3221 = vsub.f32 %v3189, %v3205
        %v3222 = vand.u32 2147483647, %v3206
        %v3223 = vand.u32 2147483647, %v3207
        %v3224 = vand.u32 2147483647, %v3208
        %v3225 = vand.u32 2147483647, %v3209
        %v3226 = vand.u32 2147483647, %v3210
        %v3227 = vand.u32 2147483647, %v3211
        %v3228 = vand.u32 2147483647, %v3212
        %v3229 = vand.u32 2147483647, %v3213
        %v3230 = vand.u32 2147483647, %v3214
        %v3231 = vand.u32 2147483647, %v3215
        %v3232 = vand.u32 2147483647, %v3216
        %v3233 = vand.u32 2147483647, %v3217
        %v3234 = vand.u32 2147483647, %v3218
        %v3235 = vand.u32 2147483647, %v3219
        %v3236 = vand.u32 2147483647, %v3220
        %v3237 = vand.u32 2147483647, %v3221
        %vm3238 = vcmp.eq.f32.partialorder %v713, 0.0
        %vm3239 = vcmp.eq.f32.partialorder %v714, 0.0
        %vm3240 = vcmp.eq.f32.partialorder %v715, 0.0
        %vm3241 = vcmp.eq.f32.partialorder %v716, 0.0
        %vm3242 = vcmp.eq.f32.partialorder %v717, 0.0
        %vm3243 = vcmp.eq.f32.partialorder %v718, 0.0
        %vm3244 = vcmp.eq.f32.partialorder %v719, 0.0
        %vm3245 = vcmp.eq.f32.partialorder %v720, 0.0
        %vm3246 = vcmp.eq.f32.partialorder %v721, 0.0
        %vm3247 = vcmp.eq.f32.partialorder %v722, 0.0
        %vm3248 = vcmp.eq.f32.partialorder %v723, 0.0
        %vm3249 = vcmp.eq.f32.partialorder %v724, 0.0
        %vm3250 = vcmp.eq.f32.partialorder %v725, 0.0
        %vm3251 = vcmp.eq.f32.partialorder %v726, 0.0
        %vm3252 = vcmp.eq.f32.partialorder %v727, 0.0
        %vm3253 = vcmp.eq.f32.partialorder %v728, 0.0
        %v3254 = vsel %vm3238, 1, 0
        %v3255 = vsel %vm3239, 1, 0
        %v3256 = vsel %vm3240, 1, 0
        %v3257 = vsel %vm3241, 1, 0
        %v3258 = vsel %vm3242, 1, 0
        %v3259 = vsel %vm3243, 1, 0
        %v3260 = vsel %vm3244, 1, 0
        %v3261 = vsel %vm3245, 1, 0
        %v3262 = vsel %vm3246, 1, 0
        %v3263 = vsel %vm3247, 1, 0
        %v3264 = vsel %vm3248, 1, 0
        %v3265 = vsel %vm3249, 1, 0
        %v3266 = vsel %vm3250, 1, 0
        %v3267 = vsel %vm3251, 1, 0
        %v3268 = vsel %vm3252, 1, 0
        %v3269 = vsel %vm3253, 1, 0
        %v3270 = vcvt.s32.f32 %v3254
        %v3271 = vcvt.s32.f32 %v3255
        %v3272 = vcvt.s32.f32 %v3256
        %v3273 = vcvt.s32.f32 %v3257
        %v3274 = vcvt.s32.f32 %v3258
        %v3275 = vcvt.s32.f32 %v3259
        %v3276 = vcvt.s32.f32 %v3260
        %v3277 = vcvt.s32.f32 %v3261
        %v3278 = vcvt.s32.f32 %v3262
        %v3279 = vcvt.s32.f32 %v3263
        %v3280 = vcvt.s32.f32 %v3264
        %v3281 = vcvt.s32.f32 %v3265
        %v3282 = vcvt.s32.f32 %v3266
        %v3283 = vcvt.s32.f32 %v3267
        %v3284 = vcvt.s32.f32 %v3268
        %v3285 = vcvt.s32.f32 %v3269
        %3318 = vrot.lane.b32.xlu0 %v3142, 126
        %v3319 = vpop.permute.xlu0 %3318
        %3320 = vrot.lane.b32.xlu0 %v3143, 126
        %v3321 = vpop.permute.xlu0 %3320
        %3322 = vrot.lane.b32.xlu0 %v3144, 126
        %v3323 = vpop.permute.xlu0 %3322
        %3324 = vrot.lane.b32.xlu0 %v3145, 126
        %v3325 = vpop.permute.xlu0 %3324
        %3326 = vrot.lane.b32.xlu0 %v3146, 126
        %v3327 = vpop.permute.xlu0 %3326
        %3328 = vrot.lane.b32.xlu0 %v3147, 126
        %v3329 = vpop.permute.xlu0 %3328
        %3330 = vrot.lane.b32.xlu0 %v3148, 126
        %v3331 = vpop.permute.xlu0 %3330
        %3332 = vrot.lane.b32.xlu0 %v3149, 126
        %v3333 = vpop.permute.xlu0 %3332
        %3334 = vrot.lane.b32.xlu0 %v3150, 126
        %v3335 = vpop.permute.xlu0 %3334
        %3336 = vrot.lane.b32.xlu0 %v3151, 126
        %v3337 = vpop.permute.xlu0 %3336
        %3338 = vrot.lane.b32.xlu0 %v3152, 126
        %v3339 = vpop.permute.xlu0 %3338
        %3340 = vrot.lane.b32.xlu0 %v3153, 126
        %v3341 = vpop.permute.xlu0 %3340
        %3342 = vrot.lane.b32.xlu0 %v3154, 126
        %v3343 = vpop.permute.xlu0 %3342
        %3344 = vrot.lane.b32.xlu0 %v3155, 126
        %v3345 = vpop.permute.xlu0 %3344
        %3346 = vrot.lane.b32.xlu0 %v3156, 126
        %v3347 = vpop.permute.xlu0 %3346
        %3348 = vrot.lane.b32.xlu0 %v3157, 126
        %v3349 = vpop.permute.xlu0 %3348
        %3350 = vrot.lane.b32.xlu0 %v3158, 126
        %v3351 = vpop.permute.xlu0 %3350
        %3352 = vrot.lane.b32.xlu0 %v3159, 126
        %v3353 = vpop.permute.xlu0 %3352
        %3354 = vrot.lane.b32.xlu0 %v3160, 126
        %v3355 = vpop.permute.xlu0 %3354
        %3356 = vrot.lane.b32.xlu0 %v3161, 126
        %v3357 = vpop.permute.xlu0 %3356
        %3358 = vrot.lane.b32.xlu0 %v3162, 126
        %v3359 = vpop.permute.xlu0 %3358
        %3360 = vrot.lane.b32.xlu0 %v3163, 126
        %v3361 = vpop.permute.xlu0 %3360
        %3362 = vrot.lane.b32.xlu0 %v3164, 126
        %v3363 = vpop.permute.xlu0 %3362
        %3364 = vrot.lane.b32.xlu0 %v3165, 126
        %v3365 = vpop.permute.xlu0 %3364
        %3366 = vrot.lane.b32.xlu0 %v3166, 126
        %v3367 = vpop.permute.xlu0 %3366
        %3368 = vrot.lane.b32.xlu0 %v3167, 126
        %v3369 = vpop.permute.xlu0 %3368
        %3370 = vrot.lane.b32.xlu0 %v3168, 126
        %v3371 = vpop.permute.xlu0 %3370
        %3372 = vrot.lane.b32.xlu0 %v3169, 126
        %v3373 = vpop.permute.xlu0 %3372
        %3374 = vrot.lane.b32.xlu0 %v3170, 126
        %v3375 = vpop.permute.xlu0 %3374
        %3376 = vrot.lane.b32.xlu0 %v3171, 126
        %v3377 = vpop.permute.xlu0 %3376
        %3378 = vrot.lane.b32.xlu0 %v3172, 126
        %v3379 = vpop.permute.xlu0 %3378
        %3380 = vrot.lane.b32.xlu0 %v3173, 126
        %v3381 = vpop.permute.xlu0 %3380
        %v3382 = vsel %vm2198, %v3319, %v3321
        %v3383 = vsel %vm2198, %v3323, %v3325
        %v3384 = vsel %vm2198, %v3327, %v3329
        %v3385 = vsel %vm2198, %v3331, %v3333
        %v3386 = vsel %vm2198, %v3335, %v3337
        %v3387 = vsel %vm2198, %v3339, %v3341
        %v3388 = vsel %vm2198, %v3343, %v3345
        %v3389 = vsel %vm2198, %v3347, %v3349
        %v3390 = vsel %vm2198, %v3351, %v3353
        %v3391 = vsel %vm2198, %v3355, %v3357
        %v3392 = vsel %vm2198, %v3359, %v3361
        %v3393 = vsel %vm2198, %v3363, %v3365
        %v3394 = vsel %vm2198, %v3367, %v3369
        %v3395 = vsel %vm2198, %v3371, %v3373
        %v3396 = vsel %vm2198, %v3375, %v3377
        %v3397 = vsel %vm2198, %v3379, %v3381
        %v3414 = vadd.f32 %v3382, %v3383
        %v3415 = vadd.f32 %v3414, %v3384
        %v3416 = vadd.f32 %v3415, %v3385
        %v3417 = vadd.f32 %v3416, %v3386
        %v3418 = vadd.f32 %v3417, %v3387
        %v3419 = vadd.f32 %v3418, %v3388
        %v3420 = vadd.f32 %v3419, %v3389
        %v3421 = vadd.f32 %v3420, %v3390
        %v3422 = vadd.f32 %v3421, %v3391
        %v3423 = vadd.f32 %v3422, %v3392
        %v3424 = vadd.f32 %v3423, %v3393
        %v3425 = vadd.f32 %v3424, %v3394
        %v3426 = vadd.f32 %v3425, %v3395
        %v3427 = vadd.f32 %v3426, %v3396
        %v3428 = vadd.f32 %v3427, %v3397
        %3429 = vadd.xlane.f32.xlu0 %v3428
        %v3430 = vpop.xlane.xlu0 %3429
        %v3431 = vrot.slane %v3430, 4
        %v3432 = vadd.f32 %v3430, %v3431
        %v3433 = vrot.slane %v3432, 2
        %v3434 = vadd.f32 %v3432, %v3433
        %v3435 = vrot.slane %v3434, 1
        %v3436 = vadd.f32 %v3434, %v3435
        %s3437 = vtos %v3436
        %v3438 = vadd.f32 %v713, %v714
        %v3439 = vadd.f32 %v3438, %v715
        %v3440 = vadd.f32 %v3439, %v716
        %v3441 = vadd.f32 %v3440, %v717
        %v3442 = vadd.f32 %v3441, %v718
        %v3443 = vadd.f32 %v3442, %v719
        %v3444 = vadd.f32 %v3443, %v720
        %v3445 = vadd.f32 %v3444, %v721
        %v3446 = vadd.f32 %v3445, %v722
        %v3447 = vadd.f32 %v3446, %v723
        %v3448 = vadd.f32 %v3447, %v724
        %v3449 = vadd.f32 %v3448, %v725
        %v3450 = vadd.f32 %v3449, %v726
        %v3451 = vadd.f32 %v3450, %v727
        %v3452 = vadd.f32 %v3451, %v728
        %3453 = vadd.xlane.f32.xlu0 %v3452
        %v3454 = vpop.xlane.xlu0 %3453
        %v3455 = vrot.slane %v3454, 4
        %v3456 = vadd.f32 %v3454, %v3455
        %v3457 = vrot.slane %v3456, 2
        %v3458 = vadd.f32 %v3456, %v3457
        %v3459 = vrot.slane %v3458, 1
        %v3460 = vadd.f32 %v3458, %v3459
        %s3461 = vtos %v3460
        %v3462 = vmul.f32 %v3222, %v713
        %v3463 = vmul.f32 %v3223, %v714
        %v3464 = vmul.f32 %v3224, %v715
        %v3465 = vmul.f32 %v3225, %v716
        %v3466 = vmul.f32 %v3226, %v717
        %v3467 = vmul.f32 %v3227, %v718
        %v3468 = vmul.f32 %v3228, %v719
        %v3469 = vmul.f32 %v3229, %v720
        %v3470 = vmul.f32 %v3230, %v721
        %v3471 = vmul.f32 %v3231, %v722
        %v3472 = vmul.f32 %v3232, %v723
        %v3473 = vmul.f32 %v3233, %v724
        %v3474 = vmul.f32 %v3234, %v725
        %v3475 = vmul.f32 %v3235, %v726
        %v3476 = vmul.f32 %v3236, %v727
        %v3477 = vmul.f32 %v3237, %v728
        %v3478 = vadd.f32 %v3462, %v3463
        %v3479 = vadd.f32 %v3478, %v3464
        %v3480 = vadd.f32 %v3479, %v3465
        %v3481 = vadd.f32 %v3480, %v3466
        %v3482 = vadd.f32 %v3481, %v3467
        %v3483 = vadd.f32 %v3482, %v3468
        %v3484 = vadd.f32 %v3483, %v3469
        %v3485 = vadd.f32 %v3484, %v3470
        %v3486 = vadd.f32 %v3485, %v3471
        %v3487 = vadd.f32 %v3486, %v3472
        %v3488 = vadd.f32 %v3487, %v3473
        %v3489 = vadd.f32 %v3488, %v3474
        %v3490 = vadd.f32 %v3489, %v3475
        %v3491 = vadd.f32 %v3490, %v3476
        %v3492 = vadd.f32 %v3491, %v3477
        %3493 = vadd.xlane.f32.xlu0 %v3492
        %v3494 = vpop.xlane.xlu0 %3493
        %v3495 = vrot.slane %v3494, 4
        %v3496 = vadd.f32 %v3494, %v3495
        %v3497 = vrot.slane %v3496, 2
        %v3498 = vadd.f32 %v3496, %v3497
        %v3499 = vrot.slane %v3498, 1
        %v3500 = vadd.f32 %v3498, %v3499
        %s3501 = vtos %v3500
        %v3502 = vmul.f32 %v3222, %v3270
        %v3503 = vmul.f32 %v3223, %v3271
        %v3504 = vmul.f32 %v3224, %v3272
        %v3505 = vmul.f32 %v3225, %v3273
        %v3506 = vmul.f32 %v3226, %v3274
        %v3507 = vmul.f32 %v3227, %v3275
        %v3508 = vmul.f32 %v3228, %v3276
        %v3509 = vmul.f32 %v3229, %v3277
        %v3510 = vmul.f32 %v3230, %v3278
        %v3511 = vmul.f32 %v3231, %v3279
        %v3512 = vmul.f32 %v3232, %v3280
        %v3513 = vmul.f32 %v3233, %v3281
        %v3514 = vmul.f32 %v3234, %v3282
        %v3515 = vmul.f32 %v3235, %v3283
        %v3516 = vmul.f32 %v3236, %v3284
        %v3517 = vmul.f32 %v3237, %v3285
        %v3518 = vadd.f32 %v3502, %v3503
        %v3519 = vadd.f32 %v3518, %v3504
        %v3520 = vadd.f32 %v3519, %v3505
        %v3521 = vadd.f32 %v3520, %v3506
        %v3522 = vadd.f32 %v3521, %v3507
        %v3523 = vadd.f32 %v3522, %v3508
        %v3524 = vadd.f32 %v3523, %v3509
        %v3525 = vadd.f32 %v3524, %v3510
        %v3526 = vadd.f32 %v3525, %v3511
        %v3527 = vadd.f32 %v3526, %v3512
        %v3528 = vadd.f32 %v3527, %v3513
        %v3529 = vadd.f32 %v3528, %v3514
        %v3530 = vadd.f32 %v3529, %v3515
        %v3531 = vadd.f32 %v3530, %v3516
        %v3532 = vadd.f32 %v3531, %v3517
        %3533 = vadd.xlane.f32.xlu0 %v3532
        %v3534 = vpop.xlane.xlu0 %3533
        %v3535 = vrot.slane %v3534, 4
        %v3536 = vadd.f32 %v3534, %v3535
        %v3537 = vrot.slane %v3536, 2
        %v3538 = vadd.f32 %v3536, %v3537
        %v3539 = vrot.slane %v3538, 1
        %v3540 = vadd.f32 %v3538, %v3539
        %s3541 = vtos %v3540
        %v3542 = vadd.f32 %v3270, %v3271
        %v3543 = vadd.f32 %v3542, %v3272
        %v3544 = vadd.f32 %v3543, %v3273
        %v3545 = vadd.f32 %v3544, %v3274
        %v3546 = vadd.f32 %v3545, %v3275
        %v3547 = vadd.f32 %v3546, %v3276
        %v3548 = vadd.f32 %v3547, %v3277
        %v3549 = vadd.f32 %v3548, %v3278
        %v3550 = vadd.f32 %v3549, %v3279
        %v3551 = vadd.f32 %v3550, %v3280
        %v3552 = vadd.f32 %v3551, %v3281
        %v3553 = vadd.f32 %v3552, %v3282
        %v3554 = vadd.f32 %v3553, %v3283
        %v3555 = vadd.f32 %v3554, %v3284
        %v3556 = vadd.f32 %v3555, %v3285
        %3557 = vadd.xlane.f32.xlu0 %v3556
        %v3558 = vpop.xlane.xlu0 %3557
        %v3559 = vrot.slane %v3558, 4
        %v3560 = vadd.f32 %v3558, %v3559
        %v3561 = vrot.slane %v3560, 2
        %v3562 = vadd.f32 %v3560, %v3561
        %v3563 = vrot.slane %v3562, 1
        %v3564 = vadd.f32 %v3562, %v3563
        %s3565 = vtos %v3564
        %v3566 = vstv %s3437
        %v3567 = vstv %s3461
        %v3568 = vstv %s3501
        %v3569 = vstv %s3541
        %v3570 = vstv %s3565
        %v3571 = vsel %vm374, %v3566, %v3567
        %v3572 = vsel %vm1093, %v3571, %v3568
        %vm3573 = vcmask 1042432
        %v3574 = vsel %vm3573, %v3572, %v3569
        %vm3575 = vcmask 1043456
        %v3576 = vsel %vm3575, %v3574, %v3570
        %3577 = vst [vmem:[%s271] sm:$0x1f] %v3576
        %p3578 = scmp.lt.s32.totalorder %s20, 1
        %s3579 = scalar_select %p3578, %s20, 1
        %s3580 = smul.addr %s3579, 8
        %s3581 = scalar_lea.vmem %s3, %s3580
        // Predicated region
        $region45: #{_lambda_.5} parent=31 // pred_check
          %p3582 = pneg %p116
        $region46: #{_lambda_.5} parent=31 // pred_check_branch
          %3584 = sbr.rel (%p3582) target = $region48
        $region47: #{_lambda_.5} parent=31 // pred_region
          _
        $region48: #{_lambda_.5} parent=31 // pred_fallthru
          _
      $region32: #{_lambda_.5} parent=5 // pred_fallthru
        _
      %p3585 = scmp.le.s32.totalorder 2, %s15
      // Predicated region
      $region49: #{_lambda_.5} parent=5 // pred_check
        %p3586 = pneg %p3585
      $region50: #{_lambda_.5} parent=5 // pred_check_branch
        %3588 = sbr.rel (%p3586) target = $region52
      $region51: #{_lambda_.5} parent=5 // pred_region
        %s3589 = ssub.s32 %s15, 2
        // Predicated region
        $region53: #{_lambda_.5} parent=51 // pred_check
          %p3590 = pneg %p122
        $region54: #{_lambda_.5} parent=51 // pred_check_branch
          %3592 = sbr.rel (%p3590) target = $region56
        $region55: #{_lambda_.5} parent=51 // pred_region
          %p3593 = scmp.lt.s32.totalorder %s21, 1
          %s3594 = scalar_select %p3593, %s21, 1
          %s3595 = smul.addr %s3594, 8
          %s3596 = scalar_lea.vmem %s3, %s3595
        $region56: #{_lambda_.5} parent=51 // pred_fallthru
          _
      $region52: #{_lambda_.5} parent=5 // pred_fallthru
        _
    $region6: #{_lambda_.5} parent=1 // loop_footer
      %s19 = sadd.s32 1, %s15
    $region7: #{_lambda_.5} parent=1 // loop_footer_branch
      %14 = sbr.rel target = $region3
    $region8: #{_lambda_.5} parent=1 // loop_exit
      _
    %3597 = vsyncpa [#allocation5], 1
    %s3598 = scalar_lea.sflag [#allocation5], 1
    %3599 = vsyncpa %s3598, 1
    %3600 = vsyncpa [#allocation7], 1
    %s3601 = scalar_lea.sflag [#allocation7], 1
    %3602 = vsyncpa %s3601, 1

</llo_original>
